<compile_context>
chip_gen: v7x
topology: tpu7x:2x2x1
jax: 0.10.0
libtpu: 0.0.40
codegen_flags: <defaults>
</compile_context>

<pallas_src>
import functools
import math

import jax
import jax.numpy as jnp
from jax.experimental import pallas as pl
from jax.experimental.pallas import tpu as pltpu


RESNET_FEATURES = 128     # stand-in for 2048
RESNET_C0 = 128
RESNET_C1 = 128
SWIN_HIDDEN = 512         # stand-in for 1024; head_dim = 128 (lane-aligned)
NUM_HEADS = 4
MLP_RATIO = 2
NUM_CLASSES = 4
CLS_PAD = 128             # classifier output padded to 128 lanes
PATCH = 4
LN_EPS = 1e-5


def _gelu(x):
    # TODO(synk): tanh-approx GELU; PyTorch nn.GELU defaults to the exact erf form.
    return 0.5 * x * (1.0 + jnp.tanh(0.7978845608028654 *
                                     (x + 0.044715 * x * x * x)))


def _layernorm(x, g, b, eps):
    mu = jnp.mean(x, axis=-1, keepdims=True)
    xc = x - mu
    var = jnp.mean(xc * xc, axis=-1, keepdims=True)
    return xc * jax.lax.rsqrt(var + eps) * g + b


def _row(v):
    return v.reshape(1, -1)


# ----------------------------------------------------------------------------
# Pallas kernels
# ----------------------------------------------------------------------------

def resnet_branch_kernel(a_ref, w0_ref, b0_ref, w1_ref, b1_ref, w2_ref, b2_ref,
                         o_ref):
    """One image per program: stem conv (im2col matmul) + two 1x1 convs with
    ReLUs, then global mean pool.  Intermediates never leave VMEM; only the
    pooled (1, C) feature row is written."""
    a = a_ref[...]                                               # (HW, Kp) bf16
    h = jnp.maximum(jnp.dot(a, w0_ref[...],
                            preferred_element_type=jnp.float32) + b0_ref[...], 0.0)
    h = jnp.maximum(jnp.dot(h.astype(jnp.bfloat16), w1_ref[...],
                            preferred_element_type=jnp.float32) + b1_ref[...], 0.0)
    h = jnp.maximum(jnp.dot(h.astype(jnp.bfloat16), w2_ref[...],
                            preferred_element_type=jnp.float32) + b2_ref[...], 0.0)
    pooled = jnp.mean(h, axis=0, keepdims=True)                  # (1, C) f32
    o_ref[...] = pooled.reshape(o_ref.shape).astype(o_ref.dtype)


def swin_branch_kernel(p_ref, pe_w_ref, pe_b_ref,
                       ln1_g_ref, ln1_b_ref, wqkv_ref, bqkv_ref, wo_ref, bo_ref,
                       ln2_g_ref, ln2_b_ref, w1_ref, b1_ref, w2_ref, b2_ref,
                       o_ref, *, H, Dh, eps, scale):
    """One image (window) per program: patch-embed matmul, LN + fused-QKV +
    head-batched MHSA + proj + residual, LN + MLP + residual, global mean
    pool.  Heads are batched into a single leading-batch einsum (Dh = 128 so
    every head slice is a lane-tile-aligned view)."""
    D = H * Dh
    patches = p_ref[...]                                         # (T, Kp) bf16
    tok = jnp.dot(patches, pe_w_ref[...],
                  preferred_element_type=jnp.float32) + pe_b_ref[...]   # (T, D) f32

    # ---- attention block ----
    xn = _layernorm(tok, ln1_g_ref[...], ln1_b_ref[...], eps).astype(jnp.bfloat16)
    qkv = jnp.dot(xn, wqkv_ref[...],
                  preferred_element_type=jnp.float32) + bqkv_ref[...]   # (T, 3D)
    qkv = qkv.astype(jnp.bfloat16)
    # head-batched layout (H, T, Dh) from lane-tile-aligned 128-wide slices
    q3 = jnp.stack([qkv[:, h * Dh:(h + 1) * Dh] for h in range(H)], axis=0)
    k3 = jnp.stack([qkv[:, D + h * Dh:D + (h + 1) * Dh] for h in range(H)], axis=0)
    v3 = jnp.stack([qkv[:, 2 * D + h * Dh:2 * D + (h + 1) * Dh] for h in range(H)],
                   axis=0)
    s = jnp.einsum('htd,hsd->hts', q3, k3,
                   preferred_element_type=jnp.float32) * scale          # (H, T, T)
    s = s - jnp.max(s, axis=-1, keepdims=True)
    p = jnp.exp(s)
    p = p / jnp.sum(p, axis=-1, keepdims=True)                          # exact softmax
    ctx3 = jnp.einsum('hts,hsd->htd', p.astype(jnp.bfloat16), v3,
                      preferred_element_type=jnp.float32)               # (H, T, Dh)
    ctx = jnp.concatenate([ctx3[h] for h in range(H)], axis=-1)         # (T, D)
    proj = jnp.dot(ctx.astype(jnp.bfloat16), wo_ref[...],
                   preferred_element_type=jnp.float32) + bo_ref[...]
    tok = tok + proj                                                    # residual

    # ---- MLP block ----
    xn = _layernorm(tok, ln2_g_ref[...], ln2_b_ref[...], eps).astype(jnp.bfloat16)
    h1 = jnp.dot(xn, w1_ref[...],
                 preferred_element_type=jnp.float32) + b1_ref[...]
    h1 = _gelu(h1).astype(jnp.bfloat16)
    h2 = jnp.dot(h1, w2_ref[...],
                 preferred_element_type=jnp.float32) + b2_ref[...]
    tok = tok + h2                                                      # residual

    pooled = jnp.mean(tok, axis=0, keepdims=True)                       # (1, D)
    o_ref[...] = pooled.reshape(o_ref.shape).astype(o_ref.dtype)


def fusion_head_kernel(r_ref, s_ref, wr_ref, ws_ref, b_ref, o_ref):
    """Classifier on the concatenated pooled features; the concat is replaced
    by a split dot (r @ wr + s @ ws) so there is no lane concat."""
    r = r_ref[...].astype(jnp.bfloat16)
    s = s_ref[...].astype(jnp.bfloat16)
    out = (jnp.dot(r, wr_ref[...], preferred_element_type=jnp.float32)
           + jnp.dot(s, ws_ref[...], preferred_element_type=jnp.float32)
           + b_ref[...])
    o_ref[...] = out.astype(o_ref.dtype)


# ----------------------------------------------------------------------------
# Pallas wrappers
# ----------------------------------------------------------------------------

_CPARAMS = pltpu.CompilerParams(dimension_semantics=("parallel",),
                                vmem_limit_bytes=32 * 1024 * 1024)


def pallas_resnet_branch(patches, w0, b0, w1, b1, w2, b2, *, B, HW):
    Kp = patches.shape[1]
    C0, C1, C2 = w0.shape[1], w1.shape[1], w2.shape[1]
    out = pl.pallas_call(
        resnet_branch_kernel,
        out_shape=jax.ShapeDtypeStruct((B, 1, C2), jnp.float32),
        grid_spec=pltpu.PrefetchScalarGridSpec(
            num_scalar_prefetch=0,
            grid=(B,),
            in_specs=[
                pl.BlockSpec((HW, Kp), lambda b: (b, 0)),
                pl.BlockSpec((Kp, C0), lambda b: (0, 0)),
                pl.BlockSpec((1, C0), lambda b: (0, 0)),
                pl.BlockSpec((C0, C1), lambda b: (0, 0)),
                pl.BlockSpec((1, C1), lambda b: (0, 0)),
                pl.BlockSpec((C1, C2), lambda b: (0, 0)),
                pl.BlockSpec((1, C2), lambda b: (0, 0)),
            ],
            out_specs=pl.BlockSpec((1, 1, C2), lambda b: (b, 0, 0)),
        ),
        compiler_params=_CPARAMS,
    )(patches, w0, _row(b0), w1, _row(b1), w2, _row(b2))
    return out.reshape(B, C2)


def pallas_swin_branch(patches, p, *, B, T, H, Dh):
    D = H * Dh
    Kp = patches.shape[1]
    Dm = p["mlp1_w"].shape[1]
    kernel = functools.partial(swin_branch_kernel, H=H, Dh=Dh, eps=LN_EPS,
                               scale=1.0 / math.sqrt(Dh))
    out = pl.pallas_call(
        kernel,
        out_shape=jax.ShapeDtypeStruct((B, 1, D), jnp.float32),
        grid_spec=pltpu.PrefetchScalarGridSpec(
            num_scalar_prefetch=0,
            grid=(B,),
            in_specs=[
                pl.BlockSpec((T, Kp), lambda b: (b, 0)),         # patches
                pl.BlockSpec((Kp, D), lambda b: (0, 0)),         # pe_w
                pl.BlockSpec((1, D), lambda b: (0, 0)),          # pe_b
                pl.BlockSpec((1, D), lambda b: (0, 0)),          # ln1_g
                pl.BlockSpec((1, D), lambda b: (0, 0)),          # ln1_b
                pl.BlockSpec((D, 3 * D), lambda b: (0, 0)),      # wqkv
                pl.BlockSpec((1, 3 * D), lambda b: (0, 0)),      # bqkv
                pl.BlockSpec((D, D), lambda b: (0, 0)),          # wo
                pl.BlockSpec((1, D), lambda b: (0, 0)),          # bo
                pl.BlockSpec((1, D), lambda b: (0, 0)),          # ln2_g
                pl.BlockSpec((1, D), lambda b: (0, 0)),          # ln2_b
                pl.BlockSpec((D, Dm), lambda b: (0, 0)),         # mlp1_w
                pl.BlockSpec((1, Dm), lambda b: (0, 0)),         # mlp1_b
                pl.BlockSpec((Dm, D), lambda b: (0, 0)),         # mlp2_w
                pl.BlockSpec((1, D), lambda b: (0, 0)),          # mlp2_b
            ],
            out_specs=pl.BlockSpec((1, 1, D), lambda b: (b, 0, 0)),
        ),
        compiler_params=_CPARAMS,
    )(patches, p["pe_w"], _row(p["pe_b"]),
      _row(p["ln1_g"]), _row(p["ln1_b"]),
      p["wqkv"], _row(p["bqkv"]), p["wo"], _row(p["bo"]),
      _row(p["ln2_g"]), _row(p["ln2_b"]),
      p["mlp1_w"], _row(p["mlp1_b"]), p["mlp2_w"], _row(p["mlp2_b"]))
    return out.reshape(B, D)


def pallas_fusion_head(rpool, spool, wr, ws, b):
    B = rpool.shape[0]
    Np = wr.shape[1]
    return pl.pallas_call(
        fusion_head_kernel,
        out_shape=jax.ShapeDtypeStruct((B, Np), jnp.float32),
    )(rpool, spool, wr, ws, _row(b))


# ----------------------------------------------------------------------------
# Glue: im2col + lane padding (pure XLA indexing; TODO noted above re scale)
# ----------------------------------------------------------------------------

def im2col_nhwc(x, k, stride, pad):
    """x: (B, H, W, C) -> (B*Ho*Wo, k*k*C) patch matrix (batch-major rows)."""
    B, H, W, C = x.shape
    xp = jnp.pad(x, ((0, 0), (pad, pad), (pad, pad), (0, 0)))
    Ho = (H + 2 * pad - k) // stride + 1
    Wo = (W + 2 * pad - k) // stride + 1
    cols = []
    for i in range(k):
        for j in range(k):
            cols.append(xp[:, i:i + Ho * stride:stride, j:j + Wo * stride:stride, :])
    patches = jnp.concatenate(cols, axis=-1)              # (B, Ho, Wo, k*k*C)
    return patches.reshape(B * Ho * Wo, k * k * C), (B, Ho, Wo)


def _pad_last_to(a, target):
    k = a.shape[-1]
    if k == target:
        return a
    return jnp.pad(a, ((0, 0), (0, target - k)))


# ----------------------------------------------------------------------------
# Parameters
# ----------------------------------------------------------------------------

def init_params(key):
    def dense(k, fan_in, fan_out, pad_in=None, pad_out=None):
        kw, kb = jax.random.split(k)
        w = jax.random.normal(kw, (fan_in, fan_out), jnp.float32) / math.sqrt(fan_in)
        b = jax.random.normal(kb, (fan_out,), jnp.float32) * 0.01
        if pad_in is not None and pad_in > fan_in:
            w = jnp.pad(w, ((0, pad_in - fan_in), (0, 0)))
        if pad_out is not None and pad_out > fan_out:
            w = jnp.pad(w, ((0, 0), (0, pad_out - fan_out)))
            b = jnp.pad(b, (0, pad_out - fan_out))
        return w.astype(jnp.bfloat16), b                  # bf16 weights, f32 bias

    keys = jax.random.split(key, 16)
    D = SWIN_HIDDEN
    p = {}
    # ResNet-like branch (K padded to 128 lanes, matching the padded patches)
    p["stem_w"], p["stem_b"] = dense(keys[0], 3 * 3 * 3, RESNET_C0, pad_in=128)
    p["r1_w"], p["r1_b"] = dense(keys[1], RESNET_C0, RESNET_C1)
    p["r2_w"], p["r2_b"] = dense(keys[2], RESNET_C1, RESNET_FEATURES)
    # Swin-like branch
    p["pe_w"], p["pe_b"] = dense(keys[3], PATCH * PATCH * 3, D, pad_in=128)
    p["ln1_g"] = jnp.ones((D,), jnp.float32)
    p["ln1_b"] = jnp.zeros((D,), jnp.float32)
    wq, bq = dense(keys[4], D, D)
    wk, bk = dense(keys[5], D, D)
    wv, bv = dense(keys[6], D, D)
    # fused QKV concatenated ONCE here (not per forward call)
    p["wqkv"] = jnp.concatenate([wq, wk, wv], axis=1)      # (D, 3D) bf16
    p["bqkv"] = jnp.concatenate([bq, bk, bv], axis=0)      # (3D,)  f32
    p["wo"], p["bo"] = dense(keys[7], D, D)
    p["ln2_g"] = jnp.ones((D,), jnp.float32)
    p["ln2_b"] = jnp.zeros((D,), jnp.float32)
    p["mlp1_w"], p["mlp1_b"] = dense(keys[8], D, MLP_RATIO * D)
    p["mlp2_w"], p["mlp2_b"] = dense(keys[9], MLP_RATIO * D, D)
    # Fusion classifier: split into (resnet part, swin part), output padded to 128
    p["cls_wr"], _ = dense(keys[10], RESNET_FEATURES, NUM_CLASSES, pad_out=CLS_PAD)
    p["cls_ws"], p["cls_b"] = dense(keys[11], D, NUM_CLASSES, pad_out=CLS_PAD)
    return p


# ----------------------------------------------------------------------------
# Model: ResNet branch || Swin branch -> pooled features -> classifier
# ----------------------------------------------------------------------------

@jax.jit
def forward(params, x_nchw):
    x_nhwc = jnp.transpose(x_nchw, (0, 2, 3, 1))           # NCHW -> NHWC
    B = x_nhwc.shape[0]

    # ResNet branch: im2col (3x3, s=1, p=1) -> fused conv stack + mean pool
    r_patches, (_, Ho, Wo) = im2col_nhwc(x_nhwc, k=3, stride=1, pad=1)
    r_patches = _pad_last_to(r_patches, 128).astype(jnp.bfloat16)
    rpool = pallas_resnet_branch(r_patches,
                                 params["stem_w"], params["stem_b"],
                                 params["r1_w"], params["r1_b"],
                                 params["r2_w"], params["r2_b"],
                                 B=B, HW=Ho * Wo)          # (B, 128) f32

    # Swin branch: patch embed + attention + MLP + mean pool, all in one kernel
    s_patches, (_, Ph, Pw) = im2col_nhwc(x_nhwc, k=PATCH, stride=PATCH, pad=0)
    s_patches = _pad_last_to(s_patches, 128).astype(jnp.bfloat16)
    spool = pallas_swin_branch(s_patches, params, B=B, T=Ph * Pw,
                               H=NUM_HEADS, Dh=SWIN_HIDDEN // NUM_HEADS)  # (B, 512)

    logits = pallas_fusion_head(rpool, spool,
                                params["cls_wr"], params["cls_ws"],
                                params["cls_b"])           # (B, 128) lane-dense
    return logits[:, :NUM_CLASSES]


if __name__ == "__main__":
    x = jax.random.normal(jax.random.PRNGKey(0), (2, 3, 16, 16), jnp.float32)
    params = init_params(jax.random.PRNGKey(42))
    out = jax.block_until_ready(forward(params, x))
    assert out.shape == (2, NUM_CLASSES) and out.dtype == jnp.float32
    assert bool(jnp.all(jnp.isfinite(out)))
    print("KERNEL_OK")
</pallas_src>

<mosaic_0001>
module attributes {stable_mosaic.version = 11 : i64} {
  func.func @resnet_branch_kernel(%arg0: i32, %arg1: memref<256x128xbf16, #tpu.memory_space<vmem>>, %arg2: memref<128x128xbf16, #tpu.memory_space<vmem>>, %arg3: memref<1x128xf32, #tpu.memory_space<vmem>>, %arg4: memref<128x128xbf16, #tpu.memory_space<vmem>>, %arg5: memref<1x128xf32, #tpu.memory_space<vmem>>, %arg6: memref<128x128xbf16, #tpu.memory_space<vmem>>, %arg7: memref<1x128xf32, #tpu.memory_space<vmem>>, %arg8: memref<1x1x128xf32, #tpu.memory_space<vmem>>) attributes {dimension_semantics = [#tpu.dimension_semantics<parallel>], iteration_bounds = array<i64: 2>, scalar_prefetch = 0 : i64, scratch_operands = 0 : i64, tpu.core_type = #tpu.core_type<tc>, window_params = [{transform_indices = @transform_0, window_bounds = array<i64: 256, 128>}, {pipeline_mode = #tpu.pipeline_mode<synchronous>, transform_indices = @transform_1, window_bounds = array<i64: 128, 128>}, {pipeline_mode = #tpu.pipeline_mode<synchronous>, transform_indices = @transform_2, window_bounds = array<i64: 1, 128>}, {pipeline_mode = #tpu.pipeline_mode<synchronous>, transform_indices = @transform_3, window_bounds = array<i64: 128, 128>}, {pipeline_mode = #tpu.pipeline_mode<synchronous>, transform_indices = @transform_4, window_bounds = array<i64: 1, 128>}, {pipeline_mode = #tpu.pipeline_mode<synchronous>, transform_indices = @transform_5, window_bounds = array<i64: 128, 128>}, {pipeline_mode = #tpu.pipeline_mode<synchronous>, transform_indices = @transform_6, window_bounds = array<i64: 1, 128>}, {transform_indices = @transform_7, window_bounds = array<i64: 1, 1, 128>}]} {
    %c0 = arith.constant 0 : index
    %c0_0 = arith.constant 0 : index
    %0 = vector.load %arg1[%c0, %c0_0] : memref<256x128xbf16, #tpu.memory_space<vmem>>, vector<256x128xbf16>
    %c0_1 = arith.constant 0 : index
    %c0_2 = arith.constant 0 : index
    %1 = vector.load %arg2[%c0_1, %c0_2] : memref<128x128xbf16, #tpu.memory_space<vmem>>, vector<128x128xbf16>
    %cst = arith.constant dense<0.000000e+00> : vector<256x128xf32>
    %2 = tpu.matmul %0, %1, %cst {dimension_numbers = #tpu.dot_dimension_numbers<[1], [0], [0], [1], [0, 0, 1, 1], [], []>} : vector<256x128xbf16>, vector<128x128xbf16>, vector<256x128xf32> -> vector<256x128xf32>
    %c0_3 = arith.constant 0 : index
    %c0_4 = arith.constant 0 : index
    %3 = vector.load %arg3[%c0_3, %c0_4] : memref<1x128xf32, #tpu.memory_space<vmem>>, vector<1x128xf32>
    %4 = vector.broadcast %3 : vector<1x128xf32> to vector<256x128xf32>
    %5 = arith.addf %2, %4 : vector<256x128xf32>
    %cst_5 = arith.constant 0.000000e+00 : f32
    %6 = vector.broadcast %cst_5 : f32 to vector<256x128xf32>
    %7 = arith.maximumf %5, %6 : vector<256x128xf32>
    %8 = arith.truncf %7 : vector<256x128xf32> to vector<256x128xbf16>
    %c0_6 = arith.constant 0 : index
    %c0_7 = arith.constant 0 : index
    %9 = vector.load %arg4[%c0_6, %c0_7] : memref<128x128xbf16, #tpu.memory_space<vmem>>, vector<128x128xbf16>
    %cst_8 = arith.constant dense<0.000000e+00> : vector<256x128xf32>
    %10 = tpu.matmul %8, %9, %cst_8 {dimension_numbers = #tpu.dot_dimension_numbers<[1], [0], [0], [1], [0, 0, 1, 1], [], []>} : vector<256x128xbf16>, vector<128x128xbf16>, vector<256x128xf32> -> vector<256x128xf32>
    %c0_9 = arith.constant 0 : index
    %c0_10 = arith.constant 0 : index
    %11 = vector.load %arg5[%c0_9, %c0_10] : memref<1x128xf32, #tpu.memory_space<vmem>>, vector<1x128xf32>
    %12 = vector.broadcast %11 : vector<1x128xf32> to vector<256x128xf32>
    %13 = arith.addf %10, %12 : vector<256x128xf32>
    %cst_11 = arith.constant 0.000000e+00 : f32
    %14 = vector.broadcast %cst_11 : f32 to vector<256x128xf32>
    %15 = arith.maximumf %13, %14 : vector<256x128xf32>
    %16 = arith.truncf %15 : vector<256x128xf32> to vector<256x128xbf16>
    %c0_12 = arith.constant 0 : index
    %c0_13 = arith.constant 0 : index
    %17 = vector.load %arg6[%c0_12, %c0_13] : memref<128x128xbf16, #tpu.memory_space<vmem>>, vector<128x128xbf16>
    %cst_14 = arith.constant dense<0.000000e+00> : vector<256x128xf32>
    %18 = tpu.matmul %16, %17, %cst_14 {dimension_numbers = #tpu.dot_dimension_numbers<[1], [0], [0], [1], [0, 0, 1, 1], [], []>} : vector<256x128xbf16>, vector<128x128xbf16>, vector<256x128xf32> -> vector<256x128xf32>
    %c0_15 = arith.constant 0 : index
    %c0_16 = arith.constant 0 : index
    %19 = vector.load %arg7[%c0_15, %c0_16] : memref<1x128xf32, #tpu.memory_space<vmem>>, vector<1x128xf32>
    %20 = vector.broadcast %19 : vector<1x128xf32> to vector<256x128xf32>
    %21 = arith.addf %18, %20 : vector<256x128xf32>
    %cst_17 = arith.constant 0.000000e+00 : f32
    %22 = vector.broadcast %cst_17 : f32 to vector<256x128xf32>
    %23 = arith.maximumf %21, %22 : vector<256x128xf32>
    %cst_18 = arith.constant dense<0.000000e+00> : vector<128xf32>
    %24 = vector.multi_reduction <add>, %23, %cst_18 [0] : vector<256x128xf32> to vector<128xf32>
    %25 = vector.shape_cast %24 : vector<128xf32> to vector<1x128xf32>
    %cst_19 = arith.constant 2.560000e+02 : f32
    %26 = vector.broadcast %cst_19 : f32 to vector<1x128xf32>
    %27 = arith.divf %25, %26 : vector<1x128xf32>
    %28 = vector.shape_cast %27 : vector<1x128xf32> to vector<1x1x128xf32>
    %c0_20 = arith.constant 0 : index
    %c0_21 = arith.constant 0 : index
    %c0_22 = arith.constant 0 : index
    %29 = vector.load %arg8[%c0_20, %c0_21, %c0_22] : memref<1x1x128xf32, #tpu.memory_space<vmem>>, vector<1x1x128xf32>
    tpu.vector_store %arg8[%c0_20, %c0_21, %c0_22], %28 {strides = array<i32>} : memref<1x1x128xf32, #tpu.memory_space<vmem>>, vector<1x1x128xf32>,
    return
  }
  func.func @transform_0(%arg0: i32) -> (i32, i32) {
    %c0_i32 = arith.constant 0 : i32
    %c0_i32_0 = arith.constant 0 : i32
    return %arg0, %c0_i32 : i32, i32
  }
  func.func @transform_1(%arg0: i32) -> (i32, i32) {
    %c0_i32 = arith.constant 0 : i32
    %c0_i32_0 = arith.constant 0 : i32
    %c0_i32_1 = arith.constant 0 : i32
    return %c0_i32, %c0_i32_0 : i32, i32
  }
  func.func @transform_2(%arg0: i32) -> (i32, i32) {
    %c0_i32 = arith.constant 0 : i32
    %c0_i32_0 = arith.constant 0 : i32
    %c0_i32_1 = arith.constant 0 : i32
    return %c0_i32, %c0_i32_0 : i32, i32
  }
  func.func @transform_3(%arg0: i32) -> (i32, i32) {
    %c0_i32 = arith.constant 0 : i32
    %c0_i32_0 = arith.constant 0 : i32
    %c0_i32_1 = arith.constant 0 : i32
    return %c0_i32, %c0_i32_0 : i32, i32
  }
  func.func @transform_4(%arg0: i32) -> (i32, i32) {
    %c0_i32 = arith.constant 0 : i32
    %c0_i32_0 = arith.constant 0 : i32
    %c0_i32_1 = arith.constant 0 : i32
    return %c0_i32, %c0_i32_0 : i32, i32
  }
  func.func @transform_5(%arg0: i32) -> (i32, i32) {
    %c0_i32 = arith.constant 0 : i32
    %c0_i32_0 = arith.constant 0 : i32
    %c0_i32_1 = arith.constant 0 : i32
    return %c0_i32, %c0_i32_0 : i32, i32
  }
  func.func @transform_6(%arg0: i32) -> (i32, i32) {
    %c0_i32 = arith.constant 0 : i32
    %c0_i32_0 = arith.constant 0 : i32
    %c0_i32_1 = arith.constant 0 : i32
    return %c0_i32, %c0_i32_0 : i32, i32
  }
  func.func @transform_7(%arg0: i32) -> (i32, i32, i32) {
    %c0_i32 = arith.constant 0 : i32
    %c0_i32_0 = arith.constant 0 : i32
    %c0_i32_1 = arith.constant 0 : i32
    return %arg0, %c0_i32, %c0_i32_0 : i32, i32, i32
  }
}

module attributes {stable_mosaic.version = 11 : i64} {
  func.func @swin_branch_kernel(%arg0: i32, %arg1: memref<16x128xbf16, #tpu.memory_space<vmem>>, %arg2: memref<128x512xbf16, #tpu.memory_space<vmem>>, %arg3: memref<1x512xf32, #tpu.memory_space<vmem>>, %arg4: memref<1x512xf32, #tpu.memory_space<vmem>>, %arg5: memref<1x512xf32, #tpu.memory_space<vmem>>, %arg6: memref<512x1536xbf16, #tpu.memory_space<vmem>>, %arg7: memref<1x1536xf32, #tpu.memory_space<vmem>>, %arg8: memref<512x512xbf16, #tpu.memory_space<vmem>>, %arg9: memref<1x512xf32, #tpu.memory_space<vmem>>, %arg10: memref<1x512xf32, #tpu.memory_space<vmem>>, %arg11: memref<1x512xf32, #tpu.memory_space<vmem>>, %arg12: memref<512x1024xbf16, #tpu.memory_space<vmem>>, %arg13: memref<1x1024xf32, #tpu.memory_space<vmem>>, %arg14: memref<1024x512xbf16, #tpu.memory_space<vmem>>, %arg15: memref<1x512xf32, #tpu.memory_space<vmem>>, %arg16: memref<1x1x512xf32, #tpu.memory_space<vmem>>) attributes {dimension_semantics = [#tpu.dimension_semantics<parallel>], iteration_bounds = array<i64: 2>, scalar_prefetch = 0 : i64, scratch_operands = 0 : i64, tpu.core_type = #tpu.core_type<tc>, window_params = [{transform_indices = @transform_0, window_bounds = array<i64: 16, 128>}, {pipeline_mode = #tpu.pipeline_mode<synchronous>, transform_indices = @transform_1, window_bounds = array<i64: 128, 512>}, {pipeline_mode = #tpu.pipeline_mode<synchronous>, transform_indices = @transform_2, window_bounds = array<i64: 1, 512>}, {pipeline_mode = #tpu.pipeline_mode<synchronous>, transform_indices = @transform_3, window_bounds = array<i64: 1, 512>}, {pipeline_mode = #tpu.pipeline_mode<synchronous>, transform_indices = @transform_4, window_bounds = array<i64: 1, 512>}, {pipeline_mode = #tpu.pipeline_mode<synchronous>, transform_indices = @transform_5, window_bounds = array<i64: 512, 1536>}, {pipeline_mode = #tpu.pipeline_mode<synchronous>, transform_indices = @transform_6, window_bounds = array<i64: 1, 1536>}, {pipeline_mode = #tpu.pipeline_mode<synchronous>, transform_indices = @transform_7, window_bounds = array<i64: 512, 512>}, {pipeline_mode = #tpu.pipeline_mode<synchronous>, transform_indices = @transform_8, window_bounds = array<i64: 1, 512>}, {pipeline_mode = #tpu.pipeline_mode<synchronous>, transform_indices = @transform_9, window_bounds = array<i64: 1, 512>}, {pipeline_mode = #tpu.pipeline_mode<synchronous>, transform_indices = @transform_10, window_bounds = array<i64: 1, 512>}, {pipeline_mode = #tpu.pipeline_mode<synchronous>, transform_indices = @transform_11, window_bounds = array<i64: 512, 1024>}, {pipeline_mode = #tpu.pipeline_mode<synchronous>, transform_indices = @transform_12, window_bounds = array<i64: 1, 1024>}, {pipeline_mode = #tpu.pipeline_mode<synchronous>, transform_indices = @transform_13, window_bounds = array<i64: 1024, 512>}, {pipeline_mode = #tpu.pipeline_mode<synchronous>, transform_indices = @transform_14, window_bounds = array<i64: 1, 512>}, {transform_indices = @transform_15, window_bounds = array<i64: 1, 1, 512>}]} {
    %c0 = arith.constant 0 : index
    %c0_0 = arith.constant 0 : index
    %0 = vector.load %arg1[%c0, %c0_0] : memref<16x128xbf16, #tpu.memory_space<vmem>>, vector<16x128xbf16>
    %c0_1 = arith.constant 0 : index
    %c0_2 = arith.constant 0 : index
    %1 = vector.load %arg2[%c0_1, %c0_2] : memref<128x512xbf16, #tpu.memory_space<vmem>>, vector<128x512xbf16>
    %cst = arith.constant dense<0.000000e+00> : vector<16x512xf32>
    %2 = tpu.matmul %0, %1, %cst {dimension_numbers = #tpu.dot_dimension_numbers<[1], [0], [0], [1], [0, 0, 1, 1], [], []>} : vector<16x128xbf16>, vector<128x512xbf16>, vector<16x512xf32> -> vector<16x512xf32>
    %c0_3 = arith.constant 0 : index
    %c0_4 = arith.constant 0 : index
    %3 = vector.load %arg3[%c0_3, %c0_4] : memref<1x512xf32, #tpu.memory_space<vmem>>, vector<1x512xf32>
    %4 = vector.broadcast %3 : vector<1x512xf32> to vector<16x512xf32>
    %5 = arith.addf %2, %4 : vector<16x512xf32>
    %c0_5 = arith.constant 0 : index
    %c0_6 = arith.constant 0 : index
    %6 = vector.load %arg4[%c0_5, %c0_6] : memref<1x512xf32, #tpu.memory_space<vmem>>, vector<1x512xf32>
    %c0_7 = arith.constant 0 : index
    %c0_8 = arith.constant 0 : index
    %7 = vector.load %arg5[%c0_7, %c0_8] : memref<1x512xf32, #tpu.memory_space<vmem>>, vector<1x512xf32>
    %cst_9 = arith.constant dense<0.000000e+00> : vector<16xf32>
    %8 = vector.multi_reduction <add>, %5, %cst_9 [1] : vector<16x512xf32> to vector<16xf32>
    %9 = vector.shape_cast %8 : vector<16xf32> to vector<16x1xf32>
    %cst_10 = arith.constant 5.120000e+02 : f32
    %10 = vector.broadcast %cst_10 : f32 to vector<16x1xf32>
    %11 = arith.divf %9, %10 : vector<16x1xf32>
    %12 = vector.broadcast %11 : vector<16x1xf32> to vector<16x512xf32>
    %13 = arith.subf %5, %12 : vector<16x512xf32>
    %14 = arith.mulf %13, %13 : vector<16x512xf32>
    %cst_11 = arith.constant dense<0.000000e+00> : vector<16xf32>
    %15 = vector.multi_reduction <add>, %14, %cst_11 [1] : vector<16x512xf32> to vector<16xf32>
    %16 = vector.shape_cast %15 : vector<16xf32> to vector<16x1xf32>
    %cst_12 = arith.constant 5.120000e+02 : f32
    %17 = vector.broadcast %cst_12 : f32 to vector<16x1xf32>
    %18 = arith.divf %16, %17 : vector<16x1xf32>
    %cst_13 = arith.constant 9.99999974E-6 : f32
    %19 = vector.broadcast %cst_13 : f32 to vector<16x1xf32>
    %20 = arith.addf %18, %19 : vector<16x1xf32>
    %21 = math.rsqrt %20 : vector<16x1xf32>
    %22 = vector.broadcast %21 : vector<16x1xf32> to vector<16x512xf32>
    %23 = arith.mulf %13, %22 : vector<16x512xf32>
    %24 = vector.broadcast %6 : vector<1x512xf32> to vector<16x512xf32>
    %25 = arith.mulf %23, %24 : vector<16x512xf32>
    %26 = vector.broadcast %7 : vector<1x512xf32> to vector<16x512xf32>
    %27 = arith.addf %25, %26 : vector<16x512xf32>
    %28 = arith.truncf %27 : vector<16x512xf32> to vector<16x512xbf16>
    %c0_14 = arith.constant 0 : index
    %c0_15 = arith.constant 0 : index
    %29 = vector.load %arg6[%c0_14, %c0_15] : memref<512x1536xbf16, #tpu.memory_space<vmem>>, vector<512x1536xbf16>
    %cst_16 = arith.constant dense<0.000000e+00> : vector<16x1536xf32>
    %30 = tpu.matmul %28, %29, %cst_16 {dimension_numbers = #tpu.dot_dimension_numbers<[1], [0], [0], [1], [0, 0, 1, 1], [], []>} : vector<16x512xbf16>, vector<512x1536xbf16>, vector<16x1536xf32> -> vector<16x1536xf32>
    %c0_17 = arith.constant 0 : index
    %c0_18 = arith.constant 0 : index
    %31 = vector.load %arg7[%c0_17, %c0_18] : memref<1x1536xf32, #tpu.memory_space<vmem>>, vector<1x1536xf32>
    %32 = vector.broadcast %31 : vector<1x1536xf32> to vector<16x1536xf32>
    %33 = arith.addf %30, %32 : vector<16x1536xf32>
    %34 = arith.truncf %33 : vector<16x1536xf32> to vector<16x1536xbf16>
    %35 = vector.extract_strided_slice %34 {offsets = [0, 0], sizes = [16, 128], strides = [1, 1]} : vector<16x1536xbf16> to vector<16x128xbf16>
    %36 = vector.extract_strided_slice %34 {offsets = [0, 128], sizes = [16, 128], strides = [1, 1]} : vector<16x1536xbf16> to vector<16x128xbf16>
    %37 = vector.extract_strided_slice %34 {offsets = [0, 256], sizes = [16, 128], strides = [1, 1]} : vector<16x1536xbf16> to vector<16x128xbf16>
    %38 = vector.extract_strided_slice %34 {offsets = [0, 384], sizes = [16, 128], strides = [1, 1]} : vector<16x1536xbf16> to vector<16x128xbf16>
    %39 = vector.shape_cast %35 : vector<16x128xbf16> to vector<1x16x128xbf16>
    %40 = vector.shape_cast %36 : vector<16x128xbf16> to vector<1x16x128xbf16>
    %41 = vector.shape_cast %37 : vector<16x128xbf16> to vector<1x16x128xbf16>
    %42 = vector.shape_cast %38 : vector<16x128xbf16> to vector<1x16x128xbf16>
    %43 = tpu.concatenate %39, %40, %41, %42 in 0 : vector<1x16x128xbf16>, vector<1x16x128xbf16>, vector<1x16x128xbf16>, vector<1x16x128xbf16> -> vector<4x16x128xbf16>
    %44 = vector.extract_strided_slice %34 {offsets = [0, 512], sizes = [16, 128], strides = [1, 1]} : vector<16x1536xbf16> to vector<16x128xbf16>
    %45 = vector.extract_strided_slice %34 {offsets = [0, 640], sizes = [16, 128], strides = [1, 1]} : vector<16x1536xbf16> to vector<16x128xbf16>
    %46 = vector.extract_strided_slice %34 {offsets = [0, 768], sizes = [16, 128], strides = [1, 1]} : vector<16x1536xbf16> to vector<16x128xbf16>
    %47 = vector.extract_strided_slice %34 {offsets = [0, 896], sizes = [16, 128], strides = [1, 1]} : vector<16x1536xbf16> to vector<16x128xbf16>
    %48 = vector.shape_cast %44 : vector<16x128xbf16> to vector<1x16x128xbf16>
    %49 = vector.shape_cast %45 : vector<16x128xbf16> to vector<1x16x128xbf16>
    %50 = vector.shape_cast %46 : vector<16x128xbf16> to vector<1x16x128xbf16>
    %51 = vector.shape_cast %47 : vector<16x128xbf16> to vector<1x16x128xbf16>
    %52 = tpu.concatenate %48, %49, %50, %51 in 0 : vector<1x16x128xbf16>, vector<1x16x128xbf16>, vector<1x16x128xbf16>, vector<1x16x128xbf16> -> vector<4x16x128xbf16>
    %53 = vector.extract_strided_slice %34 {offsets = [0, 1024], sizes = [16, 128], strides = [1, 1]} : vector<16x1536xbf16> to vector<16x128xbf16>
    %54 = vector.extract_strided_slice %34 {offsets = [0, 1152], sizes = [16, 128], strides = [1, 1]} : vector<16x1536xbf16> to vector<16x128xbf16>
    %55 = vector.extract_strided_slice %34 {offsets = [0, 1280], sizes = [16, 128], strides = [1, 1]} : vector<16x1536xbf16> to vector<16x128xbf16>
    %56 = vector.extract_strided_slice %34 {offsets = [0, 1408], sizes = [16, 128], strides = [1, 1]} : vector<16x1536xbf16> to vector<16x128xbf16>
    %57 = vector.shape_cast %53 : vector<16x128xbf16> to vector<1x16x128xbf16>
    %58 = vector.shape_cast %54 : vector<16x128xbf16> to vector<1x16x128xbf16>
    %59 = vector.shape_cast %55 : vector<16x128xbf16> to vector<1x16x128xbf16>
    %60 = vector.shape_cast %56 : vector<16x128xbf16> to vector<1x16x128xbf16>
    %61 = tpu.concatenate %57, %58, %59, %60 in 0 : vector<1x16x128xbf16>, vector<1x16x128xbf16>, vector<1x16x128xbf16>, vector<1x16x128xbf16> -> vector<4x16x128xbf16>
    "tpu.trace_start"() <{level = 10 : i32, message = "htd,hsd->hts"}> : () -> ()
    %cst_19 = arith.constant dense<0.000000e+00> : vector<4x16x16xf32>
    %62 = tpu.matmul %43, %52, %cst_19 {dimension_numbers = #tpu.dot_dimension_numbers<[2], [2], [1], [1], [0, 0, 0, 1, 1, 1], [0], [0]>} : vector<4x16x128xbf16>, vector<4x16x128xbf16>, vector<4x16x16xf32> -> vector<4x16x16xf32>
    "tpu.trace_stop"() : () -> ()
    %cst_20 = arith.constant 0.0883883461 : f32
    %63 = vector.broadcast %cst_20 : f32 to vector<4x16x16xf32>
    %64 = arith.mulf %62, %63 : vector<4x16x16xf32>
    %cst_21 = arith.constant dense<0xFF800000> : vector<4x16xf32>
    %65 = vector.multi_reduction <maximumf>, %64, %cst_21 [2] : vector<4x16x16xf32> to vector<4x16xf32>
    %66 = vector.shape_cast %65 : vector<4x16xf32> to vector<4x16x1xf32>
    %67 = vector.broadcast %66 : vector<4x16x1xf32> to vector<4x16x16xf32>
    %68 = arith.subf %64, %67 : vector<4x16x16xf32>
    %69 = math.exp %68 : vector<4x16x16xf32>
    %cst_22 = arith.constant dense<0.000000e+00> : vector<4x16xf32>
    %70 = vector.multi_reduction <add>, %69, %cst_22 [2] : vector<4x16x16xf32> to vector<4x16xf32>
    %71 = vector.shape_cast %70 : vector<4x16xf32> to vector<4x16x1xf32>
    %72 = vector.broadcast %71 : vector<4x16x1xf32> to vector<4x16x16xf32>
    %73 = arith.divf %69, %72 : vector<4x16x16xf32>
    %74 = arith.truncf %73 : vector<4x16x16xf32> to vector<4x16x16xbf16>
    "tpu.trace_start"() <{level = 10 : i32, message = "hts,hsd->htd"}> : () -> ()
    %cst_23 = arith.constant dense<0.000000e+00> : vector<4x16x128xf32>
    %75 = tpu.matmul %74, %61, %cst_23 {dimension_numbers = #tpu.dot_dimension_numbers<[2], [1], [1], [2], [0, 0, 0, 1, 1, 2], [0], [0]>} : vector<4x16x16xbf16>, vector<4x16x128xbf16>, vector<4x16x128xf32> -> vector<4x16x128xf32>
    "tpu.trace_stop"() : () -> ()
    %76 = vector.extract_strided_slice %75 {offsets = [0, 0, 0], sizes = [1, 16, 128], strides = [1, 1, 1]} : vector<4x16x128xf32> to vector<1x16x128xf32>
    %77 = vector.shape_cast %76 : vector<1x16x128xf32> to vector<16x128xf32>
    %78 = vector.extract_strided_slice %75 {offsets = [1, 0, 0], sizes = [1, 16, 128], strides = [1, 1, 1]} : vector<4x16x128xf32> to vector<1x16x128xf32>
    %79 = vector.shape_cast %78 : vector<1x16x128xf32> to vector<16x128xf32>
    %80 = vector.extract_strided_slice %75 {offsets = [2, 0, 0], sizes = [1, 16, 128], strides = [1, 1, 1]} : vector<4x16x128xf32> to vector<1x16x128xf32>
    %81 = vector.shape_cast %80 : vector<1x16x128xf32> to vector<16x128xf32>
    %82 = vector.extract_strided_slice %75 {offsets = [3, 0, 0], sizes = [1, 16, 128], strides = [1, 1, 1]} : vector<4x16x128xf32> to vector<1x16x128xf32>
    %83 = vector.shape_cast %82 : vector<1x16x128xf32> to vector<16x128xf32>
    %84 = tpu.concatenate %77, %79, %81, %83 in 1 : vector<16x128xf32>, vector<16x128xf32>, vector<16x128xf32>, vector<16x128xf32> -> vector<16x512xf32>
    %85 = arith.truncf %84 : vector<16x512xf32> to vector<16x512xbf16>
    %c0_24 = arith.constant 0 : index
    %c0_25 = arith.constant 0 : index
    %86 = vector.load %arg8[%c0_24, %c0_25] : memref<512x512xbf16, #tpu.memory_space<vmem>>, vector<512x512xbf16>
    %cst_26 = arith.constant dense<0.000000e+00> : vector<16x512xf32>
    %87 = tpu.matmul %85, %86, %cst_26 {dimension_numbers = #tpu.dot_dimension_numbers<[1], [0], [0], [1], [0, 0, 1, 1], [], []>} : vector<16x512xbf16>, vector<512x512xbf16>, vector<16x512xf32> -> vector<16x512xf32>
    %c0_27 = arith.constant 0 : index
    %c0_28 = arith.constant 0 : index
    %88 = vector.load %arg9[%c0_27, %c0_28] : memref<1x512xf32, #tpu.memory_space<vmem>>, vector<1x512xf32>
    %89 = vector.broadcast %88 : vector<1x512xf32> to vector<16x512xf32>
    %90 = arith.addf %87, %89 : vector<16x512xf32>
    %91 = arith.addf %5, %90 : vector<16x512xf32>
    %c0_29 = arith.constant 0 : index
    %c0_30 = arith.constant 0 : index
    %92 = vector.load %arg10[%c0_29, %c0_30] : memref<1x512xf32, #tpu.memory_space<vmem>>, vector<1x512xf32>
    %c0_31 = arith.constant 0 : index
    %c0_32 = arith.constant 0 : index
    %93 = vector.load %arg11[%c0_31, %c0_32] : memref<1x512xf32, #tpu.memory_space<vmem>>, vector<1x512xf32>
    %cst_33 = arith.constant dense<0.000000e+00> : vector<16xf32>
    %94 = vector.multi_reduction <add>, %91, %cst_33 [1] : vector<16x512xf32> to vector<16xf32>
    %95 = vector.shape_cast %94 : vector<16xf32> to vector<16x1xf32>
    %cst_34 = arith.constant 5.120000e+02 : f32
    %96 = vector.broadcast %cst_34 : f32 to vector<16x1xf32>
    %97 = arith.divf %95, %96 : vector<16x1xf32>
    %98 = vector.broadcast %97 : vector<16x1xf32> to vector<16x512xf32>
    %99 = arith.subf %91, %98 : vector<16x512xf32>
    %100 = arith.mulf %99, %99 : vector<16x512xf32>
    %cst_35 = arith.constant dense<0.000000e+00> : vector<16xf32>
    %101 = vector.multi_reduction <add>, %100, %cst_35 [1] : vector<16x512xf32> to vector<16xf32>
    %102 = vector.shape_cast %101 : vector<16xf32> to vector<16x1xf32>
    %cst_36 = arith.constant 5.120000e+02 : f32
    %103 = vector.broadcast %cst_36 : f32 to vector<16x1xf32>
    %104 = arith.divf %102, %103 : vector<16x1xf32>
    %cst_37 = arith.constant 9.99999974E-6 : f32
    %105 = vector.broadcast %cst_37 : f32 to vector<16x1xf32>
    %106 = arith.addf %104, %105 : vector<16x1xf32>
    %107 = math.rsqrt %106 : vector<16x1xf32>
    %108 = vector.broadcast %107 : vector<16x1xf32> to vector<16x512xf32>
    %109 = arith.mulf %99, %108 : vector<16x512xf32>
    %110 = vector.broadcast %92 : vector<1x512xf32> to vector<16x512xf32>
    %111 = arith.mulf %109, %110 : vector<16x512xf32>
    %112 = vector.broadcast %93 : vector<1x512xf32> to vector<16x512xf32>
    %113 = arith.addf %111, %112 : vector<16x512xf32>
    %114 = arith.truncf %113 : vector<16x512xf32> to vector<16x512xbf16>
    %c0_38 = arith.constant 0 : index
    %c0_39 = arith.constant 0 : index
    %115 = vector.load %arg12[%c0_38, %c0_39] : memref<512x1024xbf16, #tpu.memory_space<vmem>>, vector<512x1024xbf16>
    %cst_40 = arith.constant dense<0.000000e+00> : vector<16x1024xf32>
    %116 = tpu.matmul %114, %115, %cst_40 {dimension_numbers = #tpu.dot_dimension_numbers<[1], [0], [0], [1], [0, 0, 1, 1], [], []>} : vector<16x512xbf16>, vector<512x1024xbf16>, vector<16x1024xf32> -> vector<16x1024xf32>
    %c0_41 = arith.constant 0 : index
    %c0_42 = arith.constant 0 : index
    %117 = vector.load %arg13[%c0_41, %c0_42] : memref<1x1024xf32, #tpu.memory_space<vmem>>, vector<1x1024xf32>
    %118 = vector.broadcast %117 : vector<1x1024xf32> to vector<16x1024xf32>
    %119 = arith.addf %116, %118 : vector<16x1024xf32>
    %cst_43 = arith.constant 5.000000e-01 : f32
    %120 = vector.broadcast %cst_43 : f32 to vector<16x1024xf32>
    %121 = arith.mulf %120, %119 : vector<16x1024xf32>
    %cst_44 = arith.constant 4.471500e-02 : f32
    %122 = vector.broadcast %cst_44 : f32 to vector<16x1024xf32>
    %123 = arith.mulf %122, %119 : vector<16x1024xf32>
    %124 = arith.mulf %123, %119 : vector<16x1024xf32>
    %125 = arith.mulf %124, %119 : vector<16x1024xf32>
    %126 = arith.addf %119, %125 : vector<16x1024xf32>
    %cst_45 = arith.constant 0.797884583 : f32
    %127 = vector.broadcast %cst_45 : f32 to vector<16x1024xf32>
    %128 = arith.mulf %127, %126 : vector<16x1024xf32>
    %129 = math.tanh %128 : vector<16x1024xf32>
    %cst_46 = arith.constant 1.000000e+00 : f32
    %130 = vector.broadcast %cst_46 : f32 to vector<16x1024xf32>
    %131 = arith.addf %130, %129 : vector<16x1024xf32>
    %132 = arith.mulf %121, %131 : vector<16x1024xf32>
    %133 = arith.truncf %132 : vector<16x1024xf32> to vector<16x1024xbf16>
    %c0_47 = arith.constant 0 : index
    %c0_48 = arith.constant 0 : index
    %134 = vector.load %arg14[%c0_47, %c0_48] : memref<1024x512xbf16, #tpu.memory_space<vmem>>, vector<1024x512xbf16>
    %cst_49 = arith.constant dense<0.000000e+00> : vector<16x512xf32>
    %135 = tpu.matmul %133, %134, %cst_49 {dimension_numbers = #tpu.dot_dimension_numbers<[1], [0], [0], [1], [0, 0, 1, 1], [], []>} : vector<16x1024xbf16>, vector<1024x512xbf16>, vector<16x512xf32> -> vector<16x512xf32>
    %c0_50 = arith.constant 0 : index
    %c0_51 = arith.constant 0 : index
    %136 = vector.load %arg15[%c0_50, %c0_51] : memref<1x512xf32, #tpu.memory_space<vmem>>, vector<1x512xf32>
    %137 = vector.broadcast %136 : vector<1x512xf32> to vector<16x512xf32>
    %138 = arith.addf %135, %137 : vector<16x512xf32>
    %139 = arith.addf %91, %138 : vector<16x512xf32>
    %cst_52 = arith.constant dense<0.000000e+00> : vector<512xf32>
    %140 = vector.multi_reduction <add>, %139, %cst_52 [0] : vector<16x512xf32> to vector<512xf32>
    %141 = vector.shape_cast %140 : vector<512xf32> to vector<1x512xf32>
    %cst_53 = arith.constant 1.600000e+01 : f32
    %142 = vector.broadcast %cst_53 : f32 to vector<1x512xf32>
    %143 = arith.divf %141, %142 : vector<1x512xf32>
    %144 = vector.shape_cast %143 : vector<1x512xf32> to vector<1x1x512xf32>
    %c0_54 = arith.constant 0 : index
    %c0_55 = arith.constant 0 : index
    %c0_56 = arith.constant 0 : index
    %145 = vector.load %arg16[%c0_54, %c0_55, %c0_56] : memref<1x1x512xf32, #tpu.memory_space<vmem>>, vector<1x1x512xf32>
    tpu.vector_store %arg16[%c0_54, %c0_55, %c0_56], %144 {strides = array<i32>} : memref<1x1x512xf32, #tpu.memory_space<vmem>>, vector<1x1x512xf32>,
    return
  }
  func.func @transform_0(%arg0: i32) -> (i32, i32) {
    %c0_i32 = arith.constant 0 : i32
    %c0_i32_0 = arith.constant 0 : i32
    return %arg0, %c0_i32 : i32, i32
  }
  func.func @transform_1(%arg0: i32) -> (i32, i32) {
    %c0_i32 = arith.constant 0 : i32
    %c0_i32_0 = arith.constant 0 : i32
    %c0_i32_1 = arith.constant 0 : i32
    return %c0_i32, %c0_i32_0 : i32, i32
  }
  func.func @transform_2(%arg0: i32) -> (i32, i32) {
    %c0_i32 = arith.constant 0 : i32
    %c0_i32_0 = arith.constant 0 : i32
    %c0_i32_1 = arith.constant 0 : i32
    return %c0_i32, %c0_i32_0 : i32, i32
  }
  func.func @transform_3(%arg0: i32) -> (i32, i32) {
    %c0_i32 = arith.constant 0 : i32
    %c0_i32_0 = arith.constant 0 : i32
    %c0_i32_1 = arith.constant 0 : i32
    return %c0_i32, %c0_i32_0 : i32, i32
  }
  func.func @transform_4(%arg0: i32) -> (i32, i32) {
    %c0_i32 = arith.constant 0 : i32
    %c0_i32_0 = arith.constant 0 : i32
    %c0_i32_1 = arith.constant 0 : i32
    return %c0_i32, %c0_i32_0 : i32, i32
  }
  func.func @transform_5(%arg0: i32) -> (i32, i32) {
    %c0_i32 = arith.constant 0 : i32
    %c0_i32_0 = arith.constant 0 : i32
    %c0_i32_1 = arith.constant 0 : i32
    return %c0_i32, %c0_i32_0 : i32, i32
  }
  func.func @transform_6(%arg0: i32) -> (i32, i32) {
    %c0_i32 = arith.constant 0 : i32
    %c0_i32_0 = arith.constant 0 : i32
    %c0_i32_1 = arith.constant 0 : i32
    return %c0_i32, %c0_i32_0 : i32, i32
  }
  func.func @transform_7(%arg0: i32) -> (i32, i32) {
    %c0_i32 = arith.constant 0 : i32
    %c0_i32_0 = arith.constant 0 : i32
    %c0_i32_1 = arith.constant 0 : i32
    return %c0_i32, %c0_i32_0 : i32, i32
  }
  func.func @transform_8(%arg0: i32) -> (i32, i32) {
    %c0_i32 = arith.constant 0 : i32
    %c0_i32_0 = arith.constant 0 : i32
    %c0_i32_1 = arith.constant 0 : i32
    return %c0_i32, %c0_i32_0 : i32, i32
  }
  func.func @transform_9(%arg0: i32) -> (i32, i32) {
    %c0_i32 = arith.constant 0 : i32
    %c0_i32_0 = arith.constant 0 : i32
    %c0_i32_1 = arith.constant 0 : i32
    return %c0_i32, %c0_i32_0 : i32, i32
  }
  func.func @transform_10(%arg0: i32) -> (i32, i32) {
    %c0_i32 = arith.constant 0 : i32
    %c0_i32_0 = arith.constant 0 : i32
    %c0_i32_1 = arith.constant 0 : i32
    return %c0_i32, %c0_i32_0 : i32, i32
  }
  func.func @transform_11(%arg0: i32) -> (i32, i32) {
    %c0_i32 = arith.constant 0 : i32
    %c0_i32_0 = arith.constant 0 : i32
    %c0_i32_1 = arith.constant 0 : i32
    return %c0_i32, %c0_i32_0 : i32, i32
  }
  func.func @transform_12(%arg0: i32) -> (i32, i32) {
    %c0_i32 = arith.constant 0 : i32
    %c0_i32_0 = arith.constant 0 : i32
    %c0_i32_1 = arith.constant 0 : i32
    return %c0_i32, %c0_i32_0 : i32, i32
  }
  func.func @transform_13(%arg0: i32) -> (i32, i32) {
    %c0_i32 = arith.constant 0 : i32
    %c0_i32_0 = arith.constant 0 : i32
    %c0_i32_1 = arith.constant 0 : i32
    return %c0_i32, %c0_i32_0 : i32, i32
  }
  func.func @transform_14(%arg0: i32) -> (i32, i32) {
    %c0_i32 = arith.constant 0 : i32
    %c0_i32_0 = arith.constant 0 : i32
    %c0_i32_1 = arith.constant 0 : i32
    return %c0_i32, %c0_i32_0 : i32, i32
  }
  func.func @transform_15(%arg0: i32) -> (i32, i32, i32) {
    %c0_i32 = arith.constant 0 : i32
    %c0_i32_0 = arith.constant 0 : i32
    %c0_i32_1 = arith.constant 0 : i32
    return %arg0, %c0_i32, %c0_i32_0 : i32, i32, i32
  }
}

module attributes {stable_mosaic.version = 11 : i64} {
  func.func @fusion_head_kernel(%arg0: memref<2x128xf32, #tpu.memory_space<vmem>>, %arg1: memref<2x512xf32, #tpu.memory_space<vmem>>, %arg2: memref<128x128xbf16, #tpu.memory_space<vmem>>, %arg3: memref<512x128xbf16, #tpu.memory_space<vmem>>, %arg4: memref<1x128xf32, #tpu.memory_space<vmem>>, %arg5: memref<2x128xf32, #tpu.memory_space<vmem>>) attributes {dimension_semantics = [], scalar_prefetch = 0 : i64, scratch_operands = 0 : i64, tpu.core_type = #tpu.core_type<tc>} {
    %c0 = arith.constant 0 : index
    %c0_0 = arith.constant 0 : index
    %0 = vector.load %arg0[%c0, %c0_0] : memref<2x128xf32, #tpu.memory_space<vmem>>, vector<2x128xf32>
    %1 = arith.truncf %0 : vector<2x128xf32> to vector<2x128xbf16>
    %c0_1 = arith.constant 0 : index
    %c0_2 = arith.constant 0 : index
    %2 = vector.load %arg1[%c0_1, %c0_2] : memref<2x512xf32, #tpu.memory_space<vmem>>, vector<2x512xf32>
    %3 = arith.truncf %2 : vector<2x512xf32> to vector<2x512xbf16>
    %c0_3 = arith.constant 0 : index
    %c0_4 = arith.constant 0 : index
    %4 = vector.load %arg2[%c0_3, %c0_4] : memref<128x128xbf16, #tpu.memory_space<vmem>>, vector<128x128xbf16>
    %cst = arith.constant dense<0.000000e+00> : vector<2x128xf32>
    %5 = tpu.matmul %1, %4, %cst {dimension_numbers = #tpu.dot_dimension_numbers<[1], [0], [0], [1], [0, 0, 1, 1], [], []>} : vector<2x128xbf16>, vector<128x128xbf16>, vector<2x128xf32> -> vector<2x128xf32>
    %c0_5 = arith.constant 0 : index
    %c0_6 = arith.constant 0 : index
    %6 = vector.load %arg3[%c0_5, %c0_6] : memref<512x128xbf16, #tpu.memory_space<vmem>>, vector<512x128xbf16>
    %cst_7 = arith.constant dense<0.000000e+00> : vector<2x128xf32>
    %7 = tpu.matmul %3, %6, %cst_7 {dimension_numbers = #tpu.dot_dimension_numbers<[1], [0], [0], [1], [0, 0, 1, 1], [], []>} : vector<2x512xbf16>, vector<512x128xbf16>, vector<2x128xf32> -> vector<2x128xf32>
    %8 = arith.addf %5, %7 : vector<2x128xf32>
    %c0_8 = arith.constant 0 : index
    %c0_9 = arith.constant 0 : index
    %9 = vector.load %arg4[%c0_8, %c0_9] : memref<1x128xf32, #tpu.memory_space<vmem>>, vector<1x128xf32>
    %10 = vector.broadcast %9 : vector<1x128xf32> to vector<2x128xf32>
    %11 = arith.addf %8, %10 : vector<2x128xf32>
    %c0_10 = arith.constant 0 : index
    %c0_11 = arith.constant 0 : index
    %12 = vector.load %arg5[%c0_10, %c0_11] : memref<2x128xf32, #tpu.memory_space<vmem>>, vector<2x128xf32>
    tpu.vector_store %arg5[%c0_10, %c0_11], %11 {strides = array<i32>} : memref<2x128xf32, #tpu.memory_space<vmem>>, vector<2x128xf32>,
    return
  }
}

</mosaic_0001>

<llo_original>
// kernel: forward.3
$region0: #{forward.3}
  #allocation0 [shape = 'u32[]', space=smem, size = 0x4, offset = 0x4, fixed_abs, tag = 'smem constant byte address 0x4 - core index']
  #allocation1 [shape = 'u32[144,128]{1,0:T(1,128)}', space=vmem, size = 0x12000, scoped, tag = 'internal scratch']
  %s0 = inlined_call_operand.vmem [shape: bf16[512,128], index: 0, kind: input, shape index: {}]
  %s1 = inlined_call_operand.vmem [shape: bf16[128,128], index: 1, kind: input, shape index: {}]
  %s2 = inlined_call_operand.vmem [shape: f32[1,128], index: 2, kind: input, shape index: {}]
  %s3 = inlined_call_operand.vmem [shape: bf16[128,128], index: 3, kind: input, shape index: {}]
  %s4 = inlined_call_operand.vmem [shape: f32[1,128], index: 4, kind: input, shape index: {}]
  %s5 = inlined_call_operand.vmem [shape: bf16[128,128], index: 5, kind: input, shape index: {}]
  %s6 = inlined_call_operand.vmem [shape: f32[1,128], index: 6, kind: input, shape index: {}]
  %s7 = inlined_call_operand.vmem [shape: f32[2,1,128], index: 7, kind: output, shape index: {}]
  %s8 = sld [smem:[#allocation0]]
  $region61: #{forward.3} parent=0
    _
  %s10 = ssub.s32 1, %s8
  %s11 = scalar_select 0, %s10, %s8
  loop: start=0, step=1, limit=4
  $region2: #{forward.3} parent=0 // loop_pre_header
    _
  $region3: #{forward.3} parent=0 // loop_header
    %s13 = sphi 0, %s17
    %p14 = scmp.ge.s32.totalorder %s13, 4
    %s23 = sphi 0, %s25
    %s26 = sphi 0, %s23
    %s27 = sphi 0, %s26
    %s43 = sphi 0, %s27
    %s47 = sphi 0, %s47
    %s49 = sphi 0, %s47
    %s50 = sphi 0, %s49
    %s64 = sphi 0, %s50
    %s68 = sphi 0, %s68
    %s70 = sphi 0, %s68
    %s71 = sphi 0, %s70
    %s85 = sphi 0, %s71
    %s89 = sphi 0, %s89
    %s91 = sphi 0, %s89
    %s92 = sphi 0, %s91
    %s106 = sphi 0, %s92
    %s110 = sphi 0, %s110
    %s112 = sphi 0, %s110
    %s113 = sphi 0, %s112
    %s127 = sphi 0, %s113
    %s131 = sphi 0, %s131
    %s133 = sphi 0, %s131
    %s134 = sphi 0, %s133
    %s148 = sphi 0, %s134
    %s152 = sphi 0, %s152
    %s154 = sphi 0, %s152
    %s155 = sphi 0, %s154
    %s169 = sphi 0, %s155
    %s175 = sphi 0, %s177
    %s178 = sphi 0, %s175
    %s179 = sphi 0, %s178
    %s195 = sphi 0, %s179
  $region4: #{forward.3} parent=0 // loop_header_branch
    %16 = sbr.rel (%p14) target = $region8
  $region5: #{forward.3} parent=0 // loop_body
    %s18 = ssub.s32 %s13, 1
    %s19 = ssub.s32 %s13, 2
    %s20 = sadd.s32 %s13, 1
    %s21 = ssub.s32 %s13, %s20
    %p22 = scmp.eq.s32.totalorder %s21, 0
    %s24 = sadd.s32 %s23, 1
    %s25 = scalar_select %p22, %s23, %s24
    %p28 = pneg %p22
    %p29 = scmp.eq.s32.totalorder %s13, 1
    %p30 = por %p28, %p29
    %p31 = scmp.ne.s32.totalorder %s23, %s26
    %p32 = scmp.eq.s32.totalorder %s13, 0
    %p33 = por %p31, %p32
    %p34 = scmp.ne.s32.totalorder %s23, %s26
    %p35 = scmp.eq.s32.totalorder %s18, 1
    %p36 = por %p34, %p35
    %p37 = scmp.ne.s32.totalorder %s26, %s27
    %p38 = scmp.eq.s32.totalorder %s18, 0
    %p39 = por %p37, %p38
    %p40 = scmp.ne.s32.totalorder %s26, %s27
    %p41 = scmp.eq.s32.totalorder %s19, 1
    %p42 = por %p40, %p41
    %p44 = scmp.ne.s32.totalorder %s27, %s43
    %p45 = scmp.eq.s32.totalorder %s19, 0
    %p46 = por %p44, %p45
    %s48 = sadd.s32 %s47, 1
    %p51 = scmp.eq.s32.totalorder %s13, 1
    %p52 = scmp.ne.s32.totalorder %s47, %s49
    %p53 = scmp.eq.s32.totalorder %s13, 0
    %p54 = por %p52, %p53
    %p55 = scmp.ne.s32.totalorder %s47, %s49
    %p56 = scmp.eq.s32.totalorder %s18, 1
    %p57 = por %p55, %p56
    %p58 = scmp.ne.s32.totalorder %s49, %s50
    %p59 = scmp.eq.s32.totalorder %s18, 0
    %p60 = por %p58, %p59
    %p61 = scmp.ne.s32.totalorder %s49, %s50
    %p62 = scmp.eq.s32.totalorder %s19, 1
    %p63 = por %p61, %p62
    %p65 = scmp.ne.s32.totalorder %s50, %s64
    %p66 = scmp.eq.s32.totalorder %s19, 0
    %p67 = por %p65, %p66
    %s69 = sadd.s32 %s68, 1
    %p72 = scmp.eq.s32.totalorder %s13, 1
    %p73 = scmp.ne.s32.totalorder %s68, %s70
    %p74 = scmp.eq.s32.totalorder %s13, 0
    %p75 = por %p73, %p74
    %p76 = scmp.ne.s32.totalorder %s68, %s70
    %p77 = scmp.eq.s32.totalorder %s18, 1
    %p78 = por %p76, %p77
    %p79 = scmp.ne.s32.totalorder %s70, %s71
    %p80 = scmp.eq.s32.totalorder %s18, 0
    %p81 = por %p79, %p80
    %p82 = scmp.ne.s32.totalorder %s70, %s71
    %p83 = scmp.eq.s32.totalorder %s19, 1
    %p84 = por %p82, %p83
    %p86 = scmp.ne.s32.totalorder %s71, %s85
    %p87 = scmp.eq.s32.totalorder %s19, 0
    %p88 = por %p86, %p87
    %s90 = sadd.s32 %s89, 1
    %p93 = scmp.eq.s32.totalorder %s13, 1
    %p94 = scmp.ne.s32.totalorder %s89, %s91
    %p95 = scmp.eq.s32.totalorder %s13, 0
    %p96 = por %p94, %p95
    %p97 = scmp.ne.s32.totalorder %s89, %s91
    %p98 = scmp.eq.s32.totalorder %s18, 1
    %p99 = por %p97, %p98
    %p100 = scmp.ne.s32.totalorder %s91, %s92
    %p101 = scmp.eq.s32.totalorder %s18, 0
    %p102 = por %p100, %p101
    %p103 = scmp.ne.s32.totalorder %s91, %s92
    %p104 = scmp.eq.s32.totalorder %s19, 1
    %p105 = por %p103, %p104
    %p107 = scmp.ne.s32.totalorder %s92, %s106
    %p108 = scmp.eq.s32.totalorder %s19, 0
    %p109 = por %p107, %p108
    %s111 = sadd.s32 %s110, 1
    %p114 = scmp.eq.s32.totalorder %s13, 1
    %p115 = scmp.ne.s32.totalorder %s110, %s112
    %p116 = scmp.eq.s32.totalorder %s13, 0
    %p117 = por %p115, %p116
    %p118 = scmp.ne.s32.totalorder %s110, %s112
    %p119 = scmp.eq.s32.totalorder %s18, 1
    %p120 = por %p118, %p119
    %p121 = scmp.ne.s32.totalorder %s112, %s113
    %p122 = scmp.eq.s32.totalorder %s18, 0
    %p123 = por %p121, %p122
    %p124 = scmp.ne.s32.totalorder %s112, %s113
    %p125 = scmp.eq.s32.totalorder %s19, 1
    %p126 = por %p124, %p125
    %p128 = scmp.ne.s32.totalorder %s113, %s127
    %p129 = scmp.eq.s32.totalorder %s19, 0
    %p130 = por %p128, %p129
    %s132 = sadd.s32 %s131, 1
    %p135 = scmp.eq.s32.totalorder %s13, 1
    %p136 = scmp.ne.s32.totalorder %s131, %s133
    %p137 = scmp.eq.s32.totalorder %s13, 0
    %p138 = por %p136, %p137
    %p139 = scmp.ne.s32.totalorder %s131, %s133
    %p140 = scmp.eq.s32.totalorder %s18, 1
    %p141 = por %p139, %p140
    %p142 = scmp.ne.s32.totalorder %s133, %s134
    %p143 = scmp.eq.s32.totalorder %s18, 0
    %p144 = por %p142, %p143
    %p145 = scmp.ne.s32.totalorder %s133, %s134
    %p146 = scmp.eq.s32.totalorder %s19, 1
    %p147 = por %p145, %p146
    %p149 = scmp.ne.s32.totalorder %s134, %s148
    %p150 = scmp.eq.s32.totalorder %s19, 0
    %p151 = por %p149, %p150
    %s153 = sadd.s32 %s152, 1
    %p156 = scmp.eq.s32.totalorder %s13, 1
    %p157 = scmp.ne.s32.totalorder %s152, %s154
    %p158 = scmp.eq.s32.totalorder %s13, 0
    %p159 = por %p157, %p158
    %p160 = scmp.ne.s32.totalorder %s152, %s154
    %p161 = scmp.eq.s32.totalorder %s18, 1
    %p162 = por %p160, %p161
    %p163 = scmp.ne.s32.totalorder %s154, %s155
    %p164 = scmp.eq.s32.totalorder %s18, 0
    %p165 = por %p163, %p164
    %p166 = scmp.ne.s32.totalorder %s154, %s155
    %p167 = scmp.eq.s32.totalorder %s19, 1
    %p168 = por %p166, %p167
    %p170 = scmp.ne.s32.totalorder %s155, %s169
    %p171 = scmp.eq.s32.totalorder %s19, 0
    %p172 = por %p170, %p171
    %s173 = ssub.s32 %s13, %s20
    %p174 = scmp.eq.s32.totalorder %s173, 0
    %s176 = sadd.s32 %s175, 1
    %s177 = scalar_select %p174, %s175, %s176
    %p180 = pneg %p174
    %p181 = scmp.eq.s32.totalorder %s13, 1
    %p182 = por %p180, %p181
    %p183 = scmp.ne.s32.totalorder %s175, %s178
    %p184 = scmp.eq.s32.totalorder %s13, 0
    %p185 = por %p183, %p184
    %p186 = scmp.ne.s32.totalorder %s175, %s178
    %p187 = scmp.eq.s32.totalorder %s18, 1
    %p188 = por %p186, %p187
    %p189 = scmp.ne.s32.totalorder %s178, %s179
    %p190 = scmp.eq.s32.totalorder %s18, 0
    %p191 = por %p189, %p190
    %p192 = scmp.ne.s32.totalorder %s178, %s179
    %p193 = scmp.eq.s32.totalorder %s19, 1
    %p194 = por %p192, %p193
    %p196 = scmp.ne.s32.totalorder %s179, %s195
    %p197 = scmp.eq.s32.totalorder %s19, 0
    %p198 = por %p196, %p197
    %p199 = scmp.le.s32.totalorder 1, %s13
    %p200 = scmp.lt.s32.totalorder %s13, 3
    %p201 = pnand %p199, %p200
    %p202 = pneg %p201
    // Predicated region
    $region9: #{forward.3} parent=5 // pred_check
      _
    $region10: #{forward.3} parent=5 // pred_check_branch
      %204 = sbr.rel (%p201) target = $region12
    $region11: #{forward.3} parent=5 // pred_region
      %s205 = ssub.s32 %s13, 1
      // Predicated region
      $region13: #{forward.3} parent=11 // pred_check
        %p206 = pneg %p60
      $region14: #{forward.3} parent=11 // pred_check_branch
        %208 = sbr.rel (%p206) target = $region16
      $region15: #{forward.3} parent=11 // pred_region
        _
      $region16: #{forward.3} parent=11 // pred_fallthru
        _
      // Predicated region
      $region17: #{forward.3} parent=11 // pred_check
        %p209 = pneg %p81
      $region18: #{forward.3} parent=11 // pred_check_branch
        %211 = sbr.rel (%p209) target = $region20
      $region19: #{forward.3} parent=11 // pred_region
        _
      $region20: #{forward.3} parent=11 // pred_fallthru
        _
      // Predicated region
      $region21: #{forward.3} parent=11 // pred_check
        %p212 = pneg %p102
      $region22: #{forward.3} parent=11 // pred_check_branch
        %214 = sbr.rel (%p212) target = $region24
      $region23: #{forward.3} parent=11 // pred_region
        _
      $region24: #{forward.3} parent=11 // pred_fallthru
        _
      // Predicated region
      $region25: #{forward.3} parent=11 // pred_check
        %p215 = pneg %p123
      $region26: #{forward.3} parent=11 // pred_check_branch
        %217 = sbr.rel (%p215) target = $region28
      $region27: #{forward.3} parent=11 // pred_region
        _
      $region28: #{forward.3} parent=11 // pred_fallthru
        _
      // Predicated region
      $region29: #{forward.3} parent=11 // pred_check
        %p218 = pneg %p144
      $region30: #{forward.3} parent=11 // pred_check_branch
        %220 = sbr.rel (%p218) target = $region32
      $region31: #{forward.3} parent=11 // pred_region
        _
      $region32: #{forward.3} parent=11 // pred_fallthru
        _
      // Predicated region
      $region33: #{forward.3} parent=11 // pred_check
        %p221 = pneg %p165
      $region34: #{forward.3} parent=11 // pred_check_branch
        %223 = sbr.rel (%p221) target = $region36
      $region35: #{forward.3} parent=11 // pred_region
        _
      $region36: #{forward.3} parent=11 // pred_fallthru
        _
    $region12: #{forward.3} parent=5 // pred_fallthru
      _
    %p224 = scmp.lt.s32.totalorder %s13, 2
    // Predicated region
    $region37: #{forward.3} parent=5 // pred_check
      %p225 = pneg %p224
    $region38: #{forward.3} parent=5 // pred_check_branch
      %227 = sbr.rel (%p225) target = $region40
    $region39: #{forward.3} parent=5 // pred_region
      // Predicated region
      $region41: #{forward.3} parent=39 // pred_check
        %p228 = pneg %p33
      $region42: #{forward.3} parent=39 // pred_check_branch
        %230 = sbr.rel (%p228) target = $region44
      $region43: #{forward.3} parent=39 // pred_region
        %s231 = smul.u32 32, %s13
        %p232 = scmp.lt.s32.totalorder %s231, 63
        %s233 = scalar_select %p232, %s231, 63
        %s234 = smul.addr %s233, 4
        %s235 = scalar_lea.vmem %s0, %s234
        %s236 = smul.u32 32, %s13
      $region44: #{forward.3} parent=39 // pred_fallthru
        _
    $region40: #{forward.3} parent=5 // pred_fallthru
      _
    %p237 = scmp.le.s32.totalorder 1, %s13
    %p238 = scmp.lt.s32.totalorder %s13, 3
    %p239 = pnand %p237, %p238
    %p240 = pneg %p239
    // Predicated region
    $region45: #{forward.3} parent=5 // pred_check
      _
    $region46: #{forward.3} parent=5 // pred_check_branch
      %242 = sbr.rel (%p239) target = $region48
    $region47: #{forward.3} parent=5 // pred_region
      %s243 = ssub.s32 %s13, 1
      %s244 = smul.u32 32, %s18
      %p245 = scmp.lt.s32.totalorder %s244, 63
      %s246 = scalar_select %p245, %s244, 63
      %s247 = smul.addr %s246, 4
      %s248 = scalar_lea.vmem %s0, %s247
      %p249 = pneg %p39
      %p250 = pneg %p36
      %p251 = pneg %p60
      %p252 = pneg %p57
      %p253 = pneg %p81
      %p254 = pneg %p78
      %p255 = pneg %p102
      %p256 = pneg %p99
      %p257 = pneg %p123
      %p258 = pneg %p120
      %p259 = pneg %p144
      %p260 = pneg %p141
      %p261 = pneg %p165
      %p262 = pneg %p162
      %p263 = pneg %p191
      %p264 = pneg %p188
      %p265 = scmp.lt.s32.totalorder %s18, 1
      %s266 = scalar_select %p265, %s18, 1
      %s267 = scalar_lea.vmem %s7, %s266
      %s268 = smul.u32 32, %s18
      %p269 = scmp.lt.s32.totalorder %s268, 63
      %s270 = scalar_select %p269, %s268, 63
      %s271 = smul.addr %s270, 4
      %s272 = scalar_lea.vmem %s0, %s271
      %s273 = smul.u32 32, %s18
      %p274 = scmp.lt.s32.totalorder %s18, 1
      %s275 = scalar_select %p274, %s18, 1
      %s276 = scalar_lea.vmem %s7, %s275
      %v278 = vld [vmem:[%s272] sm:$0xf]
      %v279 = vld [vmem:[%s272 + $0x4] sm:$0xf]
      %v280 = vld [vmem:[%s272 + $0x8] sm:$0xf]
      %v281 = vld [vmem:[%s272 + $0xc] sm:$0xf]
      %v282 = vld [vmem:[%s272 + $0x10] sm:$0xf]
      %v283 = vld [vmem:[%s272 + $0x14] sm:$0xf]
      %v284 = vld [vmem:[%s272 + $0x18] sm:$0xf]
      %v285 = vld [vmem:[%s272 + $0x1c] sm:$0xf]
      %v286 = vld [vmem:[%s272 + $0x20] sm:$0xf]
      %v287 = vld [vmem:[%s272 + $0x24] sm:$0xf]
      %v288 = vld [vmem:[%s272 + $0x28] sm:$0xf]
      %v289 = vld [vmem:[%s272 + $0x2c] sm:$0xf]
      %v290 = vld [vmem:[%s272 + $0x30] sm:$0xf]
      %v291 = vld [vmem:[%s272 + $0x34] sm:$0xf]
      %v292 = vld [vmem:[%s272 + $0x38] sm:$0xf]
      %v293 = vld [vmem:[%s272 + $0x3c] sm:$0xf]
      %v294 = vld [vmem:[%s272 + $0x40] sm:$0xf]
      %v295 = vld [vmem:[%s272 + $0x44] sm:$0xf]
      %v296 = vld [vmem:[%s272 + $0x48] sm:$0xf]
      %v297 = vld [vmem:[%s272 + $0x4c] sm:$0xf]
      %v298 = vld [vmem:[%s272 + $0x50] sm:$0xf]
      %v299 = vld [vmem:[%s272 + $0x54] sm:$0xf]
      %v300 = vld [vmem:[%s272 + $0x58] sm:$0xf]
      %v301 = vld [vmem:[%s272 + $0x5c] sm:$0xf]
      %v302 = vld [vmem:[%s272 + $0x60] sm:$0xf]
      %v303 = vld [vmem:[%s272 + $0x64] sm:$0xf]
      %v304 = vld [vmem:[%s272 + $0x68] sm:$0xf]
      %v305 = vld [vmem:[%s272 + $0x6c] sm:$0xf]
      %v306 = vld [vmem:[%s272 + $0x70] sm:$0xf]
      %v307 = vld [vmem:[%s272 + $0x74] sm:$0xf]
      %v308 = vld [vmem:[%s272 + $0x78] sm:$0xf]
      %v309 = vld [vmem:[%s272 + $0x7c] sm:$0xf]
      %v310 = vld [vmem:[%s1] sm:$0xf]
      %v311 = vld [vmem:[%s1 + $0x4] sm:$0xf]
      %v312 = vld [vmem:[%s1 + $0x8] sm:$0xf]
      %v313 = vld [vmem:[%s1 + $0xc] sm:$0xf]
      %v314 = vld [vmem:[%s1 + $0x10] sm:$0xf]
      %v315 = vld [vmem:[%s1 + $0x14] sm:$0xf]
      %v316 = vld [vmem:[%s1 + $0x18] sm:$0xf]
      %v317 = vld [vmem:[%s1 + $0x1c] sm:$0xf]
      %v318 = vld [vmem:[%s1 + $0x20] sm:$0xf]
      %v319 = vld [vmem:[%s1 + $0x24] sm:$0xf]
      %v320 = vld [vmem:[%s1 + $0x28] sm:$0xf]
      %v321 = vld [vmem:[%s1 + $0x2c] sm:$0xf]
      %v322 = vld [vmem:[%s1 + $0x30] sm:$0xf]
      %v323 = vld [vmem:[%s1 + $0x34] sm:$0xf]
      %v324 = vld [vmem:[%s1 + $0x38] sm:$0xf]
      %v325 = vld [vmem:[%s1 + $0x3c] sm:$0xf]
      %v326 = vld [vmem:[%s2] sm:$0x1]
      %v328 = vlaneseq
      %v329 = vshrl.u32 %v328, 7
      %v330 = vsub.s32 0, %v329
      %v331 = vrot.slane %v326, %v330
      %v365 = vunpack.c.l.b16 %v278
      %v366 = vunpack.c.l.b16 %v279
      %v367 = vunpack.c.l.b16 %v280
      %v368 = vunpack.c.l.b16 %v281
      %v369 = vunpack.c.l.b16 %v282
      %v370 = vunpack.c.l.b16 %v283
      %v371 = vunpack.c.l.b16 %v284
      %v372 = vunpack.c.l.b16 %v285
      %v373 = vunpack.c.l.b16 %v286
      %v374 = vunpack.c.l.b16 %v287
      %v375 = vunpack.c.l.b16 %v288
      %v376 = vunpack.c.l.b16 %v289
      %v377 = vunpack.c.l.b16 %v290
      %v378 = vunpack.c.l.b16 %v291
      %v379 = vunpack.c.l.b16 %v292
      %v380 = vunpack.c.l.b16 %v293
      %v381 = vunpack.c.l.b16 %v294
      %v382 = vunpack.c.l.b16 %v295
      %v383 = vunpack.c.l.b16 %v296
      %v384 = vunpack.c.l.b16 %v297
      %v385 = vunpack.c.l.b16 %v298
      %v386 = vunpack.c.l.b16 %v299
      %v387 = vunpack.c.l.b16 %v300
      %v388 = vunpack.c.l.b16 %v301
      %v389 = vunpack.c.l.b16 %v302
      %v390 = vunpack.c.l.b16 %v303
      %v391 = vunpack.c.l.b16 %v304
      %v392 = vunpack.c.l.b16 %v305
      %v393 = vunpack.c.l.b16 %v306
      %v394 = vunpack.c.l.b16 %v307
      %v395 = vunpack.c.l.b16 %v308
      %v396 = vunpack.c.l.b16 %v309
      %v397 = vpack.c.b16 %v366, %v365
      %v398 = vpack.c.b16 %v368, %v367
      %v399 = vpack.c.b16 %v370, %v369
      %v400 = vpack.c.b16 %v372, %v371
      %v401 = vpack.c.b16 %v374, %v373
      %v402 = vpack.c.b16 %v376, %v375
      %v403 = vpack.c.b16 %v378, %v377
      %v404 = vpack.c.b16 %v380, %v379
      %v405 = vpack.c.b16 %v382, %v381
      %v406 = vpack.c.b16 %v384, %v383
      %v407 = vpack.c.b16 %v386, %v385
      %v408 = vpack.c.b16 %v388, %v387
      %v409 = vpack.c.b16 %v390, %v389
      %v410 = vpack.c.b16 %v392, %v391
      %v411 = vpack.c.b16 %v394, %v393
      %v412 = vpack.c.b16 %v396, %v395
      %v445 = vunpack.c.l.b16 %v310
      %v446 = vunpack.c.l.b16 %v311
      %v447 = vunpack.c.l.b16 %v312
      %v448 = vunpack.c.l.b16 %v313
      %v449 = vunpack.c.l.b16 %v314
      %v450 = vunpack.c.l.b16 %v315
      %v451 = vunpack.c.l.b16 %v316
      %v452 = vunpack.c.l.b16 %v317
      %v453 = vunpack.c.l.b16 %v318
      %v454 = vunpack.c.l.b16 %v319
      %v455 = vunpack.c.l.b16 %v320
      %v456 = vunpack.c.l.b16 %v321
      %v457 = vunpack.c.l.b16 %v322
      %v458 = vunpack.c.l.b16 %v323
      %v459 = vunpack.c.l.b16 %v324
      %v460 = vunpack.c.l.b16 %v325
      %v461 = vpack.c.b16 %v446, %v445
      %v462 = vpack.c.b16 %v448, %v447
      %v463 = vpack.c.b16 %v450, %v449
      %v464 = vpack.c.b16 %v452, %v451
      %v465 = vpack.c.b16 %v454, %v453
      %v466 = vpack.c.b16 %v456, %v455
      %v467 = vpack.c.b16 %v458, %v457
      %v468 = vpack.c.b16 %v460, %v459
      %477 = vmatprep.subr.bf16.mxu0 0
      %478 = vmatpush1.bf16.msra.mxu0 %v461
      %479 = vmatprep.subr.bf16.mxu0 0
      %480 = vmatpush1.bf16.msra.mxu0 %v462
      %481 = vmatprep.subr.bf16.mxu0 0
      %482 = vmatpush1.bf16.msra.mxu0 %v463
      %483 = vmatprep.subr.bf16.mxu0 0
      %484 = vmatpush1.bf16.msra.mxu0 %v464
      %485 = vmatprep.subr.bf16.mxu0 0
      %486 = vmatpush1.bf16.msra.mxu0 %v465
      %487 = vmatprep.subr.bf16.mxu0 0
      %488 = vmatpush1.bf16.msra.mxu0 %v466
      %489 = vmatprep.subr.bf16.mxu0 0
      %490 = vmatpush1.bf16.msra.mxu0 %v467
      %491 = vmatprep.subr.bf16.mxu0 0
      %492 = vmatpush1.bf16.msra.mxu0 %v468
      %493 = vmatprep.subr.bf16.mxu0 0
      %494 = vmatpush1.bf16.msra.mxu0 0
      %495 = vmatprep.subr.bf16.mxu0 0
      %496 = vmatpush1.bf16.msra.mxu0 0
      %497 = vmatprep.subr.bf16.mxu0 0
      %498 = vmatpush1.bf16.msra.mxu0 0
      %499 = vmatprep.subr.bf16.mxu0 0
      %500 = vmatpush1.bf16.msra.mxu0 0
      %501 = vmatprep.subr.bf16.mxu0 0
      %502 = vmatpush1.bf16.msra.mxu0 0
      %503 = vmatprep.subr.bf16.mxu0 0
      %504 = vmatpush1.bf16.msra.mxu0 0
      %505 = vmatprep.subr.bf16.mxu0 0
      %506 = vmatpush1.bf16.msra.mxu0 0
      %507 = vmatprep.subr.bf16.mxu0 0
      %508 = vmatpush1.bf16.msra.mxu0 0
      %509 = vmatprep.mubr.bf16.mxu0 0
      %510 = vmatmul.mubr.bf16.gmra.mrb[0].mxu0 %v397
      %v511 = vpop.f32.mrb[0].mxu0
      %v512 = vadd.f32 %v331, %v511
      %v513 = vpop.f32.mrb[0].mxu0
      %v514 = vpop.f32.mrb[0].mxu0
      %v515 = vadd.f32 %v331, %v514
      %v516 = vpop.f32.mrb[0].mxu0
      %517 = vmatprep.mubr.bf16.mxu0 0
      %518 = vmatmul.mubr.bf16.gmra.mrb[0].mxu0 %v398
      %v519 = vpop.f32.mrb[0].mxu0
      %v520 = vadd.f32 %v331, %v519
      %v521 = vpop.f32.mrb[0].mxu0
      %v522 = vpop.f32.mrb[0].mxu0
      %v523 = vadd.f32 %v331, %v522
      %v524 = vpop.f32.mrb[0].mxu0
      %525 = vmatprep.mubr.bf16.mxu0 0
      %526 = vmatmul.mubr.bf16.gmra.mrb[0].mxu0 %v399
      %v527 = vpop.f32.mrb[0].mxu0
      %v528 = vadd.f32 %v331, %v527
      %v529 = vpop.f32.mrb[0].mxu0
      %v530 = vpop.f32.mrb[0].mxu0
      %v531 = vadd.f32 %v331, %v530
      %v532 = vpop.f32.mrb[0].mxu0
      %533 = vmatprep.mubr.bf16.mxu0 0
      %534 = vmatmul.mubr.bf16.gmra.mrb[0].mxu0 %v400
      %v535 = vpop.f32.mrb[0].mxu0
      %v536 = vadd.f32 %v331, %v535
      %v537 = vpop.f32.mrb[0].mxu0
      %v538 = vpop.f32.mrb[0].mxu0
      %v539 = vadd.f32 %v331, %v538
      %v540 = vpop.f32.mrb[0].mxu0
      %541 = vmatprep.mubr.bf16.mxu0 0
      %542 = vmatmul.mubr.bf16.gmra.mrb[0].mxu0 %v401
      %v543 = vpop.f32.mrb[0].mxu0
      %v544 = vadd.f32 %v331, %v543
      %v545 = vpop.f32.mrb[0].mxu0
      %v546 = vpop.f32.mrb[0].mxu0
      %v547 = vadd.f32 %v331, %v546
      %v548 = vpop.f32.mrb[0].mxu0
      %549 = vmatprep.mubr.bf16.mxu0 0
      %550 = vmatmul.mubr.bf16.gmra.mrb[0].mxu0 %v402
      %v551 = vpop.f32.mrb[0].mxu0
      %v552 = vadd.f32 %v331, %v551
      %v553 = vpop.f32.mrb[0].mxu0
      %v554 = vpop.f32.mrb[0].mxu0
      %v555 = vadd.f32 %v331, %v554
      %v556 = vpop.f32.mrb[0].mxu0
      %557 = vmatprep.mubr.bf16.mxu0 0
      %558 = vmatmul.mubr.bf16.gmra.mrb[0].mxu0 %v403
      %v559 = vpop.f32.mrb[0].mxu0
      %v560 = vadd.f32 %v331, %v559
      %v561 = vpop.f32.mrb[0].mxu0
      %v562 = vpop.f32.mrb[0].mxu0
      %v563 = vadd.f32 %v331, %v562
      %v564 = vpop.f32.mrb[0].mxu0
      %565 = vmatprep.mubr.bf16.mxu0 0
      %566 = vmatmul.mubr.bf16.gmra.mrb[0].mxu0 %v404
      %v567 = vpop.f32.mrb[0].mxu0
      %v568 = vadd.f32 %v331, %v567
      %v569 = vpop.f32.mrb[0].mxu0
      %v570 = vpop.f32.mrb[0].mxu0
      %v571 = vadd.f32 %v331, %v570
      %v572 = vpop.f32.mrb[0].mxu0
      %573 = vmatprep.mubr.bf16.mxu0 0
      %574 = vmatmul.mubr.bf16.gmra.mrb[0].mxu0 %v405
      %v575 = vpop.f32.mrb[0].mxu0
      %v576 = vadd.f32 %v331, %v575
      %v577 = vpop.f32.mrb[0].mxu0
      %v578 = vpop.f32.mrb[0].mxu0
      %v579 = vadd.f32 %v331, %v578
      %v580 = vpop.f32.mrb[0].mxu0
      %581 = vmatprep.mubr.bf16.mxu0 0
      %582 = vmatmul.mubr.bf16.gmra.mrb[0].mxu0 %v406
      %v583 = vpop.f32.mrb[0].mxu0
      %v584 = vadd.f32 %v331, %v583
      %v585 = vpop.f32.mrb[0].mxu0
      %v586 = vpop.f32.mrb[0].mxu0
      %v587 = vadd.f32 %v331, %v586
      %v588 = vpop.f32.mrb[0].mxu0
      %589 = vmatprep.mubr.bf16.mxu0 0
      %590 = vmatmul.mubr.bf16.gmra.mrb[0].mxu0 %v407
      %v591 = vpop.f32.mrb[0].mxu0
      %v592 = vadd.f32 %v331, %v591
      %v593 = vpop.f32.mrb[0].mxu0
      %v594 = vpop.f32.mrb[0].mxu0
      %v595 = vadd.f32 %v331, %v594
      %v596 = vpop.f32.mrb[0].mxu0
      %597 = vmatprep.mubr.bf16.mxu0 0
      %598 = vmatmul.mubr.bf16.gmra.mrb[0].mxu0 %v408
      %v599 = vpop.f32.mrb[0].mxu0
      %v600 = vadd.f32 %v331, %v599
      %v601 = vpop.f32.mrb[0].mxu0
      %v602 = vpop.f32.mrb[0].mxu0
      %v603 = vadd.f32 %v331, %v602
      %v604 = vpop.f32.mrb[0].mxu0
      %605 = vmatprep.mubr.bf16.mxu0 0
      %606 = vmatmul.mubr.bf16.gmra.mrb[0].mxu0 %v409
      %v607 = vpop.f32.mrb[0].mxu0
      %v608 = vadd.f32 %v331, %v607
      %v609 = vpop.f32.mrb[0].mxu0
      %v610 = vpop.f32.mrb[0].mxu0
      %v611 = vadd.f32 %v331, %v610
      %v612 = vpop.f32.mrb[0].mxu0
      %613 = vmatprep.mubr.bf16.mxu0 0
      %614 = vmatmul.mubr.bf16.gmra.mrb[0].mxu0 %v410
      %v615 = vpop.f32.mrb[0].mxu0
      %v616 = vadd.f32 %v331, %v615
      %v617 = vpop.f32.mrb[0].mxu0
      %v618 = vpop.f32.mrb[0].mxu0
      %v619 = vadd.f32 %v331, %v618
      %v620 = vpop.f32.mrb[0].mxu0
      %621 = vmatprep.mubr.bf16.mxu0 0
      %622 = vmatmul.mubr.bf16.gmra.mrb[0].mxu0 %v411
      %v623 = vpop.f32.mrb[0].mxu0
      %v624 = vadd.f32 %v331, %v623
      %v625 = vpop.f32.mrb[0].mxu0
      %v626 = vpop.f32.mrb[0].mxu0
      %v627 = vadd.f32 %v331, %v626
      %v628 = vpop.f32.mrb[0].mxu0
      %629 = vmatprep.mubr.bf16.mxu0 0
      %630 = vmatmul.mubr.bf16.gmra.mrb[0].mxu0 %v412
      %v631 = vpop.f32.mrb[0].mxu0
      %v632 = vadd.f32 %v331, %v631
      %v633 = vpop.f32.mrb[0].mxu0
      %v634 = vpop.f32.mrb[0].mxu0
      %v635 = vadd.f32 %v331, %v634
      %v636 = vpop.f32.mrb[0].mxu0
      %637 = vdwg.mxu0
      %v638 = vmax.f32 %v512, 0.0
      %v639 = vmax.f32 %v515, 0.0
      %v640 = vmax.f32 %v520, 0.0
      %v641 = vmax.f32 %v523, 0.0
      %v642 = vmax.f32 %v528, 0.0
      %v643 = vmax.f32 %v531, 0.0
      %v644 = vmax.f32 %v536, 0.0
      %v645 = vmax.f32 %v539, 0.0
      %v646 = vmax.f32 %v544, 0.0
      %v647 = vmax.f32 %v547, 0.0
      %v648 = vmax.f32 %v552, 0.0
      %v649 = vmax.f32 %v555, 0.0
      %v650 = vmax.f32 %v560, 0.0
      %v651 = vmax.f32 %v563, 0.0
      %v652 = vmax.f32 %v568, 0.0
      %v653 = vmax.f32 %v571, 0.0
      %v654 = vmax.f32 %v576, 0.0
      %v655 = vmax.f32 %v579, 0.0
      %v656 = vmax.f32 %v584, 0.0
      %v657 = vmax.f32 %v587, 0.0
      %v658 = vmax.f32 %v592, 0.0
      %v659 = vmax.f32 %v595, 0.0
      %v660 = vmax.f32 %v600, 0.0
      %v661 = vmax.f32 %v603, 0.0
      %v662 = vmax.f32 %v608, 0.0
      %v663 = vmax.f32 %v611, 0.0
      %v664 = vmax.f32 %v616, 0.0
      %v665 = vmax.f32 %v619, 0.0
      %v666 = vmax.f32 %v624, 0.0
      %v667 = vmax.f32 %v627, 0.0
      %v668 = vmax.f32 %v632, 0.0
      %v669 = vmax.f32 %v635, 0.0
      %v670 = vpack.c.bf16 %v639, %v638
      %v671 = vpack.c.bf16 %v641, %v640
      %v672 = vpack.c.bf16 %v643, %v642
      %v673 = vpack.c.bf16 %v645, %v644
      %v674 = vpack.c.bf16 %v647, %v646
      %v675 = vpack.c.bf16 %v649, %v648
      %v676 = vpack.c.bf16 %v651, %v650
      %v677 = vpack.c.bf16 %v653, %v652
      %v678 = vpack.c.bf16 %v655, %v654
      %v679 = vpack.c.bf16 %v657, %v656
      %v680 = vpack.c.bf16 %v659, %v658
      %v681 = vpack.c.bf16 %v661, %v660
      %v682 = vpack.c.bf16 %v663, %v662
      %v683 = vpack.c.bf16 %v665, %v664
      %v684 = vpack.c.bf16 %v667, %v666
      %v685 = vpack.c.bf16 %v669, %v668
      %v686 = vld [vmem:[%s3] sm:$0xf]
      %v687 = vld [vmem:[%s3 + $0x4] sm:$0xf]
      %v688 = vld [vmem:[%s3 + $0x8] sm:$0xf]
      %v689 = vld [vmem:[%s3 + $0xc] sm:$0xf]
      %v690 = vld [vmem:[%s3 + $0x10] sm:$0xf]
      %v691 = vld [vmem:[%s3 + $0x14] sm:$0xf]
      %v692 = vld [vmem:[%s3 + $0x18] sm:$0xf]
      %v693 = vld [vmem:[%s3 + $0x1c] sm:$0xf]
      %v694 = vld [vmem:[%s3 + $0x20] sm:$0xf]
      %v695 = vld [vmem:[%s3 + $0x24] sm:$0xf]
      %v696 = vld [vmem:[%s3 + $0x28] sm:$0xf]
      %v697 = vld [vmem:[%s3 + $0x2c] sm:$0xf]
      %v698 = vld [vmem:[%s3 + $0x30] sm:$0xf]
      %v699 = vld [vmem:[%s3 + $0x34] sm:$0xf]
      %v700 = vld [vmem:[%s3 + $0x38] sm:$0xf]
      %v701 = vld [vmem:[%s3 + $0x3c] sm:$0xf]
      %v702 = vld [vmem:[%s4] sm:$0x1]
      %v704 = vlaneseq
      %v705 = vshrl.u32 %v704, 7
      %v706 = vsub.s32 0, %v705
      %v707 = vrot.slane %v702, %v706
      %v725 = vunpack.c.l.b16 %v686
      %v726 = vunpack.c.l.b16 %v687
      %v727 = vunpack.c.l.b16 %v688
      %v728 = vunpack.c.l.b16 %v689
      %v729 = vunpack.c.l.b16 %v690
      %v730 = vunpack.c.l.b16 %v691
      %v731 = vunpack.c.l.b16 %v692
      %v732 = vunpack.c.l.b16 %v693
      %v733 = vunpack.c.l.b16 %v694
      %v734 = vunpack.c.l.b16 %v695
      %v735 = vunpack.c.l.b16 %v696
      %v736 = vunpack.c.l.b16 %v697
      %v737 = vunpack.c.l.b16 %v698
      %v738 = vunpack.c.l.b16 %v699
      %v739 = vunpack.c.l.b16 %v700
      %v740 = vunpack.c.l.b16 %v701
      %v741 = vpack.c.b16 %v726, %v725
      %v742 = vpack.c.b16 %v728, %v727
      %v743 = vpack.c.b16 %v730, %v729
      %v744 = vpack.c.b16 %v732, %v731
      %v745 = vpack.c.b16 %v734, %v733
      %v746 = vpack.c.b16 %v736, %v735
      %v747 = vpack.c.b16 %v738, %v737
      %v748 = vpack.c.b16 %v740, %v739
      %757 = vmatprep.subr.bf16.mxu0 0
      %758 = vmatpush1.bf16.msra.mxu0 %v741
      %759 = vmatprep.subr.bf16.mxu0 0
      %760 = vmatpush1.bf16.msra.mxu0 %v742
      %761 = vmatprep.subr.bf16.mxu0 0
      %762 = vmatpush1.bf16.msra.mxu0 %v743
      %763 = vmatprep.subr.bf16.mxu0 0
      %764 = vmatpush1.bf16.msra.mxu0 %v744
      %765 = vmatprep.subr.bf16.mxu0 0
      %766 = vmatpush1.bf16.msra.mxu0 %v745
      %767 = vmatprep.subr.bf16.mxu0 0
      %768 = vmatpush1.bf16.msra.mxu0 %v746
      %769 = vmatprep.subr.bf16.mxu0 0
      %770 = vmatpush1.bf16.msra.mxu0 %v747
      %771 = vmatprep.subr.bf16.mxu0 0
      %772 = vmatpush1.bf16.msra.mxu0 %v748
      %773 = vmatprep.subr.bf16.mxu0 0
      %774 = vmatpush1.bf16.msra.mxu0 0
      %775 = vmatprep.subr.bf16.mxu0 0
      %776 = vmatpush1.bf16.msra.mxu0 0
      %777 = vmatprep.subr.bf16.mxu0 0
      %778 = vmatpush1.bf16.msra.mxu0 0
      %779 = vmatprep.subr.bf16.mxu0 0
      %780 = vmatpush1.bf16.msra.mxu0 0
      %781 = vmatprep.subr.bf16.mxu0 0
      %782 = vmatpush1.bf16.msra.mxu0 0
      %783 = vmatprep.subr.bf16.mxu0 0
      %784 = vmatpush1.bf16.msra.mxu0 0
      %785 = vmatprep.subr.bf16.mxu0 0
      %786 = vmatpush1.bf16.msra.mxu0 0
      %787 = vmatprep.subr.bf16.mxu0 0
      %788 = vmatpush1.bf16.msra.mxu0 0
      %789 = vmatprep.mubr.bf16.mxu0 0
      %790 = vmatmul.mubr.bf16.gmra.mrb[0].mxu0 %v670
      %v791 = vpop.f32.mrb[0].mxu0
      %v792 = vadd.f32 %v707, %v791
      %v793 = vpop.f32.mrb[0].mxu0
      %v794 = vpop.f32.mrb[0].mxu0
      %v795 = vadd.f32 %v707, %v794
      %v796 = vpop.f32.mrb[0].mxu0
      %797 = vmatprep.mubr.bf16.mxu0 0
      %798 = vmatmul.mubr.bf16.gmra.mrb[0].mxu0 %v671
      %v799 = vpop.f32.mrb[0].mxu0
      %v800 = vadd.f32 %v707, %v799
      %v801 = vpop.f32.mrb[0].mxu0
      %v802 = vpop.f32.mrb[0].mxu0
      %v803 = vadd.f32 %v707, %v802
      %v804 = vpop.f32.mrb[0].mxu0
      %805 = vmatprep.mubr.bf16.mxu0 0
      %806 = vmatmul.mubr.bf16.gmra.mrb[0].mxu0 %v672
      %v807 = vpop.f32.mrb[0].mxu0
      %v808 = vadd.f32 %v707, %v807
      %v809 = vpop.f32.mrb[0].mxu0
      %v810 = vpop.f32.mrb[0].mxu0
      %v811 = vadd.f32 %v707, %v810
      %v812 = vpop.f32.mrb[0].mxu0
      %813 = vmatprep.mubr.bf16.mxu0 0
      %814 = vmatmul.mubr.bf16.gmra.mrb[0].mxu0 %v673
      %v815 = vpop.f32.mrb[0].mxu0
      %v816 = vadd.f32 %v707, %v815
      %v817 = vpop.f32.mrb[0].mxu0
      %v818 = vpop.f32.mrb[0].mxu0
      %v819 = vadd.f32 %v707, %v818
      %v820 = vpop.f32.mrb[0].mxu0
      %821 = vmatprep.mubr.bf16.mxu0 0
      %822 = vmatmul.mubr.bf16.gmra.mrb[0].mxu0 %v674
      %v823 = vpop.f32.mrb[0].mxu0
      %v824 = vadd.f32 %v707, %v823
      %v825 = vpop.f32.mrb[0].mxu0
      %v826 = vpop.f32.mrb[0].mxu0
      %v827 = vadd.f32 %v707, %v826
      %v828 = vpop.f32.mrb[0].mxu0
      %829 = vmatprep.mubr.bf16.mxu0 0
      %830 = vmatmul.mubr.bf16.gmra.mrb[0].mxu0 %v675
      %v831 = vpop.f32.mrb[0].mxu0
      %v832 = vadd.f32 %v707, %v831
      %v833 = vpop.f32.mrb[0].mxu0
      %v834 = vpop.f32.mrb[0].mxu0
      %v835 = vadd.f32 %v707, %v834
      %v836 = vpop.f32.mrb[0].mxu0
      %837 = vmatprep.mubr.bf16.mxu0 0
      %838 = vmatmul.mubr.bf16.gmra.mrb[0].mxu0 %v676
      %v839 = vpop.f32.mrb[0].mxu0
      %v840 = vadd.f32 %v707, %v839
      %v841 = vpop.f32.mrb[0].mxu0
      %v842 = vpop.f32.mrb[0].mxu0
      %v843 = vadd.f32 %v707, %v842
      %v844 = vpop.f32.mrb[0].mxu0
      %845 = vmatprep.mubr.bf16.mxu0 0
      %846 = vmatmul.mubr.bf16.gmra.mrb[0].mxu0 %v677
      %v847 = vpop.f32.mrb[0].mxu0
      %v848 = vadd.f32 %v707, %v847
      %v849 = vpop.f32.mrb[0].mxu0
      %v850 = vpop.f32.mrb[0].mxu0
      %v851 = vadd.f32 %v707, %v850
      %v852 = vpop.f32.mrb[0].mxu0
      %853 = vmatprep.mubr.bf16.mxu0 0
      %854 = vmatmul.mubr.bf16.gmra.mrb[0].mxu0 %v678
      %v855 = vpop.f32.mrb[0].mxu0
      %v856 = vadd.f32 %v707, %v855
      %v857 = vpop.f32.mrb[0].mxu0
      %v858 = vpop.f32.mrb[0].mxu0
      %v859 = vadd.f32 %v707, %v858
      %v860 = vpop.f32.mrb[0].mxu0
      %861 = vmatprep.mubr.bf16.mxu0 0
      %862 = vmatmul.mubr.bf16.gmra.mrb[0].mxu0 %v679
      %v863 = vpop.f32.mrb[0].mxu0
      %v864 = vadd.f32 %v707, %v863
      %v865 = vpop.f32.mrb[0].mxu0
      %v866 = vpop.f32.mrb[0].mxu0
      %v867 = vadd.f32 %v707, %v866
      %v868 = vpop.f32.mrb[0].mxu0
      %869 = vmatprep.mubr.bf16.mxu0 0
      %870 = vmatmul.mubr.bf16.gmra.mrb[0].mxu0 %v680
      %v871 = vpop.f32.mrb[0].mxu0
      %v872 = vadd.f32 %v707, %v871
      %v873 = vpop.f32.mrb[0].mxu0
      %v874 = vpop.f32.mrb[0].mxu0
      %v875 = vadd.f32 %v707, %v874
      %v876 = vpop.f32.mrb[0].mxu0
      %877 = vmatprep.mubr.bf16.mxu0 0
      %878 = vmatmul.mubr.bf16.gmra.mrb[0].mxu0 %v681
      %v879 = vpop.f32.mrb[0].mxu0
      %v880 = vadd.f32 %v707, %v879
      %v881 = vpop.f32.mrb[0].mxu0
      %v882 = vpop.f32.mrb[0].mxu0
      %v883 = vadd.f32 %v707, %v882
      %v884 = vpop.f32.mrb[0].mxu0
      %885 = vmatprep.mubr.bf16.mxu0 0
      %886 = vmatmul.mubr.bf16.gmra.mrb[0].mxu0 %v682
      %v887 = vpop.f32.mrb[0].mxu0
      %v888 = vadd.f32 %v707, %v887
      %v889 = vpop.f32.mrb[0].mxu0
      %v890 = vpop.f32.mrb[0].mxu0
      %v891 = vadd.f32 %v707, %v890
      %v892 = vpop.f32.mrb[0].mxu0
      %893 = vmatprep.mubr.bf16.mxu0 0
      %894 = vmatmul.mubr.bf16.gmra.mrb[0].mxu0 %v683
      %v895 = vpop.f32.mrb[0].mxu0
      %v896 = vadd.f32 %v707, %v895
      %v897 = vpop.f32.mrb[0].mxu0
      %v898 = vpop.f32.mrb[0].mxu0
      %v899 = vadd.f32 %v707, %v898
      %v900 = vpop.f32.mrb[0].mxu0
      %901 = vmatprep.mubr.bf16.mxu0 0
      %902 = vmatmul.mubr.bf16.gmra.mrb[0].mxu0 %v684
      %v903 = vpop.f32.mrb[0].mxu0
      %v904 = vadd.f32 %v707, %v903
      %v905 = vpop.f32.mrb[0].mxu0
      %v906 = vpop.f32.mrb[0].mxu0
      %v907 = vadd.f32 %v707, %v906
      %v908 = vpop.f32.mrb[0].mxu0
      %909 = vmatprep.mubr.bf16.mxu0 0
      %910 = vmatmul.mubr.bf16.gmra.mrb[0].mxu0 %v685
      %v911 = vpop.f32.mrb[0].mxu0
      %v912 = vadd.f32 %v707, %v911
      %v913 = vpop.f32.mrb[0].mxu0
      %v914 = vpop.f32.mrb[0].mxu0
      %v915 = vadd.f32 %v707, %v914
      %v916 = vpop.f32.mrb[0].mxu0
      %917 = vdwg.mxu0
      %v918 = vmax.f32 %v792, 0.0
      %v919 = vmax.f32 %v795, 0.0
      %v920 = vmax.f32 %v800, 0.0
      %v921 = vmax.f32 %v803, 0.0
      %v922 = vmax.f32 %v808, 0.0
      %v923 = vmax.f32 %v811, 0.0
      %v924 = vmax.f32 %v816, 0.0
      %v925 = vmax.f32 %v819, 0.0
      %v926 = vmax.f32 %v824, 0.0
      %v927 = vmax.f32 %v827, 0.0
      %v928 = vmax.f32 %v832, 0.0
      %v929 = vmax.f32 %v835, 0.0
      %v930 = vmax.f32 %v840, 0.0
      %v931 = vmax.f32 %v843, 0.0
      %v932 = vmax.f32 %v848, 0.0
      %v933 = vmax.f32 %v851, 0.0
      %v934 = vmax.f32 %v856, 0.0
      %v935 = vmax.f32 %v859, 0.0
      %v936 = vmax.f32 %v864, 0.0
      %v937 = vmax.f32 %v867, 0.0
      %v938 = vmax.f32 %v872, 0.0
      %v939 = vmax.f32 %v875, 0.0
      %v940 = vmax.f32 %v880, 0.0
      %v941 = vmax.f32 %v883, 0.0
      %v942 = vmax.f32 %v888, 0.0
      %v943 = vmax.f32 %v891, 0.0
      %v944 = vmax.f32 %v896, 0.0
      %v945 = vmax.f32 %v899, 0.0
      %v946 = vmax.f32 %v904, 0.0
      %v947 = vmax.f32 %v907, 0.0
      %v948 = vmax.f32 %v912, 0.0
      %v949 = vmax.f32 %v915, 0.0
      %v950 = vpack.c.bf16 %v919, %v918
      %v951 = vpack.c.bf16 %v921, %v920
      %v952 = vpack.c.bf16 %v923, %v922
      %v953 = vpack.c.bf16 %v925, %v924
      %v954 = vpack.c.bf16 %v927, %v926
      %v955 = vpack.c.bf16 %v929, %v928
      %v956 = vpack.c.bf16 %v931, %v930
      %v957 = vpack.c.bf16 %v933, %v932
      %v958 = vpack.c.bf16 %v935, %v934
      %v959 = vpack.c.bf16 %v937, %v936
      %v960 = vpack.c.bf16 %v939, %v938
      %v961 = vpack.c.bf16 %v941, %v940
      %v962 = vpack.c.bf16 %v943, %v942
      %v963 = vpack.c.bf16 %v945, %v944
      %v964 = vpack.c.bf16 %v947, %v946
      %v965 = vpack.c.bf16 %v949, %v948
      %v966 = vld [vmem:[%s5] sm:$0xf]
      %v967 = vld [vmem:[%s5 + $0x4] sm:$0xf]
      %v968 = vld [vmem:[%s5 + $0x8] sm:$0xf]
      %v969 = vld [vmem:[%s5 + $0xc] sm:$0xf]
      %v970 = vld [vmem:[%s5 + $0x10] sm:$0xf]
      %v971 = vld [vmem:[%s5 + $0x14] sm:$0xf]
      %v972 = vld [vmem:[%s5 + $0x18] sm:$0xf]
      %v973 = vld [vmem:[%s5 + $0x1c] sm:$0xf]
      %v974 = vld [vmem:[%s5 + $0x20] sm:$0xf]
      %v975 = vld [vmem:[%s5 + $0x24] sm:$0xf]
      %v976 = vld [vmem:[%s5 + $0x28] sm:$0xf]
      %v977 = vld [vmem:[%s5 + $0x2c] sm:$0xf]
      %v978 = vld [vmem:[%s5 + $0x30] sm:$0xf]
      %v979 = vld [vmem:[%s5 + $0x34] sm:$0xf]
      %v980 = vld [vmem:[%s5 + $0x38] sm:$0xf]
      %v981 = vld [vmem:[%s5 + $0x3c] sm:$0xf]
      %v982 = vld [vmem:[%s6] sm:$0x1]
      %v984 = vlaneseq
      %v985 = vshrl.u32 %v984, 7
      %v986 = vsub.s32 0, %v985
      %v987 = vrot.slane %v982, %v986
      %v1005 = vunpack.c.l.b16 %v966
      %v1006 = vunpack.c.l.b16 %v967
      %v1007 = vunpack.c.l.b16 %v968
      %v1008 = vunpack.c.l.b16 %v969
      %v1009 = vunpack.c.l.b16 %v970
      %v1010 = vunpack.c.l.b16 %v971
      %v1011 = vunpack.c.l.b16 %v972
      %v1012 = vunpack.c.l.b16 %v973
      %v1013 = vunpack.c.l.b16 %v974
      %v1014 = vunpack.c.l.b16 %v975
      %v1015 = vunpack.c.l.b16 %v976
      %v1016 = vunpack.c.l.b16 %v977
      %v1017 = vunpack.c.l.b16 %v978
      %v1018 = vunpack.c.l.b16 %v979
      %v1019 = vunpack.c.l.b16 %v980
      %v1020 = vunpack.c.l.b16 %v981
      %v1021 = vpack.c.b16 %v1006, %v1005
      %v1022 = vpack.c.b16 %v1008, %v1007
      %v1023 = vpack.c.b16 %v1010, %v1009
      %v1024 = vpack.c.b16 %v1012, %v1011
      %v1025 = vpack.c.b16 %v1014, %v1013
      %v1026 = vpack.c.b16 %v1016, %v1015
      %v1027 = vpack.c.b16 %v1018, %v1017
      %v1028 = vpack.c.b16 %v1020, %v1019
      %1037 = vmatprep.subr.bf16.mxu0 0
      %1038 = vmatpush1.bf16.msra.mxu0 %v1021
      %1039 = vmatprep.subr.bf16.mxu0 0
      %1040 = vmatpush1.bf16.msra.mxu0 %v1022
      %1041 = vmatprep.subr.bf16.mxu0 0
      %1042 = vmatpush1.bf16.msra.mxu0 %v1023
      %1043 = vmatprep.subr.bf16.mxu0 0
      %1044 = vmatpush1.bf16.msra.mxu0 %v1024
      %1045 = vmatprep.subr.bf16.mxu0 0
      %1046 = vmatpush1.bf16.msra.mxu0 %v1025
      %1047 = vmatprep.subr.bf16.mxu0 0
      %1048 = vmatpush1.bf16.msra.mxu0 %v1026
      %1049 = vmatprep.subr.bf16.mxu0 0
      %1050 = vmatpush1.bf16.msra.mxu0 %v1027
      %1051 = vmatprep.subr.bf16.mxu0 0
      %1052 = vmatpush1.bf16.msra.mxu0 %v1028
      %1053 = vmatprep.subr.bf16.mxu0 0
      %1054 = vmatpush1.bf16.msra.mxu0 0
      %1055 = vmatprep.subr.bf16.mxu0 0
      %1056 = vmatpush1.bf16.msra.mxu0 0
      %1057 = vmatprep.subr.bf16.mxu0 0
      %1058 = vmatpush1.bf16.msra.mxu0 0
      %1059 = vmatprep.subr.bf16.mxu0 0
      %1060 = vmatpush1.bf16.msra.mxu0 0
      %1061 = vmatprep.subr.bf16.mxu0 0
      %1062 = vmatpush1.bf16.msra.mxu0 0
      %1063 = vmatprep.subr.bf16.mxu0 0
      %1064 = vmatpush1.bf16.msra.mxu0 0
      %1065 = vmatprep.subr.bf16.mxu0 0
      %1066 = vmatpush1.bf16.msra.mxu0 0
      %1067 = vmatprep.subr.bf16.mxu0 0
      %1068 = vmatpush1.bf16.msra.mxu0 0
      %1069 = vmatprep.mubr.bf16.mxu0 0
      %1070 = vmatmul.mubr.bf16.gmra.mrb[0].mxu0 %v950
      %v1071 = vpop.f32.mrb[0].mxu0
      %v1072 = vadd.f32 %v987, %v1071
      %v1073 = vpop.f32.mrb[0].mxu0
      %v1074 = vpop.f32.mrb[0].mxu0
      %v1075 = vadd.f32 %v987, %v1074
      %v1076 = vpop.f32.mrb[0].mxu0
      %1077 = vmatprep.mubr.bf16.mxu0 0
      %1078 = vmatmul.mubr.bf16.gmra.mrb[0].mxu0 %v951
      %v1079 = vpop.f32.mrb[0].mxu0
      %v1080 = vadd.f32 %v987, %v1079
      %v1081 = vpop.f32.mrb[0].mxu0
      %v1082 = vpop.f32.mrb[0].mxu0
      %v1083 = vadd.f32 %v987, %v1082
      %v1084 = vpop.f32.mrb[0].mxu0
      %1085 = vmatprep.mubr.bf16.mxu0 0
      %1086 = vmatmul.mubr.bf16.gmra.mrb[0].mxu0 %v952
      %v1087 = vpop.f32.mrb[0].mxu0
      %v1088 = vadd.f32 %v987, %v1087
      %v1089 = vpop.f32.mrb[0].mxu0
      %v1090 = vpop.f32.mrb[0].mxu0
      %v1091 = vadd.f32 %v987, %v1090
      %v1092 = vpop.f32.mrb[0].mxu0
      %1093 = vmatprep.mubr.bf16.mxu0 0
      %1094 = vmatmul.mubr.bf16.gmra.mrb[0].mxu0 %v953
      %v1095 = vpop.f32.mrb[0].mxu0
      %v1096 = vadd.f32 %v987, %v1095
      %v1097 = vpop.f32.mrb[0].mxu0
      %v1098 = vpop.f32.mrb[0].mxu0
      %v1099 = vadd.f32 %v987, %v1098
      %v1100 = vpop.f32.mrb[0].mxu0
      %1101 = vmatprep.mubr.bf16.mxu0 0
      %1102 = vmatmul.mubr.bf16.gmra.mrb[0].mxu0 %v954
      %v1103 = vpop.f32.mrb[0].mxu0
      %v1104 = vadd.f32 %v987, %v1103
      %v1105 = vpop.f32.mrb[0].mxu0
      %v1106 = vpop.f32.mrb[0].mxu0
      %v1107 = vadd.f32 %v987, %v1106
      %v1108 = vpop.f32.mrb[0].mxu0
      %1109 = vmatprep.mubr.bf16.mxu0 0
      %1110 = vmatmul.mubr.bf16.gmra.mrb[0].mxu0 %v955
      %v1111 = vpop.f32.mrb[0].mxu0
      %v1112 = vadd.f32 %v987, %v1111
      %v1113 = vpop.f32.mrb[0].mxu0
      %v1114 = vpop.f32.mrb[0].mxu0
      %v1115 = vadd.f32 %v987, %v1114
      %v1116 = vpop.f32.mrb[0].mxu0
      %1117 = vmatprep.mubr.bf16.mxu0 0
      %1118 = vmatmul.mubr.bf16.gmra.mrb[0].mxu0 %v956
      %v1119 = vpop.f32.mrb[0].mxu0
      %v1120 = vadd.f32 %v987, %v1119
      %v1121 = vpop.f32.mrb[0].mxu0
      %v1122 = vpop.f32.mrb[0].mxu0
      %v1123 = vadd.f32 %v987, %v1122
      %v1124 = vpop.f32.mrb[0].mxu0
      %1125 = vmatprep.mubr.bf16.mxu0 0
      %1126 = vmatmul.mubr.bf16.gmra.mrb[0].mxu0 %v957
      %v1127 = vpop.f32.mrb[0].mxu0
      %v1128 = vadd.f32 %v987, %v1127
      %v1129 = vpop.f32.mrb[0].mxu0
      %v1130 = vpop.f32.mrb[0].mxu0
      %v1131 = vadd.f32 %v987, %v1130
      %v1132 = vpop.f32.mrb[0].mxu0
      %1133 = vmatprep.mubr.bf16.mxu0 0
      %1134 = vmatmul.mubr.bf16.gmra.mrb[0].mxu0 %v958
      %v1135 = vpop.f32.mrb[0].mxu0
      %v1136 = vadd.f32 %v987, %v1135
      %v1137 = vpop.f32.mrb[0].mxu0
      %v1138 = vpop.f32.mrb[0].mxu0
      %v1139 = vadd.f32 %v987, %v1138
      %v1140 = vpop.f32.mrb[0].mxu0
      %1141 = vmatprep.mubr.bf16.mxu0 0
      %1142 = vmatmul.mubr.bf16.gmra.mrb[0].mxu0 %v959
      %v1143 = vpop.f32.mrb[0].mxu0
      %v1144 = vadd.f32 %v987, %v1143
      %v1145 = vpop.f32.mrb[0].mxu0
      %v1146 = vpop.f32.mrb[0].mxu0
      %v1147 = vadd.f32 %v987, %v1146
      %v1148 = vpop.f32.mrb[0].mxu0
      %1149 = vmatprep.mubr.bf16.mxu0 0
      %1150 = vmatmul.mubr.bf16.gmra.mrb[0].mxu0 %v960
      %v1151 = vpop.f32.mrb[0].mxu0
      %v1152 = vadd.f32 %v987, %v1151
      %v1153 = vpop.f32.mrb[0].mxu0
      %v1154 = vpop.f32.mrb[0].mxu0
      %v1155 = vadd.f32 %v987, %v1154
      %v1156 = vpop.f32.mrb[0].mxu0
      %1157 = vmatprep.mubr.bf16.mxu0 0
      %1158 = vmatmul.mubr.bf16.gmra.mrb[0].mxu0 %v961
      %v1159 = vpop.f32.mrb[0].mxu0
      %v1160 = vadd.f32 %v987, %v1159
      %v1161 = vpop.f32.mrb[0].mxu0
      %v1162 = vpop.f32.mrb[0].mxu0
      %v1163 = vadd.f32 %v987, %v1162
      %v1164 = vpop.f32.mrb[0].mxu0
      %1165 = vmatprep.mubr.bf16.mxu0 0
      %1166 = vmatmul.mubr.bf16.gmra.mrb[0].mxu0 %v962
      %v1167 = vpop.f32.mrb[0].mxu0
      %v1168 = vadd.f32 %v987, %v1167
      %v1169 = vpop.f32.mrb[0].mxu0
      %v1170 = vpop.f32.mrb[0].mxu0
      %v1171 = vadd.f32 %v987, %v1170
      %v1172 = vpop.f32.mrb[0].mxu0
      %1173 = vmatprep.mubr.bf16.mxu0 0
      %1174 = vmatmul.mubr.bf16.gmra.mrb[0].mxu0 %v963
      %v1175 = vpop.f32.mrb[0].mxu0
      %v1176 = vadd.f32 %v987, %v1175
      %v1177 = vpop.f32.mrb[0].mxu0
      %v1178 = vpop.f32.mrb[0].mxu0
      %v1179 = vadd.f32 %v987, %v1178
      %v1180 = vpop.f32.mrb[0].mxu0
      %1181 = vmatprep.mubr.bf16.mxu0 0
      %1182 = vmatmul.mubr.bf16.gmra.mrb[0].mxu0 %v964
      %v1183 = vpop.f32.mrb[0].mxu0
      %v1184 = vadd.f32 %v987, %v1183
      %v1185 = vpop.f32.mrb[0].mxu0
      %v1186 = vpop.f32.mrb[0].mxu0
      %v1187 = vadd.f32 %v987, %v1186
      %v1188 = vpop.f32.mrb[0].mxu0
      %1189 = vmatprep.mubr.bf16.mxu0 0
      %1190 = vmatmul.mubr.bf16.gmra.mrb[0].mxu0 %v965
      %v1191 = vpop.f32.mrb[0].mxu0
      %v1192 = vadd.f32 %v987, %v1191
      %v1193 = vpop.f32.mrb[0].mxu0
      %v1194 = vpop.f32.mrb[0].mxu0
      %v1195 = vadd.f32 %v987, %v1194
      %v1196 = vpop.f32.mrb[0].mxu0
      %1197 = vdwg.mxu0
      %v1198 = vmax.f32 %v1072, 0.0
      %v1199 = vmax.f32 %v1075, 0.0
      %v1200 = vmax.f32 %v1080, 0.0
      %v1201 = vmax.f32 %v1083, 0.0
      %v1202 = vmax.f32 %v1088, 0.0
      %v1203 = vmax.f32 %v1091, 0.0
      %v1204 = vmax.f32 %v1096, 0.0
      %v1205 = vmax.f32 %v1099, 0.0
      %v1206 = vmax.f32 %v1104, 0.0
      %v1207 = vmax.f32 %v1107, 0.0
      %v1208 = vmax.f32 %v1112, 0.0
      %v1209 = vmax.f32 %v1115, 0.0
      %v1210 = vmax.f32 %v1120, 0.0
      %v1211 = vmax.f32 %v1123, 0.0
      %v1212 = vmax.f32 %v1128, 0.0
      %v1213 = vmax.f32 %v1131, 0.0
      %v1214 = vmax.f32 %v1136, 0.0
      %v1215 = vmax.f32 %v1139, 0.0
      %v1216 = vmax.f32 %v1144, 0.0
      %v1217 = vmax.f32 %v1147, 0.0
      %v1218 = vmax.f32 %v1152, 0.0
      %v1219 = vmax.f32 %v1155, 0.0
      %v1220 = vmax.f32 %v1160, 0.0
      %v1221 = vmax.f32 %v1163, 0.0
      %v1222 = vmax.f32 %v1168, 0.0
      %v1223 = vmax.f32 %v1171, 0.0
      %v1224 = vmax.f32 %v1176, 0.0
      %v1225 = vmax.f32 %v1179, 0.0
      %v1226 = vmax.f32 %v1184, 0.0
      %v1227 = vmax.f32 %v1187, 0.0
      %v1228 = vmax.f32 %v1192, 0.0
      %v1229 = vmax.f32 %v1195, 0.0
      %v1230 = vadd.f32 %v1198, %v1199
      %v1231 = vadd.f32 %v1230, %v1200
      %v1232 = vadd.f32 %v1231, %v1201
      %v1233 = vadd.f32 %v1232, %v1202
      %v1234 = vadd.f32 %v1233, %v1203
      %v1235 = vadd.f32 %v1234, %v1204
      %v1236 = vadd.f32 %v1235, %v1205
      %v1237 = vadd.f32 %v1236, %v1206
      %v1238 = vadd.f32 %v1237, %v1207
      %v1239 = vadd.f32 %v1238, %v1208
      %v1240 = vadd.f32 %v1239, %v1209
      %v1241 = vadd.f32 %v1240, %v1210
      %v1242 = vadd.f32 %v1241, %v1211
      %v1243 = vadd.f32 %v1242, %v1212
      %v1244 = vadd.f32 %v1243, %v1213
      %v1245 = vadd.f32 %v1244, %v1214
      %v1246 = vadd.f32 %v1245, %v1215
      %v1247 = vadd.f32 %v1246, %v1216
      %v1248 = vadd.f32 %v1247, %v1217
      %v1249 = vadd.f32 %v1248, %v1218
      %v1250 = vadd.f32 %v1249, %v1219
      %v1251 = vadd.f32 %v1250, %v1220
      %v1252 = vadd.f32 %v1251, %v1221
      %v1253 = vadd.f32 %v1252, %v1222
      %v1254 = vadd.f32 %v1253, %v1223
      %v1255 = vadd.f32 %v1254, %v1224
      %v1256 = vadd.f32 %v1255, %v1225
      %v1257 = vadd.f32 %v1256, %v1226
      %v1258 = vadd.f32 %v1257, %v1227
      %v1259 = vadd.f32 %v1258, %v1228
      %v1260 = vadd.f32 %v1259, %v1229
      %v1261 = vrot.slane %v1260, 4
      %v1262 = vadd.f32 %v1260, %v1261
      %v1263 = vrot.slane %v1262, 2
      %v1264 = vadd.f32 %v1262, %v1263
      %v1265 = vrot.slane %v1264, 1
      %v1266 = vadd.f32 %v1264, %v1265
      %v1267 = vrcp.pop 256.0
      %v1268 = vmul.f32 %v1266, %v1267
      %1269 = vst [vmem:[%s276] sm:$0x1] %v1268
      %p1270 = scmp.lt.s32.totalorder %s18, 1
      %s1271 = scalar_select %p1270, %s18, 1
      %s1272 = scalar_lea.vmem %s7, %s1271
      // Predicated region
      $region49: #{forward.3} parent=47 // pred_check
        %p1273 = pneg %p188
      $region50: #{forward.3} parent=47 // pred_check_branch
        %1275 = sbr.rel (%p1273) target = $region52
      $region51: #{forward.3} parent=47 // pred_region
        _
      $region52: #{forward.3} parent=47 // pred_fallthru
        _
    $region48: #{forward.3} parent=5 // pred_fallthru
      _
    %p1276 = scmp.le.s32.totalorder 2, %s13
    // Predicated region
    $region53: #{forward.3} parent=5 // pred_check
      %p1277 = pneg %p1276
    $region54: #{forward.3} parent=5 // pred_check_branch
      %1279 = sbr.rel (%p1277) target = $region56
    $region55: #{forward.3} parent=5 // pred_region
      %s1280 = ssub.s32 %s13, 2
      // Predicated region
      $region57: #{forward.3} parent=55 // pred_check
        %p1281 = pneg %p194
      $region58: #{forward.3} parent=55 // pred_check_branch
        %1283 = sbr.rel (%p1281) target = $region60
      $region59: #{forward.3} parent=55 // pred_region
        %p1284 = scmp.lt.s32.totalorder %s19, 1
        %s1285 = scalar_select %p1284, %s19, 1
        %s1286 = scalar_lea.vmem %s7, %s1285
      $region60: #{forward.3} parent=55 // pred_fallthru
        _
    $region56: #{forward.3} parent=5 // pred_fallthru
      _
  $region6: #{forward.3} parent=0 // loop_footer
    %s17 = sadd.s32 1, %s13
  $region7: #{forward.3} parent=0 // loop_footer_branch
    %12 = sbr.rel target = $region3
  $region8: #{forward.3} parent=0 // loop_exit
    _

// kernel: forward.5
$region0: #{forward.5}
  #allocation0 [shape = 'u32[]', space=smem, size = 0x4, offset = 0x4, fixed_abs, tag = 'smem constant byte address 0x4 - core index']
  #allocation1 [shape = 'u32[144,128]{1,0:T(1,128)}', space=vmem, size = 0x12000, scoped, tag = 'internal scratch']
  %s0 = inlined_call_operand.vmem [shape: f32[2,128], index: 0, kind: input, shape index: {}]
  %s1 = inlined_call_operand.vmem [shape: f32[2,512], index: 1, kind: input, shape index: {}]
  %s2 = inlined_call_operand.vmem [shape: bf16[128,128], index: 2, kind: input, shape index: {}]
  %s3 = inlined_call_operand.vmem [shape: bf16[512,128], index: 3, kind: input, shape index: {}]
  %s4 = inlined_call_operand.vmem [shape: f32[1,128], index: 4, kind: input, shape index: {}]
  %s5 = inlined_call_operand.hbm [shape: f32[2,128], index: 5, kind: output, shape index: {}]
  %s6 = sld [smem:[#allocation0]]
  $region30: #{forward.5} parent=0
    _
  %s8 = ssub.s32 1, %s6
  %s9 = scalar_select 0, %s8, %s6
  $region1: #{forward.5} parent=0
    #allocation2 [shape = 'u8[1024]{0}', space=vmem, size = 0x400, scoped, tag = 'output window, operand 0, single buffered']
    #allocation3 [shape = 's32[1]{0}', space=sflag, size = 0x4, scoped, tag = 'scoped memory for forward.5']
    %10 = vsyncpa [#allocation3], 0
    // Predicated region
    $region2: #{forward.5} parent=1 // pred_check
      _
    $region3: #{forward.5} parent=1 // pred_check_branch
      %12 = sbr.rel (0) target = $region5
    $region4: #{forward.5} parent=1 // pred_region
      _
    $region5: #{forward.5} parent=1 // pred_fallthru
      _
    // Predicated region
    $region6: #{forward.5} parent=1 // pred_check
      _
    $region7: #{forward.5} parent=1 // pred_check_branch
      %14 = sbr.rel (0) target = $region9
    $region8: #{forward.5} parent=1 // pred_region
      _
    $region9: #{forward.5} parent=1 // pred_fallthru
      _
    // Predicated region
    $region10: #{forward.5} parent=1 // pred_check
      _
    $region11: #{forward.5} parent=1 // pred_check_branch
      %16 = sbr.rel (0) target = $region13
    $region12: #{forward.5} parent=1 // pred_region
      _
    $region13: #{forward.5} parent=1 // pred_fallthru
      _
    // Predicated region
    $region14: #{forward.5} parent=1 // pred_check
      _
    $region15: #{forward.5} parent=1 // pred_check_branch
      %18 = sbr.rel (0) target = $region17
    $region16: #{forward.5} parent=1 // pred_region
      _
    $region17: #{forward.5} parent=1 // pred_fallthru
      _
    // Predicated region
    $region18: #{forward.5} parent=1 // pred_check
      _
    $region19: #{forward.5} parent=1 // pred_check_branch
      %20 = sbr.rel (0) target = $region21
    $region20: #{forward.5} parent=1 // pred_region
      _
    $region21: #{forward.5} parent=1 // pred_fallthru
      _
    %v22 = vld [vmem:[%s0] sm:$0x3]
    %v23 = vpack.c.bf16 %v22, %v22
    %v24 = vld [vmem:[%s1] sm:$0xff]
    %v26 = vcombine.high %v24, %v24
    %v28 = vunpack.c.l.s4 1983009808
    %v29 = vunpack.c.0.s8 %v28
    %v30 = vlaneseq
    %v31 = vshrl.u32 %v30, 7
    %v32 = vsub.s32 %v29, %v31
    %v33 = vrot.slane %v24, %v32
    %v35 = vunpack.c.l.s4 1983009808
    %v36 = vunpack.c.0.s8 %v35
    %v37 = vlaneseq
    %v38 = vshrl.u32 %v37, 7
    %v39 = vsub.s32 %v36, %v38
    %v40 = vrot.slane %v26, %v39
    %v41 = vcombine.high %v33, %v33
    %v42 = vcombine.high %v40, %v40
    %v47 = vpack.c.bf16 %v33, %v33
    %v48 = vpack.c.bf16 %v41, %v41
    %v49 = vpack.c.bf16 %v40, %v40
    %v50 = vpack.c.bf16 %v42, %v42
    %v51 = vld [vmem:[%s2] sm:$0xf]
    %v52 = vld [vmem:[%s2 + $0x4] sm:$0xf]
    %v53 = vld [vmem:[%s2 + $0x8] sm:$0xf]
    %v54 = vld [vmem:[%s2 + $0xc] sm:$0xf]
    %v55 = vld [vmem:[%s2 + $0x10] sm:$0xf]
    %v56 = vld [vmem:[%s2 + $0x14] sm:$0xf]
    %v57 = vld [vmem:[%s2 + $0x18] sm:$0xf]
    %v58 = vld [vmem:[%s2 + $0x1c] sm:$0xf]
    %v59 = vld [vmem:[%s2 + $0x20] sm:$0xf]
    %v60 = vld [vmem:[%s2 + $0x24] sm:$0xf]
    %v61 = vld [vmem:[%s2 + $0x28] sm:$0xf]
    %v62 = vld [vmem:[%s2 + $0x2c] sm:$0xf]
    %v63 = vld [vmem:[%s2 + $0x30] sm:$0xf]
    %v64 = vld [vmem:[%s2 + $0x34] sm:$0xf]
    %v65 = vld [vmem:[%s2 + $0x38] sm:$0xf]
    %v66 = vld [vmem:[%s2 + $0x3c] sm:$0xf]
    %v67 = vld [vmem:[%s3] sm:$0xf]
    %v68 = vld [vmem:[%s3 + $0x4] sm:$0xf]
    %v69 = vld [vmem:[%s3 + $0x8] sm:$0xf]
    %v70 = vld [vmem:[%s3 + $0xc] sm:$0xf]
    %v71 = vld [vmem:[%s3 + $0x10] sm:$0xf]
    %v72 = vld [vmem:[%s3 + $0x14] sm:$0xf]
    %v73 = vld [vmem:[%s3 + $0x18] sm:$0xf]
    %v74 = vld [vmem:[%s3 + $0x1c] sm:$0xf]
    %v75 = vld [vmem:[%s3 + $0x20] sm:$0xf]
    %v76 = vld [vmem:[%s3 + $0x24] sm:$0xf]
    %v77 = vld [vmem:[%s3 + $0x28] sm:$0xf]
    %v78 = vld [vmem:[%s3 + $0x2c] sm:$0xf]
    %v79 = vld [vmem:[%s3 + $0x30] sm:$0xf]
    %v80 = vld [vmem:[%s3 + $0x34] sm:$0xf]
    %v81 = vld [vmem:[%s3 + $0x38] sm:$0xf]
    %v82 = vld [vmem:[%s3 + $0x3c] sm:$0xf]
    %v83 = vld [vmem:[%s3 + $0x40] sm:$0xf]
    %v84 = vld [vmem:[%s3 + $0x44] sm:$0xf]
    %v85 = vld [vmem:[%s3 + $0x48] sm:$0xf]
    %v86 = vld [vmem:[%s3 + $0x4c] sm:$0xf]
    %v87 = vld [vmem:[%s3 + $0x50] sm:$0xf]
    %v88 = vld [vmem:[%s3 + $0x54] sm:$0xf]
    %v89 = vld [vmem:[%s3 + $0x58] sm:$0xf]
    %v90 = vld [vmem:[%s3 + $0x5c] sm:$0xf]
    %v91 = vld [vmem:[%s3 + $0x60] sm:$0xf]
    %v92 = vld [vmem:[%s3 + $0x64] sm:$0xf]
    %v93 = vld [vmem:[%s3 + $0x68] sm:$0xf]
    %v94 = vld [vmem:[%s3 + $0x6c] sm:$0xf]
    %v95 = vld [vmem:[%s3 + $0x70] sm:$0xf]
    %v96 = vld [vmem:[%s3 + $0x74] sm:$0xf]
    %v97 = vld [vmem:[%s3 + $0x78] sm:$0xf]
    %v98 = vld [vmem:[%s3 + $0x7c] sm:$0xf]
    %v99 = vld [vmem:[%s3 + $0x80] sm:$0xf]
    %v100 = vld [vmem:[%s3 + $0x84] sm:$0xf]
    %v101 = vld [vmem:[%s3 + $0x88] sm:$0xf]
    %v102 = vld [vmem:[%s3 + $0x8c] sm:$0xf]
    %v103 = vld [vmem:[%s3 + $0x90] sm:$0xf]
    %v104 = vld [vmem:[%s3 + $0x94] sm:$0xf]
    %v105 = vld [vmem:[%s3 + $0x98] sm:$0xf]
    %v106 = vld [vmem:[%s3 + $0x9c] sm:$0xf]
    %v107 = vld [vmem:[%s3 + $0xa0] sm:$0xf]
    %v108 = vld [vmem:[%s3 + $0xa4] sm:$0xf]
    %v109 = vld [vmem:[%s3 + $0xa8] sm:$0xf]
    %v110 = vld [vmem:[%s3 + $0xac] sm:$0xf]
    %v111 = vld [vmem:[%s3 + $0xb0] sm:$0xf]
    %v112 = vld [vmem:[%s3 + $0xb4] sm:$0xf]
    %v113 = vld [vmem:[%s3 + $0xb8] sm:$0xf]
    %v114 = vld [vmem:[%s3 + $0xbc] sm:$0xf]
    %v115 = vld [vmem:[%s3 + $0xc0] sm:$0xf]
    %v116 = vld [vmem:[%s3 + $0xc4] sm:$0xf]
    %v117 = vld [vmem:[%s3 + $0xc8] sm:$0xf]
    %v118 = vld [vmem:[%s3 + $0xcc] sm:$0xf]
    %v119 = vld [vmem:[%s3 + $0xd0] sm:$0xf]
    %v120 = vld [vmem:[%s3 + $0xd4] sm:$0xf]
    %v121 = vld [vmem:[%s3 + $0xd8] sm:$0xf]
    %v122 = vld [vmem:[%s3 + $0xdc] sm:$0xf]
    %v123 = vld [vmem:[%s3 + $0xe0] sm:$0xf]
    %v124 = vld [vmem:[%s3 + $0xe4] sm:$0xf]
    %v125 = vld [vmem:[%s3 + $0xe8] sm:$0xf]
    %v126 = vld [vmem:[%s3 + $0xec] sm:$0xf]
    %v127 = vld [vmem:[%s3 + $0xf0] sm:$0xf]
    %v128 = vld [vmem:[%s3 + $0xf4] sm:$0xf]
    %v129 = vld [vmem:[%s3 + $0xf8] sm:$0xf]
    %v130 = vld [vmem:[%s3 + $0xfc] sm:$0xf]
    %v195 = vunpack.c.l.b16 %v67
    %v196 = vunpack.c.l.b16 %v68
    %v197 = vunpack.c.l.b16 %v69
    %v198 = vunpack.c.l.b16 %v70
    %v199 = vunpack.c.l.b16 %v71
    %v200 = vunpack.c.l.b16 %v72
    %v201 = vunpack.c.l.b16 %v73
    %v202 = vunpack.c.l.b16 %v74
    %v203 = vunpack.c.l.b16 %v75
    %v204 = vunpack.c.l.b16 %v76
    %v205 = vunpack.c.l.b16 %v77
    %v206 = vunpack.c.l.b16 %v78
    %v207 = vunpack.c.l.b16 %v79
    %v208 = vunpack.c.l.b16 %v80
    %v209 = vunpack.c.l.b16 %v81
    %v210 = vunpack.c.l.b16 %v82
    %v211 = vunpack.c.l.b16 %v83
    %v212 = vunpack.c.l.b16 %v84
    %v213 = vunpack.c.l.b16 %v85
    %v214 = vunpack.c.l.b16 %v86
    %v215 = vunpack.c.l.b16 %v87
    %v216 = vunpack.c.l.b16 %v88
    %v217 = vunpack.c.l.b16 %v89
    %v218 = vunpack.c.l.b16 %v90
    %v219 = vunpack.c.l.b16 %v91
    %v220 = vunpack.c.l.b16 %v92
    %v221 = vunpack.c.l.b16 %v93
    %v222 = vunpack.c.l.b16 %v94
    %v223 = vunpack.c.l.b16 %v95
    %v224 = vunpack.c.l.b16 %v96
    %v225 = vunpack.c.l.b16 %v97
    %v226 = vunpack.c.l.b16 %v98
    %v227 = vunpack.c.l.b16 %v99
    %v228 = vunpack.c.l.b16 %v100
    %v229 = vunpack.c.l.b16 %v101
    %v230 = vunpack.c.l.b16 %v102
    %v231 = vunpack.c.l.b16 %v103
    %v232 = vunpack.c.l.b16 %v104
    %v233 = vunpack.c.l.b16 %v105
    %v234 = vunpack.c.l.b16 %v106
    %v235 = vunpack.c.l.b16 %v107
    %v236 = vunpack.c.l.b16 %v108
    %v237 = vunpack.c.l.b16 %v109
    %v238 = vunpack.c.l.b16 %v110
    %v239 = vunpack.c.l.b16 %v111
    %v240 = vunpack.c.l.b16 %v112
    %v241 = vunpack.c.l.b16 %v113
    %v242 = vunpack.c.l.b16 %v114
    %v243 = vunpack.c.l.b16 %v115
    %v244 = vunpack.c.l.b16 %v116
    %v245 = vunpack.c.l.b16 %v117
    %v246 = vunpack.c.l.b16 %v118
    %v247 = vunpack.c.l.b16 %v119
    %v248 = vunpack.c.l.b16 %v120
    %v249 = vunpack.c.l.b16 %v121
    %v250 = vunpack.c.l.b16 %v122
    %v251 = vunpack.c.l.b16 %v123
    %v252 = vunpack.c.l.b16 %v124
    %v253 = vunpack.c.l.b16 %v125
    %v254 = vunpack.c.l.b16 %v126
    %v255 = vunpack.c.l.b16 %v127
    %v256 = vunpack.c.l.b16 %v128
    %v257 = vunpack.c.l.b16 %v129
    %v258 = vunpack.c.l.b16 %v130
    %v259 = vpack.c.b16 %v196, %v195
    %v260 = vpack.c.b16 %v198, %v197
    %v261 = vpack.c.b16 %v200, %v199
    %v262 = vpack.c.b16 %v202, %v201
    %v263 = vpack.c.b16 %v204, %v203
    %v264 = vpack.c.b16 %v206, %v205
    %v265 = vpack.c.b16 %v208, %v207
    %v266 = vpack.c.b16 %v210, %v209
    %v267 = vpack.c.b16 %v212, %v211
    %v268 = vpack.c.b16 %v214, %v213
    %v269 = vpack.c.b16 %v216, %v215
    %v270 = vpack.c.b16 %v218, %v217
    %v271 = vpack.c.b16 %v220, %v219
    %v272 = vpack.c.b16 %v222, %v221
    %v273 = vpack.c.b16 %v224, %v223
    %v274 = vpack.c.b16 %v226, %v225
    %v275 = vpack.c.b16 %v228, %v227
    %v276 = vpack.c.b16 %v230, %v229
    %v277 = vpack.c.b16 %v232, %v231
    %v278 = vpack.c.b16 %v234, %v233
    %v279 = vpack.c.b16 %v236, %v235
    %v280 = vpack.c.b16 %v238, %v237
    %v281 = vpack.c.b16 %v240, %v239
    %v282 = vpack.c.b16 %v242, %v241
    %v283 = vpack.c.b16 %v244, %v243
    %v284 = vpack.c.b16 %v246, %v245
    %v285 = vpack.c.b16 %v248, %v247
    %v286 = vpack.c.b16 %v250, %v249
    %v287 = vpack.c.b16 %v252, %v251
    %v288 = vpack.c.b16 %v254, %v253
    %v289 = vpack.c.b16 %v256, %v255
    %v290 = vpack.c.b16 %v258, %v257
    %323 = vmatprep.subr.bf16.mxu0 0
    %324 = vmatpush1.bf16.msra.mxu0 %v259
    %325 = vmatprep.subr.bf16.mxu0 0
    %326 = vmatpush1.bf16.msra.mxu0 %v260
    %327 = vmatprep.subr.bf16.mxu0 0
    %328 = vmatpush1.bf16.msra.mxu0 %v261
    %329 = vmatprep.subr.bf16.mxu0 0
    %330 = vmatpush1.bf16.msra.mxu0 %v262
    %331 = vmatprep.subr.bf16.mxu0 0
    %332 = vmatpush1.bf16.msra.mxu0 %v263
    %333 = vmatprep.subr.bf16.mxu0 0
    %334 = vmatpush1.bf16.msra.mxu0 %v264
    %335 = vmatprep.subr.bf16.mxu0 0
    %336 = vmatpush1.bf16.msra.mxu0 %v265
    %337 = vmatprep.subr.bf16.mxu0 0
    %338 = vmatpush1.bf16.msra.mxu0 %v266
    %339 = vmatprep.subr.bf16.mxu0 0
    %340 = vmatpush1.bf16.msra.mxu0 %v267
    %341 = vmatprep.subr.bf16.mxu0 0
    %342 = vmatpush1.bf16.msra.mxu0 %v268
    %343 = vmatprep.subr.bf16.mxu0 0
    %344 = vmatpush1.bf16.msra.mxu0 %v269
    %345 = vmatprep.subr.bf16.mxu0 0
    %346 = vmatpush1.bf16.msra.mxu0 %v270
    %347 = vmatprep.subr.bf16.mxu0 0
    %348 = vmatpush1.bf16.msra.mxu0 %v271
    %349 = vmatprep.subr.bf16.mxu0 0
    %350 = vmatpush1.bf16.msra.mxu0 %v272
    %351 = vmatprep.subr.bf16.mxu0 0
    %352 = vmatpush1.bf16.msra.mxu0 %v273
    %353 = vmatprep.subr.bf16.mxu0 0
    %354 = vmatpush1.bf16.msra.mxu0 %v274
    %355 = vmatprep.mubr.bf16.mxu0 %v48
    %356 = vmatmul.mubr.bf16.gmra.mrb[0].mxu0 %v47
    %v357 = vpop.f32.mrb[0].mxu0
    %v358 = vadd.f32 0.0, %v357
    %v359 = vpop.f32.mrb[0].mxu0
    %v360 = vpop.f32.mrb[0].mxu0
    %v361 = vpop.f32.mrb[0].mxu0
    %362 = vdwg.mxu0
    %363 = vmatprep.subr.bf16.mxu0 0
    %364 = vmatpush1.bf16.msra.mxu0 %v275
    %365 = vmatprep.subr.bf16.mxu0 0
    %366 = vmatpush1.bf16.msra.mxu0 %v276
    %367 = vmatprep.subr.bf16.mxu0 0
    %368 = vmatpush1.bf16.msra.mxu0 %v277
    %369 = vmatprep.subr.bf16.mxu0 0
    %370 = vmatpush1.bf16.msra.mxu0 %v278
    %371 = vmatprep.subr.bf16.mxu0 0
    %372 = vmatpush1.bf16.msra.mxu0 %v279
    %373 = vmatprep.subr.bf16.mxu0 0
    %374 = vmatpush1.bf16.msra.mxu0 %v280
    %375 = vmatprep.subr.bf16.mxu0 0
    %376 = vmatpush1.bf16.msra.mxu0 %v281
    %377 = vmatprep.subr.bf16.mxu0 0
    %378 = vmatpush1.bf16.msra.mxu0 %v282
    %379 = vmatprep.subr.bf16.mxu0 0
    %380 = vmatpush1.bf16.msra.mxu0 %v283
    %381 = vmatprep.subr.bf16.mxu0 0
    %382 = vmatpush1.bf16.msra.mxu0 %v284
    %383 = vmatprep.subr.bf16.mxu0 0
    %384 = vmatpush1.bf16.msra.mxu0 %v285
    %385 = vmatprep.subr.bf16.mxu0 0
    %386 = vmatpush1.bf16.msra.mxu0 %v286
    %387 = vmatprep.subr.bf16.mxu0 0
    %388 = vmatpush1.bf16.msra.mxu0 %v287
    %389 = vmatprep.subr.bf16.mxu0 0
    %390 = vmatpush1.bf16.msra.mxu0 %v288
    %391 = vmatprep.subr.bf16.mxu0 0
    %392 = vmatpush1.bf16.msra.mxu0 %v289
    %393 = vmatprep.subr.bf16.mxu0 0
    %394 = vmatpush1.bf16.msra.mxu0 %v290
    %395 = vmatprep.mubr.bf16.mxu0 %v50
    %396 = vmatmul.mubr.bf16.gmra.mrb[0].mxu0 %v49
    %v397 = vpop.f32.mrb[0].mxu0
    %v398 = vadd.f32 %v358, %v397
    %v399 = vpop.f32.mrb[0].mxu0
    %v400 = vpop.f32.mrb[0].mxu0
    %v401 = vpop.f32.mrb[0].mxu0
    %402 = vdwg.mxu0
    %v419 = vunpack.c.l.b16 %v51
    %v420 = vunpack.c.l.b16 %v52
    %v421 = vunpack.c.l.b16 %v53
    %v422 = vunpack.c.l.b16 %v54
    %v423 = vunpack.c.l.b16 %v55
    %v424 = vunpack.c.l.b16 %v56
    %v425 = vunpack.c.l.b16 %v57
    %v426 = vunpack.c.l.b16 %v58
    %v427 = vunpack.c.l.b16 %v59
    %v428 = vunpack.c.l.b16 %v60
    %v429 = vunpack.c.l.b16 %v61
    %v430 = vunpack.c.l.b16 %v62
    %v431 = vunpack.c.l.b16 %v63
    %v432 = vunpack.c.l.b16 %v64
    %v433 = vunpack.c.l.b16 %v65
    %v434 = vunpack.c.l.b16 %v66
    %v435 = vpack.c.b16 %v420, %v419
    %v436 = vpack.c.b16 %v422, %v421
    %v437 = vpack.c.b16 %v424, %v423
    %v438 = vpack.c.b16 %v426, %v425
    %v439 = vpack.c.b16 %v428, %v427
    %v440 = vpack.c.b16 %v430, %v429
    %v441 = vpack.c.b16 %v432, %v431
    %v442 = vpack.c.b16 %v434, %v433
    %451 = vmatprep.subr.bf16.mxu0 0
    %452 = vmatpush1.bf16.msra.mxu0 %v435
    %453 = vmatprep.subr.bf16.mxu0 0
    %454 = vmatpush1.bf16.msra.mxu0 %v436
    %455 = vmatprep.subr.bf16.mxu0 0
    %456 = vmatpush1.bf16.msra.mxu0 %v437
    %457 = vmatprep.subr.bf16.mxu0 0
    %458 = vmatpush1.bf16.msra.mxu0 %v438
    %459 = vmatprep.subr.bf16.mxu0 0
    %460 = vmatpush1.bf16.msra.mxu0 %v439
    %461 = vmatprep.subr.bf16.mxu0 0
    %462 = vmatpush1.bf16.msra.mxu0 %v440
    %463 = vmatprep.subr.bf16.mxu0 0
    %464 = vmatpush1.bf16.msra.mxu0 %v441
    %465 = vmatprep.subr.bf16.mxu0 0
    %466 = vmatpush1.bf16.msra.mxu0 %v442
    %467 = vmatprep.subr.bf16.mxu0 0
    %468 = vmatpush1.bf16.msra.mxu0 0
    %469 = vmatprep.subr.bf16.mxu0 0
    %470 = vmatpush1.bf16.msra.mxu0 0
    %471 = vmatprep.subr.bf16.mxu0 0
    %472 = vmatpush1.bf16.msra.mxu0 0
    %473 = vmatprep.subr.bf16.mxu0 0
    %474 = vmatpush1.bf16.msra.mxu0 0
    %475 = vmatprep.subr.bf16.mxu0 0
    %476 = vmatpush1.bf16.msra.mxu0 0
    %477 = vmatprep.subr.bf16.mxu0 0
    %478 = vmatpush1.bf16.msra.mxu0 0
    %479 = vmatprep.subr.bf16.mxu0 0
    %480 = vmatpush1.bf16.msra.mxu0 0
    %481 = vmatprep.subr.bf16.mxu0 0
    %482 = vmatpush1.bf16.msra.mxu0 0
    %483 = vmatprep.mubr.bf16.mxu0 0
    %484 = vmatmul.mubr.bf16.gmra.mrb[0].mxu0 %v23
    %v485 = vpop.f32.mrb[0].mxu0
    %v486 = vadd.f32 %v398, %v485
    %v487 = vpop.f32.mrb[0].mxu0
    %v488 = vpop.f32.mrb[0].mxu0
    %v489 = vpop.f32.mrb[0].mxu0
    %490 = vdwg.mxu0
    %v491 = vld [vmem:[%s4] sm:$0x1]
    %v493 = vlaneseq
    %v494 = vshrl.u32 %v493, 7
    %v495 = vsub.s32 0, %v494
    %v496 = vrot.slane %v491, %v495
    %v498 = vadd.f32 %v486, %v496
    %499 = vst [vmem:[#allocation2] sm:$0x3] %v498
    // Predicated region
    $region22: #{forward.5} parent=1 // pred_check
      _
    $region23: #{forward.5} parent=1 // pred_check_branch
      %501 = sbr.rel (0) target = $region25
    $region24: #{forward.5} parent=1 // pred_region
      %s503 = ssub.s32 32, 32
      %504 = vsyncadd [#allocation3], %s503
      %s506 = sshll.u32 [#allocation2], 4
      %s507 = int_to_ptr.vmem [resolvable:$true] %s506
      %509 = dma.vmem_to_hbm [thread:$0]  %s507, 32, %s5, [#allocation3]
    $region25: #{forward.5} parent=1 // pred_fallthru
      _
    // Predicated region
    $region26: #{forward.5} parent=1 // pred_check
      _
    $region27: #{forward.5} parent=1 // pred_check_branch
      %511 = sbr.rel (0) target = $region29
    $region28: #{forward.5} parent=1 // pred_region
      %512 = dma.done [#allocation3], 32
    $region29: #{forward.5} parent=1 // pred_fallthru
      _
    %513 = vsyncpa [#allocation3], 1

// kernel: forward.4
$region0: #{forward.4}
  #allocation0 [shape = 'u32[]', space=smem, size = 0x4, offset = 0x4, fixed_abs, tag = 'smem constant byte address 0x4 - core index']
  #allocation1 [shape = 'u32[144,128]{1,0:T(1,128)}', space=vmem, size = 0x12000, scoped, tag = 'internal scratch']
  %s0 = inlined_call_operand.vmem [shape: bf16[32,128], index: 0, kind: input, shape index: {}]
  %s1 = inlined_call_operand.vmem [shape: bf16[128,512], index: 1, kind: input, shape index: {}]
  %s2 = inlined_call_operand.vmem [shape: f32[1,512], index: 2, kind: input, shape index: {}]
  %s3 = inlined_call_operand.vmem [shape: f32[1,512], index: 3, kind: input, shape index: {}]
  %s4 = inlined_call_operand.vmem [shape: f32[1,512], index: 4, kind: input, shape index: {}]
  %s5 = inlined_call_operand.vmem [shape: bf16[512,1536], index: 5, kind: input, shape index: {}]
  %s6 = inlined_call_operand.vmem [shape: f32[1,1536], index: 6, kind: input, shape index: {}]
  %s7 = inlined_call_operand.vmem [shape: bf16[512,512], index: 7, kind: input, shape index: {}]
  %s8 = inlined_call_operand.vmem [shape: f32[1,512], index: 8, kind: input, shape index: {}]
  %s9 = inlined_call_operand.vmem [shape: f32[1,512], index: 9, kind: input, shape index: {}]
  %s10 = inlined_call_operand.vmem [shape: f32[1,512], index: 10, kind: input, shape index: {}]
  %s11 = inlined_call_operand.vmem [shape: bf16[512,1024], index: 11, kind: input, shape index: {}]
  %s12 = inlined_call_operand.vmem [shape: f32[1,1024], index: 12, kind: input, shape index: {}]
  %s13 = inlined_call_operand.vmem [shape: bf16[1024,512], index: 13, kind: input, shape index: {}]
  %s14 = inlined_call_operand.vmem [shape: f32[1,512], index: 14, kind: input, shape index: {}]
  %s15 = inlined_call_operand.vmem [shape: f32[2,1,512], index: 15, kind: output, shape index: {}]
  %s16 = sld [smem:[#allocation0]]
  $region93: #{forward.4} parent=0
    _
  %s18 = ssub.s32 1, %s16
  %s19 = scalar_select 0, %s18, %s16
  loop: start=0, step=1, limit=4
  $region2: #{forward.4} parent=0 // loop_pre_header
    _
  $region3: #{forward.4} parent=0 // loop_header
    %s21 = sphi 0, %s25
    %p22 = scmp.ge.s32.totalorder %s21, 4
    %s31 = sphi 0, %s33
    %s34 = sphi 0, %s31
    %s35 = sphi 0, %s34
    %s51 = sphi 0, %s35
    %s55 = sphi 0, %s55
    %s57 = sphi 0, %s55
    %s58 = sphi 0, %s57
    %s72 = sphi 0, %s58
    %s76 = sphi 0, %s76
    %s78 = sphi 0, %s76
    %s79 = sphi 0, %s78
    %s93 = sphi 0, %s79
    %s97 = sphi 0, %s97
    %s99 = sphi 0, %s97
    %s100 = sphi 0, %s99
    %s114 = sphi 0, %s100
    %s118 = sphi 0, %s118
    %s120 = sphi 0, %s118
    %s121 = sphi 0, %s120
    %s135 = sphi 0, %s121
    %s139 = sphi 0, %s139
    %s141 = sphi 0, %s139
    %s142 = sphi 0, %s141
    %s156 = sphi 0, %s142
    %s160 = sphi 0, %s160
    %s162 = sphi 0, %s160
    %s163 = sphi 0, %s162
    %s177 = sphi 0, %s163
    %s181 = sphi 0, %s181
    %s183 = sphi 0, %s181
    %s184 = sphi 0, %s183
    %s198 = sphi 0, %s184
    %s202 = sphi 0, %s202
    %s204 = sphi 0, %s202
    %s205 = sphi 0, %s204
    %s219 = sphi 0, %s205
    %s223 = sphi 0, %s223
    %s225 = sphi 0, %s223
    %s226 = sphi 0, %s225
    %s240 = sphi 0, %s226
    %s244 = sphi 0, %s244
    %s246 = sphi 0, %s244
    %s247 = sphi 0, %s246
    %s261 = sphi 0, %s247
    %s265 = sphi 0, %s265
    %s267 = sphi 0, %s265
    %s268 = sphi 0, %s267
    %s282 = sphi 0, %s268
    %s286 = sphi 0, %s286
    %s288 = sphi 0, %s286
    %s289 = sphi 0, %s288
    %s303 = sphi 0, %s289
    %s307 = sphi 0, %s307
    %s309 = sphi 0, %s307
    %s310 = sphi 0, %s309
    %s324 = sphi 0, %s310
    %s328 = sphi 0, %s328
    %s330 = sphi 0, %s328
    %s331 = sphi 0, %s330
    %s345 = sphi 0, %s331
    %s351 = sphi 0, %s353
    %s354 = sphi 0, %s351
    %s355 = sphi 0, %s354
    %s371 = sphi 0, %s355
  $region4: #{forward.4} parent=0 // loop_header_branch
    %24 = sbr.rel (%p22) target = $region8
  $region5: #{forward.4} parent=0 // loop_body
    %s26 = ssub.s32 %s21, 1
    %s27 = ssub.s32 %s21, 2
    %s28 = sadd.s32 %s21, 1
    %s29 = ssub.s32 %s21, %s28
    %p30 = scmp.eq.s32.totalorder %s29, 0
    %s32 = sadd.s32 %s31, 1
    %s33 = scalar_select %p30, %s31, %s32
    %p36 = pneg %p30
    %p37 = scmp.eq.s32.totalorder %s21, 1
    %p38 = por %p36, %p37
    %p39 = scmp.ne.s32.totalorder %s31, %s34
    %p40 = scmp.eq.s32.totalorder %s21, 0
    %p41 = por %p39, %p40
    %p42 = scmp.ne.s32.totalorder %s31, %s34
    %p43 = scmp.eq.s32.totalorder %s26, 1
    %p44 = por %p42, %p43
    %p45 = scmp.ne.s32.totalorder %s34, %s35
    %p46 = scmp.eq.s32.totalorder %s26, 0
    %p47 = por %p45, %p46
    %p48 = scmp.ne.s32.totalorder %s34, %s35
    %p49 = scmp.eq.s32.totalorder %s27, 1
    %p50 = por %p48, %p49
    %p52 = scmp.ne.s32.totalorder %s35, %s51
    %p53 = scmp.eq.s32.totalorder %s27, 0
    %p54 = por %p52, %p53
    %s56 = sadd.s32 %s55, 1
    %p59 = scmp.eq.s32.totalorder %s21, 1
    %p60 = scmp.ne.s32.totalorder %s55, %s57
    %p61 = scmp.eq.s32.totalorder %s21, 0
    %p62 = por %p60, %p61
    %p63 = scmp.ne.s32.totalorder %s55, %s57
    %p64 = scmp.eq.s32.totalorder %s26, 1
    %p65 = por %p63, %p64
    %p66 = scmp.ne.s32.totalorder %s57, %s58
    %p67 = scmp.eq.s32.totalorder %s26, 0
    %p68 = por %p66, %p67
    %p69 = scmp.ne.s32.totalorder %s57, %s58
    %p70 = scmp.eq.s32.totalorder %s27, 1
    %p71 = por %p69, %p70
    %p73 = scmp.ne.s32.totalorder %s58, %s72
    %p74 = scmp.eq.s32.totalorder %s27, 0
    %p75 = por %p73, %p74
    %s77 = sadd.s32 %s76, 1
    %p80 = scmp.eq.s32.totalorder %s21, 1
    %p81 = scmp.ne.s32.totalorder %s76, %s78
    %p82 = scmp.eq.s32.totalorder %s21, 0
    %p83 = por %p81, %p82
    %p84 = scmp.ne.s32.totalorder %s76, %s78
    %p85 = scmp.eq.s32.totalorder %s26, 1
    %p86 = por %p84, %p85
    %p87 = scmp.ne.s32.totalorder %s78, %s79
    %p88 = scmp.eq.s32.totalorder %s26, 0
    %p89 = por %p87, %p88
    %p90 = scmp.ne.s32.totalorder %s78, %s79
    %p91 = scmp.eq.s32.totalorder %s27, 1
    %p92 = por %p90, %p91
    %p94 = scmp.ne.s32.totalorder %s79, %s93
    %p95 = scmp.eq.s32.totalorder %s27, 0
    %p96 = por %p94, %p95
    %s98 = sadd.s32 %s97, 1
    %p101 = scmp.eq.s32.totalorder %s21, 1
    %p102 = scmp.ne.s32.totalorder %s97, %s99
    %p103 = scmp.eq.s32.totalorder %s21, 0
    %p104 = por %p102, %p103
    %p105 = scmp.ne.s32.totalorder %s97, %s99
    %p106 = scmp.eq.s32.totalorder %s26, 1
    %p107 = por %p105, %p106
    %p108 = scmp.ne.s32.totalorder %s99, %s100
    %p109 = scmp.eq.s32.totalorder %s26, 0
    %p110 = por %p108, %p109
    %p111 = scmp.ne.s32.totalorder %s99, %s100
    %p112 = scmp.eq.s32.totalorder %s27, 1
    %p113 = por %p111, %p112
    %p115 = scmp.ne.s32.totalorder %s100, %s114
    %p116 = scmp.eq.s32.totalorder %s27, 0
    %p117 = por %p115, %p116
    %s119 = sadd.s32 %s118, 1
    %p122 = scmp.eq.s32.totalorder %s21, 1
    %p123 = scmp.ne.s32.totalorder %s118, %s120
    %p124 = scmp.eq.s32.totalorder %s21, 0
    %p125 = por %p123, %p124
    %p126 = scmp.ne.s32.totalorder %s118, %s120
    %p127 = scmp.eq.s32.totalorder %s26, 1
    %p128 = por %p126, %p127
    %p129 = scmp.ne.s32.totalorder %s120, %s121
    %p130 = scmp.eq.s32.totalorder %s26, 0
    %p131 = por %p129, %p130
    %p132 = scmp.ne.s32.totalorder %s120, %s121
    %p133 = scmp.eq.s32.totalorder %s27, 1
    %p134 = por %p132, %p133
    %p136 = scmp.ne.s32.totalorder %s121, %s135
    %p137 = scmp.eq.s32.totalorder %s27, 0
    %p138 = por %p136, %p137
    %s140 = sadd.s32 %s139, 1
    %p143 = scmp.eq.s32.totalorder %s21, 1
    %p144 = scmp.ne.s32.totalorder %s139, %s141
    %p145 = scmp.eq.s32.totalorder %s21, 0
    %p146 = por %p144, %p145
    %p147 = scmp.ne.s32.totalorder %s139, %s141
    %p148 = scmp.eq.s32.totalorder %s26, 1
    %p149 = por %p147, %p148
    %p150 = scmp.ne.s32.totalorder %s141, %s142
    %p151 = scmp.eq.s32.totalorder %s26, 0
    %p152 = por %p150, %p151
    %p153 = scmp.ne.s32.totalorder %s141, %s142
    %p154 = scmp.eq.s32.totalorder %s27, 1
    %p155 = por %p153, %p154
    %p157 = scmp.ne.s32.totalorder %s142, %s156
    %p158 = scmp.eq.s32.totalorder %s27, 0
    %p159 = por %p157, %p158
    %s161 = sadd.s32 %s160, 1
    %p164 = scmp.eq.s32.totalorder %s21, 1
    %p165 = scmp.ne.s32.totalorder %s160, %s162
    %p166 = scmp.eq.s32.totalorder %s21, 0
    %p167 = por %p165, %p166
    %p168 = scmp.ne.s32.totalorder %s160, %s162
    %p169 = scmp.eq.s32.totalorder %s26, 1
    %p170 = por %p168, %p169
    %p171 = scmp.ne.s32.totalorder %s162, %s163
    %p172 = scmp.eq.s32.totalorder %s26, 0
    %p173 = por %p171, %p172
    %p174 = scmp.ne.s32.totalorder %s162, %s163
    %p175 = scmp.eq.s32.totalorder %s27, 1
    %p176 = por %p174, %p175
    %p178 = scmp.ne.s32.totalorder %s163, %s177
    %p179 = scmp.eq.s32.totalorder %s27, 0
    %p180 = por %p178, %p179
    %s182 = sadd.s32 %s181, 1
    %p185 = scmp.eq.s32.totalorder %s21, 1
    %p186 = scmp.ne.s32.totalorder %s181, %s183
    %p187 = scmp.eq.s32.totalorder %s21, 0
    %p188 = por %p186, %p187
    %p189 = scmp.ne.s32.totalorder %s181, %s183
    %p190 = scmp.eq.s32.totalorder %s26, 1
    %p191 = por %p189, %p190
    %p192 = scmp.ne.s32.totalorder %s183, %s184
    %p193 = scmp.eq.s32.totalorder %s26, 0
    %p194 = por %p192, %p193
    %p195 = scmp.ne.s32.totalorder %s183, %s184
    %p196 = scmp.eq.s32.totalorder %s27, 1
    %p197 = por %p195, %p196
    %p199 = scmp.ne.s32.totalorder %s184, %s198
    %p200 = scmp.eq.s32.totalorder %s27, 0
    %p201 = por %p199, %p200
    %s203 = sadd.s32 %s202, 1
    %p206 = scmp.eq.s32.totalorder %s21, 1
    %p207 = scmp.ne.s32.totalorder %s202, %s204
    %p208 = scmp.eq.s32.totalorder %s21, 0
    %p209 = por %p207, %p208
    %p210 = scmp.ne.s32.totalorder %s202, %s204
    %p211 = scmp.eq.s32.totalorder %s26, 1
    %p212 = por %p210, %p211
    %p213 = scmp.ne.s32.totalorder %s204, %s205
    %p214 = scmp.eq.s32.totalorder %s26, 0
    %p215 = por %p213, %p214
    %p216 = scmp.ne.s32.totalorder %s204, %s205
    %p217 = scmp.eq.s32.totalorder %s27, 1
    %p218 = por %p216, %p217
    %p220 = scmp.ne.s32.totalorder %s205, %s219
    %p221 = scmp.eq.s32.totalorder %s27, 0
    %p222 = por %p220, %p221
    %s224 = sadd.s32 %s223, 1
    %p227 = scmp.eq.s32.totalorder %s21, 1
    %p228 = scmp.ne.s32.totalorder %s223, %s225
    %p229 = scmp.eq.s32.totalorder %s21, 0
    %p230 = por %p228, %p229
    %p231 = scmp.ne.s32.totalorder %s223, %s225
    %p232 = scmp.eq.s32.totalorder %s26, 1
    %p233 = por %p231, %p232
    %p234 = scmp.ne.s32.totalorder %s225, %s226
    %p235 = scmp.eq.s32.totalorder %s26, 0
    %p236 = por %p234, %p235
    %p237 = scmp.ne.s32.totalorder %s225, %s226
    %p238 = scmp.eq.s32.totalorder %s27, 1
    %p239 = por %p237, %p238
    %p241 = scmp.ne.s32.totalorder %s226, %s240
    %p242 = scmp.eq.s32.totalorder %s27, 0
    %p243 = por %p241, %p242
    %s245 = sadd.s32 %s244, 1
    %p248 = scmp.eq.s32.totalorder %s21, 1
    %p249 = scmp.ne.s32.totalorder %s244, %s246
    %p250 = scmp.eq.s32.totalorder %s21, 0
    %p251 = por %p249, %p250
    %p252 = scmp.ne.s32.totalorder %s244, %s246
    %p253 = scmp.eq.s32.totalorder %s26, 1
    %p254 = por %p252, %p253
    %p255 = scmp.ne.s32.totalorder %s246, %s247
    %p256 = scmp.eq.s32.totalorder %s26, 0
    %p257 = por %p255, %p256
    %p258 = scmp.ne.s32.totalorder %s246, %s247
    %p259 = scmp.eq.s32.totalorder %s27, 1
    %p260 = por %p258, %p259
    %p262 = scmp.ne.s32.totalorder %s247, %s261
    %p263 = scmp.eq.s32.totalorder %s27, 0
    %p264 = por %p262, %p263
    %s266 = sadd.s32 %s265, 1
    %p269 = scmp.eq.s32.totalorder %s21, 1
    %p270 = scmp.ne.s32.totalorder %s265, %s267
    %p271 = scmp.eq.s32.totalorder %s21, 0
    %p272 = por %p270, %p271
    %p273 = scmp.ne.s32.totalorder %s265, %s267
    %p274 = scmp.eq.s32.totalorder %s26, 1
    %p275 = por %p273, %p274
    %p276 = scmp.ne.s32.totalorder %s267, %s268
    %p277 = scmp.eq.s32.totalorder %s26, 0
    %p278 = por %p276, %p277
    %p279 = scmp.ne.s32.totalorder %s267, %s268
    %p280 = scmp.eq.s32.totalorder %s27, 1
    %p281 = por %p279, %p280
    %p283 = scmp.ne.s32.totalorder %s268, %s282
    %p284 = scmp.eq.s32.totalorder %s27, 0
    %p285 = por %p283, %p284
    %s287 = sadd.s32 %s286, 1
    %p290 = scmp.eq.s32.totalorder %s21, 1
    %p291 = scmp.ne.s32.totalorder %s286, %s288
    %p292 = scmp.eq.s32.totalorder %s21, 0
    %p293 = por %p291, %p292
    %p294 = scmp.ne.s32.totalorder %s286, %s288
    %p295 = scmp.eq.s32.totalorder %s26, 1
    %p296 = por %p294, %p295
    %p297 = scmp.ne.s32.totalorder %s288, %s289
    %p298 = scmp.eq.s32.totalorder %s26, 0
    %p299 = por %p297, %p298
    %p300 = scmp.ne.s32.totalorder %s288, %s289
    %p301 = scmp.eq.s32.totalorder %s27, 1
    %p302 = por %p300, %p301
    %p304 = scmp.ne.s32.totalorder %s289, %s303
    %p305 = scmp.eq.s32.totalorder %s27, 0
    %p306 = por %p304, %p305
    %s308 = sadd.s32 %s307, 1
    %p311 = scmp.eq.s32.totalorder %s21, 1
    %p312 = scmp.ne.s32.totalorder %s307, %s309
    %p313 = scmp.eq.s32.totalorder %s21, 0
    %p314 = por %p312, %p313
    %p315 = scmp.ne.s32.totalorder %s307, %s309
    %p316 = scmp.eq.s32.totalorder %s26, 1
    %p317 = por %p315, %p316
    %p318 = scmp.ne.s32.totalorder %s309, %s310
    %p319 = scmp.eq.s32.totalorder %s26, 0
    %p320 = por %p318, %p319
    %p321 = scmp.ne.s32.totalorder %s309, %s310
    %p322 = scmp.eq.s32.totalorder %s27, 1
    %p323 = por %p321, %p322
    %p325 = scmp.ne.s32.totalorder %s310, %s324
    %p326 = scmp.eq.s32.totalorder %s27, 0
    %p327 = por %p325, %p326
    %s329 = sadd.s32 %s328, 1
    %p332 = scmp.eq.s32.totalorder %s21, 1
    %p333 = scmp.ne.s32.totalorder %s328, %s330
    %p334 = scmp.eq.s32.totalorder %s21, 0
    %p335 = por %p333, %p334
    %p336 = scmp.ne.s32.totalorder %s328, %s330
    %p337 = scmp.eq.s32.totalorder %s26, 1
    %p338 = por %p336, %p337
    %p339 = scmp.ne.s32.totalorder %s330, %s331
    %p340 = scmp.eq.s32.totalorder %s26, 0
    %p341 = por %p339, %p340
    %p342 = scmp.ne.s32.totalorder %s330, %s331
    %p343 = scmp.eq.s32.totalorder %s27, 1
    %p344 = por %p342, %p343
    %p346 = scmp.ne.s32.totalorder %s331, %s345
    %p347 = scmp.eq.s32.totalorder %s27, 0
    %p348 = por %p346, %p347
    %s349 = ssub.s32 %s21, %s28
    %p350 = scmp.eq.s32.totalorder %s349, 0
    %s352 = sadd.s32 %s351, 1
    %s353 = scalar_select %p350, %s351, %s352
    %p356 = pneg %p350
    %p357 = scmp.eq.s32.totalorder %s21, 1
    %p358 = por %p356, %p357
    %p359 = scmp.ne.s32.totalorder %s351, %s354
    %p360 = scmp.eq.s32.totalorder %s21, 0
    %p361 = por %p359, %p360
    %p362 = scmp.ne.s32.totalorder %s351, %s354
    %p363 = scmp.eq.s32.totalorder %s26, 1
    %p364 = por %p362, %p363
    %p365 = scmp.ne.s32.totalorder %s354, %s355
    %p366 = scmp.eq.s32.totalorder %s26, 0
    %p367 = por %p365, %p366
    %p368 = scmp.ne.s32.totalorder %s354, %s355
    %p369 = scmp.eq.s32.totalorder %s27, 1
    %p370 = por %p368, %p369
    %p372 = scmp.ne.s32.totalorder %s355, %s371
    %p373 = scmp.eq.s32.totalorder %s27, 0
    %p374 = por %p372, %p373
    %p375 = scmp.le.s32.totalorder 1, %s21
    %p376 = scmp.lt.s32.totalorder %s21, 3
    %p377 = pnand %p375, %p376
    %p378 = pneg %p377
    // Predicated region
    $region9: #{forward.4} parent=5 // pred_check
      _
    $region10: #{forward.4} parent=5 // pred_check_branch
      %380 = sbr.rel (%p377) target = $region12
    $region11: #{forward.4} parent=5 // pred_region
      %s381 = ssub.s32 %s21, 1
      // Predicated region
      $region13: #{forward.4} parent=11 // pred_check
        %p382 = pneg %p68
      $region14: #{forward.4} parent=11 // pred_check_branch
        %384 = sbr.rel (%p382) target = $region16
      $region15: #{forward.4} parent=11 // pred_region
        _
      $region16: #{forward.4} parent=11 // pred_fallthru
        _
      // Predicated region
      $region17: #{forward.4} parent=11 // pred_check
        %p385 = pneg %p89
      $region18: #{forward.4} parent=11 // pred_check_branch
        %387 = sbr.rel (%p385) target = $region20
      $region19: #{forward.4} parent=11 // pred_region
        _
      $region20: #{forward.4} parent=11 // pred_fallthru
        _
      // Predicated region
      $region21: #{forward.4} parent=11 // pred_check
        %p388 = pneg %p110
      $region22: #{forward.4} parent=11 // pred_check_branch
        %390 = sbr.rel (%p388) target = $region24
      $region23: #{forward.4} parent=11 // pred_region
        _
      $region24: #{forward.4} parent=11 // pred_fallthru
        _
      // Predicated region
      $region25: #{forward.4} parent=11 // pred_check
        %p391 = pneg %p131
      $region26: #{forward.4} parent=11 // pred_check_branch
        %393 = sbr.rel (%p391) target = $region28
      $region27: #{forward.4} parent=11 // pred_region
        _
      $region28: #{forward.4} parent=11 // pred_fallthru
        _
      // Predicated region
      $region29: #{forward.4} parent=11 // pred_check
        %p394 = pneg %p152
      $region30: #{forward.4} parent=11 // pred_check_branch
        %396 = sbr.rel (%p394) target = $region32
      $region31: #{forward.4} parent=11 // pred_region
        _
      $region32: #{forward.4} parent=11 // pred_fallthru
        _
      // Predicated region
      $region33: #{forward.4} parent=11 // pred_check
        %p397 = pneg %p173
      $region34: #{forward.4} parent=11 // pred_check_branch
        %399 = sbr.rel (%p397) target = $region36
      $region35: #{forward.4} parent=11 // pred_region
        _
      $region36: #{forward.4} parent=11 // pred_fallthru
        _
      // Predicated region
      $region37: #{forward.4} parent=11 // pred_check
        %p400 = pneg %p194
      $region38: #{forward.4} parent=11 // pred_check_branch
        %402 = sbr.rel (%p400) target = $region40
      $region39: #{forward.4} parent=11 // pred_region
        _
      $region40: #{forward.4} parent=11 // pred_fallthru
        _
      // Predicated region
      $region41: #{forward.4} parent=11 // pred_check
        %p403 = pneg %p215
      $region42: #{forward.4} parent=11 // pred_check_branch
        %405 = sbr.rel (%p403) target = $region44
      $region43: #{forward.4} parent=11 // pred_region
        _
      $region44: #{forward.4} parent=11 // pred_fallthru
        _
      // Predicated region
      $region45: #{forward.4} parent=11 // pred_check
        %p406 = pneg %p236
      $region46: #{forward.4} parent=11 // pred_check_branch
        %408 = sbr.rel (%p406) target = $region48
      $region47: #{forward.4} parent=11 // pred_region
        _
      $region48: #{forward.4} parent=11 // pred_fallthru
        _
      // Predicated region
      $region49: #{forward.4} parent=11 // pred_check
        %p409 = pneg %p257
      $region50: #{forward.4} parent=11 // pred_check_branch
        %411 = sbr.rel (%p409) target = $region52
      $region51: #{forward.4} parent=11 // pred_region
        _
      $region52: #{forward.4} parent=11 // pred_fallthru
        _
      // Predicated region
      $region53: #{forward.4} parent=11 // pred_check
        %p412 = pneg %p278
      $region54: #{forward.4} parent=11 // pred_check_branch
        %414 = sbr.rel (%p412) target = $region56
      $region55: #{forward.4} parent=11 // pred_region
        _
      $region56: #{forward.4} parent=11 // pred_fallthru
        _
      // Predicated region
      $region57: #{forward.4} parent=11 // pred_check
        %p415 = pneg %p299
      $region58: #{forward.4} parent=11 // pred_check_branch
        %417 = sbr.rel (%p415) target = $region60
      $region59: #{forward.4} parent=11 // pred_region
        _
      $region60: #{forward.4} parent=11 // pred_fallthru
        _
      // Predicated region
      $region61: #{forward.4} parent=11 // pred_check
        %p418 = pneg %p320
      $region62: #{forward.4} parent=11 // pred_check_branch
        %420 = sbr.rel (%p418) target = $region64
      $region63: #{forward.4} parent=11 // pred_region
        _
      $region64: #{forward.4} parent=11 // pred_fallthru
        _
      // Predicated region
      $region65: #{forward.4} parent=11 // pred_check
        %p421 = pneg %p341
      $region66: #{forward.4} parent=11 // pred_check_branch
        %423 = sbr.rel (%p421) target = $region68
      $region67: #{forward.4} parent=11 // pred_region
        _
      $region68: #{forward.4} parent=11 // pred_fallthru
        _
    $region12: #{forward.4} parent=5 // pred_fallthru
      _
    %p424 = scmp.lt.s32.totalorder %s21, 2
    // Predicated region
    $region69: #{forward.4} parent=5 // pred_check
      %p425 = pneg %p424
    $region70: #{forward.4} parent=5 // pred_check_branch
      %427 = sbr.rel (%p425) target = $region72
    $region71: #{forward.4} parent=5 // pred_region
      // Predicated region
      $region73: #{forward.4} parent=71 // pred_check
        %p428 = pneg %p41
      $region74: #{forward.4} parent=71 // pred_check_branch
        %430 = sbr.rel (%p428) target = $region76
      $region75: #{forward.4} parent=71 // pred_region
        %s431 = smul.u32 2, %s21
        %p432 = scmp.lt.s32.totalorder %s431, 3
        %s433 = scalar_select %p432, %s431, 3
        %s434 = smul.addr %s433, 4
        %s435 = scalar_lea.vmem %s0, %s434
        %s436 = smul.u32 2, %s21
      $region76: #{forward.4} parent=71 // pred_fallthru
        _
    $region72: #{forward.4} parent=5 // pred_fallthru
      _
    %p437 = scmp.le.s32.totalorder 1, %s21
    %p438 = scmp.lt.s32.totalorder %s21, 3
    %p439 = pnand %p437, %p438
    %p440 = pneg %p439
    // Predicated region
    $region77: #{forward.4} parent=5 // pred_check
      _
    $region78: #{forward.4} parent=5 // pred_check_branch
      %442 = sbr.rel (%p439) target = $region80
    $region79: #{forward.4} parent=5 // pred_region
      %s443 = ssub.s32 %s21, 1
      %s444 = smul.u32 2, %s26
      %p445 = scmp.lt.s32.totalorder %s444, 3
      %s446 = scalar_select %p445, %s444, 3
      %s447 = smul.addr %s446, 4
      %s448 = scalar_lea.vmem %s0, %s447
      %p449 = pneg %p47
      %p450 = pneg %p44
      %p451 = pneg %p68
      %p452 = pneg %p65
      %p453 = pneg %p89
      %p454 = pneg %p86
      %p455 = pneg %p110
      %p456 = pneg %p107
      %p457 = pneg %p131
      %p458 = pneg %p128
      %p459 = pneg %p152
      %p460 = pneg %p149
      %p461 = pneg %p173
      %p462 = pneg %p170
      %p463 = pneg %p194
      %p464 = pneg %p191
      %p465 = pneg %p215
      %p466 = pneg %p212
      %p467 = pneg %p236
      %p468 = pneg %p233
      %p469 = pneg %p257
      %p470 = pneg %p254
      %p471 = pneg %p278
      %p472 = pneg %p275
      %p473 = pneg %p299
      %p474 = pneg %p296
      %p475 = pneg %p320
      %p476 = pneg %p317
      %p477 = pneg %p341
      %p478 = pneg %p338
      %p479 = pneg %p367
      %p480 = pneg %p364
      %p481 = scmp.lt.s32.totalorder %s26, 1
      %s482 = scalar_select %p481, %s26, 1
      %s483 = smul.addr %s482, 4
      %s484 = scalar_lea.vmem %s15, %s483
      %s485 = smul.u32 2, %s26
      %p486 = scmp.lt.s32.totalorder %s485, 3
      %s487 = scalar_select %p486, %s485, 3
      %s488 = smul.addr %s487, 4
      %s489 = scalar_lea.vmem %s0, %s488
      %s490 = smul.u32 2, %s26
      %p491 = scmp.lt.s32.totalorder %s26, 1
      %s492 = scalar_select %p491, %s26, 1
      %s493 = smul.addr %s492, 4
      %s494 = scalar_lea.vmem %s15, %s493
      %v496 = vld [vmem:[%s489] sm:$0xf]
      %v497 = vld [vmem:[%s489 + $0x4] sm:$0xf]
      %v498 = vld [vmem:[%s1] sm:$0xff]
      %v499 = vld [vmem:[%s1 + $0x8] sm:$0xff]
      %v500 = vld [vmem:[%s1 + $0x10] sm:$0xff]
      %v501 = vld [vmem:[%s1 + $0x18] sm:$0xff]
      %v502 = vld [vmem:[%s1 + $0x20] sm:$0xff]
      %v503 = vld [vmem:[%s1 + $0x28] sm:$0xff]
      %v504 = vld [vmem:[%s1 + $0x30] sm:$0xff]
      %v505 = vld [vmem:[%s1 + $0x38] sm:$0xff]
      %v506 = vld [vmem:[%s1 + $0x40] sm:$0xff]
      %v507 = vld [vmem:[%s1 + $0x48] sm:$0xff]
      %v508 = vld [vmem:[%s1 + $0x50] sm:$0xff]
      %v509 = vld [vmem:[%s1 + $0x58] sm:$0xff]
      %v510 = vld [vmem:[%s1 + $0x60] sm:$0xff]
      %v511 = vld [vmem:[%s1 + $0x68] sm:$0xff]
      %v512 = vld [vmem:[%s1 + $0x70] sm:$0xff]
      %v513 = vld [vmem:[%s1 + $0x78] sm:$0xff]
      %v514 = vld [vmem:[%s1 + $0x80] sm:$0xff]
      %v515 = vld [vmem:[%s1 + $0x88] sm:$0xff]
      %v516 = vld [vmem:[%s1 + $0x90] sm:$0xff]
      %v517 = vld [vmem:[%s1 + $0x98] sm:$0xff]
      %v518 = vld [vmem:[%s1 + $0xa0] sm:$0xff]
      %v519 = vld [vmem:[%s1 + $0xa8] sm:$0xff]
      %v520 = vld [vmem:[%s1 + $0xb0] sm:$0xff]
      %v521 = vld [vmem:[%s1 + $0xb8] sm:$0xff]
      %v522 = vld [vmem:[%s1 + $0xc0] sm:$0xff]
      %v523 = vld [vmem:[%s1 + $0xc8] sm:$0xff]
      %v524 = vld [vmem:[%s1 + $0xd0] sm:$0xff]
      %v525 = vld [vmem:[%s1 + $0xd8] sm:$0xff]
      %v526 = vld [vmem:[%s1 + $0xe0] sm:$0xff]
      %v527 = vld [vmem:[%s1 + $0xe8] sm:$0xff]
      %v528 = vld [vmem:[%s1 + $0xf0] sm:$0xff]
      %v529 = vld [vmem:[%s1 + $0xf8] sm:$0xff]
      %v530 = vld [vmem:[%s2] sm:$0xf]
      %v532 = vlaneseq
      %v533 = vshrl.u32 %v532, 7
      %v534 = vsub.s32 0, %v533
      %v535 = vrot.slane %v530, %v534
      %v536 = vlaneseq
      %v537 = vshrl.u32 %v536, 7
      %v538 = vsub.s32 1, %v537
      %v539 = vrot.slane %v530, %v538
      %v540 = vlaneseq
      %v541 = vshrl.u32 %v540, 7
      %v542 = vsub.s32 2, %v541
      %v543 = vrot.slane %v530, %v542
      %v544 = vlaneseq
      %v545 = vshrl.u32 %v544, 7
      %v546 = vsub.s32 3, %v545
      %v547 = vrot.slane %v530, %v546
      %v554 = vunpack.c.l.b16 %v496
      %v555 = vunpack.c.l.b16 %v497
      %v556 = vpack.c.b16 %v555, %v554
      %v590 = vunpack.c.l.b16 %v498
      %v591 = vunpack.c.h.b16 %v498
      %v592 = vunpack.c.l.b16 %v499
      %v593 = vunpack.c.h.b16 %v499
      %v594 = vunpack.c.l.b16 %v500
      %v595 = vunpack.c.h.b16 %v500
      %v596 = vunpack.c.l.b16 %v501
      %v597 = vunpack.c.h.b16 %v501
      %v598 = vunpack.c.l.b16 %v502
      %v599 = vunpack.c.h.b16 %v502
      %v600 = vunpack.c.l.b16 %v503
      %v601 = vunpack.c.h.b16 %v503
      %v602 = vunpack.c.l.b16 %v504
      %v603 = vunpack.c.h.b16 %v504
      %v604 = vunpack.c.l.b16 %v505
      %v605 = vunpack.c.h.b16 %v505
      %v606 = vunpack.c.l.b16 %v506
      %v607 = vunpack.c.h.b16 %v506
      %v608 = vunpack.c.l.b16 %v507
      %v609 = vunpack.c.h.b16 %v507
      %v610 = vunpack.c.l.b16 %v508
      %v611 = vunpack.c.h.b16 %v508
      %v612 = vunpack.c.l.b16 %v509
      %v613 = vunpack.c.h.b16 %v509
      %v614 = vunpack.c.l.b16 %v510
      %v615 = vunpack.c.h.b16 %v510
      %v616 = vunpack.c.l.b16 %v511
      %v617 = vunpack.c.h.b16 %v511
      %v618 = vunpack.c.l.b16 %v512
      %v619 = vunpack.c.h.b16 %v512
      %v620 = vunpack.c.l.b16 %v513
      %v621 = vunpack.c.h.b16 %v513
      %v622 = vunpack.c.l.b16 %v514
      %v623 = vunpack.c.h.b16 %v514
      %v624 = vunpack.c.l.b16 %v515
      %v625 = vunpack.c.h.b16 %v515
      %v626 = vunpack.c.l.b16 %v516
      %v627 = vunpack.c.h.b16 %v516
      %v628 = vunpack.c.l.b16 %v517
      %v629 = vunpack.c.h.b16 %v517
      %v630 = vunpack.c.l.b16 %v518
      %v631 = vunpack.c.h.b16 %v518
      %v632 = vunpack.c.l.b16 %v519
      %v633 = vunpack.c.h.b16 %v519
      %v634 = vunpack.c.l.b16 %v520
      %v635 = vunpack.c.h.b16 %v520
      %v636 = vunpack.c.l.b16 %v521
      %v637 = vunpack.c.h.b16 %v521
      %v638 = vunpack.c.l.b16 %v522
      %v639 = vunpack.c.h.b16 %v522
      %v640 = vunpack.c.l.b16 %v523
      %v641 = vunpack.c.h.b16 %v523
      %v642 = vunpack.c.l.b16 %v524
      %v643 = vunpack.c.h.b16 %v524
      %v644 = vunpack.c.l.b16 %v525
      %v645 = vunpack.c.h.b16 %v525
      %v646 = vunpack.c.l.b16 %v526
      %v647 = vunpack.c.h.b16 %v526
      %v648 = vunpack.c.l.b16 %v527
      %v649 = vunpack.c.h.b16 %v527
      %v650 = vunpack.c.l.b16 %v528
      %v651 = vunpack.c.h.b16 %v528
      %v652 = vunpack.c.l.b16 %v529
      %v653 = vunpack.c.h.b16 %v529
      %v654 = vpack.c.b16 %v594, %v590
      %v655 = vpack.c.b16 %v595, %v591
      %v656 = vpack.c.b16 %v596, %v592
      %v657 = vpack.c.b16 %v597, %v593
      %v658 = vpack.c.b16 %v602, %v598
      %v659 = vpack.c.b16 %v603, %v599
      %v660 = vpack.c.b16 %v604, %v600
      %v661 = vpack.c.b16 %v605, %v601
      %v662 = vpack.c.b16 %v610, %v606
      %v663 = vpack.c.b16 %v611, %v607
      %v664 = vpack.c.b16 %v612, %v608
      %v665 = vpack.c.b16 %v613, %v609
      %v666 = vpack.c.b16 %v618, %v614
      %v667 = vpack.c.b16 %v619, %v615
      %v668 = vpack.c.b16 %v620, %v616
      %v669 = vpack.c.b16 %v621, %v617
      %v670 = vpack.c.b16 %v626, %v622
      %v671 = vpack.c.b16 %v627, %v623
      %v672 = vpack.c.b16 %v628, %v624
      %v673 = vpack.c.b16 %v629, %v625
      %v674 = vpack.c.b16 %v634, %v630
      %v675 = vpack.c.b16 %v635, %v631
      %v676 = vpack.c.b16 %v636, %v632
      %v677 = vpack.c.b16 %v637, %v633
      %v678 = vpack.c.b16 %v642, %v638
      %v679 = vpack.c.b16 %v643, %v639
      %v680 = vpack.c.b16 %v644, %v640
      %v681 = vpack.c.b16 %v645, %v641
      %v682 = vpack.c.b16 %v650, %v646
      %v683 = vpack.c.b16 %v651, %v647
      %v684 = vpack.c.b16 %v652, %v648
      %v685 = vpack.c.b16 %v653, %v649
      %718 = vmatprep.subr.bf16.mxu0 %v655
      %719 = vmatpush1.bf16.msra.mxu0 %v654
      %720 = vmatprep.subr.bf16.mxu0 %v659
      %721 = vmatpush1.bf16.msra.mxu0 %v658
      %722 = vmatprep.subr.bf16.mxu0 %v663
      %723 = vmatpush1.bf16.msra.mxu0 %v662
      %724 = vmatprep.subr.bf16.mxu0 %v667
      %725 = vmatpush1.bf16.msra.mxu0 %v666
      %726 = vmatprep.subr.bf16.mxu0 %v671
      %727 = vmatpush1.bf16.msra.mxu0 %v670
      %728 = vmatprep.subr.bf16.mxu0 %v675
      %729 = vmatpush1.bf16.msra.mxu0 %v674
      %730 = vmatprep.subr.bf16.mxu0 %v679
      %731 = vmatpush1.bf16.msra.mxu0 %v678
      %732 = vmatprep.subr.bf16.mxu0 %v683
      %733 = vmatpush1.bf16.msra.mxu0 %v682
      %734 = vmatprep.subr.bf16.mxu0 0
      %735 = vmatpush1.bf16.msra.mxu0 0
      %736 = vmatprep.subr.bf16.mxu0 0
      %737 = vmatpush1.bf16.msra.mxu0 0
      %738 = vmatprep.subr.bf16.mxu0 0
      %739 = vmatpush1.bf16.msra.mxu0 0
      %740 = vmatprep.subr.bf16.mxu0 0
      %741 = vmatpush1.bf16.msra.mxu0 0
      %742 = vmatprep.subr.bf16.mxu0 0
      %743 = vmatpush1.bf16.msra.mxu0 0
      %744 = vmatprep.subr.bf16.mxu0 0
      %745 = vmatpush1.bf16.msra.mxu0 0
      %746 = vmatprep.subr.bf16.mxu0 0
      %747 = vmatpush1.bf16.msra.mxu0 0
      %748 = vmatprep.subr.bf16.mxu0 0
      %749 = vmatpush1.bf16.msra.mxu0 0
      %750 = vmatprep.mubr.bf16.mxu0 0
      %751 = vmatmul.mubr.bf16.gmra.mrb[0].mxu0 %v556
      %v752 = vpop.f32.mrb[0].mxu0
      %v753 = vadd.f32 %v535, %v752
      %v754 = vpop.f32.mrb[0].mxu0
      %v755 = vadd.f32 %v539, %v754
      %v756 = vpop.f32.mrb[0].mxu0
      %v757 = vadd.f32 %v535, %v756
      %v758 = vpop.f32.mrb[0].mxu0
      %v759 = vadd.f32 %v539, %v758
      %760 = vdwg.mxu0
      %761 = vmatprep.subr.bf16.mxu0 %v657
      %762 = vmatpush1.bf16.msra.mxu0 %v656
      %763 = vmatprep.subr.bf16.mxu0 %v661
      %764 = vmatpush1.bf16.msra.mxu0 %v660
      %765 = vmatprep.subr.bf16.mxu0 %v665
      %766 = vmatpush1.bf16.msra.mxu0 %v664
      %767 = vmatprep.subr.bf16.mxu0 %v669
      %768 = vmatpush1.bf16.msra.mxu0 %v668
      %769 = vmatprep.subr.bf16.mxu0 %v673
      %770 = vmatpush1.bf16.msra.mxu0 %v672
      %771 = vmatprep.subr.bf16.mxu0 %v677
      %772 = vmatpush1.bf16.msra.mxu0 %v676
      %773 = vmatprep.subr.bf16.mxu0 %v681
      %774 = vmatpush1.bf16.msra.mxu0 %v680
      %775 = vmatprep.subr.bf16.mxu0 %v685
      %776 = vmatpush1.bf16.msra.mxu0 %v684
      %777 = vmatprep.subr.bf16.mxu0 0
      %778 = vmatpush1.bf16.msra.mxu0 0
      %779 = vmatprep.subr.bf16.mxu0 0
      %780 = vmatpush1.bf16.msra.mxu0 0
      %781 = vmatprep.subr.bf16.mxu0 0
      %782 = vmatpush1.bf16.msra.mxu0 0
      %783 = vmatprep.subr.bf16.mxu0 0
      %784 = vmatpush1.bf16.msra.mxu0 0
      %785 = vmatprep.subr.bf16.mxu0 0
      %786 = vmatpush1.bf16.msra.mxu0 0
      %787 = vmatprep.subr.bf16.mxu0 0
      %788 = vmatpush1.bf16.msra.mxu0 0
      %789 = vmatprep.subr.bf16.mxu0 0
      %790 = vmatpush1.bf16.msra.mxu0 0
      %791 = vmatprep.subr.bf16.mxu0 0
      %792 = vmatpush1.bf16.msra.mxu0 0
      %793 = vmatprep.mubr.bf16.mxu0 0
      %794 = vmatmul.mubr.bf16.gmra.mrb[0].mxu0 %v556
      %v795 = vpop.f32.mrb[0].mxu0
      %v796 = vadd.f32 %v543, %v795
      %v797 = vpop.f32.mrb[0].mxu0
      %v798 = vadd.f32 %v547, %v797
      %v799 = vpop.f32.mrb[0].mxu0
      %v800 = vadd.f32 %v543, %v799
      %v801 = vpop.f32.mrb[0].mxu0
      %v802 = vadd.f32 %v547, %v801
      %803 = vdwg.mxu0
      %v804 = vld [vmem:[%s3] sm:$0xf]
      %v805 = vld [vmem:[%s4] sm:$0xf]
      %v806 = vadd.f32 %v753, %v755
      %v807 = vadd.f32 %v806, %v796
      %v808 = vadd.f32 %v807, %v798
      %809 = vadd.xlane.f32.xlu0 %v808
      %v810 = vpop.xlane.xlu0 %809
      %v811 = vadd.f32 %v757, %v759
      %v812 = vadd.f32 %v811, %v800
      %v813 = vadd.f32 %v812, %v802
      %814 = vadd.xlane.f32.xlu0 %v813
      %v815 = vpop.xlane.xlu0 %814
      %v816 = vrcp.pop 512.0
      %v817 = vmul.f32 %v810, %v816
      %v818 = vmul.f32 %v815, %v816
      %v819 = vsub.f32 %v753, %v817
      %v820 = vsub.f32 %v755, %v817
      %v821 = vsub.f32 %v796, %v817
      %v822 = vsub.f32 %v798, %v817
      %v823 = vsub.f32 %v757, %v818
      %v824 = vsub.f32 %v759, %v818
      %v825 = vsub.f32 %v800, %v818
      %v826 = vsub.f32 %v802, %v818
      %v827 = vmul.f32 %v819, %v819
      %v828 = vmul.f32 %v820, %v820
      %v829 = vmul.f32 %v821, %v821
      %v830 = vmul.f32 %v822, %v822
      %v831 = vmul.f32 %v823, %v823
      %v832 = vmul.f32 %v824, %v824
      %v833 = vmul.f32 %v825, %v825
      %v834 = vmul.f32 %v826, %v826
      %v835 = vadd.f32 %v827, %v828
      %v836 = vadd.f32 %v835, %v829
      %v837 = vadd.f32 %v836, %v830
      %838 = vadd.xlane.f32.xlu0 %v837
      %v839 = vpop.xlane.xlu0 %838
      %v840 = vadd.f32 %v831, %v832
      %v841 = vadd.f32 %v840, %v833
      %v842 = vadd.f32 %v841, %v834
      %843 = vadd.xlane.f32.xlu0 %v842
      %v844 = vpop.xlane.xlu0 %843
      %v845 = vmul.f32 %v839, %v816
      %v846 = vmul.f32 %v844, %v816
      %v847 = vadd.f32 %v845, 1e-05
      %v848 = vadd.f32 %v846, 1e-05
      %v849 = vrsqrt.pop %v847
      %v850 = vrsqrt.pop %v848
      %v851 = vmul.f32 %v819, %v849
      %v852 = vmul.f32 %v820, %v849
      %v853 = vmul.f32 %v821, %v849
      %v854 = vmul.f32 %v822, %v849
      %v855 = vmul.f32 %v823, %v850
      %v856 = vmul.f32 %v824, %v850
      %v857 = vmul.f32 %v825, %v850
      %v858 = vmul.f32 %v826, %v850
      %v860 = vlaneseq
      %v861 = vshrl.u32 %v860, 7
      %v862 = vsub.s32 0, %v861
      %v863 = vrot.slane %v804, %v862
      %v864 = vlaneseq
      %v865 = vshrl.u32 %v864, 7
      %v866 = vsub.s32 1, %v865
      %v867 = vrot.slane %v804, %v866
      %v868 = vlaneseq
      %v869 = vshrl.u32 %v868, 7
      %v870 = vsub.s32 2, %v869
      %v871 = vrot.slane %v804, %v870
      %v872 = vlaneseq
      %v873 = vshrl.u32 %v872, 7
      %v874 = vsub.s32 3, %v873
      %v875 = vrot.slane %v804, %v874
      %v880 = vmul.f32 %v851, %v863
      %v881 = vmul.f32 %v852, %v867
      %v882 = vmul.f32 %v853, %v871
      %v883 = vmul.f32 %v854, %v875
      %v884 = vmul.f32 %v855, %v863
      %v885 = vmul.f32 %v856, %v867
      %v886 = vmul.f32 %v857, %v871
      %v887 = vmul.f32 %v858, %v875
      %v889 = vlaneseq
      %v890 = vshrl.u32 %v889, 7
      %v891 = vsub.s32 0, %v890
      %v892 = vrot.slane %v805, %v891
      %v893 = vlaneseq
      %v894 = vshrl.u32 %v893, 7
      %v895 = vsub.s32 1, %v894
      %v896 = vrot.slane %v805, %v895
      %v897 = vlaneseq
      %v898 = vshrl.u32 %v897, 7
      %v899 = vsub.s32 2, %v898
      %v900 = vrot.slane %v805, %v899
      %v901 = vlaneseq
      %v902 = vshrl.u32 %v901, 7
      %v903 = vsub.s32 3, %v902
      %v904 = vrot.slane %v805, %v903
      %v909 = vadd.f32 %v880, %v892
      %v910 = vadd.f32 %v881, %v896
      %v911 = vadd.f32 %v882, %v900
      %v912 = vadd.f32 %v883, %v904
      %v913 = vadd.f32 %v884, %v892
      %v914 = vadd.f32 %v885, %v896
      %v915 = vadd.f32 %v886, %v900
      %v916 = vadd.f32 %v887, %v904
      %v917 = vpack.c.bf16 %v913, %v909
      %v918 = vpack.c.bf16 %v914, %v910
      %v919 = vpack.c.bf16 %v915, %v911
      %v920 = vpack.c.bf16 %v916, %v912
      %v921 = vld [vmem:[%s5] sm:$0xff]
      %v922 = vld [vmem:[%s5 + $0x8] sm:$0xff]
      %v923 = vld [vmem:[%s5 + $0x10] sm:$0xff]
      %v924 = vld [vmem:[%s5 + $0x18] sm:$0xff]
      %v925 = vld [vmem:[%s5 + $0x20] sm:$0xff]
      %v926 = vld [vmem:[%s5 + $0x28] sm:$0xff]
      %v927 = vld [vmem:[%s5 + $0x30] sm:$0xff]
      %v928 = vld [vmem:[%s5 + $0x38] sm:$0xff]
      %v929 = vld [vmem:[%s5 + $0x40] sm:$0xff]
      %v930 = vld [vmem:[%s5 + $0x48] sm:$0xff]
      %v931 = vld [vmem:[%s5 + $0x50] sm:$0xff]
      %v932 = vld [vmem:[%s5 + $0x58] sm:$0xff]
      %v933 = vld [vmem:[%s5 + $0x60] sm:$0xff]
      %v934 = vld [vmem:[%s5 + $0x68] sm:$0xff]
      %v935 = vld [vmem:[%s5 + $0x70] sm:$0xff]
      %v936 = vld [vmem:[%s5 + $0x78] sm:$0xff]
      %v937 = vld [vmem:[%s5 + $0x80] sm:$0xff]
      %v938 = vld [vmem:[%s5 + $0x88] sm:$0xff]
      %v939 = vld [vmem:[%s5 + $0x90] sm:$0xff]
      %v940 = vld [vmem:[%s5 + $0x98] sm:$0xff]
      %v941 = vld [vmem:[%s5 + $0xa0] sm:$0xff]
      %v942 = vld [vmem:[%s5 + $0xa8] sm:$0xff]
      %v943 = vld [vmem:[%s5 + $0xb0] sm:$0xff]
      %v944 = vld [vmem:[%s5 + $0xb8] sm:$0xff]
      %v945 = vld [vmem:[%s5 + $0xc0] sm:$0xff]
      %v946 = vld [vmem:[%s5 + $0xc8] sm:$0xff]
      %v947 = vld [vmem:[%s5 + $0xd0] sm:$0xff]
      %v948 = vld [vmem:[%s5 + $0xd8] sm:$0xff]
      %v949 = vld [vmem:[%s5 + $0xe0] sm:$0xff]
      %v950 = vld [vmem:[%s5 + $0xe8] sm:$0xff]
      %v951 = vld [vmem:[%s5 + $0xf0] sm:$0xff]
      %v952 = vld [vmem:[%s5 + $0xf8] sm:$0xff]
      %v953 = vld [vmem:[%s5 + $0x100] sm:$0xff]
      %v954 = vld [vmem:[%s5 + $0x108] sm:$0xff]
      %v955 = vld [vmem:[%s5 + $0x110] sm:$0xff]
      %v956 = vld [vmem:[%s5 + $0x118] sm:$0xff]
      %v957 = vld [vmem:[%s5 + $0x120] sm:$0xff]
      %v958 = vld [vmem:[%s5 + $0x128] sm:$0xff]
      %v959 = vld [vmem:[%s5 + $0x130] sm:$0xff]
      %v960 = vld [vmem:[%s5 + $0x138] sm:$0xff]
      %v961 = vld [vmem:[%s5 + $0x140] sm:$0xff]
      %v962 = vld [vmem:[%s5 + $0x148] sm:$0xff]
      %v963 = vld [vmem:[%s5 + $0x150] sm:$0xff]
      %v964 = vld [vmem:[%s5 + $0x158] sm:$0xff]
      %v965 = vld [vmem:[%s5 + $0x160] sm:$0xff]
      %v966 = vld [vmem:[%s5 + $0x168] sm:$0xff]
      %v967 = vld [vmem:[%s5 + $0x170] sm:$0xff]
      %v968 = vld [vmem:[%s5 + $0x178] sm:$0xff]
      %v969 = vld [vmem:[%s5 + $0x180] sm:$0xff]
      %v970 = vld [vmem:[%s5 + $0x188] sm:$0xff]
      %v971 = vld [vmem:[%s5 + $0x190] sm:$0xff]
      %v972 = vld [vmem:[%s5 + $0x198] sm:$0xff]
      %v973 = vld [vmem:[%s5 + $0x1a0] sm:$0xff]
      %v974 = vld [vmem:[%s5 + $0x1a8] sm:$0xff]
      %v975 = vld [vmem:[%s5 + $0x1b0] sm:$0xff]
      %v976 = vld [vmem:[%s5 + $0x1b8] sm:$0xff]
      %v977 = vld [vmem:[%s5 + $0x1c0] sm:$0xff]
      %v978 = vld [vmem:[%s5 + $0x1c8] sm:$0xff]
      %v979 = vld [vmem:[%s5 + $0x1d0] sm:$0xff]
      %v980 = vld [vmem:[%s5 + $0x1d8] sm:$0xff]
      %v981 = vld [vmem:[%s5 + $0x1e0] sm:$0xff]
      %v982 = vld [vmem:[%s5 + $0x1e8] sm:$0xff]
      %v983 = vld [vmem:[%s5 + $0x1f0] sm:$0xff]
      %v984 = vld [vmem:[%s5 + $0x1f8] sm:$0xff]
      %v985 = vld [vmem:[%s5 + $0x200] sm:$0xff]
      %v986 = vld [vmem:[%s5 + $0x208] sm:$0xff]
      %v987 = vld [vmem:[%s5 + $0x210] sm:$0xff]
      %v988 = vld [vmem:[%s5 + $0x218] sm:$0xff]
      %v989 = vld [vmem:[%s5 + $0x220] sm:$0xff]
      %v990 = vld [vmem:[%s5 + $0x228] sm:$0xff]
      %v991 = vld [vmem:[%s5 + $0x230] sm:$0xff]
      %v992 = vld [vmem:[%s5 + $0x238] sm:$0xff]
      %v993 = vld [vmem:[%s5 + $0x240] sm:$0xff]
      %v994 = vld [vmem:[%s5 + $0x248] sm:$0xff]
      %v995 = vld [vmem:[%s5 + $0x250] sm:$0xff]
      %v996 = vld [vmem:[%s5 + $0x258] sm:$0xff]
      %v997 = vld [vmem:[%s5 + $0x260] sm:$0xff]
      %v998 = vld [vmem:[%s5 + $0x268] sm:$0xff]
      %v999 = vld [vmem:[%s5 + $0x270] sm:$0xff]
      %v1000 = vld [vmem:[%s5 + $0x278] sm:$0xff]
      %v1001 = vld [vmem:[%s5 + $0x280] sm:$0xff]
      %v1002 = vld [vmem:[%s5 + $0x288] sm:$0xff]
      %v1003 = vld [vmem:[%s5 + $0x290] sm:$0xff]
      %v1004 = vld [vmem:[%s5 + $0x298] sm:$0xff]
      %v1005 = vld [vmem:[%s5 + $0x2a0] sm:$0xff]
      %v1006 = vld [vmem:[%s5 + $0x2a8] sm:$0xff]
      %v1007 = vld [vmem:[%s5 + $0x2b0] sm:$0xff]
      %v1008 = vld [vmem:[%s5 + $0x2b8] sm:$0xff]
      %v1009 = vld [vmem:[%s5 + $0x2c0] sm:$0xff]
      %v1010 = vld [vmem:[%s5 + $0x2c8] sm:$0xff]
      %v1011 = vld [vmem:[%s5 + $0x2d0] sm:$0xff]
      %v1012 = vld [vmem:[%s5 + $0x2d8] sm:$0xff]
      %v1013 = vld [vmem:[%s5 + $0x2e0] sm:$0xff]
      %v1014 = vld [vmem:[%s5 + $0x2e8] sm:$0xff]
      %v1015 = vld [vmem:[%s5 + $0x2f0] sm:$0xff]
      %v1016 = vld [vmem:[%s5 + $0x2f8] sm:$0xff]
      %v1017 = vld [vmem:[%s5 + $0x300] sm:$0xff]
      %v1018 = vld [vmem:[%s5 + $0x308] sm:$0xff]
      %v1019 = vld [vmem:[%s5 + $0x310] sm:$0xff]
      %v1020 = vld [vmem:[%s5 + $0x318] sm:$0xff]
      %v1021 = vld [vmem:[%s5 + $0x320] sm:$0xff]
      %v1022 = vld [vmem:[%s5 + $0x328] sm:$0xff]
      %v1023 = vld [vmem:[%s5 + $0x330] sm:$0xff]
      %v1024 = vld [vmem:[%s5 + $0x338] sm:$0xff]
      %v1025 = vld [vmem:[%s5 + $0x340] sm:$0xff]
      %v1026 = vld [vmem:[%s5 + $0x348] sm:$0xff]
      %v1027 = vld [vmem:[%s5 + $0x350] sm:$0xff]
      %v1028 = vld [vmem:[%s5 + $0x358] sm:$0xff]
      %v1029 = vld [vmem:[%s5 + $0x360] sm:$0xff]
      %v1030 = vld [vmem:[%s5 + $0x368] sm:$0xff]
      %v1031 = vld [vmem:[%s5 + $0x370] sm:$0xff]
      %v1032 = vld [vmem:[%s5 + $0x378] sm:$0xff]
      %v1033 = vld [vmem:[%s5 + $0x380] sm:$0xff]
      %v1034 = vld [vmem:[%s5 + $0x388] sm:$0xff]
      %v1035 = vld [vmem:[%s5 + $0x390] sm:$0xff]
      %v1036 = vld [vmem:[%s5 + $0x398] sm:$0xff]
      %v1037 = vld [vmem:[%s5 + $0x3a0] sm:$0xff]
      %v1038 = vld [vmem:[%s5 + $0x3a8] sm:$0xff]
      %v1039 = vld [vmem:[%s5 + $0x3b0] sm:$0xff]
      %v1040 = vld [vmem:[%s5 + $0x3b8] sm:$0xff]
      %v1041 = vld [vmem:[%s5 + $0x3c0] sm:$0xff]
      %v1042 = vld [vmem:[%s5 + $0x3c8] sm:$0xff]
      %v1043 = vld [vmem:[%s5 + $0x3d0] sm:$0xff]
      %v1044 = vld [vmem:[%s5 + $0x3d8] sm:$0xff]
      %v1045 = vld [vmem:[%s5 + $0x3e0] sm:$0xff]
      %v1046 = vld [vmem:[%s5 + $0x3e8] sm:$0xff]
      %v1047 = vld [vmem:[%s5 + $0x3f0] sm:$0xff]
      %v1048 = vld [vmem:[%s5 + $0x3f8] sm:$0xff]
      %v1049 = vld [vmem:[%s5 + $0x400] sm:$0xff]
      %v1050 = vld [vmem:[%s5 + $0x408] sm:$0xff]
      %v1051 = vld [vmem:[%s5 + $0x410] sm:$0xff]
      %v1052 = vld [vmem:[%s5 + $0x418] sm:$0xff]
      %v1053 = vld [vmem:[%s5 + $0x420] sm:$0xff]
      %v1054 = vld [vmem:[%s5 + $0x428] sm:$0xff]
      %v1055 = vld [vmem:[%s5 + $0x430] sm:$0xff]
      %v1056 = vld [vmem:[%s5 + $0x438] sm:$0xff]
      %v1057 = vld [vmem:[%s5 + $0x440] sm:$0xff]
      %v1058 = vld [vmem:[%s5 + $0x448] sm:$0xff]
      %v1059 = vld [vmem:[%s5 + $0x450] sm:$0xff]
      %v1060 = vld [vmem:[%s5 + $0x458] sm:$0xff]
      %v1061 = vld [vmem:[%s5 + $0x460] sm:$0xff]
      %v1062 = vld [vmem:[%s5 + $0x468] sm:$0xff]
      %v1063 = vld [vmem:[%s5 + $0x470] sm:$0xff]
      %v1064 = vld [vmem:[%s5 + $0x478] sm:$0xff]
      %v1065 = vld [vmem:[%s5 + $0x480] sm:$0xff]
      %v1066 = vld [vmem:[%s5 + $0x488] sm:$0xff]
      %v1067 = vld [vmem:[%s5 + $0x490] sm:$0xff]
      %v1068 = vld [vmem:[%s5 + $0x498] sm:$0xff]
      %v1069 = vld [vmem:[%s5 + $0x4a0] sm:$0xff]
      %v1070 = vld [vmem:[%s5 + $0x4a8] sm:$0xff]
      %v1071 = vld [vmem:[%s5 + $0x4b0] sm:$0xff]
      %v1072 = vld [vmem:[%s5 + $0x4b8] sm:$0xff]
      %v1073 = vld [vmem:[%s5 + $0x4c0] sm:$0xff]
      %v1074 = vld [vmem:[%s5 + $0x4c8] sm:$0xff]
      %v1075 = vld [vmem:[%s5 + $0x4d0] sm:$0xff]
      %v1076 = vld [vmem:[%s5 + $0x4d8] sm:$0xff]
      %v1077 = vld [vmem:[%s5 + $0x4e0] sm:$0xff]
      %v1078 = vld [vmem:[%s5 + $0x4e8] sm:$0xff]
      %v1079 = vld [vmem:[%s5 + $0x4f0] sm:$0xff]
      %v1080 = vld [vmem:[%s5 + $0x4f8] sm:$0xff]
      %v1081 = vld [vmem:[%s5 + $0x500] sm:$0xff]
      %v1082 = vld [vmem:[%s5 + $0x508] sm:$0xff]
      %v1083 = vld [vmem:[%s5 + $0x510] sm:$0xff]
      %v1084 = vld [vmem:[%s5 + $0x518] sm:$0xff]
      %v1085 = vld [vmem:[%s5 + $0x520] sm:$0xff]
      %v1086 = vld [vmem:[%s5 + $0x528] sm:$0xff]
      %v1087 = vld [vmem:[%s5 + $0x530] sm:$0xff]
      %v1088 = vld [vmem:[%s5 + $0x538] sm:$0xff]
      %v1089 = vld [vmem:[%s5 + $0x540] sm:$0xff]
      %v1090 = vld [vmem:[%s5 + $0x548] sm:$0xff]
      %v1091 = vld [vmem:[%s5 + $0x550] sm:$0xff]
      %v1092 = vld [vmem:[%s5 + $0x558] sm:$0xff]
      %v1093 = vld [vmem:[%s5 + $0x560] sm:$0xff]
      %v1094 = vld [vmem:[%s5 + $0x568] sm:$0xff]
      %v1095 = vld [vmem:[%s5 + $0x570] sm:$0xff]
      %v1096 = vld [vmem:[%s5 + $0x578] sm:$0xff]
      %v1097 = vld [vmem:[%s5 + $0x580] sm:$0xff]
      %v1098 = vld [vmem:[%s5 + $0x588] sm:$0xff]
      %v1099 = vld [vmem:[%s5 + $0x590] sm:$0xff]
      %v1100 = vld [vmem:[%s5 + $0x598] sm:$0xff]
      %v1101 = vld [vmem:[%s5 + $0x5a0] sm:$0xff]
      %v1102 = vld [vmem:[%s5 + $0x5a8] sm:$0xff]
      %v1103 = vld [vmem:[%s5 + $0x5b0] sm:$0xff]
      %v1104 = vld [vmem:[%s5 + $0x5b8] sm:$0xff]
      %v1105 = vld [vmem:[%s5 + $0x5c0] sm:$0xff]
      %v1106 = vld [vmem:[%s5 + $0x5c8] sm:$0xff]
      %v1107 = vld [vmem:[%s5 + $0x5d0] sm:$0xff]
      %v1108 = vld [vmem:[%s5 + $0x5d8] sm:$0xff]
      %v1109 = vld [vmem:[%s5 + $0x5e0] sm:$0xff]
      %v1110 = vld [vmem:[%s5 + $0x5e8] sm:$0xff]
      %v1111 = vld [vmem:[%s5 + $0x5f0] sm:$0xff]
      %v1112 = vld [vmem:[%s5 + $0x5f8] sm:$0xff]
      %v1113 = vld [vmem:[%s5 + $0x600] sm:$0xff]
      %v1114 = vld [vmem:[%s5 + $0x608] sm:$0xff]
      %v1115 = vld [vmem:[%s5 + $0x610] sm:$0xff]
      %v1116 = vld [vmem:[%s5 + $0x618] sm:$0xff]
      %v1117 = vld [vmem:[%s5 + $0x620] sm:$0xff]
      %v1118 = vld [vmem:[%s5 + $0x628] sm:$0xff]
      %v1119 = vld [vmem:[%s5 + $0x630] sm:$0xff]
      %v1120 = vld [vmem:[%s5 + $0x638] sm:$0xff]
      %v1121 = vld [vmem:[%s5 + $0x640] sm:$0xff]
      %v1122 = vld [vmem:[%s5 + $0x648] sm:$0xff]
      %v1123 = vld [vmem:[%s5 + $0x650] sm:$0xff]
      %v1124 = vld [vmem:[%s5 + $0x658] sm:$0xff]
      %v1125 = vld [vmem:[%s5 + $0x660] sm:$0xff]
      %v1126 = vld [vmem:[%s5 + $0x668] sm:$0xff]
      %v1127 = vld [vmem:[%s5 + $0x670] sm:$0xff]
      %v1128 = vld [vmem:[%s5 + $0x678] sm:$0xff]
      %v1129 = vld [vmem:[%s5 + $0x680] sm:$0xff]
      %v1130 = vld [vmem:[%s5 + $0x688] sm:$0xff]
      %v1131 = vld [vmem:[%s5 + $0x690] sm:$0xff]
      %v1132 = vld [vmem:[%s5 + $0x698] sm:$0xff]
      %v1133 = vld [vmem:[%s5 + $0x6a0] sm:$0xff]
      %v1134 = vld [vmem:[%s5 + $0x6a8] sm:$0xff]
      %v1135 = vld [vmem:[%s5 + $0x6b0] sm:$0xff]
      %v1136 = vld [vmem:[%s5 + $0x6b8] sm:$0xff]
      %v1137 = vld [vmem:[%s5 + $0x6c0] sm:$0xff]
      %v1138 = vld [vmem:[%s5 + $0x6c8] sm:$0xff]
      %v1139 = vld [vmem:[%s5 + $0x6d0] sm:$0xff]
      %v1140 = vld [vmem:[%s5 + $0x6d8] sm:$0xff]
      %v1141 = vld [vmem:[%s5 + $0x6e0] sm:$0xff]
      %v1142 = vld [vmem:[%s5 + $0x6e8] sm:$0xff]
      %v1143 = vld [vmem:[%s5 + $0x6f0] sm:$0xff]
      %v1144 = vld [vmem:[%s5 + $0x6f8] sm:$0xff]
      %v1145 = vld [vmem:[%s5 + $0x700] sm:$0xff]
      %v1146 = vld [vmem:[%s5 + $0x708] sm:$0xff]
      %v1147 = vld [vmem:[%s5 + $0x710] sm:$0xff]
      %v1148 = vld [vmem:[%s5 + $0x718] sm:$0xff]
      %v1149 = vld [vmem:[%s5 + $0x720] sm:$0xff]
      %v1150 = vld [vmem:[%s5 + $0x728] sm:$0xff]
      %v1151 = vld [vmem:[%s5 + $0x730] sm:$0xff]
      %v1152 = vld [vmem:[%s5 + $0x738] sm:$0xff]
      %v1153 = vld [vmem:[%s5 + $0x740] sm:$0xff]
      %v1154 = vld [vmem:[%s5 + $0x748] sm:$0xff]
      %v1155 = vld [vmem:[%s5 + $0x750] sm:$0xff]
      %v1156 = vld [vmem:[%s5 + $0x758] sm:$0xff]
      %v1157 = vld [vmem:[%s5 + $0x760] sm:$0xff]
      %v1158 = vld [vmem:[%s5 + $0x768] sm:$0xff]
      %v1159 = vld [vmem:[%s5 + $0x770] sm:$0xff]
      %v1160 = vld [vmem:[%s5 + $0x778] sm:$0xff]
      %v1161 = vld [vmem:[%s5 + $0x780] sm:$0xff]
      %v1162 = vld [vmem:[%s5 + $0x788] sm:$0xff]
      %v1163 = vld [vmem:[%s5 + $0x790] sm:$0xff]
      %v1164 = vld [vmem:[%s5 + $0x798] sm:$0xff]
      %v1165 = vld [vmem:[%s5 + $0x7a0] sm:$0xff]
      %v1166 = vld [vmem:[%s5 + $0x7a8] sm:$0xff]
      %v1167 = vld [vmem:[%s5 + $0x7b0] sm:$0xff]
      %v1168 = vld [vmem:[%s5 + $0x7b8] sm:$0xff]
      %v1169 = vld [vmem:[%s5 + $0x7c0] sm:$0xff]
      %v1170 = vld [vmem:[%s5 + $0x7c8] sm:$0xff]
      %v1171 = vld [vmem:[%s5 + $0x7d0] sm:$0xff]
      %v1172 = vld [vmem:[%s5 + $0x7d8] sm:$0xff]
      %v1173 = vld [vmem:[%s5 + $0x7e0] sm:$0xff]
      %v1174 = vld [vmem:[%s5 + $0x7e8] sm:$0xff]
      %v1175 = vld [vmem:[%s5 + $0x7f0] sm:$0xff]
      %v1176 = vld [vmem:[%s5 + $0x7f8] sm:$0xff]
      %v1177 = vld [vmem:[%s5 + $0x800] sm:$0xff]
      %v1178 = vld [vmem:[%s5 + $0x808] sm:$0xff]
      %v1179 = vld [vmem:[%s5 + $0x810] sm:$0xff]
      %v1180 = vld [vmem:[%s5 + $0x818] sm:$0xff]
      %v1181 = vld [vmem:[%s5 + $0x820] sm:$0xff]
      %v1182 = vld [vmem:[%s5 + $0x828] sm:$0xff]
      %v1183 = vld [vmem:[%s5 + $0x830] sm:$0xff]
      %v1184 = vld [vmem:[%s5 + $0x838] sm:$0xff]
      %v1185 = vld [vmem:[%s5 + $0x840] sm:$0xff]
      %v1186 = vld [vmem:[%s5 + $0x848] sm:$0xff]
      %v1187 = vld [vmem:[%s5 + $0x850] sm:$0xff]
      %v1188 = vld [vmem:[%s5 + $0x858] sm:$0xff]
      %v1189 = vld [vmem:[%s5 + $0x860] sm:$0xff]
      %v1190 = vld [vmem:[%s5 + $0x868] sm:$0xff]
      %v1191 = vld [vmem:[%s5 + $0x870] sm:$0xff]
      %v1192 = vld [vmem:[%s5 + $0x878] sm:$0xff]
      %v1193 = vld [vmem:[%s5 + $0x880] sm:$0xff]
      %v1194 = vld [vmem:[%s5 + $0x888] sm:$0xff]
      %v1195 = vld [vmem:[%s5 + $0x890] sm:$0xff]
      %v1196 = vld [vmem:[%s5 + $0x898] sm:$0xff]
      %v1197 = vld [vmem:[%s5 + $0x8a0] sm:$0xff]
      %v1198 = vld [vmem:[%s5 + $0x8a8] sm:$0xff]
      %v1199 = vld [vmem:[%s5 + $0x8b0] sm:$0xff]
      %v1200 = vld [vmem:[%s5 + $0x8b8] sm:$0xff]
      %v1201 = vld [vmem:[%s5 + $0x8c0] sm:$0xff]
      %v1202 = vld [vmem:[%s5 + $0x8c8] sm:$0xff]
      %v1203 = vld [vmem:[%s5 + $0x8d0] sm:$0xff]
      %v1204 = vld [vmem:[%s5 + $0x8d8] sm:$0xff]
      %v1205 = vld [vmem:[%s5 + $0x8e0] sm:$0xff]
      %v1206 = vld [vmem:[%s5 + $0x8e8] sm:$0xff]
      %v1207 = vld [vmem:[%s5 + $0x8f0] sm:$0xff]
      %v1208 = vld [vmem:[%s5 + $0x8f8] sm:$0xff]
      %v1209 = vld [vmem:[%s5 + $0x900] sm:$0xff]
      %v1210 = vld [vmem:[%s5 + $0x908] sm:$0xff]
      %v1211 = vld [vmem:[%s5 + $0x910] sm:$0xff]
      %v1212 = vld [vmem:[%s5 + $0x918] sm:$0xff]
      %v1213 = vld [vmem:[%s5 + $0x920] sm:$0xff]
      %v1214 = vld [vmem:[%s5 + $0x928] sm:$0xff]
      %v1215 = vld [vmem:[%s5 + $0x930] sm:$0xff]
      %v1216 = vld [vmem:[%s5 + $0x938] sm:$0xff]
      %v1217 = vld [vmem:[%s5 + $0x940] sm:$0xff]
      %v1218 = vld [vmem:[%s5 + $0x948] sm:$0xff]
      %v1219 = vld [vmem:[%s5 + $0x950] sm:$0xff]
      %v1220 = vld [vmem:[%s5 + $0x958] sm:$0xff]
      %v1221 = vld [vmem:[%s5 + $0x960] sm:$0xff]
      %v1222 = vld [vmem:[%s5 + $0x968] sm:$0xff]
      %v1223 = vld [vmem:[%s5 + $0x970] sm:$0xff]
      %v1224 = vld [vmem:[%s5 + $0x978] sm:$0xff]
      %v1225 = vld [vmem:[%s5 + $0x980] sm:$0xff]
      %v1226 = vld [vmem:[%s5 + $0x988] sm:$0xff]
      %v1227 = vld [vmem:[%s5 + $0x990] sm:$0xff]
      %v1228 = vld [vmem:[%s5 + $0x998] sm:$0xff]
      %v1229 = vld [vmem:[%s5 + $0x9a0] sm:$0xff]
      %v1230 = vld [vmem:[%s5 + $0x9a8] sm:$0xff]
      %v1231 = vld [vmem:[%s5 + $0x9b0] sm:$0xff]
      %v1232 = vld [vmem:[%s5 + $0x9b8] sm:$0xff]
      %v1233 = vld [vmem:[%s5 + $0x9c0] sm:$0xff]
      %v1234 = vld [vmem:[%s5 + $0x9c8] sm:$0xff]
      %v1235 = vld [vmem:[%s5 + $0x9d0] sm:$0xff]
      %v1236 = vld [vmem:[%s5 + $0x9d8] sm:$0xff]
      %v1237 = vld [vmem:[%s5 + $0x9e0] sm:$0xff]
      %v1238 = vld [vmem:[%s5 + $0x9e8] sm:$0xff]
      %v1239 = vld [vmem:[%s5 + $0x9f0] sm:$0xff]
      %v1240 = vld [vmem:[%s5 + $0x9f8] sm:$0xff]
      %v1241 = vld [vmem:[%s5 + $0xa00] sm:$0xff]
      %v1242 = vld [vmem:[%s5 + $0xa08] sm:$0xff]
      %v1243 = vld [vmem:[%s5 + $0xa10] sm:$0xff]
      %v1244 = vld [vmem:[%s5 + $0xa18] sm:$0xff]
      %v1245 = vld [vmem:[%s5 + $0xa20] sm:$0xff]
      %v1246 = vld [vmem:[%s5 + $0xa28] sm:$0xff]
      %v1247 = vld [vmem:[%s5 + $0xa30] sm:$0xff]
      %v1248 = vld [vmem:[%s5 + $0xa38] sm:$0xff]
      %v1249 = vld [vmem:[%s5 + $0xa40] sm:$0xff]
      %v1250 = vld [vmem:[%s5 + $0xa48] sm:$0xff]
      %v1251 = vld [vmem:[%s5 + $0xa50] sm:$0xff]
      %v1252 = vld [vmem:[%s5 + $0xa58] sm:$0xff]
      %v1253 = vld [vmem:[%s5 + $0xa60] sm:$0xff]
      %v1254 = vld [vmem:[%s5 + $0xa68] sm:$0xff]
      %v1255 = vld [vmem:[%s5 + $0xa70] sm:$0xff]
      %v1256 = vld [vmem:[%s5 + $0xa78] sm:$0xff]
      %v1257 = vld [vmem:[%s5 + $0xa80] sm:$0xff]
      %v1258 = vld [vmem:[%s5 + $0xa88] sm:$0xff]
      %v1259 = vld [vmem:[%s5 + $0xa90] sm:$0xff]
      %v1260 = vld [vmem:[%s5 + $0xa98] sm:$0xff]
      %v1261 = vld [vmem:[%s5 + $0xaa0] sm:$0xff]
      %v1262 = vld [vmem:[%s5 + $0xaa8] sm:$0xff]
      %v1263 = vld [vmem:[%s5 + $0xab0] sm:$0xff]
      %v1264 = vld [vmem:[%s5 + $0xab8] sm:$0xff]
      %v1265 = vld [vmem:[%s5 + $0xac0] sm:$0xff]
      %v1266 = vld [vmem:[%s5 + $0xac8] sm:$0xff]
      %v1267 = vld [vmem:[%s5 + $0xad0] sm:$0xff]
      %v1268 = vld [vmem:[%s5 + $0xad8] sm:$0xff]
      %v1269 = vld [vmem:[%s5 + $0xae0] sm:$0xff]
      %v1270 = vld [vmem:[%s5 + $0xae8] sm:$0xff]
      %v1271 = vld [vmem:[%s5 + $0xaf0] sm:$0xff]
      %v1272 = vld [vmem:[%s5 + $0xaf8] sm:$0xff]
      %v1273 = vld [vmem:[%s5 + $0xb00] sm:$0xff]
      %v1274 = vld [vmem:[%s5 + $0xb08] sm:$0xff]
      %v1275 = vld [vmem:[%s5 + $0xb10] sm:$0xff]
      %v1276 = vld [vmem:[%s5 + $0xb18] sm:$0xff]
      %v1277 = vld [vmem:[%s5 + $0xb20] sm:$0xff]
      %v1278 = vld [vmem:[%s5 + $0xb28] sm:$0xff]
      %v1279 = vld [vmem:[%s5 + $0xb30] sm:$0xff]
      %v1280 = vld [vmem:[%s5 + $0xb38] sm:$0xff]
      %v1281 = vld [vmem:[%s5 + $0xb40] sm:$0xff]
      %v1282 = vld [vmem:[%s5 + $0xb48] sm:$0xff]
      %v1283 = vld [vmem:[%s5 + $0xb50] sm:$0xff]
      %v1284 = vld [vmem:[%s5 + $0xb58] sm:$0xff]
      %v1285 = vld [vmem:[%s5 + $0xb60] sm:$0xff]
      %v1286 = vld [vmem:[%s5 + $0xb68] sm:$0xff]
      %v1287 = vld [vmem:[%s5 + $0xb70] sm:$0xff]
      %v1288 = vld [vmem:[%s5 + $0xb78] sm:$0xff]
      %v1289 = vld [vmem:[%s5 + $0xb80] sm:$0xff]
      %v1290 = vld [vmem:[%s5 + $0xb88] sm:$0xff]
      %v1291 = vld [vmem:[%s5 + $0xb90] sm:$0xff]
      %v1292 = vld [vmem:[%s5 + $0xb98] sm:$0xff]
      %v1293 = vld [vmem:[%s5 + $0xba0] sm:$0xff]
      %v1294 = vld [vmem:[%s5 + $0xba8] sm:$0xff]
      %v1295 = vld [vmem:[%s5 + $0xbb0] sm:$0xff]
      %v1296 = vld [vmem:[%s5 + $0xbb8] sm:$0xff]
      %v1297 = vld [vmem:[%s5 + $0xbc0] sm:$0xff]
      %v1298 = vld [vmem:[%s5 + $0xbc8] sm:$0xff]
      %v1299 = vld [vmem:[%s5 + $0xbd0] sm:$0xff]
      %v1300 = vld [vmem:[%s5 + $0xbd8] sm:$0xff]
      %v1301 = vld [vmem:[%s5 + $0xbe0] sm:$0xff]
      %v1302 = vld [vmem:[%s5 + $0xbe8] sm:$0xff]
      %v1303 = vld [vmem:[%s5 + $0xbf0] sm:$0xff]
      %v1304 = vld [vmem:[%s5 + $0xbf8] sm:$0xff]
      %v1305 = vld [vmem:[%s6] sm:$0xff]
      %v1306 = vld [vmem:[%s6 + $0x8] sm:$0xf]
      %v1309 = vlaneseq
      %v1310 = vshrl.u32 %v1309, 7
      %v1311 = vsub.s32 0, %v1310
      %v1312 = vrot.slane %v1305, %v1311
      %v1313 = vlaneseq
      %v1314 = vshrl.u32 %v1313, 7
      %v1315 = vsub.s32 1, %v1314
      %v1316 = vrot.slane %v1305, %v1315
      %v1317 = vlaneseq
      %v1318 = vshrl.u32 %v1317, 7
      %v1319 = vsub.s32 2, %v1318
      %v1320 = vrot.slane %v1305, %v1319
      %v1321 = vlaneseq
      %v1322 = vshrl.u32 %v1321, 7
      %v1323 = vsub.s32 3, %v1322
      %v1324 = vrot.slane %v1305, %v1323
      %v1325 = vlaneseq
      %v1326 = vshrl.u32 %v1325, 7
      %v1327 = vsub.s32 4, %v1326
      %v1328 = vrot.slane %v1305, %v1327
      %v1329 = vlaneseq
      %v1330 = vshrl.u32 %v1329, 7
      %v1331 = vsub.s32 5, %v1330
      %v1332 = vrot.slane %v1305, %v1331
      %v1333 = vlaneseq
      %v1334 = vshrl.u32 %v1333, 7
      %v1335 = vsub.s32 6, %v1334
      %v1336 = vrot.slane %v1305, %v1335
      %v1337 = vlaneseq
      %v1338 = vshrl.u32 %v1337, 7
      %v1339 = vsub.s32 7, %v1338
      %v1340 = vrot.slane %v1305, %v1339
      %v1341 = vlaneseq
      %v1342 = vshrl.u32 %v1341, 7
      %v1343 = vsub.s32 0, %v1342
      %v1344 = vrot.slane %v1306, %v1343
      %v1345 = vlaneseq
      %v1346 = vshrl.u32 %v1345, 7
      %v1347 = vsub.s32 1, %v1346
      %v1348 = vrot.slane %v1306, %v1347
      %v1349 = vlaneseq
      %v1350 = vshrl.u32 %v1349, 7
      %v1351 = vsub.s32 2, %v1350
      %v1352 = vrot.slane %v1306, %v1351
      %v1353 = vlaneseq
      %v1354 = vshrl.u32 %v1353, 7
      %v1355 = vsub.s32 3, %v1354
      %v1356 = vrot.slane %v1306, %v1355
      %v1753 = vunpack.c.l.b16 %v921
      %v1754 = vunpack.c.h.b16 %v921
      %v1755 = vunpack.c.l.b16 %v922
      %v1756 = vunpack.c.h.b16 %v922
      %v1757 = vunpack.c.l.b16 %v923
      %v1758 = vunpack.c.h.b16 %v923
      %v1759 = vunpack.c.l.b16 %v924
      %v1760 = vunpack.c.h.b16 %v924
      %v1761 = vunpack.c.l.b16 %v925
      %v1762 = vunpack.c.h.b16 %v925
      %v1763 = vunpack.c.l.b16 %v926
      %v1764 = vunpack.c.h.b16 %v926
      %v1765 = vunpack.c.l.b16 %v927
      %v1766 = vunpack.c.h.b16 %v927
      %v1767 = vunpack.c.l.b16 %v928
      %v1768 = vunpack.c.h.b16 %v928
      %v1769 = vunpack.c.l.b16 %v929
      %v1770 = vunpack.c.h.b16 %v929
      %v1771 = vunpack.c.l.b16 %v930
      %v1772 = vunpack.c.h.b16 %v930
      %v1773 = vunpack.c.l.b16 %v931
      %v1774 = vunpack.c.h.b16 %v931
      %v1775 = vunpack.c.l.b16 %v932
      %v1776 = vunpack.c.h.b16 %v932
      %v1777 = vunpack.c.l.b16 %v933
      %v1778 = vunpack.c.h.b16 %v933
      %v1779 = vunpack.c.l.b16 %v934
      %v1780 = vunpack.c.h.b16 %v934
      %v1781 = vunpack.c.l.b16 %v935
      %v1782 = vunpack.c.h.b16 %v935
      %v1783 = vunpack.c.l.b16 %v936
      %v1784 = vunpack.c.h.b16 %v936
      %v1785 = vunpack.c.l.b16 %v937
      %v1786 = vunpack.c.h.b16 %v937
      %v1787 = vunpack.c.l.b16 %v938
      %v1788 = vunpack.c.h.b16 %v938
      %v1789 = vunpack.c.l.b16 %v939
      %v1790 = vunpack.c.h.b16 %v939
      %v1791 = vunpack.c.l.b16 %v940
      %v1792 = vunpack.c.h.b16 %v940
      %v1793 = vunpack.c.l.b16 %v941
      %v1794 = vunpack.c.h.b16 %v941
      %v1795 = vunpack.c.l.b16 %v942
      %v1796 = vunpack.c.h.b16 %v942
      %v1797 = vunpack.c.l.b16 %v943
      %v1798 = vunpack.c.h.b16 %v943
      %v1799 = vunpack.c.l.b16 %v944
      %v1800 = vunpack.c.h.b16 %v944
      %v1801 = vunpack.c.l.b16 %v945
      %v1802 = vunpack.c.h.b16 %v945
      %v1803 = vunpack.c.l.b16 %v946
      %v1804 = vunpack.c.h.b16 %v946
      %v1805 = vunpack.c.l.b16 %v947
      %v1806 = vunpack.c.h.b16 %v947
      %v1807 = vunpack.c.l.b16 %v948
      %v1808 = vunpack.c.h.b16 %v948
      %v1809 = vunpack.c.l.b16 %v949
      %v1810 = vunpack.c.h.b16 %v949
      %v1811 = vunpack.c.l.b16 %v950
      %v1812 = vunpack.c.h.b16 %v950
      %v1813 = vunpack.c.l.b16 %v951
      %v1814 = vunpack.c.h.b16 %v951
      %v1815 = vunpack.c.l.b16 %v952
      %v1816 = vunpack.c.h.b16 %v952
      %v1817 = vunpack.c.l.b16 %v953
      %v1818 = vunpack.c.h.b16 %v953
      %v1819 = vunpack.c.l.b16 %v954
      %v1820 = vunpack.c.h.b16 %v954
      %v1821 = vunpack.c.l.b16 %v955
      %v1822 = vunpack.c.h.b16 %v955
      %v1823 = vunpack.c.l.b16 %v956
      %v1824 = vunpack.c.h.b16 %v956
      %v1825 = vunpack.c.l.b16 %v957
      %v1826 = vunpack.c.h.b16 %v957
      %v1827 = vunpack.c.l.b16 %v958
      %v1828 = vunpack.c.h.b16 %v958
      %v1829 = vunpack.c.l.b16 %v959
      %v1830 = vunpack.c.h.b16 %v959
      %v1831 = vunpack.c.l.b16 %v960
      %v1832 = vunpack.c.h.b16 %v960
      %v1833 = vunpack.c.l.b16 %v961
      %v1834 = vunpack.c.h.b16 %v961
      %v1835 = vunpack.c.l.b16 %v962
      %v1836 = vunpack.c.h.b16 %v962
      %v1837 = vunpack.c.l.b16 %v963
      %v1838 = vunpack.c.h.b16 %v963
      %v1839 = vunpack.c.l.b16 %v964
      %v1840 = vunpack.c.h.b16 %v964
      %v1841 = vunpack.c.l.b16 %v965
      %v1842 = vunpack.c.h.b16 %v965
      %v1843 = vunpack.c.l.b16 %v966
      %v1844 = vunpack.c.h.b16 %v966
      %v1845 = vunpack.c.l.b16 %v967
      %v1846 = vunpack.c.h.b16 %v967
      %v1847 = vunpack.c.l.b16 %v968
      %v1848 = vunpack.c.h.b16 %v968
      %v1849 = vunpack.c.l.b16 %v969
      %v1850 = vunpack.c.h.b16 %v969
      %v1851 = vunpack.c.l.b16 %v970
      %v1852 = vunpack.c.h.b16 %v970
      %v1853 = vunpack.c.l.b16 %v971
      %v1854 = vunpack.c.h.b16 %v971
      %v1855 = vunpack.c.l.b16 %v972
      %v1856 = vunpack.c.h.b16 %v972
      %v1857 = vunpack.c.l.b16 %v973
      %v1858 = vunpack.c.h.b16 %v973
      %v1859 = vunpack.c.l.b16 %v974
      %v1860 = vunpack.c.h.b16 %v974
      %v1861 = vunpack.c.l.b16 %v975
      %v1862 = vunpack.c.h.b16 %v975
      %v1863 = vunpack.c.l.b16 %v976
      %v1864 = vunpack.c.h.b16 %v976
      %v1865 = vunpack.c.l.b16 %v977
      %v1866 = vunpack.c.h.b16 %v977
      %v1867 = vunpack.c.l.b16 %v978
      %v1868 = vunpack.c.h.b16 %v978
      %v1869 = vunpack.c.l.b16 %v979
      %v1870 = vunpack.c.h.b16 %v979
      %v1871 = vunpack.c.l.b16 %v980
      %v1872 = vunpack.c.h.b16 %v980
      %v1873 = vunpack.c.l.b16 %v981
      %v1874 = vunpack.c.h.b16 %v981
      %v1875 = vunpack.c.l.b16 %v982
      %v1876 = vunpack.c.h.b16 %v982
      %v1877 = vunpack.c.l.b16 %v983
      %v1878 = vunpack.c.h.b16 %v983
      %v1879 = vunpack.c.l.b16 %v984
      %v1880 = vunpack.c.h.b16 %v984
      %v1881 = vunpack.c.l.b16 %v985
      %v1882 = vunpack.c.h.b16 %v985
      %v1883 = vunpack.c.l.b16 %v986
      %v1884 = vunpack.c.h.b16 %v986
      %v1885 = vunpack.c.l.b16 %v987
      %v1886 = vunpack.c.h.b16 %v987
      %v1887 = vunpack.c.l.b16 %v988
      %v1888 = vunpack.c.h.b16 %v988
      %v1889 = vunpack.c.l.b16 %v989
      %v1890 = vunpack.c.h.b16 %v989
      %v1891 = vunpack.c.l.b16 %v990
      %v1892 = vunpack.c.h.b16 %v990
      %v1893 = vunpack.c.l.b16 %v991
      %v1894 = vunpack.c.h.b16 %v991
      %v1895 = vunpack.c.l.b16 %v992
      %v1896 = vunpack.c.h.b16 %v992
      %v1897 = vunpack.c.l.b16 %v993
      %v1898 = vunpack.c.h.b16 %v993
      %v1899 = vunpack.c.l.b16 %v994
      %v1900 = vunpack.c.h.b16 %v994
      %v1901 = vunpack.c.l.b16 %v995
      %v1902 = vunpack.c.h.b16 %v995
      %v1903 = vunpack.c.l.b16 %v996
      %v1904 = vunpack.c.h.b16 %v996
      %v1905 = vunpack.c.l.b16 %v997
      %v1906 = vunpack.c.h.b16 %v997
      %v1907 = vunpack.c.l.b16 %v998
      %v1908 = vunpack.c.h.b16 %v998
      %v1909 = vunpack.c.l.b16 %v999
      %v1910 = vunpack.c.h.b16 %v999
      %v1911 = vunpack.c.l.b16 %v1000
      %v1912 = vunpack.c.h.b16 %v1000
      %v1913 = vunpack.c.l.b16 %v1001
      %v1914 = vunpack.c.h.b16 %v1001
      %v1915 = vunpack.c.l.b16 %v1002
      %v1916 = vunpack.c.h.b16 %v1002
      %v1917 = vunpack.c.l.b16 %v1003
      %v1918 = vunpack.c.h.b16 %v1003
      %v1919 = vunpack.c.l.b16 %v1004
      %v1920 = vunpack.c.h.b16 %v1004
      %v1921 = vunpack.c.l.b16 %v1005
      %v1922 = vunpack.c.h.b16 %v1005
      %v1923 = vunpack.c.l.b16 %v1006
      %v1924 = vunpack.c.h.b16 %v1006
      %v1925 = vunpack.c.l.b16 %v1007
      %v1926 = vunpack.c.h.b16 %v1007
      %v1927 = vunpack.c.l.b16 %v1008
      %v1928 = vunpack.c.h.b16 %v1008
      %v1929 = vunpack.c.l.b16 %v1009
      %v1930 = vunpack.c.h.b16 %v1009
      %v1931 = vunpack.c.l.b16 %v1010
      %v1932 = vunpack.c.h.b16 %v1010
      %v1933 = vunpack.c.l.b16 %v1011
      %v1934 = vunpack.c.h.b16 %v1011
      %v1935 = vunpack.c.l.b16 %v1012
      %v1936 = vunpack.c.h.b16 %v1012
      %v1937 = vunpack.c.l.b16 %v1013
      %v1938 = vunpack.c.h.b16 %v1013
      %v1939 = vunpack.c.l.b16 %v1014
      %v1940 = vunpack.c.h.b16 %v1014
      %v1941 = vunpack.c.l.b16 %v1015
      %v1942 = vunpack.c.h.b16 %v1015
      %v1943 = vunpack.c.l.b16 %v1016
      %v1944 = vunpack.c.h.b16 %v1016
      %v1945 = vunpack.c.l.b16 %v1017
      %v1946 = vunpack.c.h.b16 %v1017
      %v1947 = vunpack.c.l.b16 %v1018
      %v1948 = vunpack.c.h.b16 %v1018
      %v1949 = vunpack.c.l.b16 %v1019
      %v1950 = vunpack.c.h.b16 %v1019
      %v1951 = vunpack.c.l.b16 %v1020
      %v1952 = vunpack.c.h.b16 %v1020
      %v1953 = vunpack.c.l.b16 %v1021
      %v1954 = vunpack.c.h.b16 %v1021
      %v1955 = vunpack.c.l.b16 %v1022
      %v1956 = vunpack.c.h.b16 %v1022
      %v1957 = vunpack.c.l.b16 %v1023
      %v1958 = vunpack.c.h.b16 %v1023
      %v1959 = vunpack.c.l.b16 %v1024
      %v1960 = vunpack.c.h.b16 %v1024
      %v1961 = vunpack.c.l.b16 %v1025
      %v1962 = vunpack.c.h.b16 %v1025
      %v1963 = vunpack.c.l.b16 %v1026
      %v1964 = vunpack.c.h.b16 %v1026
      %v1965 = vunpack.c.l.b16 %v1027
      %v1966 = vunpack.c.h.b16 %v1027
      %v1967 = vunpack.c.l.b16 %v1028
      %v1968 = vunpack.c.h.b16 %v1028
      %v1969 = vunpack.c.l.b16 %v1029
      %v1970 = vunpack.c.h.b16 %v1029
      %v1971 = vunpack.c.l.b16 %v1030
      %v1972 = vunpack.c.h.b16 %v1030
      %v1973 = vunpack.c.l.b16 %v1031
      %v1974 = vunpack.c.h.b16 %v1031
      %v1975 = vunpack.c.l.b16 %v1032
      %v1976 = vunpack.c.h.b16 %v1032
      %v1977 = vunpack.c.l.b16 %v1033
      %v1978 = vunpack.c.h.b16 %v1033
      %v1979 = vunpack.c.l.b16 %v1034
      %v1980 = vunpack.c.h.b16 %v1034
      %v1981 = vunpack.c.l.b16 %v1035
      %v1982 = vunpack.c.h.b16 %v1035
      %v1983 = vunpack.c.l.b16 %v1036
      %v1984 = vunpack.c.h.b16 %v1036
      %v1985 = vunpack.c.l.b16 %v1037
      %v1986 = vunpack.c.h.b16 %v1037
      %v1987 = vunpack.c.l.b16 %v1038
      %v1988 = vunpack.c.h.b16 %v1038
      %v1989 = vunpack.c.l.b16 %v1039
      %v1990 = vunpack.c.h.b16 %v1039
      %v1991 = vunpack.c.l.b16 %v1040
      %v1992 = vunpack.c.h.b16 %v1040
      %v1993 = vunpack.c.l.b16 %v1041
      %v1994 = vunpack.c.h.b16 %v1041
      %v1995 = vunpack.c.l.b16 %v1042
      %v1996 = vunpack.c.h.b16 %v1042
      %v1997 = vunpack.c.l.b16 %v1043
      %v1998 = vunpack.c.h.b16 %v1043
      %v1999 = vunpack.c.l.b16 %v1044
      %v2000 = vunpack.c.h.b16 %v1044
      %v2001 = vunpack.c.l.b16 %v1045
      %v2002 = vunpack.c.h.b16 %v1045
      %v2003 = vunpack.c.l.b16 %v1046
      %v2004 = vunpack.c.h.b16 %v1046
      %v2005 = vunpack.c.l.b16 %v1047
      %v2006 = vunpack.c.h.b16 %v1047
      %v2007 = vunpack.c.l.b16 %v1048
      %v2008 = vunpack.c.h.b16 %v1048
      %v2009 = vunpack.c.l.b16 %v1049
      %v2010 = vunpack.c.h.b16 %v1049
      %v2011 = vunpack.c.l.b16 %v1050
      %v2012 = vunpack.c.h.b16 %v1050
      %v2013 = vunpack.c.l.b16 %v1051
      %v2014 = vunpack.c.h.b16 %v1051
      %v2015 = vunpack.c.l.b16 %v1052
      %v2016 = vunpack.c.h.b16 %v1052
      %v2017 = vunpack.c.l.b16 %v1053
      %v2018 = vunpack.c.h.b16 %v1053
      %v2019 = vunpack.c.l.b16 %v1054
      %v2020 = vunpack.c.h.b16 %v1054
      %v2021 = vunpack.c.l.b16 %v1055
      %v2022 = vunpack.c.h.b16 %v1055
      %v2023 = vunpack.c.l.b16 %v1056
      %v2024 = vunpack.c.h.b16 %v1056
      %v2025 = vunpack.c.l.b16 %v1057
      %v2026 = vunpack.c.h.b16 %v1057
      %v2027 = vunpack.c.l.b16 %v1058
      %v2028 = vunpack.c.h.b16 %v1058
      %v2029 = vunpack.c.l.b16 %v1059
      %v2030 = vunpack.c.h.b16 %v1059
      %v2031 = vunpack.c.l.b16 %v1060
      %v2032 = vunpack.c.h.b16 %v1060
      %v2033 = vunpack.c.l.b16 %v1061
      %v2034 = vunpack.c.h.b16 %v1061
      %v2035 = vunpack.c.l.b16 %v1062
      %v2036 = vunpack.c.h.b16 %v1062
      %v2037 = vunpack.c.l.b16 %v1063
      %v2038 = vunpack.c.h.b16 %v1063
      %v2039 = vunpack.c.l.b16 %v1064
      %v2040 = vunpack.c.h.b16 %v1064
      %v2041 = vunpack.c.l.b16 %v1065
      %v2042 = vunpack.c.h.b16 %v1065
      %v2043 = vunpack.c.l.b16 %v1066
      %v2044 = vunpack.c.h.b16 %v1066
      %v2045 = vunpack.c.l.b16 %v1067
      %v2046 = vunpack.c.h.b16 %v1067
      %v2047 = vunpack.c.l.b16 %v1068
      %v2048 = vunpack.c.h.b16 %v1068
      %v2049 = vunpack.c.l.b16 %v1069
      %v2050 = vunpack.c.h.b16 %v1069
      %v2051 = vunpack.c.l.b16 %v1070
      %v2052 = vunpack.c.h.b16 %v1070
      %v2053 = vunpack.c.l.b16 %v1071
      %v2054 = vunpack.c.h.b16 %v1071
      %v2055 = vunpack.c.l.b16 %v1072
      %v2056 = vunpack.c.h.b16 %v1072
      %v2057 = vunpack.c.l.b16 %v1073
      %v2058 = vunpack.c.h.b16 %v1073
      %v2059 = vunpack.c.l.b16 %v1074
      %v2060 = vunpack.c.h.b16 %v1074
      %v2061 = vunpack.c.l.b16 %v1075
      %v2062 = vunpack.c.h.b16 %v1075
      %v2063 = vunpack.c.l.b16 %v1076
      %v2064 = vunpack.c.h.b16 %v1076
      %v2065 = vunpack.c.l.b16 %v1077
      %v2066 = vunpack.c.h.b16 %v1077
      %v2067 = vunpack.c.l.b16 %v1078
      %v2068 = vunpack.c.h.b16 %v1078
      %v2069 = vunpack.c.l.b16 %v1079
      %v2070 = vunpack.c.h.b16 %v1079
      %v2071 = vunpack.c.l.b16 %v1080
      %v2072 = vunpack.c.h.b16 %v1080
      %v2073 = vunpack.c.l.b16 %v1081
      %v2074 = vunpack.c.h.b16 %v1081
      %v2075 = vunpack.c.l.b16 %v1082
      %v2076 = vunpack.c.h.b16 %v1082
      %v2077 = vunpack.c.l.b16 %v1083
      %v2078 = vunpack.c.h.b16 %v1083
      %v2079 = vunpack.c.l.b16 %v1084
      %v2080 = vunpack.c.h.b16 %v1084
      %v2081 = vunpack.c.l.b16 %v1085
      %v2082 = vunpack.c.h.b16 %v1085
      %v2083 = vunpack.c.l.b16 %v1086
      %v2084 = vunpack.c.h.b16 %v1086
      %v2085 = vunpack.c.l.b16 %v1087
      %v2086 = vunpack.c.h.b16 %v1087
      %v2087 = vunpack.c.l.b16 %v1088
      %v2088 = vunpack.c.h.b16 %v1088
      %v2089 = vunpack.c.l.b16 %v1089
      %v2090 = vunpack.c.h.b16 %v1089
      %v2091 = vunpack.c.l.b16 %v1090
      %v2092 = vunpack.c.h.b16 %v1090
      %v2093 = vunpack.c.l.b16 %v1091
      %v2094 = vunpack.c.h.b16 %v1091
      %v2095 = vunpack.c.l.b16 %v1092
      %v2096 = vunpack.c.h.b16 %v1092
      %v2097 = vunpack.c.l.b16 %v1093
      %v2098 = vunpack.c.h.b16 %v1093
      %v2099 = vunpack.c.l.b16 %v1094
      %v2100 = vunpack.c.h.b16 %v1094
      %v2101 = vunpack.c.l.b16 %v1095
      %v2102 = vunpack.c.h.b16 %v1095
      %v2103 = vunpack.c.l.b16 %v1096
      %v2104 = vunpack.c.h.b16 %v1096
      %v2105 = vunpack.c.l.b16 %v1097
      %v2106 = vunpack.c.h.b16 %v1097
      %v2107 = vunpack.c.l.b16 %v1098
      %v2108 = vunpack.c.h.b16 %v1098
      %v2109 = vunpack.c.l.b16 %v1099
      %v2110 = vunpack.c.h.b16 %v1099
      %v2111 = vunpack.c.l.b16 %v1100
      %v2112 = vunpack.c.h.b16 %v1100
      %v2113 = vunpack.c.l.b16 %v1101
      %v2114 = vunpack.c.h.b16 %v1101
      %v2115 = vunpack.c.l.b16 %v1102
      %v2116 = vunpack.c.h.b16 %v1102
      %v2117 = vunpack.c.l.b16 %v1103
      %v2118 = vunpack.c.h.b16 %v1103
      %v2119 = vunpack.c.l.b16 %v1104
      %v2120 = vunpack.c.h.b16 %v1104
      %v2121 = vunpack.c.l.b16 %v1105
      %v2122 = vunpack.c.h.b16 %v1105
      %v2123 = vunpack.c.l.b16 %v1106
      %v2124 = vunpack.c.h.b16 %v1106
      %v2125 = vunpack.c.l.b16 %v1107
      %v2126 = vunpack.c.h.b16 %v1107
      %v2127 = vunpack.c.l.b16 %v1108
      %v2128 = vunpack.c.h.b16 %v1108
      %v2129 = vunpack.c.l.b16 %v1109
      %v2130 = vunpack.c.h.b16 %v1109
      %v2131 = vunpack.c.l.b16 %v1110
      %v2132 = vunpack.c.h.b16 %v1110
      %v2133 = vunpack.c.l.b16 %v1111
      %v2134 = vunpack.c.h.b16 %v1111
      %v2135 = vunpack.c.l.b16 %v1112
      %v2136 = vunpack.c.h.b16 %v1112
      %v2137 = vunpack.c.l.b16 %v1113
      %v2138 = vunpack.c.h.b16 %v1113
      %v2139 = vunpack.c.l.b16 %v1114
      %v2140 = vunpack.c.h.b16 %v1114
      %v2141 = vunpack.c.l.b16 %v1115
      %v2142 = vunpack.c.h.b16 %v1115
      %v2143 = vunpack.c.l.b16 %v1116
      %v2144 = vunpack.c.h.b16 %v1116
      %v2145 = vunpack.c.l.b16 %v1117
      %v2146 = vunpack.c.h.b16 %v1117
      %v2147 = vunpack.c.l.b16 %v1118
      %v2148 = vunpack.c.h.b16 %v1118
      %v2149 = vunpack.c.l.b16 %v1119
      %v2150 = vunpack.c.h.b16 %v1119
      %v2151 = vunpack.c.l.b16 %v1120
      %v2152 = vunpack.c.h.b16 %v1120
      %v2153 = vunpack.c.l.b16 %v1121
      %v2154 = vunpack.c.h.b16 %v1121
      %v2155 = vunpack.c.l.b16 %v1122
      %v2156 = vunpack.c.h.b16 %v1122
      %v2157 = vunpack.c.l.b16 %v1123
      %v2158 = vunpack.c.h.b16 %v1123
      %v2159 = vunpack.c.l.b16 %v1124
      %v2160 = vunpack.c.h.b16 %v1124
      %v2161 = vunpack.c.l.b16 %v1125
      %v2162 = vunpack.c.h.b16 %v1125
      %v2163 = vunpack.c.l.b16 %v1126
      %v2164 = vunpack.c.h.b16 %v1126
      %v2165 = vunpack.c.l.b16 %v1127
      %v2166 = vunpack.c.h.b16 %v1127
      %v2167 = vunpack.c.l.b16 %v1128
      %v2168 = vunpack.c.h.b16 %v1128
      %v2169 = vunpack.c.l.b16 %v1129
      %v2170 = vunpack.c.h.b16 %v1129
      %v2171 = vunpack.c.l.b16 %v1130
      %v2172 = vunpack.c.h.b16 %v1130
      %v2173 = vunpack.c.l.b16 %v1131
      %v2174 = vunpack.c.h.b16 %v1131
      %v2175 = vunpack.c.l.b16 %v1132
      %v2176 = vunpack.c.h.b16 %v1132
      %v2177 = vunpack.c.l.b16 %v1133
      %v2178 = vunpack.c.h.b16 %v1133
      %v2179 = vunpack.c.l.b16 %v1134
      %v2180 = vunpack.c.h.b16 %v1134
      %v2181 = vunpack.c.l.b16 %v1135
      %v2182 = vunpack.c.h.b16 %v1135
      %v2183 = vunpack.c.l.b16 %v1136
      %v2184 = vunpack.c.h.b16 %v1136
      %v2185 = vunpack.c.l.b16 %v1137
      %v2186 = vunpack.c.h.b16 %v1137
      %v2187 = vunpack.c.l.b16 %v1138
      %v2188 = vunpack.c.h.b16 %v1138
      %v2189 = vunpack.c.l.b16 %v1139
      %v2190 = vunpack.c.h.b16 %v1139
      %v2191 = vunpack.c.l.b16 %v1140
      %v2192 = vunpack.c.h.b16 %v1140
      %v2193 = vunpack.c.l.b16 %v1141
      %v2194 = vunpack.c.h.b16 %v1141
      %v2195 = vunpack.c.l.b16 %v1142
      %v2196 = vunpack.c.h.b16 %v1142
      %v2197 = vunpack.c.l.b16 %v1143
      %v2198 = vunpack.c.h.b16 %v1143
      %v2199 = vunpack.c.l.b16 %v1144
      %v2200 = vunpack.c.h.b16 %v1144
      %v2201 = vunpack.c.l.b16 %v1145
      %v2202 = vunpack.c.h.b16 %v1145
      %v2203 = vunpack.c.l.b16 %v1146
      %v2204 = vunpack.c.h.b16 %v1146
      %v2205 = vunpack.c.l.b16 %v1147
      %v2206 = vunpack.c.h.b16 %v1147
      %v2207 = vunpack.c.l.b16 %v1148
      %v2208 = vunpack.c.h.b16 %v1148
      %v2209 = vunpack.c.l.b16 %v1149
      %v2210 = vunpack.c.h.b16 %v1149
      %v2211 = vunpack.c.l.b16 %v1150
      %v2212 = vunpack.c.h.b16 %v1150
      %v2213 = vunpack.c.l.b16 %v1151
      %v2214 = vunpack.c.h.b16 %v1151
      %v2215 = vunpack.c.l.b16 %v1152
      %v2216 = vunpack.c.h.b16 %v1152
      %v2217 = vunpack.c.l.b16 %v1153
      %v2218 = vunpack.c.h.b16 %v1153
      %v2219 = vunpack.c.l.b16 %v1154
      %v2220 = vunpack.c.h.b16 %v1154
      %v2221 = vunpack.c.l.b16 %v1155
      %v2222 = vunpack.c.h.b16 %v1155
      %v2223 = vunpack.c.l.b16 %v1156
      %v2224 = vunpack.c.h.b16 %v1156
      %v2225 = vunpack.c.l.b16 %v1157
      %v2226 = vunpack.c.h.b16 %v1157
      %v2227 = vunpack.c.l.b16 %v1158
      %v2228 = vunpack.c.h.b16 %v1158
      %v2229 = vunpack.c.l.b16 %v1159
      %v2230 = vunpack.c.h.b16 %v1159
      %v2231 = vunpack.c.l.b16 %v1160
      %v2232 = vunpack.c.h.b16 %v1160
      %v2233 = vunpack.c.l.b16 %v1161
      %v2234 = vunpack.c.h.b16 %v1161
      %v2235 = vunpack.c.l.b16 %v1162
      %v2236 = vunpack.c.h.b16 %v1162
      %v2237 = vunpack.c.l.b16 %v1163
      %v2238 = vunpack.c.h.b16 %v1163
      %v2239 = vunpack.c.l.b16 %v1164
      %v2240 = vunpack.c.h.b16 %v1164
      %v2241 = vunpack.c.l.b16 %v1165
      %v2242 = vunpack.c.h.b16 %v1165
      %v2243 = vunpack.c.l.b16 %v1166
      %v2244 = vunpack.c.h.b16 %v1166
      %v2245 = vunpack.c.l.b16 %v1167
      %v2246 = vunpack.c.h.b16 %v1167
      %v2247 = vunpack.c.l.b16 %v1168
      %v2248 = vunpack.c.h.b16 %v1168
      %v2249 = vunpack.c.l.b16 %v1169
      %v2250 = vunpack.c.h.b16 %v1169
      %v2251 = vunpack.c.l.b16 %v1170
      %v2252 = vunpack.c.h.b16 %v1170
      %v2253 = vunpack.c.l.b16 %v1171
      %v2254 = vunpack.c.h.b16 %v1171
      %v2255 = vunpack.c.l.b16 %v1172
      %v2256 = vunpack.c.h.b16 %v1172
      %v2257 = vunpack.c.l.b16 %v1173
      %v2258 = vunpack.c.h.b16 %v1173
      %v2259 = vunpack.c.l.b16 %v1174
      %v2260 = vunpack.c.h.b16 %v1174
      %v2261 = vunpack.c.l.b16 %v1175
      %v2262 = vunpack.c.h.b16 %v1175
      %v2263 = vunpack.c.l.b16 %v1176
      %v2264 = vunpack.c.h.b16 %v1176
      %v2265 = vunpack.c.l.b16 %v1177
      %v2266 = vunpack.c.h.b16 %v1177
      %v2267 = vunpack.c.l.b16 %v1178
      %v2268 = vunpack.c.h.b16 %v1178
      %v2269 = vunpack.c.l.b16 %v1179
      %v2270 = vunpack.c.h.b16 %v1179
      %v2271 = vunpack.c.l.b16 %v1180
      %v2272 = vunpack.c.h.b16 %v1180
      %v2273 = vunpack.c.l.b16 %v1181
      %v2274 = vunpack.c.h.b16 %v1181
      %v2275 = vunpack.c.l.b16 %v1182
      %v2276 = vunpack.c.h.b16 %v1182
      %v2277 = vunpack.c.l.b16 %v1183
      %v2278 = vunpack.c.h.b16 %v1183
      %v2279 = vunpack.c.l.b16 %v1184
      %v2280 = vunpack.c.h.b16 %v1184
      %v2281 = vunpack.c.l.b16 %v1185
      %v2282 = vunpack.c.h.b16 %v1185
      %v2283 = vunpack.c.l.b16 %v1186
      %v2284 = vunpack.c.h.b16 %v1186
      %v2285 = vunpack.c.l.b16 %v1187
      %v2286 = vunpack.c.h.b16 %v1187
      %v2287 = vunpack.c.l.b16 %v1188
      %v2288 = vunpack.c.h.b16 %v1188
      %v2289 = vunpack.c.l.b16 %v1189
      %v2290 = vunpack.c.h.b16 %v1189
      %v2291 = vunpack.c.l.b16 %v1190
      %v2292 = vunpack.c.h.b16 %v1190
      %v2293 = vunpack.c.l.b16 %v1191
      %v2294 = vunpack.c.h.b16 %v1191
      %v2295 = vunpack.c.l.b16 %v1192
      %v2296 = vunpack.c.h.b16 %v1192
      %v2297 = vunpack.c.l.b16 %v1193
      %v2298 = vunpack.c.h.b16 %v1193
      %v2299 = vunpack.c.l.b16 %v1194
      %v2300 = vunpack.c.h.b16 %v1194
      %v2301 = vunpack.c.l.b16 %v1195
      %v2302 = vunpack.c.h.b16 %v1195
      %v2303 = vunpack.c.l.b16 %v1196
      %v2304 = vunpack.c.h.b16 %v1196
      %v2305 = vunpack.c.l.b16 %v1197
      %v2306 = vunpack.c.h.b16 %v1197
      %v2307 = vunpack.c.l.b16 %v1198
      %v2308 = vunpack.c.h.b16 %v1198
      %v2309 = vunpack.c.l.b16 %v1199
      %v2310 = vunpack.c.h.b16 %v1199
      %v2311 = vunpack.c.l.b16 %v1200
      %v2312 = vunpack.c.h.b16 %v1200
      %v2313 = vunpack.c.l.b16 %v1201
      %v2314 = vunpack.c.h.b16 %v1201
      %v2315 = vunpack.c.l.b16 %v1202
      %v2316 = vunpack.c.h.b16 %v1202
      %v2317 = vunpack.c.l.b16 %v1203
      %v2318 = vunpack.c.h.b16 %v1203
      %v2319 = vunpack.c.l.b16 %v1204
      %v2320 = vunpack.c.h.b16 %v1204
      %v2321 = vunpack.c.l.b16 %v1205
      %v2322 = vunpack.c.h.b16 %v1205
      %v2323 = vunpack.c.l.b16 %v1206
      %v2324 = vunpack.c.h.b16 %v1206
      %v2325 = vunpack.c.l.b16 %v1207
      %v2326 = vunpack.c.h.b16 %v1207
      %v2327 = vunpack.c.l.b16 %v1208
      %v2328 = vunpack.c.h.b16 %v1208
      %v2329 = vunpack.c.l.b16 %v1209
      %v2330 = vunpack.c.h.b16 %v1209
      %v2331 = vunpack.c.l.b16 %v1210
      %v2332 = vunpack.c.h.b16 %v1210
      %v2333 = vunpack.c.l.b16 %v1211
      %v2334 = vunpack.c.h.b16 %v1211
      %v2335 = vunpack.c.l.b16 %v1212
      %v2336 = vunpack.c.h.b16 %v1212
      %v2337 = vunpack.c.l.b16 %v1213
      %v2338 = vunpack.c.h.b16 %v1213
      %v2339 = vunpack.c.l.b16 %v1214
      %v2340 = vunpack.c.h.b16 %v1214
      %v2341 = vunpack.c.l.b16 %v1215
      %v2342 = vunpack.c.h.b16 %v1215
      %v2343 = vunpack.c.l.b16 %v1216
      %v2344 = vunpack.c.h.b16 %v1216
      %v2345 = vunpack.c.l.b16 %v1217
      %v2346 = vunpack.c.h.b16 %v1217
      %v2347 = vunpack.c.l.b16 %v1218
      %v2348 = vunpack.c.h.b16 %v1218
      %v2349 = vunpack.c.l.b16 %v1219
      %v2350 = vunpack.c.h.b16 %v1219
      %v2351 = vunpack.c.l.b16 %v1220
      %v2352 = vunpack.c.h.b16 %v1220
      %v2353 = vunpack.c.l.b16 %v1221
      %v2354 = vunpack.c.h.b16 %v1221
      %v2355 = vunpack.c.l.b16 %v1222
      %v2356 = vunpack.c.h.b16 %v1222
      %v2357 = vunpack.c.l.b16 %v1223
      %v2358 = vunpack.c.h.b16 %v1223
      %v2359 = vunpack.c.l.b16 %v1224
      %v2360 = vunpack.c.h.b16 %v1224
      %v2361 = vunpack.c.l.b16 %v1225
      %v2362 = vunpack.c.h.b16 %v1225
      %v2363 = vunpack.c.l.b16 %v1226
      %v2364 = vunpack.c.h.b16 %v1226
      %v2365 = vunpack.c.l.b16 %v1227
      %v2366 = vunpack.c.h.b16 %v1227
      %v2367 = vunpack.c.l.b16 %v1228
      %v2368 = vunpack.c.h.b16 %v1228
      %v2369 = vunpack.c.l.b16 %v1229
      %v2370 = vunpack.c.h.b16 %v1229
      %v2371 = vunpack.c.l.b16 %v1230
      %v2372 = vunpack.c.h.b16 %v1230
      %v2373 = vunpack.c.l.b16 %v1231
      %v2374 = vunpack.c.h.b16 %v1231
      %v2375 = vunpack.c.l.b16 %v1232
      %v2376 = vunpack.c.h.b16 %v1232
      %v2377 = vunpack.c.l.b16 %v1233
      %v2378 = vunpack.c.h.b16 %v1233
      %v2379 = vunpack.c.l.b16 %v1234
      %v2380 = vunpack.c.h.b16 %v1234
      %v2381 = vunpack.c.l.b16 %v1235
      %v2382 = vunpack.c.h.b16 %v1235
      %v2383 = vunpack.c.l.b16 %v1236
      %v2384 = vunpack.c.h.b16 %v1236
      %v2385 = vunpack.c.l.b16 %v1237
      %v2386 = vunpack.c.h.b16 %v1237
      %v2387 = vunpack.c.l.b16 %v1238
      %v2388 = vunpack.c.h.b16 %v1238
      %v2389 = vunpack.c.l.b16 %v1239
      %v2390 = vunpack.c.h.b16 %v1239
      %v2391 = vunpack.c.l.b16 %v1240
      %v2392 = vunpack.c.h.b16 %v1240
      %v2393 = vunpack.c.l.b16 %v1241
      %v2394 = vunpack.c.h.b16 %v1241
      %v2395 = vunpack.c.l.b16 %v1242
      %v2396 = vunpack.c.h.b16 %v1242
      %v2397 = vunpack.c.l.b16 %v1243
      %v2398 = vunpack.c.h.b16 %v1243
      %v2399 = vunpack.c.l.b16 %v1244
      %v2400 = vunpack.c.h.b16 %v1244
      %v2401 = vunpack.c.l.b16 %v1245
      %v2402 = vunpack.c.h.b16 %v1245
      %v2403 = vunpack.c.l.b16 %v1246
      %v2404 = vunpack.c.h.b16 %v1246
      %v2405 = vunpack.c.l.b16 %v1247
      %v2406 = vunpack.c.h.b16 %v1247
      %v2407 = vunpack.c.l.b16 %v1248
      %v2408 = vunpack.c.h.b16 %v1248
      %v2409 = vunpack.c.l.b16 %v1249
      %v2410 = vunpack.c.h.b16 %v1249
      %v2411 = vunpack.c.l.b16 %v1250
      %v2412 = vunpack.c.h.b16 %v1250
      %v2413 = vunpack.c.l.b16 %v1251
      %v2414 = vunpack.c.h.b16 %v1251
      %v2415 = vunpack.c.l.b16 %v1252
      %v2416 = vunpack.c.h.b16 %v1252
      %v2417 = vunpack.c.l.b16 %v1253
      %v2418 = vunpack.c.h.b16 %v1253
      %v2419 = vunpack.c.l.b16 %v1254
      %v2420 = vunpack.c.h.b16 %v1254
      %v2421 = vunpack.c.l.b16 %v1255
      %v2422 = vunpack.c.h.b16 %v1255
      %v2423 = vunpack.c.l.b16 %v1256
      %v2424 = vunpack.c.h.b16 %v1256
      %v2425 = vunpack.c.l.b16 %v1257
      %v2426 = vunpack.c.h.b16 %v1257
      %v2427 = vunpack.c.l.b16 %v1258
      %v2428 = vunpack.c.h.b16 %v1258
      %v2429 = vunpack.c.l.b16 %v1259
      %v2430 = vunpack.c.h.b16 %v1259
      %v2431 = vunpack.c.l.b16 %v1260
      %v2432 = vunpack.c.h.b16 %v1260
      %v2433 = vunpack.c.l.b16 %v1261
      %v2434 = vunpack.c.h.b16 %v1261
      %v2435 = vunpack.c.l.b16 %v1262
      %v2436 = vunpack.c.h.b16 %v1262
      %v2437 = vunpack.c.l.b16 %v1263
      %v2438 = vunpack.c.h.b16 %v1263
      %v2439 = vunpack.c.l.b16 %v1264
      %v2440 = vunpack.c.h.b16 %v1264
      %v2441 = vunpack.c.l.b16 %v1265
      %v2442 = vunpack.c.h.b16 %v1265
      %v2443 = vunpack.c.l.b16 %v1266
      %v2444 = vunpack.c.h.b16 %v1266
      %v2445 = vunpack.c.l.b16 %v1267
      %v2446 = vunpack.c.h.b16 %v1267
      %v2447 = vunpack.c.l.b16 %v1268
      %v2448 = vunpack.c.h.b16 %v1268
      %v2449 = vunpack.c.l.b16 %v1269
      %v2450 = vunpack.c.h.b16 %v1269
      %v2451 = vunpack.c.l.b16 %v1270
      %v2452 = vunpack.c.h.b16 %v1270
      %v2453 = vunpack.c.l.b16 %v1271
      %v2454 = vunpack.c.h.b16 %v1271
      %v2455 = vunpack.c.l.b16 %v1272
      %v2456 = vunpack.c.h.b16 %v1272
      %v2457 = vunpack.c.l.b16 %v1273
      %v2458 = vunpack.c.h.b16 %v1273
      %v2459 = vunpack.c.l.b16 %v1274
      %v2460 = vunpack.c.h.b16 %v1274
      %v2461 = vunpack.c.l.b16 %v1275
      %v2462 = vunpack.c.h.b16 %v1275
      %v2463 = vunpack.c.l.b16 %v1276
      %v2464 = vunpack.c.h.b16 %v1276
      %v2465 = vunpack.c.l.b16 %v1277
      %v2466 = vunpack.c.h.b16 %v1277
      %v2467 = vunpack.c.l.b16 %v1278
      %v2468 = vunpack.c.h.b16 %v1278
      %v2469 = vunpack.c.l.b16 %v1279
      %v2470 = vunpack.c.h.b16 %v1279
      %v2471 = vunpack.c.l.b16 %v1280
      %v2472 = vunpack.c.h.b16 %v1280
      %v2473 = vunpack.c.l.b16 %v1281
      %v2474 = vunpack.c.h.b16 %v1281
      %v2475 = vunpack.c.l.b16 %v1282
      %v2476 = vunpack.c.h.b16 %v1282
      %v2477 = vunpack.c.l.b16 %v1283
      %v2478 = vunpack.c.h.b16 %v1283
      %v2479 = vunpack.c.l.b16 %v1284
      %v2480 = vunpack.c.h.b16 %v1284
      %v2481 = vunpack.c.l.b16 %v1285
      %v2482 = vunpack.c.h.b16 %v1285
      %v2483 = vunpack.c.l.b16 %v1286
      %v2484 = vunpack.c.h.b16 %v1286
      %v2485 = vunpack.c.l.b16 %v1287
      %v2486 = vunpack.c.h.b16 %v1287
      %v2487 = vunpack.c.l.b16 %v1288
      %v2488 = vunpack.c.h.b16 %v1288
      %v2489 = vunpack.c.l.b16 %v1289
      %v2490 = vunpack.c.h.b16 %v1289
      %v2491 = vunpack.c.l.b16 %v1290
      %v2492 = vunpack.c.h.b16 %v1290
      %v2493 = vunpack.c.l.b16 %v1291
      %v2494 = vunpack.c.h.b16 %v1291
      %v2495 = vunpack.c.l.b16 %v1292
      %v2496 = vunpack.c.h.b16 %v1292
      %v2497 = vunpack.c.l.b16 %v1293
      %v2498 = vunpack.c.h.b16 %v1293
      %v2499 = vunpack.c.l.b16 %v1294
      %v2500 = vunpack.c.h.b16 %v1294
      %v2501 = vunpack.c.l.b16 %v1295
      %v2502 = vunpack.c.h.b16 %v1295
      %v2503 = vunpack.c.l.b16 %v1296
      %v2504 = vunpack.c.h.b16 %v1296
      %v2505 = vunpack.c.l.b16 %v1297
      %v2506 = vunpack.c.h.b16 %v1297
      %v2507 = vunpack.c.l.b16 %v1298
      %v2508 = vunpack.c.h.b16 %v1298
      %v2509 = vunpack.c.l.b16 %v1299
      %v2510 = vunpack.c.h.b16 %v1299
      %v2511 = vunpack.c.l.b16 %v1300
      %v2512 = vunpack.c.h.b16 %v1300
      %v2513 = vunpack.c.l.b16 %v1301
      %v2514 = vunpack.c.h.b16 %v1301
      %v2515 = vunpack.c.l.b16 %v1302
      %v2516 = vunpack.c.h.b16 %v1302
      %v2517 = vunpack.c.l.b16 %v1303
      %v2518 = vunpack.c.h.b16 %v1303
      %v2519 = vunpack.c.l.b16 %v1304
      %v2520 = vunpack.c.h.b16 %v1304
      %v2521 = vpack.c.b16 %v1765, %v1753
      %v2522 = vpack.c.b16 %v1766, %v1754
      %v2523 = vpack.c.b16 %v1767, %v1755
      %v2524 = vpack.c.b16 %v1768, %v1756
      %v2525 = vpack.c.b16 %v1769, %v1757
      %v2526 = vpack.c.b16 %v1770, %v1758
      %v2527 = vpack.c.b16 %v1771, %v1759
      %v2528 = vpack.c.b16 %v1772, %v1760
      %v2529 = vpack.c.b16 %v1773, %v1761
      %v2530 = vpack.c.b16 %v1774, %v1762
      %v2531 = vpack.c.b16 %v1775, %v1763
      %v2532 = vpack.c.b16 %v1776, %v1764
      %v2533 = vpack.c.b16 %v1789, %v1777
      %v2534 = vpack.c.b16 %v1790, %v1778
      %v2535 = vpack.c.b16 %v1791, %v1779
      %v2536 = vpack.c.b16 %v1792, %v1780
      %v2537 = vpack.c.b16 %v1793, %v1781
      %v2538 = vpack.c.b16 %v1794, %v1782
      %v2539 = vpack.c.b16 %v1795, %v1783
      %v2540 = vpack.c.b16 %v1796, %v1784
      %v2541 = vpack.c.b16 %v1797, %v1785
      %v2542 = vpack.c.b16 %v1798, %v1786
      %v2543 = vpack.c.b16 %v1799, %v1787
      %v2544 = vpack.c.b16 %v1800, %v1788
      %v2545 = vpack.c.b16 %v1813, %v1801
      %v2546 = vpack.c.b16 %v1814, %v1802
      %v2547 = vpack.c.b16 %v1815, %v1803
      %v2548 = vpack.c.b16 %v1816, %v1804
      %v2549 = vpack.c.b16 %v1817, %v1805
      %v2550 = vpack.c.b16 %v1818, %v1806
      %v2551 = vpack.c.b16 %v1819, %v1807
      %v2552 = vpack.c.b16 %v1820, %v1808
      %v2553 = vpack.c.b16 %v1821, %v1809
      %v2554 = vpack.c.b16 %v1822, %v1810
      %v2555 = vpack.c.b16 %v1823, %v1811
      %v2556 = vpack.c.b16 %v1824, %v1812
      %v2557 = vpack.c.b16 %v1837, %v1825
      %v2558 = vpack.c.b16 %v1838, %v1826
      %v2559 = vpack.c.b16 %v1839, %v1827
      %v2560 = vpack.c.b16 %v1840, %v1828
      %v2561 = vpack.c.b16 %v1841, %v1829
      %v2562 = vpack.c.b16 %v1842, %v1830
      %v2563 = vpack.c.b16 %v1843, %v1831
      %v2564 = vpack.c.b16 %v1844, %v1832
      %v2565 = vpack.c.b16 %v1845, %v1833
      %v2566 = vpack.c.b16 %v1846, %v1834
      %v2567 = vpack.c.b16 %v1847, %v1835
      %v2568 = vpack.c.b16 %v1848, %v1836
      %v2569 = vpack.c.b16 %v1861, %v1849
      %v2570 = vpack.c.b16 %v1862, %v1850
      %v2571 = vpack.c.b16 %v1863, %v1851
      %v2572 = vpack.c.b16 %v1864, %v1852
      %v2573 = vpack.c.b16 %v1865, %v1853
      %v2574 = vpack.c.b16 %v1866, %v1854
      %v2575 = vpack.c.b16 %v1867, %v1855
      %v2576 = vpack.c.b16 %v1868, %v1856
      %v2577 = vpack.c.b16 %v1869, %v1857
      %v2578 = vpack.c.b16 %v1870, %v1858
      %v2579 = vpack.c.b16 %v1871, %v1859
      %v2580 = vpack.c.b16 %v1872, %v1860
      %v2581 = vpack.c.b16 %v1885, %v1873
      %v2582 = vpack.c.b16 %v1886, %v1874
      %v2583 = vpack.c.b16 %v1887, %v1875
      %v2584 = vpack.c.b16 %v1888, %v1876
      %v2585 = vpack.c.b16 %v1889, %v1877
      %v2586 = vpack.c.b16 %v1890, %v1878
      %v2587 = vpack.c.b16 %v1891, %v1879
      %v2588 = vpack.c.b16 %v1892, %v1880
      %v2589 = vpack.c.b16 %v1893, %v1881
      %v2590 = vpack.c.b16 %v1894, %v1882
      %v2591 = vpack.c.b16 %v1895, %v1883
      %v2592 = vpack.c.b16 %v1896, %v1884
      %v2593 = vpack.c.b16 %v1909, %v1897
      %v2594 = vpack.c.b16 %v1910, %v1898
      %v2595 = vpack.c.b16 %v1911, %v1899
      %v2596 = vpack.c.b16 %v1912, %v1900
      %v2597 = vpack.c.b16 %v1913, %v1901
      %v2598 = vpack.c.b16 %v1914, %v1902
      %v2599 = vpack.c.b16 %v1915, %v1903
      %v2600 = vpack.c.b16 %v1916, %v1904
      %v2601 = vpack.c.b16 %v1917, %v1905
      %v2602 = vpack.c.b16 %v1918, %v1906
      %v2603 = vpack.c.b16 %v1919, %v1907
      %v2604 = vpack.c.b16 %v1920, %v1908
      %v2605 = vpack.c.b16 %v1933, %v1921
      %v2606 = vpack.c.b16 %v1934, %v1922
      %v2607 = vpack.c.b16 %v1935, %v1923
      %v2608 = vpack.c.b16 %v1936, %v1924
      %v2609 = vpack.c.b16 %v1937, %v1925
      %v2610 = vpack.c.b16 %v1938, %v1926
      %v2611 = vpack.c.b16 %v1939, %v1927
      %v2612 = vpack.c.b16 %v1940, %v1928
      %v2613 = vpack.c.b16 %v1941, %v1929
      %v2614 = vpack.c.b16 %v1942, %v1930
      %v2615 = vpack.c.b16 %v1943, %v1931
      %v2616 = vpack.c.b16 %v1944, %v1932
      %v2617 = vpack.c.b16 %v1957, %v1945
      %v2618 = vpack.c.b16 %v1958, %v1946
      %v2619 = vpack.c.b16 %v1959, %v1947
      %v2620 = vpack.c.b16 %v1960, %v1948
      %v2621 = vpack.c.b16 %v1961, %v1949
      %v2622 = vpack.c.b16 %v1962, %v1950
      %v2623 = vpack.c.b16 %v1963, %v1951
      %v2624 = vpack.c.b16 %v1964, %v1952
      %v2625 = vpack.c.b16 %v1965, %v1953
      %v2626 = vpack.c.b16 %v1966, %v1954
      %v2627 = vpack.c.b16 %v1967, %v1955
      %v2628 = vpack.c.b16 %v1968, %v1956
      %v2629 = vpack.c.b16 %v1981, %v1969
      %v2630 = vpack.c.b16 %v1982, %v1970
      %v2631 = vpack.c.b16 %v1983, %v1971
      %v2632 = vpack.c.b16 %v1984, %v1972
      %v2633 = vpack.c.b16 %v1985, %v1973
      %v2634 = vpack.c.b16 %v1986, %v1974
      %v2635 = vpack.c.b16 %v1987, %v1975
      %v2636 = vpack.c.b16 %v1988, %v1976
      %v2637 = vpack.c.b16 %v1989, %v1977
      %v2638 = vpack.c.b16 %v1990, %v1978
      %v2639 = vpack.c.b16 %v1991, %v1979
      %v2640 = vpack.c.b16 %v1992, %v1980
      %v2641 = vpack.c.b16 %v2005, %v1993
      %v2642 = vpack.c.b16 %v2006, %v1994
      %v2643 = vpack.c.b16 %v2007, %v1995
      %v2644 = vpack.c.b16 %v2008, %v1996
      %v2645 = vpack.c.b16 %v2009, %v1997
      %v2646 = vpack.c.b16 %v2010, %v1998
      %v2647 = vpack.c.b16 %v2011, %v1999
      %v2648 = vpack.c.b16 %v2012, %v2000
      %v2649 = vpack.c.b16 %v2013, %v2001
      %v2650 = vpack.c.b16 %v2014, %v2002
      %v2651 = vpack.c.b16 %v2015, %v2003
      %v2652 = vpack.c.b16 %v2016, %v2004
      %v2653 = vpack.c.b16 %v2029, %v2017
      %v2654 = vpack.c.b16 %v2030, %v2018
      %v2655 = vpack.c.b16 %v2031, %v2019
      %v2656 = vpack.c.b16 %v2032, %v2020
      %v2657 = vpack.c.b16 %v2033, %v2021
      %v2658 = vpack.c.b16 %v2034, %v2022
      %v2659 = vpack.c.b16 %v2035, %v2023
      %v2660 = vpack.c.b16 %v2036, %v2024
      %v2661 = vpack.c.b16 %v2037, %v2025
      %v2662 = vpack.c.b16 %v2038, %v2026
      %v2663 = vpack.c.b16 %v2039, %v2027
      %v2664 = vpack.c.b16 %v2040, %v2028
      %v2665 = vpack.c.b16 %v2053, %v2041
      %v2666 = vpack.c.b16 %v2054, %v2042
      %v2667 = vpack.c.b16 %v2055, %v2043
      %v2668 = vpack.c.b16 %v2056, %v2044
      %v2669 = vpack.c.b16 %v2057, %v2045
      %v2670 = vpack.c.b16 %v2058, %v2046
      %v2671 = vpack.c.b16 %v2059, %v2047
      %v2672 = vpack.c.b16 %v2060, %v2048
      %v2673 = vpack.c.b16 %v2061, %v2049
      %v2674 = vpack.c.b16 %v2062, %v2050
      %v2675 = vpack.c.b16 %v2063, %v2051
      %v2676 = vpack.c.b16 %v2064, %v2052
      %v2677 = vpack.c.b16 %v2077, %v2065
      %v2678 = vpack.c.b16 %v2078, %v2066
      %v2679 = vpack.c.b16 %v2079, %v2067
      %v2680 = vpack.c.b16 %v2080, %v2068
      %v2681 = vpack.c.b16 %v2081, %v2069
      %v2682 = vpack.c.b16 %v2082, %v2070
      %v2683 = vpack.c.b16 %v2083, %v2071
      %v2684 = vpack.c.b16 %v2084, %v2072
      %v2685 = vpack.c.b16 %v2085, %v2073
      %v2686 = vpack.c.b16 %v2086, %v2074
      %v2687 = vpack.c.b16 %v2087, %v2075
      %v2688 = vpack.c.b16 %v2088, %v2076
      %v2689 = vpack.c.b16 %v2101, %v2089
      %v2690 = vpack.c.b16 %v2102, %v2090
      %v2691 = vpack.c.b16 %v2103, %v2091
      %v2692 = vpack.c.b16 %v2104, %v2092
      %v2693 = vpack.c.b16 %v2105, %v2093
      %v2694 = vpack.c.b16 %v2106, %v2094
      %v2695 = vpack.c.b16 %v2107, %v2095
      %v2696 = vpack.c.b16 %v2108, %v2096
      %v2697 = vpack.c.b16 %v2109, %v2097
      %v2698 = vpack.c.b16 %v2110, %v2098
      %v2699 = vpack.c.b16 %v2111, %v2099
      %v2700 = vpack.c.b16 %v2112, %v2100
      %v2701 = vpack.c.b16 %v2125, %v2113
      %v2702 = vpack.c.b16 %v2126, %v2114
      %v2703 = vpack.c.b16 %v2127, %v2115
      %v2704 = vpack.c.b16 %v2128, %v2116
      %v2705 = vpack.c.b16 %v2129, %v2117
      %v2706 = vpack.c.b16 %v2130, %v2118
      %v2707 = vpack.c.b16 %v2131, %v2119
      %v2708 = vpack.c.b16 %v2132, %v2120
      %v2709 = vpack.c.b16 %v2133, %v2121
      %v2710 = vpack.c.b16 %v2134, %v2122
      %v2711 = vpack.c.b16 %v2135, %v2123
      %v2712 = vpack.c.b16 %v2136, %v2124
      %v2713 = vpack.c.b16 %v2149, %v2137
      %v2714 = vpack.c.b16 %v2150, %v2138
      %v2715 = vpack.c.b16 %v2151, %v2139
      %v2716 = vpack.c.b16 %v2152, %v2140
      %v2717 = vpack.c.b16 %v2153, %v2141
      %v2718 = vpack.c.b16 %v2154, %v2142
      %v2719 = vpack.c.b16 %v2155, %v2143
      %v2720 = vpack.c.b16 %v2156, %v2144
      %v2721 = vpack.c.b16 %v2157, %v2145
      %v2722 = vpack.c.b16 %v2158, %v2146
      %v2723 = vpack.c.b16 %v2159, %v2147
      %v2724 = vpack.c.b16 %v2160, %v2148
      %v2725 = vpack.c.b16 %v2173, %v2161
      %v2726 = vpack.c.b16 %v2174, %v2162
      %v2727 = vpack.c.b16 %v2175, %v2163
      %v2728 = vpack.c.b16 %v2176, %v2164
      %v2729 = vpack.c.b16 %v2177, %v2165
      %v2730 = vpack.c.b16 %v2178, %v2166
      %v2731 = vpack.c.b16 %v2179, %v2167
      %v2732 = vpack.c.b16 %v2180, %v2168
      %v2733 = vpack.c.b16 %v2181, %v2169
      %v2734 = vpack.c.b16 %v2182, %v2170
      %v2735 = vpack.c.b16 %v2183, %v2171
      %v2736 = vpack.c.b16 %v2184, %v2172
      %v2737 = vpack.c.b16 %v2197, %v2185
      %v2738 = vpack.c.b16 %v2198, %v2186
      %v2739 = vpack.c.b16 %v2199, %v2187
      %v2740 = vpack.c.b16 %v2200, %v2188
      %v2741 = vpack.c.b16 %v2201, %v2189
      %v2742 = vpack.c.b16 %v2202, %v2190
      %v2743 = vpack.c.b16 %v2203, %v2191
      %v2744 = vpack.c.b16 %v2204, %v2192
      %v2745 = vpack.c.b16 %v2205, %v2193
      %v2746 = vpack.c.b16 %v2206, %v2194
      %v2747 = vpack.c.b16 %v2207, %v2195
      %v2748 = vpack.c.b16 %v2208, %v2196
      %v2749 = vpack.c.b16 %v2221, %v2209
      %v2750 = vpack.c.b16 %v2222, %v2210
      %v2751 = vpack.c.b16 %v2223, %v2211
      %v2752 = vpack.c.b16 %v2224, %v2212
      %v2753 = vpack.c.b16 %v2225, %v2213
      %v2754 = vpack.c.b16 %v2226, %v2214
      %v2755 = vpack.c.b16 %v2227, %v2215
      %v2756 = vpack.c.b16 %v2228, %v2216
      %v2757 = vpack.c.b16 %v2229, %v2217
      %v2758 = vpack.c.b16 %v2230, %v2218
      %v2759 = vpack.c.b16 %v2231, %v2219
      %v2760 = vpack.c.b16 %v2232, %v2220
      %v2761 = vpack.c.b16 %v2245, %v2233
      %v2762 = vpack.c.b16 %v2246, %v2234
      %v2763 = vpack.c.b16 %v2247, %v2235
      %v2764 = vpack.c.b16 %v2248, %v2236
      %v2765 = vpack.c.b16 %v2249, %v2237
      %v2766 = vpack.c.b16 %v2250, %v2238
      %v2767 = vpack.c.b16 %v2251, %v2239
      %v2768 = vpack.c.b16 %v2252, %v2240
      %v2769 = vpack.c.b16 %v2253, %v2241
      %v2770 = vpack.c.b16 %v2254, %v2242
      %v2771 = vpack.c.b16 %v2255, %v2243
      %v2772 = vpack.c.b16 %v2256, %v2244
      %v2773 = vpack.c.b16 %v2269, %v2257
      %v2774 = vpack.c.b16 %v2270, %v2258
      %v2775 = vpack.c.b16 %v2271, %v2259
      %v2776 = vpack.c.b16 %v2272, %v2260
      %v2777 = vpack.c.b16 %v2273, %v2261
      %v2778 = vpack.c.b16 %v2274, %v2262
      %v2779 = vpack.c.b16 %v2275, %v2263
      %v2780 = vpack.c.b16 %v2276, %v2264
      %v2781 = vpack.c.b16 %v2277, %v2265
      %v2782 = vpack.c.b16 %v2278, %v2266
      %v2783 = vpack.c.b16 %v2279, %v2267
      %v2784 = vpack.c.b16 %v2280, %v2268
      %v2785 = vpack.c.b16 %v2293, %v2281
      %v2786 = vpack.c.b16 %v2294, %v2282
      %v2787 = vpack.c.b16 %v2295, %v2283
      %v2788 = vpack.c.b16 %v2296, %v2284
      %v2789 = vpack.c.b16 %v2297, %v2285
      %v2790 = vpack.c.b16 %v2298, %v2286
      %v2791 = vpack.c.b16 %v2299, %v2287
      %v2792 = vpack.c.b16 %v2300, %v2288
      %v2793 = vpack.c.b16 %v2301, %v2289
      %v2794 = vpack.c.b16 %v2302, %v2290
      %v2795 = vpack.c.b16 %v2303, %v2291
      %v2796 = vpack.c.b16 %v2304, %v2292
      %v2797 = vpack.c.b16 %v2317, %v2305
      %v2798 = vpack.c.b16 %v2318, %v2306
      %v2799 = vpack.c.b16 %v2319, %v2307
      %v2800 = vpack.c.b16 %v2320, %v2308
      %v2801 = vpack.c.b16 %v2321, %v2309
      %v2802 = vpack.c.b16 %v2322, %v2310
      %v2803 = vpack.c.b16 %v2323, %v2311
      %v2804 = vpack.c.b16 %v2324, %v2312
      %v2805 = vpack.c.b16 %v2325, %v2313
      %v2806 = vpack.c.b16 %v2326, %v2314
      %v2807 = vpack.c.b16 %v2327, %v2315
      %v2808 = vpack.c.b16 %v2328, %v2316
      %v2809 = vpack.c.b16 %v2341, %v2329
      %v2810 = vpack.c.b16 %v2342, %v2330
      %v2811 = vpack.c.b16 %v2343, %v2331
      %v2812 = vpack.c.b16 %v2344, %v2332
      %v2813 = vpack.c.b16 %v2345, %v2333
      %v2814 = vpack.c.b16 %v2346, %v2334
      %v2815 = vpack.c.b16 %v2347, %v2335
      %v2816 = vpack.c.b16 %v2348, %v2336
      %v2817 = vpack.c.b16 %v2349, %v2337
      %v2818 = vpack.c.b16 %v2350, %v2338
      %v2819 = vpack.c.b16 %v2351, %v2339
      %v2820 = vpack.c.b16 %v2352, %v2340
      %v2821 = vpack.c.b16 %v2365, %v2353
      %v2822 = vpack.c.b16 %v2366, %v2354
      %v2823 = vpack.c.b16 %v2367, %v2355
      %v2824 = vpack.c.b16 %v2368, %v2356
      %v2825 = vpack.c.b16 %v2369, %v2357
      %v2826 = vpack.c.b16 %v2370, %v2358
      %v2827 = vpack.c.b16 %v2371, %v2359
      %v2828 = vpack.c.b16 %v2372, %v2360
      %v2829 = vpack.c.b16 %v2373, %v2361
      %v2830 = vpack.c.b16 %v2374, %v2362
      %v2831 = vpack.c.b16 %v2375, %v2363
      %v2832 = vpack.c.b16 %v2376, %v2364
      %v2833 = vpack.c.b16 %v2389, %v2377
      %v2834 = vpack.c.b16 %v2390, %v2378
      %v2835 = vpack.c.b16 %v2391, %v2379
      %v2836 = vpack.c.b16 %v2392, %v2380
      %v2837 = vpack.c.b16 %v2393, %v2381
      %v2838 = vpack.c.b16 %v2394, %v2382
      %v2839 = vpack.c.b16 %v2395, %v2383
      %v2840 = vpack.c.b16 %v2396, %v2384
      %v2841 = vpack.c.b16 %v2397, %v2385
      %v2842 = vpack.c.b16 %v2398, %v2386
      %v2843 = vpack.c.b16 %v2399, %v2387
      %v2844 = vpack.c.b16 %v2400, %v2388
      %v2845 = vpack.c.b16 %v2413, %v2401
      %v2846 = vpack.c.b16 %v2414, %v2402
      %v2847 = vpack.c.b16 %v2415, %v2403
      %v2848 = vpack.c.b16 %v2416, %v2404
      %v2849 = vpack.c.b16 %v2417, %v2405
      %v2850 = vpack.c.b16 %v2418, %v2406
      %v2851 = vpack.c.b16 %v2419, %v2407
      %v2852 = vpack.c.b16 %v2420, %v2408
      %v2853 = vpack.c.b16 %v2421, %v2409
      %v2854 = vpack.c.b16 %v2422, %v2410
      %v2855 = vpack.c.b16 %v2423, %v2411
      %v2856 = vpack.c.b16 %v2424, %v2412
      %v2857 = vpack.c.b16 %v2437, %v2425
      %v2858 = vpack.c.b16 %v2438, %v2426
      %v2859 = vpack.c.b16 %v2439, %v2427
      %v2860 = vpack.c.b16 %v2440, %v2428
      %v2861 = vpack.c.b16 %v2441, %v2429
      %v2862 = vpack.c.b16 %v2442, %v2430
      %v2863 = vpack.c.b16 %v2443, %v2431
      %v2864 = vpack.c.b16 %v2444, %v2432
      %v2865 = vpack.c.b16 %v2445, %v2433
      %v2866 = vpack.c.b16 %v2446, %v2434
      %v2867 = vpack.c.b16 %v2447, %v2435
      %v2868 = vpack.c.b16 %v2448, %v2436
      %v2869 = vpack.c.b16 %v2461, %v2449
      %v2870 = vpack.c.b16 %v2462, %v2450
      %v2871 = vpack.c.b16 %v2463, %v2451
      %v2872 = vpack.c.b16 %v2464, %v2452
      %v2873 = vpack.c.b16 %v2465, %v2453
      %v2874 = vpack.c.b16 %v2466, %v2454
      %v2875 = vpack.c.b16 %v2467, %v2455
      %v2876 = vpack.c.b16 %v2468, %v2456
      %v2877 = vpack.c.b16 %v2469, %v2457
      %v2878 = vpack.c.b16 %v2470, %v2458
      %v2879 = vpack.c.b16 %v2471, %v2459
      %v2880 = vpack.c.b16 %v2472, %v2460
      %v2881 = vpack.c.b16 %v2485, %v2473
      %v2882 = vpack.c.b16 %v2486, %v2474
      %v2883 = vpack.c.b16 %v2487, %v2475
      %v2884 = vpack.c.b16 %v2488, %v2476
      %v2885 = vpack.c.b16 %v2489, %v2477
      %v2886 = vpack.c.b16 %v2490, %v2478
      %v2887 = vpack.c.b16 %v2491, %v2479
      %v2888 = vpack.c.b16 %v2492, %v2480
      %v2889 = vpack.c.b16 %v2493, %v2481
      %v2890 = vpack.c.b16 %v2494, %v2482
      %v2891 = vpack.c.b16 %v2495, %v2483
      %v2892 = vpack.c.b16 %v2496, %v2484
      %v2893 = vpack.c.b16 %v2509, %v2497
      %v2894 = vpack.c.b16 %v2510, %v2498
      %v2895 = vpack.c.b16 %v2511, %v2499
      %v2896 = vpack.c.b16 %v2512, %v2500
      %v2897 = vpack.c.b16 %v2513, %v2501
      %v2898 = vpack.c.b16 %v2514, %v2502
      %v2899 = vpack.c.b16 %v2515, %v2503
      %v2900 = vpack.c.b16 %v2516, %v2504
      %v2901 = vpack.c.b16 %v2517, %v2505
      %v2902 = vpack.c.b16 %v2518, %v2506
      %v2903 = vpack.c.b16 %v2519, %v2507
      %v2904 = vpack.c.b16 %v2520, %v2508
      %3289 = vmatprep.subr.bf16.mxu0 %v2522
      %3290 = vmatpush1.bf16.msra.mxu0 %v2521
      %3291 = vmatprep.subr.bf16.mxu0 %v2534
      %3292 = vmatpush1.bf16.msra.mxu0 %v2533
      %3293 = vmatprep.subr.bf16.mxu0 %v2546
      %3294 = vmatpush1.bf16.msra.mxu0 %v2545
      %3295 = vmatprep.subr.bf16.mxu0 %v2558
      %3296 = vmatpush1.bf16.msra.mxu0 %v2557
      %3297 = vmatprep.subr.bf16.mxu0 %v2570
      %3298 = vmatpush1.bf16.msra.mxu0 %v2569
      %3299 = vmatprep.subr.bf16.mxu0 %v2582
      %3300 = vmatpush1.bf16.msra.mxu0 %v2581
      %3301 = vmatprep.subr.bf16.mxu0 %v2594
      %3302 = vmatpush1.bf16.msra.mxu0 %v2593
      %3303 = vmatprep.subr.bf16.mxu0 %v2606
      %3304 = vmatpush1.bf16.msra.mxu0 %v2605
      %3305 = vmatprep.subr.bf16.mxu0 %v2618
      %3306 = vmatpush1.bf16.msra.mxu0 %v2617
      %3307 = vmatprep.subr.bf16.mxu0 %v2630
      %3308 = vmatpush1.bf16.msra.mxu0 %v2629
      %3309 = vmatprep.subr.bf16.mxu0 %v2642
      %3310 = vmatpush1.bf16.msra.mxu0 %v2641
      %3311 = vmatprep.subr.bf16.mxu0 %v2654
      %3312 = vmatpush1.bf16.msra.mxu0 %v2653
      %3313 = vmatprep.subr.bf16.mxu0 %v2666
      %3314 = vmatpush1.bf16.msra.mxu0 %v2665
      %3315 = vmatprep.subr.bf16.mxu0 %v2678
      %3316 = vmatpush1.bf16.msra.mxu0 %v2677
      %3317 = vmatprep.subr.bf16.mxu0 %v2690
      %3318 = vmatpush1.bf16.msra.mxu0 %v2689
      %3319 = vmatprep.subr.bf16.mxu0 %v2702
      %3320 = vmatpush1.bf16.msra.mxu0 %v2701
      %3321 = vmatprep.mubr.bf16.mxu0 %v918
      %3322 = vmatmul.mubr.bf16.gmra.mrb[0].mxu0 %v917
      %v3323 = vpop.f32.mrb[0].mxu0
      %v3324 = vadd.f32 %v1312, %v3323
      %v3325 = vpop.f32.mrb[0].mxu0
      %v3326 = vadd.f32 %v1316, %v3325
      %v3327 = vpop.f32.mrb[0].mxu0
      %v3328 = vadd.f32 %v1312, %v3327
      %v3329 = vpop.f32.mrb[0].mxu0
      %v3330 = vadd.f32 %v1316, %v3329
      %3331 = vdwg.mxu0
      %3332 = vmatprep.subr.bf16.mxu0 %v2714
      %3333 = vmatpush1.bf16.msra.mxu0 %v2713
      %3334 = vmatprep.subr.bf16.mxu0 %v2726
      %3335 = vmatpush1.bf16.msra.mxu0 %v2725
      %3336 = vmatprep.subr.bf16.mxu0 %v2738
      %3337 = vmatpush1.bf16.msra.mxu0 %v2737
      %3338 = vmatprep.subr.bf16.mxu0 %v2750
      %3339 = vmatpush1.bf16.msra.mxu0 %v2749
      %3340 = vmatprep.subr.bf16.mxu0 %v2762
      %3341 = vmatpush1.bf16.msra.mxu0 %v2761
      %3342 = vmatprep.subr.bf16.mxu0 %v2774
      %3343 = vmatpush1.bf16.msra.mxu0 %v2773
      %3344 = vmatprep.subr.bf16.mxu0 %v2786
      %3345 = vmatpush1.bf16.msra.mxu0 %v2785
      %3346 = vmatprep.subr.bf16.mxu0 %v2798
      %3347 = vmatpush1.bf16.msra.mxu0 %v2797
      %3348 = vmatprep.subr.bf16.mxu0 %v2810
      %3349 = vmatpush1.bf16.msra.mxu0 %v2809
      %3350 = vmatprep.subr.bf16.mxu0 %v2822
      %3351 = vmatpush1.bf16.msra.mxu0 %v2821
      %3352 = vmatprep.subr.bf16.mxu0 %v2834
      %3353 = vmatpush1.bf16.msra.mxu0 %v2833
      %3354 = vmatprep.subr.bf16.mxu0 %v2846
      %3355 = vmatpush1.bf16.msra.mxu0 %v2845
      %3356 = vmatprep.subr.bf16.mxu0 %v2858
      %3357 = vmatpush1.bf16.msra.mxu0 %v2857
      %3358 = vmatprep.subr.bf16.mxu0 %v2870
      %3359 = vmatpush1.bf16.msra.mxu0 %v2869
      %3360 = vmatprep.subr.bf16.mxu0 %v2882
      %3361 = vmatpush1.bf16.msra.mxu0 %v2881
      %3362 = vmatprep.subr.bf16.mxu0 %v2894
      %3363 = vmatpush1.bf16.msra.mxu0 %v2893
      %3364 = vmatprep.mubr.bf16.mxu0 %v920
      %3365 = vmatmul.mubr.bf16.gmra.mrb[0].mxu0 %v919
      %v3366 = vpop.f32.mrb[0].mxu0
      %v3367 = vadd.f32 %v3324, %v3366
      %v3368 = vpop.f32.mrb[0].mxu0
      %v3369 = vadd.f32 %v3326, %v3368
      %v3370 = vpop.f32.mrb[0].mxu0
      %v3371 = vadd.f32 %v3328, %v3370
      %v3372 = vpop.f32.mrb[0].mxu0
      %v3373 = vadd.f32 %v3330, %v3372
      %3374 = vdwg.mxu0
      %3375 = vmatprep.subr.bf16.mxu0 %v2524
      %3376 = vmatpush1.bf16.msra.mxu0 %v2523
      %3377 = vmatprep.subr.bf16.mxu0 %v2536
      %3378 = vmatpush1.bf16.msra.mxu0 %v2535
      %3379 = vmatprep.subr.bf16.mxu0 %v2548
      %3380 = vmatpush1.bf16.msra.mxu0 %v2547
      %3381 = vmatprep.subr.bf16.mxu0 %v2560
      %3382 = vmatpush1.bf16.msra.mxu0 %v2559
      %3383 = vmatprep.subr.bf16.mxu0 %v2572
      %3384 = vmatpush1.bf16.msra.mxu0 %v2571
      %3385 = vmatprep.subr.bf16.mxu0 %v2584
      %3386 = vmatpush1.bf16.msra.mxu0 %v2583
      %3387 = vmatprep.subr.bf16.mxu0 %v2596
      %3388 = vmatpush1.bf16.msra.mxu0 %v2595
      %3389 = vmatprep.subr.bf16.mxu0 %v2608
      %3390 = vmatpush1.bf16.msra.mxu0 %v2607
      %3391 = vmatprep.subr.bf16.mxu0 %v2620
      %3392 = vmatpush1.bf16.msra.mxu0 %v2619
      %3393 = vmatprep.subr.bf16.mxu0 %v2632
      %3394 = vmatpush1.bf16.msra.mxu0 %v2631
      %3395 = vmatprep.subr.bf16.mxu0 %v2644
      %3396 = vmatpush1.bf16.msra.mxu0 %v2643
      %3397 = vmatprep.subr.bf16.mxu0 %v2656
      %3398 = vmatpush1.bf16.msra.mxu0 %v2655
      %3399 = vmatprep.subr.bf16.mxu0 %v2668
      %3400 = vmatpush1.bf16.msra.mxu0 %v2667
      %3401 = vmatprep.subr.bf16.mxu0 %v2680
      %3402 = vmatpush1.bf16.msra.mxu0 %v2679
      %3403 = vmatprep.subr.bf16.mxu0 %v2692
      %3404 = vmatpush1.bf16.msra.mxu0 %v2691
      %3405 = vmatprep.subr.bf16.mxu0 %v2704
      %3406 = vmatpush1.bf16.msra.mxu0 %v2703
      %3407 = vmatprep.mubr.bf16.mxu0 %v918
      %3408 = vmatmul.mubr.bf16.gmra.mrb[0].mxu0 %v917
      %v3409 = vpop.f32.mrb[0].mxu0
      %v3410 = vadd.f32 %v1320, %v3409
      %v3411 = vpop.f32.mrb[0].mxu0
      %v3412 = vadd.f32 %v1324, %v3411
      %v3413 = vpop.f32.mrb[0].mxu0
      %v3414 = vadd.f32 %v1320, %v3413
      %v3415 = vpop.f32.mrb[0].mxu0
      %v3416 = vadd.f32 %v1324, %v3415
      %3417 = vdwg.mxu0
      %3418 = vmatprep.subr.bf16.mxu0 %v2716
      %3419 = vmatpush1.bf16.msra.mxu0 %v2715
      %3420 = vmatprep.subr.bf16.mxu0 %v2728
      %3421 = vmatpush1.bf16.msra.mxu0 %v2727
      %3422 = vmatprep.subr.bf16.mxu0 %v2740
      %3423 = vmatpush1.bf16.msra.mxu0 %v2739
      %3424 = vmatprep.subr.bf16.mxu0 %v2752
      %3425 = vmatpush1.bf16.msra.mxu0 %v2751
      %3426 = vmatprep.subr.bf16.mxu0 %v2764
      %3427 = vmatpush1.bf16.msra.mxu0 %v2763
      %3428 = vmatprep.subr.bf16.mxu0 %v2776
      %3429 = vmatpush1.bf16.msra.mxu0 %v2775
      %3430 = vmatprep.subr.bf16.mxu0 %v2788
      %3431 = vmatpush1.bf16.msra.mxu0 %v2787
      %3432 = vmatprep.subr.bf16.mxu0 %v2800
      %3433 = vmatpush1.bf16.msra.mxu0 %v2799
      %3434 = vmatprep.subr.bf16.mxu0 %v2812
      %3435 = vmatpush1.bf16.msra.mxu0 %v2811
      %3436 = vmatprep.subr.bf16.mxu0 %v2824
      %3437 = vmatpush1.bf16.msra.mxu0 %v2823
      %3438 = vmatprep.subr.bf16.mxu0 %v2836
      %3439 = vmatpush1.bf16.msra.mxu0 %v2835
      %3440 = vmatprep.subr.bf16.mxu0 %v2848
      %3441 = vmatpush1.bf16.msra.mxu0 %v2847
      %3442 = vmatprep.subr.bf16.mxu0 %v2860
      %3443 = vmatpush1.bf16.msra.mxu0 %v2859
      %3444 = vmatprep.subr.bf16.mxu0 %v2872
      %3445 = vmatpush1.bf16.msra.mxu0 %v2871
      %3446 = vmatprep.subr.bf16.mxu0 %v2884
      %3447 = vmatpush1.bf16.msra.mxu0 %v2883
      %3448 = vmatprep.subr.bf16.mxu0 %v2896
      %3449 = vmatpush1.bf16.msra.mxu0 %v2895
      %3450 = vmatprep.mubr.bf16.mxu0 %v920
      %3451 = vmatmul.mubr.bf16.gmra.mrb[0].mxu0 %v919
      %v3452 = vpop.f32.mrb[0].mxu0
      %v3453 = vadd.f32 %v3410, %v3452
      %v3454 = vpop.f32.mrb[0].mxu0
      %v3455 = vadd.f32 %v3412, %v3454
      %v3456 = vpop.f32.mrb[0].mxu0
      %v3457 = vadd.f32 %v3414, %v3456
      %v3458 = vpop.f32.mrb[0].mxu0
      %v3459 = vadd.f32 %v3416, %v3458
      %3460 = vdwg.mxu0
      %3461 = vmatprep.subr.bf16.mxu0 %v2526
      %3462 = vmatpush1.bf16.msra.mxu0 %v2525
      %3463 = vmatprep.subr.bf16.mxu0 %v2538
      %3464 = vmatpush1.bf16.msra.mxu0 %v2537
      %3465 = vmatprep.subr.bf16.mxu0 %v2550
      %3466 = vmatpush1.bf16.msra.mxu0 %v2549
      %3467 = vmatprep.subr.bf16.mxu0 %v2562
      %3468 = vmatpush1.bf16.msra.mxu0 %v2561
      %3469 = vmatprep.subr.bf16.mxu0 %v2574
      %3470 = vmatpush1.bf16.msra.mxu0 %v2573
      %3471 = vmatprep.subr.bf16.mxu0 %v2586
      %3472 = vmatpush1.bf16.msra.mxu0 %v2585
      %3473 = vmatprep.subr.bf16.mxu0 %v2598
      %3474 = vmatpush1.bf16.msra.mxu0 %v2597
      %3475 = vmatprep.subr.bf16.mxu0 %v2610
      %3476 = vmatpush1.bf16.msra.mxu0 %v2609
      %3477 = vmatprep.subr.bf16.mxu0 %v2622
      %3478 = vmatpush1.bf16.msra.mxu0 %v2621
      %3479 = vmatprep.subr.bf16.mxu0 %v2634
      %3480 = vmatpush1.bf16.msra.mxu0 %v2633
      %3481 = vmatprep.subr.bf16.mxu0 %v2646
      %3482 = vmatpush1.bf16.msra.mxu0 %v2645
      %3483 = vmatprep.subr.bf16.mxu0 %v2658
      %3484 = vmatpush1.bf16.msra.mxu0 %v2657
      %3485 = vmatprep.subr.bf16.mxu0 %v2670
      %3486 = vmatpush1.bf16.msra.mxu0 %v2669
      %3487 = vmatprep.subr.bf16.mxu0 %v2682
      %3488 = vmatpush1.bf16.msra.mxu0 %v2681
      %3489 = vmatprep.subr.bf16.mxu0 %v2694
      %3490 = vmatpush1.bf16.msra.mxu0 %v2693
      %3491 = vmatprep.subr.bf16.mxu0 %v2706
      %3492 = vmatpush1.bf16.msra.mxu0 %v2705
      %3493 = vmatprep.mubr.bf16.mxu0 %v918
      %3494 = vmatmul.mubr.bf16.gmra.mrb[0].mxu0 %v917
      %v3495 = vpop.f32.mrb[0].mxu0
      %v3496 = vadd.f32 %v1328, %v3495
      %v3497 = vpop.f32.mrb[0].mxu0
      %v3498 = vadd.f32 %v1332, %v3497
      %v3499 = vpop.f32.mrb[0].mxu0
      %v3500 = vadd.f32 %v1328, %v3499
      %v3501 = vpop.f32.mrb[0].mxu0
      %v3502 = vadd.f32 %v1332, %v3501
      %3503 = vdwg.mxu0
      %3504 = vmatprep.subr.bf16.mxu0 %v2718
      %3505 = vmatpush1.bf16.msra.mxu0 %v2717
      %3506 = vmatprep.subr.bf16.mxu0 %v2730
      %3507 = vmatpush1.bf16.msra.mxu0 %v2729
      %3508 = vmatprep.subr.bf16.mxu0 %v2742
      %3509 = vmatpush1.bf16.msra.mxu0 %v2741
      %3510 = vmatprep.subr.bf16.mxu0 %v2754
      %3511 = vmatpush1.bf16.msra.mxu0 %v2753
      %3512 = vmatprep.subr.bf16.mxu0 %v2766
      %3513 = vmatpush1.bf16.msra.mxu0 %v2765
      %3514 = vmatprep.subr.bf16.mxu0 %v2778
      %3515 = vmatpush1.bf16.msra.mxu0 %v2777
      %3516 = vmatprep.subr.bf16.mxu0 %v2790
      %3517 = vmatpush1.bf16.msra.mxu0 %v2789
      %3518 = vmatprep.subr.bf16.mxu0 %v2802
      %3519 = vmatpush1.bf16.msra.mxu0 %v2801
      %3520 = vmatprep.subr.bf16.mxu0 %v2814
      %3521 = vmatpush1.bf16.msra.mxu0 %v2813
      %3522 = vmatprep.subr.bf16.mxu0 %v2826
      %3523 = vmatpush1.bf16.msra.mxu0 %v2825
      %3524 = vmatprep.subr.bf16.mxu0 %v2838
      %3525 = vmatpush1.bf16.msra.mxu0 %v2837
      %3526 = vmatprep.subr.bf16.mxu0 %v2850
      %3527 = vmatpush1.bf16.msra.mxu0 %v2849
      %3528 = vmatprep.subr.bf16.mxu0 %v2862
      %3529 = vmatpush1.bf16.msra.mxu0 %v2861
      %3530 = vmatprep.subr.bf16.mxu0 %v2874
      %3531 = vmatpush1.bf16.msra.mxu0 %v2873
      %3532 = vmatprep.subr.bf16.mxu0 %v2886
      %3533 = vmatpush1.bf16.msra.mxu0 %v2885
      %3534 = vmatprep.subr.bf16.mxu0 %v2898
      %3535 = vmatpush1.bf16.msra.mxu0 %v2897
      %3536 = vmatprep.mubr.bf16.mxu0 %v920
      %3537 = vmatmul.mubr.bf16.gmra.mrb[0].mxu0 %v919
      %v3538 = vpop.f32.mrb[0].mxu0
      %v3539 = vadd.f32 %v3496, %v3538
      %v3540 = vpop.f32.mrb[0].mxu0
      %v3541 = vadd.f32 %v3498, %v3540
      %v3542 = vpop.f32.mrb[0].mxu0
      %v3543 = vadd.f32 %v3500, %v3542
      %v3544 = vpop.f32.mrb[0].mxu0
      %v3545 = vadd.f32 %v3502, %v3544
      %3546 = vdwg.mxu0
      %3547 = vmatprep.subr.bf16.mxu0 %v2528
      %3548 = vmatpush1.bf16.msra.mxu0 %v2527
      %3549 = vmatprep.subr.bf16.mxu0 %v2540
      %3550 = vmatpush1.bf16.msra.mxu0 %v2539
      %3551 = vmatprep.subr.bf16.mxu0 %v2552
      %3552 = vmatpush1.bf16.msra.mxu0 %v2551
      %3553 = vmatprep.subr.bf16.mxu0 %v2564
      %3554 = vmatpush1.bf16.msra.mxu0 %v2563
      %3555 = vmatprep.subr.bf16.mxu0 %v2576
      %3556 = vmatpush1.bf16.msra.mxu0 %v2575
      %3557 = vmatprep.subr.bf16.mxu0 %v2588
      %3558 = vmatpush1.bf16.msra.mxu0 %v2587
      %3559 = vmatprep.subr.bf16.mxu0 %v2600
      %3560 = vmatpush1.bf16.msra.mxu0 %v2599
      %3561 = vmatprep.subr.bf16.mxu0 %v2612
      %3562 = vmatpush1.bf16.msra.mxu0 %v2611
      %3563 = vmatprep.subr.bf16.mxu0 %v2624
      %3564 = vmatpush1.bf16.msra.mxu0 %v2623
      %3565 = vmatprep.subr.bf16.mxu0 %v2636
      %3566 = vmatpush1.bf16.msra.mxu0 %v2635
      %3567 = vmatprep.subr.bf16.mxu0 %v2648
      %3568 = vmatpush1.bf16.msra.mxu0 %v2647
      %3569 = vmatprep.subr.bf16.mxu0 %v2660
      %3570 = vmatpush1.bf16.msra.mxu0 %v2659
      %3571 = vmatprep.subr.bf16.mxu0 %v2672
      %3572 = vmatpush1.bf16.msra.mxu0 %v2671
      %3573 = vmatprep.subr.bf16.mxu0 %v2684
      %3574 = vmatpush1.bf16.msra.mxu0 %v2683
      %3575 = vmatprep.subr.bf16.mxu0 %v2696
      %3576 = vmatpush1.bf16.msra.mxu0 %v2695
      %3577 = vmatprep.subr.bf16.mxu0 %v2708
      %3578 = vmatpush1.bf16.msra.mxu0 %v2707
      %3579 = vmatprep.mubr.bf16.mxu0 %v918
      %3580 = vmatmul.mubr.bf16.gmra.mrb[0].mxu0 %v917
      %v3581 = vpop.f32.mrb[0].mxu0
      %v3582 = vadd.f32 %v1336, %v3581
      %v3583 = vpop.f32.mrb[0].mxu0
      %v3584 = vadd.f32 %v1340, %v3583
      %v3585 = vpop.f32.mrb[0].mxu0
      %v3586 = vadd.f32 %v1336, %v3585
      %v3587 = vpop.f32.mrb[0].mxu0
      %v3588 = vadd.f32 %v1340, %v3587
      %3589 = vdwg.mxu0
      %3590 = vmatprep.subr.bf16.mxu0 %v2720
      %3591 = vmatpush1.bf16.msra.mxu0 %v2719
      %3592 = vmatprep.subr.bf16.mxu0 %v2732
      %3593 = vmatpush1.bf16.msra.mxu0 %v2731
      %3594 = vmatprep.subr.bf16.mxu0 %v2744
      %3595 = vmatpush1.bf16.msra.mxu0 %v2743
      %3596 = vmatprep.subr.bf16.mxu0 %v2756
      %3597 = vmatpush1.bf16.msra.mxu0 %v2755
      %3598 = vmatprep.subr.bf16.mxu0 %v2768
      %3599 = vmatpush1.bf16.msra.mxu0 %v2767
      %3600 = vmatprep.subr.bf16.mxu0 %v2780
      %3601 = vmatpush1.bf16.msra.mxu0 %v2779
      %3602 = vmatprep.subr.bf16.mxu0 %v2792
      %3603 = vmatpush1.bf16.msra.mxu0 %v2791
      %3604 = vmatprep.subr.bf16.mxu0 %v2804
      %3605 = vmatpush1.bf16.msra.mxu0 %v2803
      %3606 = vmatprep.subr.bf16.mxu0 %v2816
      %3607 = vmatpush1.bf16.msra.mxu0 %v2815
      %3608 = vmatprep.subr.bf16.mxu0 %v2828
      %3609 = vmatpush1.bf16.msra.mxu0 %v2827
      %3610 = vmatprep.subr.bf16.mxu0 %v2840
      %3611 = vmatpush1.bf16.msra.mxu0 %v2839
      %3612 = vmatprep.subr.bf16.mxu0 %v2852
      %3613 = vmatpush1.bf16.msra.mxu0 %v2851
      %3614 = vmatprep.subr.bf16.mxu0 %v2864
      %3615 = vmatpush1.bf16.msra.mxu0 %v2863
      %3616 = vmatprep.subr.bf16.mxu0 %v2876
      %3617 = vmatpush1.bf16.msra.mxu0 %v2875
      %3618 = vmatprep.subr.bf16.mxu0 %v2888
      %3619 = vmatpush1.bf16.msra.mxu0 %v2887
      %3620 = vmatprep.subr.bf16.mxu0 %v2900
      %3621 = vmatpush1.bf16.msra.mxu0 %v2899
      %3622 = vmatprep.mubr.bf16.mxu0 %v920
      %3623 = vmatmul.mubr.bf16.gmra.mrb[0].mxu0 %v919
      %v3624 = vpop.f32.mrb[0].mxu0
      %v3625 = vadd.f32 %v3582, %v3624
      %v3626 = vpop.f32.mrb[0].mxu0
      %v3627 = vadd.f32 %v3584, %v3626
      %v3628 = vpop.f32.mrb[0].mxu0
      %v3629 = vadd.f32 %v3586, %v3628
      %v3630 = vpop.f32.mrb[0].mxu0
      %v3631 = vadd.f32 %v3588, %v3630
      %3632 = vdwg.mxu0
      %3633 = vmatprep.subr.bf16.mxu0 %v2530
      %3634 = vmatpush1.bf16.msra.mxu0 %v2529
      %3635 = vmatprep.subr.bf16.mxu0 %v2542
      %3636 = vmatpush1.bf16.msra.mxu0 %v2541
      %3637 = vmatprep.subr.bf16.mxu0 %v2554
      %3638 = vmatpush1.bf16.msra.mxu0 %v2553
      %3639 = vmatprep.subr.bf16.mxu0 %v2566
      %3640 = vmatpush1.bf16.msra.mxu0 %v2565
      %3641 = vmatprep.subr.bf16.mxu0 %v2578
      %3642 = vmatpush1.bf16.msra.mxu0 %v2577
      %3643 = vmatprep.subr.bf16.mxu0 %v2590
      %3644 = vmatpush1.bf16.msra.mxu0 %v2589
      %3645 = vmatprep.subr.bf16.mxu0 %v2602
      %3646 = vmatpush1.bf16.msra.mxu0 %v2601
      %3647 = vmatprep.subr.bf16.mxu0 %v2614
      %3648 = vmatpush1.bf16.msra.mxu0 %v2613
      %3649 = vmatprep.subr.bf16.mxu0 %v2626
      %3650 = vmatpush1.bf16.msra.mxu0 %v2625
      %3651 = vmatprep.subr.bf16.mxu0 %v2638
      %3652 = vmatpush1.bf16.msra.mxu0 %v2637
      %3653 = vmatprep.subr.bf16.mxu0 %v2650
      %3654 = vmatpush1.bf16.msra.mxu0 %v2649
      %3655 = vmatprep.subr.bf16.mxu0 %v2662
      %3656 = vmatpush1.bf16.msra.mxu0 %v2661
      %3657 = vmatprep.subr.bf16.mxu0 %v2674
      %3658 = vmatpush1.bf16.msra.mxu0 %v2673
      %3659 = vmatprep.subr.bf16.mxu0 %v2686
      %3660 = vmatpush1.bf16.msra.mxu0 %v2685
      %3661 = vmatprep.subr.bf16.mxu0 %v2698
      %3662 = vmatpush1.bf16.msra.mxu0 %v2697
      %3663 = vmatprep.subr.bf16.mxu0 %v2710
      %3664 = vmatpush1.bf16.msra.mxu0 %v2709
      %3665 = vmatprep.mubr.bf16.mxu0 %v918
      %3666 = vmatmul.mubr.bf16.gmra.mrb[0].mxu0 %v917
      %v3667 = vpop.f32.mrb[0].mxu0
      %v3668 = vadd.f32 %v1344, %v3667
      %v3669 = vpop.f32.mrb[0].mxu0
      %v3670 = vadd.f32 %v1348, %v3669
      %v3671 = vpop.f32.mrb[0].mxu0
      %v3672 = vadd.f32 %v1344, %v3671
      %v3673 = vpop.f32.mrb[0].mxu0
      %v3674 = vadd.f32 %v1348, %v3673
      %3675 = vdwg.mxu0
      %3676 = vmatprep.subr.bf16.mxu0 %v2722
      %3677 = vmatpush1.bf16.msra.mxu0 %v2721
      %3678 = vmatprep.subr.bf16.mxu0 %v2734
      %3679 = vmatpush1.bf16.msra.mxu0 %v2733
      %3680 = vmatprep.subr.bf16.mxu0 %v2746
      %3681 = vmatpush1.bf16.msra.mxu0 %v2745
      %3682 = vmatprep.subr.bf16.mxu0 %v2758
      %3683 = vmatpush1.bf16.msra.mxu0 %v2757
      %3684 = vmatprep.subr.bf16.mxu0 %v2770
      %3685 = vmatpush1.bf16.msra.mxu0 %v2769
      %3686 = vmatprep.subr.bf16.mxu0 %v2782
      %3687 = vmatpush1.bf16.msra.mxu0 %v2781
      %3688 = vmatprep.subr.bf16.mxu0 %v2794
      %3689 = vmatpush1.bf16.msra.mxu0 %v2793
      %3690 = vmatprep.subr.bf16.mxu0 %v2806
      %3691 = vmatpush1.bf16.msra.mxu0 %v2805
      %3692 = vmatprep.subr.bf16.mxu0 %v2818
      %3693 = vmatpush1.bf16.msra.mxu0 %v2817
      %3694 = vmatprep.subr.bf16.mxu0 %v2830
      %3695 = vmatpush1.bf16.msra.mxu0 %v2829
      %3696 = vmatprep.subr.bf16.mxu0 %v2842
      %3697 = vmatpush1.bf16.msra.mxu0 %v2841
      %3698 = vmatprep.subr.bf16.mxu0 %v2854
      %3699 = vmatpush1.bf16.msra.mxu0 %v2853
      %3700 = vmatprep.subr.bf16.mxu0 %v2866
      %3701 = vmatpush1.bf16.msra.mxu0 %v2865
      %3702 = vmatprep.subr.bf16.mxu0 %v2878
      %3703 = vmatpush1.bf16.msra.mxu0 %v2877
      %3704 = vmatprep.subr.bf16.mxu0 %v2890
      %3705 = vmatpush1.bf16.msra.mxu0 %v2889
      %3706 = vmatprep.subr.bf16.mxu0 %v2902
      %3707 = vmatpush1.bf16.msra.mxu0 %v2901
      %3708 = vmatprep.mubr.bf16.mxu0 %v920
      %3709 = vmatmul.mubr.bf16.gmra.mrb[0].mxu0 %v919
      %v3710 = vpop.f32.mrb[0].mxu0
      %v3711 = vadd.f32 %v3668, %v3710
      %v3712 = vpop.f32.mrb[0].mxu0
      %v3713 = vadd.f32 %v3670, %v3712
      %v3714 = vpop.f32.mrb[0].mxu0
      %v3715 = vadd.f32 %v3672, %v3714
      %v3716 = vpop.f32.mrb[0].mxu0
      %v3717 = vadd.f32 %v3674, %v3716
      %3718 = vdwg.mxu0
      %3719 = vmatprep.subr.bf16.mxu0 %v2532
      %3720 = vmatpush1.bf16.msra.mxu0 %v2531
      %3721 = vmatprep.subr.bf16.mxu0 %v2544
      %3722 = vmatpush1.bf16.msra.mxu0 %v2543
      %3723 = vmatprep.subr.bf16.mxu0 %v2556
      %3724 = vmatpush1.bf16.msra.mxu0 %v2555
      %3725 = vmatprep.subr.bf16.mxu0 %v2568
      %3726 = vmatpush1.bf16.msra.mxu0 %v2567
      %3727 = vmatprep.subr.bf16.mxu0 %v2580
      %3728 = vmatpush1.bf16.msra.mxu0 %v2579
      %3729 = vmatprep.subr.bf16.mxu0 %v2592
      %3730 = vmatpush1.bf16.msra.mxu0 %v2591
      %3731 = vmatprep.subr.bf16.mxu0 %v2604
      %3732 = vmatpush1.bf16.msra.mxu0 %v2603
      %3733 = vmatprep.subr.bf16.mxu0 %v2616
      %3734 = vmatpush1.bf16.msra.mxu0 %v2615
      %3735 = vmatprep.subr.bf16.mxu0 %v2628
      %3736 = vmatpush1.bf16.msra.mxu0 %v2627
      %3737 = vmatprep.subr.bf16.mxu0 %v2640
      %3738 = vmatpush1.bf16.msra.mxu0 %v2639
      %3739 = vmatprep.subr.bf16.mxu0 %v2652
      %3740 = vmatpush1.bf16.msra.mxu0 %v2651
      %3741 = vmatprep.subr.bf16.mxu0 %v2664
      %3742 = vmatpush1.bf16.msra.mxu0 %v2663
      %3743 = vmatprep.subr.bf16.mxu0 %v2676
      %3744 = vmatpush1.bf16.msra.mxu0 %v2675
      %3745 = vmatprep.subr.bf16.mxu0 %v2688
      %3746 = vmatpush1.bf16.msra.mxu0 %v2687
      %3747 = vmatprep.subr.bf16.mxu0 %v2700
      %3748 = vmatpush1.bf16.msra.mxu0 %v2699
      %3749 = vmatprep.subr.bf16.mxu0 %v2712
      %3750 = vmatpush1.bf16.msra.mxu0 %v2711
      %3751 = vmatprep.mubr.bf16.mxu0 %v918
      %3752 = vmatmul.mubr.bf16.gmra.mrb[0].mxu0 %v917
      %v3753 = vpop.f32.mrb[0].mxu0
      %v3754 = vadd.f32 %v1352, %v3753
      %v3755 = vpop.f32.mrb[0].mxu0
      %v3756 = vadd.f32 %v1356, %v3755
      %v3757 = vpop.f32.mrb[0].mxu0
      %v3758 = vadd.f32 %v1352, %v3757
      %v3759 = vpop.f32.mrb[0].mxu0
      %v3760 = vadd.f32 %v1356, %v3759
      %3761 = vdwg.mxu0
      %3762 = vmatprep.subr.bf16.mxu0 %v2724
      %3763 = vmatpush1.bf16.msra.mxu0 %v2723
      %3764 = vmatprep.subr.bf16.mxu0 %v2736
      %3765 = vmatpush1.bf16.msra.mxu0 %v2735
      %3766 = vmatprep.subr.bf16.mxu0 %v2748
      %3767 = vmatpush1.bf16.msra.mxu0 %v2747
      %3768 = vmatprep.subr.bf16.mxu0 %v2760
      %3769 = vmatpush1.bf16.msra.mxu0 %v2759
      %3770 = vmatprep.subr.bf16.mxu0 %v2772
      %3771 = vmatpush1.bf16.msra.mxu0 %v2771
      %3772 = vmatprep.subr.bf16.mxu0 %v2784
      %3773 = vmatpush1.bf16.msra.mxu0 %v2783
      %3774 = vmatprep.subr.bf16.mxu0 %v2796
      %3775 = vmatpush1.bf16.msra.mxu0 %v2795
      %3776 = vmatprep.subr.bf16.mxu0 %v2808
      %3777 = vmatpush1.bf16.msra.mxu0 %v2807
      %3778 = vmatprep.subr.bf16.mxu0 %v2820
      %3779 = vmatpush1.bf16.msra.mxu0 %v2819
      %3780 = vmatprep.subr.bf16.mxu0 %v2832
      %3781 = vmatpush1.bf16.msra.mxu0 %v2831
      %3782 = vmatprep.subr.bf16.mxu0 %v2844
      %3783 = vmatpush1.bf16.msra.mxu0 %v2843
      %3784 = vmatprep.subr.bf16.mxu0 %v2856
      %3785 = vmatpush1.bf16.msra.mxu0 %v2855
      %3786 = vmatprep.subr.bf16.mxu0 %v2868
      %3787 = vmatpush1.bf16.msra.mxu0 %v2867
      %3788 = vmatprep.subr.bf16.mxu0 %v2880
      %3789 = vmatpush1.bf16.msra.mxu0 %v2879
      %3790 = vmatprep.subr.bf16.mxu0 %v2892
      %3791 = vmatpush1.bf16.msra.mxu0 %v2891
      %3792 = vmatprep.subr.bf16.mxu0 %v2904
      %3793 = vmatpush1.bf16.msra.mxu0 %v2903
      %3794 = vmatprep.mubr.bf16.mxu0 %v920
      %3795 = vmatmul.mubr.bf16.gmra.mrb[0].mxu0 %v919
      %v3796 = vpop.f32.mrb[0].mxu0
      %v3797 = vadd.f32 %v3754, %v3796
      %v3798 = vpop.f32.mrb[0].mxu0
      %v3799 = vadd.f32 %v3756, %v3798
      %v3800 = vpop.f32.mrb[0].mxu0
      %v3801 = vadd.f32 %v3758, %v3800
      %v3802 = vpop.f32.mrb[0].mxu0
      %v3803 = vadd.f32 %v3760, %v3802
      %3804 = vdwg.mxu0
      %v3805 = vpack.c.bf16 %v3371, %v3367
      %v3806 = vpack.c.bf16 %v3373, %v3369
      %v3807 = vpack.c.bf16 %v3457, %v3453
      %v3808 = vpack.c.bf16 %v3459, %v3455
      %v3809 = vpack.c.bf16 %v3543, %v3539
      %v3810 = vpack.c.bf16 %v3545, %v3541
      %v3811 = vpack.c.bf16 %v3629, %v3625
      %v3812 = vpack.c.bf16 %v3631, %v3627
      %v3813 = vpack.c.bf16 %v3715, %v3711
      %v3814 = vpack.c.bf16 %v3717, %v3713
      %v3815 = vpack.c.bf16 %v3801, %v3797
      %v3816 = vpack.c.bf16 %v3803, %v3799
      %3817 = vmatprep.subr.bf16.mxu0 0
      %3818 = vmatpush1.bf16.xpose.msra.mxu0 %v3809
      %3819 = vmatprep.subr.bf16.mxu0 0
      %3820 = vmatpush1.bf16.xpose.msra.mxu0 0
      %3821 = vmatprep.subr.bf16.mxu0 0
      %3822 = vmatpush1.bf16.xpose.msra.mxu0 0
      %3823 = vmatprep.subr.bf16.mxu0 0
      %3824 = vmatpush1.bf16.xpose.msra.mxu0 0
      %3825 = vmatprep.subr.bf16.mxu0 0
      %3826 = vmatpush1.bf16.xpose.msra.mxu0 0
      %3827 = vmatprep.subr.bf16.mxu0 0
      %3828 = vmatpush1.bf16.xpose.msra.mxu0 0
      %3829 = vmatprep.subr.bf16.mxu0 0
      %3830 = vmatpush1.bf16.xpose.msra.mxu0 0
      %3831 = vmatprep.subr.bf16.mxu0 0
      %3832 = vmatpush1.bf16.xpose.msra.mxu0 0
      %3833 = vmatprep.subr.bf16.mxu0 0
      %3834 = vmatpush1.bf16.xpose.msra.mxu0 0
      %3835 = vmatprep.subr.bf16.mxu0 0
      %3836 = vmatpush1.bf16.xpose.msra.mxu0 0
      %3837 = vmatprep.subr.bf16.mxu0 0
      %3838 = vmatpush1.bf16.xpose.msra.mxu0 0
      %3839 = vmatprep.subr.bf16.mxu0 0
      %3840 = vmatpush1.bf16.xpose.msra.mxu0 0
      %3841 = vmatprep.subr.bf16.mxu0 0
      %3842 = vmatpush1.bf16.xpose.msra.mxu0 0
      %3843 = vmatprep.subr.bf16.mxu0 0
      %3844 = vmatpush1.bf16.xpose.msra.mxu0 0
      %3845 = vmatprep.subr.bf16.mxu0 0
      %3846 = vmatpush1.bf16.xpose.msra.mxu0 0
      %3847 = vmatprep.subr.bf16.mxu0 0
      %3848 = vmatpush1.bf16.xpose.msra.mxu0 0
      %3849 = vmatprep.mubr.bf16.mxu0 0
      %3850 = vmatmul.mubr.bf16.gmra.mrb[0].mxu0 %v3805
      %v3851 = vpop.f32.mrb[0].mxu0
      %v3852 = vadd.f32 0.0, %v3851
      %v3853 = vpop.f32.mrb[0].mxu0
      %v3854 = vpop.f32.mrb[0].mxu0
      %v3855 = vadd.f32 0.0, %v3854
      %v3856 = vpop.f32.mrb[0].mxu0
      %3857 = vdwg.mxu0
      %3858 = vmatprep.subr.bf16.mxu0 0
      %3859 = vmatpush1.bf16.xpose.msra.mxu0 %v3810
      %3860 = vmatprep.subr.bf16.mxu0 0
      %3861 = vmatpush1.bf16.xpose.msra.mxu0 0
      %3862 = vmatprep.subr.bf16.mxu0 0
      %3863 = vmatpush1.bf16.xpose.msra.mxu0 0
      %3864 = vmatprep.subr.bf16.mxu0 0
      %3865 = vmatpush1.bf16.xpose.msra.mxu0 0
      %3866 = vmatprep.subr.bf16.mxu0 0
      %3867 = vmatpush1.bf16.xpose.msra.mxu0 0
      %3868 = vmatprep.subr.bf16.mxu0 0
      %3869 = vmatpush1.bf16.xpose.msra.mxu0 0
      %3870 = vmatprep.subr.bf16.mxu0 0
      %3871 = vmatpush1.bf16.xpose.msra.mxu0 0
      %3872 = vmatprep.subr.bf16.mxu0 0
      %3873 = vmatpush1.bf16.xpose.msra.mxu0 0
      %3874 = vmatprep.subr.bf16.mxu0 0
      %3875 = vmatpush1.bf16.xpose.msra.mxu0 0
      %3876 = vmatprep.subr.bf16.mxu0 0
      %3877 = vmatpush1.bf16.xpose.msra.mxu0 0
      %3878 = vmatprep.subr.bf16.mxu0 0
      %3879 = vmatpush1.bf16.xpose.msra.mxu0 0
      %3880 = vmatprep.subr.bf16.mxu0 0
      %3881 = vmatpush1.bf16.xpose.msra.mxu0 0
      %3882 = vmatprep.subr.bf16.mxu0 0
      %3883 = vmatpush1.bf16.xpose.msra.mxu0 0
      %3884 = vmatprep.subr.bf16.mxu0 0
      %3885 = vmatpush1.bf16.xpose.msra.mxu0 0
      %3886 = vmatprep.subr.bf16.mxu0 0
      %3887 = vmatpush1.bf16.xpose.msra.mxu0 0
      %3888 = vmatprep.subr.bf16.mxu0 0
      %3889 = vmatpush1.bf16.xpose.msra.mxu0 0
      %3890 = vmatprep.mubr.bf16.mxu0 0
      %3891 = vmatmul.mubr.bf16.gmra.mrb[0].mxu0 %v3806
      %v3892 = vpop.f32.mrb[0].mxu0
      %v3893 = vadd.f32 0.0, %v3892
      %v3894 = vpop.f32.mrb[0].mxu0
      %v3895 = vpop.f32.mrb[0].mxu0
      %v3896 = vadd.f32 0.0, %v3895
      %v3897 = vpop.f32.mrb[0].mxu0
      %3898 = vdwg.mxu0
      %3899 = vmatprep.subr.bf16.mxu0 0
      %3900 = vmatpush1.bf16.xpose.msra.mxu0 %v3811
      %3901 = vmatprep.subr.bf16.mxu0 0
      %3902 = vmatpush1.bf16.xpose.msra.mxu0 0
      %3903 = vmatprep.subr.bf16.mxu0 0
      %3904 = vmatpush1.bf16.xpose.msra.mxu0 0
      %3905 = vmatprep.subr.bf16.mxu0 0
      %3906 = vmatpush1.bf16.xpose.msra.mxu0 0
      %3907 = vmatprep.subr.bf16.mxu0 0
      %3908 = vmatpush1.bf16.xpose.msra.mxu0 0
      %3909 = vmatprep.subr.bf16.mxu0 0
      %3910 = vmatpush1.bf16.xpose.msra.mxu0 0
      %3911 = vmatprep.subr.bf16.mxu0 0
      %3912 = vmatpush1.bf16.xpose.msra.mxu0 0
      %3913 = vmatprep.subr.bf16.mxu0 0
      %3914 = vmatpush1.bf16.xpose.msra.mxu0 0
      %3915 = vmatprep.subr.bf16.mxu0 0
      %3916 = vmatpush1.bf16.xpose.msra.mxu0 0
      %3917 = vmatprep.subr.bf16.mxu0 0
      %3918 = vmatpush1.bf16.xpose.msra.mxu0 0
      %3919 = vmatprep.subr.bf16.mxu0 0
      %3920 = vmatpush1.bf16.xpose.msra.mxu0 0
      %3921 = vmatprep.subr.bf16.mxu0 0
      %3922 = vmatpush1.bf16.xpose.msra.mxu0 0
      %3923 = vmatprep.subr.bf16.mxu0 0
      %3924 = vmatpush1.bf16.xpose.msra.mxu0 0
      %3925 = vmatprep.subr.bf16.mxu0 0
      %3926 = vmatpush1.bf16.xpose.msra.mxu0 0
      %3927 = vmatprep.subr.bf16.mxu0 0
      %3928 = vmatpush1.bf16.xpose.msra.mxu0 0
      %3929 = vmatprep.subr.bf16.mxu0 0
      %3930 = vmatpush1.bf16.xpose.msra.mxu0 0
      %3931 = vmatprep.mubr.bf16.mxu0 0
      %3932 = vmatmul.mubr.bf16.gmra.mrb[0].mxu0 %v3807
      %v3933 = vpop.f32.mrb[0].mxu0
      %v3934 = vadd.f32 0.0, %v3933
      %v3935 = vpop.f32.mrb[0].mxu0
      %v3936 = vpop.f32.mrb[0].mxu0
      %v3937 = vadd.f32 0.0, %v3936
      %v3938 = vpop.f32.mrb[0].mxu0
      %3939 = vdwg.mxu0
      %3940 = vmatprep.subr.bf16.mxu0 0
      %3941 = vmatpush1.bf16.xpose.msra.mxu0 %v3812
      %3942 = vmatprep.subr.bf16.mxu0 0
      %3943 = vmatpush1.bf16.xpose.msra.mxu0 0
      %3944 = vmatprep.subr.bf16.mxu0 0
      %3945 = vmatpush1.bf16.xpose.msra.mxu0 0
      %3946 = vmatprep.subr.bf16.mxu0 0
      %3947 = vmatpush1.bf16.xpose.msra.mxu0 0
      %3948 = vmatprep.subr.bf16.mxu0 0
      %3949 = vmatpush1.bf16.xpose.msra.mxu0 0
      %3950 = vmatprep.subr.bf16.mxu0 0
      %3951 = vmatpush1.bf16.xpose.msra.mxu0 0
      %3952 = vmatprep.subr.bf16.mxu0 0
      %3953 = vmatpush1.bf16.xpose.msra.mxu0 0
      %3954 = vmatprep.subr.bf16.mxu0 0
      %3955 = vmatpush1.bf16.xpose.msra.mxu0 0
      %3956 = vmatprep.subr.bf16.mxu0 0
      %3957 = vmatpush1.bf16.xpose.msra.mxu0 0
      %3958 = vmatprep.subr.bf16.mxu0 0
      %3959 = vmatpush1.bf16.xpose.msra.mxu0 0
      %3960 = vmatprep.subr.bf16.mxu0 0
      %3961 = vmatpush1.bf16.xpose.msra.mxu0 0
      %3962 = vmatprep.subr.bf16.mxu0 0
      %3963 = vmatpush1.bf16.xpose.msra.mxu0 0
      %3964 = vmatprep.subr.bf16.mxu0 0
      %3965 = vmatpush1.bf16.xpose.msra.mxu0 0
      %3966 = vmatprep.subr.bf16.mxu0 0
      %3967 = vmatpush1.bf16.xpose.msra.mxu0 0
      %3968 = vmatprep.subr.bf16.mxu0 0
      %3969 = vmatpush1.bf16.xpose.msra.mxu0 0
      %3970 = vmatprep.subr.bf16.mxu0 0
      %3971 = vmatpush1.bf16.xpose.msra.mxu0 0
      %3972 = vmatprep.mubr.bf16.mxu0 0
      %3973 = vmatmul.mubr.bf16.gmra.mrb[0].mxu0 %v3808
      %v3974 = vpop.f32.mrb[0].mxu0
      %v3975 = vadd.f32 0.0, %v3974
      %v3976 = vpop.f32.mrb[0].mxu0
      %v3977 = vpop.f32.mrb[0].mxu0
      %v3978 = vadd.f32 0.0, %v3977
      %v3979 = vpop.f32.mrb[0].mxu0
      %3980 = vdwg.mxu0
      %v3981 = vmul.f32 %v3852, 0.088388346
      %v3982 = vmul.f32 %v3855, 0.088388346
      %v3983 = vmul.f32 %v3893, 0.088388346
      %v3984 = vmul.f32 %v3896, 0.088388346
      %v3985 = vmul.f32 %v3934, 0.088388346
      %v3986 = vmul.f32 %v3937, 0.088388346
      %v3987 = vmul.f32 %v3975, 0.088388346
      %v3988 = vmul.f32 %v3978, 0.088388346
      %vm3989 = vcmask 130048
      %v3990 = vsel %vm3989, %v3981, -inf
      %3991 = vmax.xlane.f32.xlu0 %v3990
      %v3992 = vpop.xlane.xlu0 %3991
      %v3993 = vsel %vm3989, %v3982, -inf
      %3994 = vmax.xlane.f32.xlu0 %v3993
      %v3995 = vpop.xlane.xlu0 %3994
      %v3996 = vsel %vm3989, %v3983, -inf
      %3997 = vmax.xlane.f32.xlu0 %v3996
      %v3998 = vpop.xlane.xlu0 %3997
      %v3999 = vsel %vm3989, %v3984, -inf
      %4000 = vmax.xlane.f32.xlu0 %v3999
      %v4001 = vpop.xlane.xlu0 %4000
      %v4002 = vsel %vm3989, %v3985, -inf
      %4003 = vmax.xlane.f32.xlu0 %v4002
      %v4004 = vpop.xlane.xlu0 %4003
      %v4005 = vsel %vm3989, %v3986, -inf
      %4006 = vmax.xlane.f32.xlu0 %v4005
      %v4007 = vpop.xlane.xlu0 %4006
      %v4008 = vsel %vm3989, %v3987, -inf
      %4009 = vmax.xlane.f32.xlu0 %v4008
      %v4010 = vpop.xlane.xlu0 %4009
      %v4011 = vsel %vm3989, %v3988, -inf
      %4012 = vmax.xlane.f32.xlu0 %v4011
      %v4013 = vpop.xlane.xlu0 %4012
      %v4014 = vsub.f32 %v3981, %v3992
      %v4015 = vsub.f32 %v3982, %v3995
      %v4016 = vsub.f32 %v3983, %v3998
      %v4017 = vsub.f32 %v3984, %v4001
      %v4018 = vsub.f32 %v3985, %v4004
      %v4019 = vsub.f32 %v3986, %v4007
      %v4020 = vsub.f32 %v3987, %v4010
      %v4021 = vsub.f32 %v3988, %v4013
      %v4022 = vmul.f32 %v4014, 1.442695
      %v4023 = vpow.pop %v4022
      %v4024 = vmul.f32 %v4015, 1.442695
      %v4025 = vpow.pop %v4024
      %v4026 = vmul.f32 %v4016, 1.442695
      %v4027 = vpow.pop %v4026
      %v4028 = vmul.f32 %v4017, 1.442695
      %v4029 = vpow.pop %v4028
      %v4030 = vmul.f32 %v4018, 1.442695
      %v4031 = vpow.pop %v4030
      %v4032 = vmul.f32 %v4019, 1.442695
      %v4033 = vpow.pop %v4032
      %v4034 = vmul.f32 %v4020, 1.442695
      %v4035 = vpow.pop %v4034
      %v4036 = vmul.f32 %v4021, 1.442695
      %v4037 = vpow.pop %v4036
      %v4038 = vsel %vm3989, %v4023, 0.0
      %4039 = vadd.xlane.f32.xlu0 %v4038
      %v4040 = vpop.xlane.xlu0 %4039
      %v4041 = vsel %vm3989, %v4025, 0.0
      %4042 = vadd.xlane.f32.xlu0 %v4041
      %v4043 = vpop.xlane.xlu0 %4042
      %v4044 = vsel %vm3989, %v4027, 0.0
      %4045 = vadd.xlane.f32.xlu0 %v4044
      %v4046 = vpop.xlane.xlu0 %4045
      %v4047 = vsel %vm3989, %v4029, 0.0
      %4048 = vadd.xlane.f32.xlu0 %v4047
      %v4049 = vpop.xlane.xlu0 %4048
      %v4050 = vsel %vm3989, %v4031, 0.0
      %4051 = vadd.xlane.f32.xlu0 %v4050
      %v4052 = vpop.xlane.xlu0 %4051
      %v4053 = vsel %vm3989, %v4033, 0.0
      %4054 = vadd.xlane.f32.xlu0 %v4053
      %v4055 = vpop.xlane.xlu0 %4054
      %v4056 = vsel %vm3989, %v4035, 0.0
      %4057 = vadd.xlane.f32.xlu0 %v4056
      %v4058 = vpop.xlane.xlu0 %4057
      %v4059 = vsel %vm3989, %v4037, 0.0
      %4060 = vadd.xlane.f32.xlu0 %v4059
      %v4061 = vpop.xlane.xlu0 %4060
      %v4062 = vrcp.pop %v4040
      %v4063 = vmul.f32 %v4023, %v4062
      %v4064 = vrcp.pop %v4043
      %v4065 = vmul.f32 %v4025, %v4064
      %v4066 = vrcp.pop %v4046
      %v4067 = vmul.f32 %v4027, %v4066
      %v4068 = vrcp.pop %v4049
      %v4069 = vmul.f32 %v4029, %v4068
      %v4070 = vrcp.pop %v4052
      %v4071 = vmul.f32 %v4031, %v4070
      %v4072 = vrcp.pop %v4055
      %v4073 = vmul.f32 %v4033, %v4072
      %v4074 = vrcp.pop %v4058
      %v4075 = vmul.f32 %v4035, %v4074
      %v4076 = vrcp.pop %v4061
      %v4077 = vmul.f32 %v4037, %v4076
      %v4078 = vpack.c.bf16 %v4065, %v4063
      %v4079 = vpack.c.bf16 %v4069, %v4067
      %v4080 = vpack.c.bf16 %v4073, %v4071
      %v4081 = vpack.c.bf16 %v4077, %v4075
      %v4083 = vsel %vm3989, %v4078, 0
      %4085 = vmatprep.subr.bf16.mxu0 0
      %4086 = vmatpush1.bf16.msra.mxu0 %v3813
      %4087 = vmatprep.subr.bf16.mxu0 0
      %4088 = vmatpush1.bf16.msra.mxu0 0
      %4089 = vmatprep.subr.bf16.mxu0 0
      %4090 = vmatpush1.bf16.msra.mxu0 0
      %4091 = vmatprep.subr.bf16.mxu0 0
      %4092 = vmatpush1.bf16.msra.mxu0 0
      %4093 = vmatprep.subr.bf16.mxu0 0
      %4094 = vmatpush1.bf16.msra.mxu0 0
      %4095 = vmatprep.subr.bf16.mxu0 0
      %4096 = vmatpush1.bf16.msra.mxu0 0
      %4097 = vmatprep.subr.bf16.mxu0 0
      %4098 = vmatpush1.bf16.msra.mxu0 0
      %4099 = vmatprep.subr.bf16.mxu0 0
      %4100 = vmatpush1.bf16.msra.mxu0 0
      %4101 = vmatprep.subr.bf16.mxu0 0
      %4102 = vmatpush1.bf16.msra.mxu0 0
      %4103 = vmatprep.subr.bf16.mxu0 0
      %4104 = vmatpush1.bf16.msra.mxu0 0
      %4105 = vmatprep.subr.bf16.mxu0 0
      %4106 = vmatpush1.bf16.msra.mxu0 0
      %4107 = vmatprep.subr.bf16.mxu0 0
      %4108 = vmatpush1.bf16.msra.mxu0 0
      %4109 = vmatprep.subr.bf16.mxu0 0
      %4110 = vmatpush1.bf16.msra.mxu0 0
      %4111 = vmatprep.subr.bf16.mxu0 0
      %4112 = vmatpush1.bf16.msra.mxu0 0
      %4113 = vmatprep.subr.bf16.mxu0 0
      %4114 = vmatpush1.bf16.msra.mxu0 0
      %4115 = vmatprep.subr.bf16.mxu0 0
      %4116 = vmatpush1.bf16.msra.mxu0 0
      %4117 = vmatprep.mubr.bf16.mxu0 0
      %4118 = vmatmul.mubr.bf16.gmra.mrb[0].mxu0 %v4083
      %v4119 = vpop.f32.mrb[0].mxu0
      %v4120 = vadd.f32 0.0, %v4119
      %v4121 = vpop.f32.mrb[0].mxu0
      %v4122 = vpop.f32.mrb[0].mxu0
      %v4123 = vadd.f32 0.0, %v4122
      %v4124 = vpop.f32.mrb[0].mxu0
      %4125 = vdwg.mxu0
      %v4127 = vsel %vm3989, %v4079, 0
      %4129 = vmatprep.subr.bf16.mxu0 0
      %4130 = vmatpush1.bf16.msra.mxu0 %v3814
      %4131 = vmatprep.subr.bf16.mxu0 0
      %4132 = vmatpush1.bf16.msra.mxu0 0
      %4133 = vmatprep.subr.bf16.mxu0 0
      %4134 = vmatpush1.bf16.msra.mxu0 0
      %4135 = vmatprep.subr.bf16.mxu0 0
      %4136 = vmatpush1.bf16.msra.mxu0 0
      %4137 = vmatprep.subr.bf16.mxu0 0
      %4138 = vmatpush1.bf16.msra.mxu0 0
      %4139 = vmatprep.subr.bf16.mxu0 0
      %4140 = vmatpush1.bf16.msra.mxu0 0
      %4141 = vmatprep.subr.bf16.mxu0 0
      %4142 = vmatpush1.bf16.msra.mxu0 0
      %4143 = vmatprep.subr.bf16.mxu0 0
      %4144 = vmatpush1.bf16.msra.mxu0 0
      %4145 = vmatprep.subr.bf16.mxu0 0
      %4146 = vmatpush1.bf16.msra.mxu0 0
      %4147 = vmatprep.subr.bf16.mxu0 0
      %4148 = vmatpush1.bf16.msra.mxu0 0
      %4149 = vmatprep.subr.bf16.mxu0 0
      %4150 = vmatpush1.bf16.msra.mxu0 0
      %4151 = vmatprep.subr.bf16.mxu0 0
      %4152 = vmatpush1.bf16.msra.mxu0 0
      %4153 = vmatprep.subr.bf16.mxu0 0
      %4154 = vmatpush1.bf16.msra.mxu0 0
      %4155 = vmatprep.subr.bf16.mxu0 0
      %4156 = vmatpush1.bf16.msra.mxu0 0
      %4157 = vmatprep.subr.bf16.mxu0 0
      %4158 = vmatpush1.bf16.msra.mxu0 0
      %4159 = vmatprep.subr.bf16.mxu0 0
      %4160 = vmatpush1.bf16.msra.mxu0 0
      %4161 = vmatprep.mubr.bf16.mxu0 0
      %4162 = vmatmul.mubr.bf16.gmra.mrb[0].mxu0 %v4127
      %v4163 = vpop.f32.mrb[0].mxu0
      %v4164 = vadd.f32 0.0, %v4163
      %v4165 = vpop.f32.mrb[0].mxu0
      %v4166 = vpop.f32.mrb[0].mxu0
      %v4167 = vadd.f32 0.0, %v4166
      %v4168 = vpop.f32.mrb[0].mxu0
      %4169 = vdwg.mxu0
      %v4171 = vsel %vm3989, %v4080, 0
      %4173 = vmatprep.subr.bf16.mxu0 0
      %4174 = vmatpush1.bf16.msra.mxu0 %v3815
      %4175 = vmatprep.subr.bf16.mxu0 0
      %4176 = vmatpush1.bf16.msra.mxu0 0
      %4177 = vmatprep.subr.bf16.mxu0 0
      %4178 = vmatpush1.bf16.msra.mxu0 0
      %4179 = vmatprep.subr.bf16.mxu0 0
      %4180 = vmatpush1.bf16.msra.mxu0 0
      %4181 = vmatprep.subr.bf16.mxu0 0
      %4182 = vmatpush1.bf16.msra.mxu0 0
      %4183 = vmatprep.subr.bf16.mxu0 0
      %4184 = vmatpush1.bf16.msra.mxu0 0
      %4185 = vmatprep.subr.bf16.mxu0 0
      %4186 = vmatpush1.bf16.msra.mxu0 0
      %4187 = vmatprep.subr.bf16.mxu0 0
      %4188 = vmatpush1.bf16.msra.mxu0 0
      %4189 = vmatprep.subr.bf16.mxu0 0
      %4190 = vmatpush1.bf16.msra.mxu0 0
      %4191 = vmatprep.subr.bf16.mxu0 0
      %4192 = vmatpush1.bf16.msra.mxu0 0
      %4193 = vmatprep.subr.bf16.mxu0 0
      %4194 = vmatpush1.bf16.msra.mxu0 0
      %4195 = vmatprep.subr.bf16.mxu0 0
      %4196 = vmatpush1.bf16.msra.mxu0 0
      %4197 = vmatprep.subr.bf16.mxu0 0
      %4198 = vmatpush1.bf16.msra.mxu0 0
      %4199 = vmatprep.subr.bf16.mxu0 0
      %4200 = vmatpush1.bf16.msra.mxu0 0
      %4201 = vmatprep.subr.bf16.mxu0 0
      %4202 = vmatpush1.bf16.msra.mxu0 0
      %4203 = vmatprep.subr.bf16.mxu0 0
      %4204 = vmatpush1.bf16.msra.mxu0 0
      %4205 = vmatprep.mubr.bf16.mxu0 0
      %4206 = vmatmul.mubr.bf16.gmra.mrb[0].mxu0 %v4171
      %v4207 = vpop.f32.mrb[0].mxu0
      %v4208 = vadd.f32 0.0, %v4207
      %v4209 = vpop.f32.mrb[0].mxu0
      %v4210 = vpop.f32.mrb[0].mxu0
      %v4211 = vadd.f32 0.0, %v4210
      %v4212 = vpop.f32.mrb[0].mxu0
      %4213 = vdwg.mxu0
      %v4215 = vsel %vm3989, %v4081, 0
      %4217 = vmatprep.subr.bf16.mxu0 0
      %4218 = vmatpush1.bf16.msra.mxu0 %v3816
      %4219 = vmatprep.subr.bf16.mxu0 0
      %4220 = vmatpush1.bf16.msra.mxu0 0
      %4221 = vmatprep.subr.bf16.mxu0 0
      %4222 = vmatpush1.bf16.msra.mxu0 0
      %4223 = vmatprep.subr.bf16.mxu0 0
      %4224 = vmatpush1.bf16.msra.mxu0 0
      %4225 = vmatprep.subr.bf16.mxu0 0
      %4226 = vmatpush1.bf16.msra.mxu0 0
      %4227 = vmatprep.subr.bf16.mxu0 0
      %4228 = vmatpush1.bf16.msra.mxu0 0
      %4229 = vmatprep.subr.bf16.mxu0 0
      %4230 = vmatpush1.bf16.msra.mxu0 0
      %4231 = vmatprep.subr.bf16.mxu0 0
      %4232 = vmatpush1.bf16.msra.mxu0 0
      %4233 = vmatprep.subr.bf16.mxu0 0
      %4234 = vmatpush1.bf16.msra.mxu0 0
      %4235 = vmatprep.subr.bf16.mxu0 0
      %4236 = vmatpush1.bf16.msra.mxu0 0
      %4237 = vmatprep.subr.bf16.mxu0 0
      %4238 = vmatpush1.bf16.msra.mxu0 0
      %4239 = vmatprep.subr.bf16.mxu0 0
      %4240 = vmatpush1.bf16.msra.mxu0 0
      %4241 = vmatprep.subr.bf16.mxu0 0
      %4242 = vmatpush1.bf16.msra.mxu0 0
      %4243 = vmatprep.subr.bf16.mxu0 0
      %4244 = vmatpush1.bf16.msra.mxu0 0
      %4245 = vmatprep.subr.bf16.mxu0 0
      %4246 = vmatpush1.bf16.msra.mxu0 0
      %4247 = vmatprep.subr.bf16.mxu0 0
      %4248 = vmatpush1.bf16.msra.mxu0 0
      %4249 = vmatprep.mubr.bf16.mxu0 0
      %4250 = vmatmul.mubr.bf16.gmra.mrb[0].mxu0 %v4215
      %v4251 = vpop.f32.mrb[0].mxu0
      %v4252 = vadd.f32 0.0, %v4251
      %v4253 = vpop.f32.mrb[0].mxu0
      %v4254 = vpop.f32.mrb[0].mxu0
      %v4255 = vadd.f32 0.0, %v4254
      %v4256 = vpop.f32.mrb[0].mxu0
      %4257 = vdwg.mxu0
      %v4258 = vpack.c.bf16 %v4123, %v4120
      %v4259 = vpack.c.bf16 %v4167, %v4164
      %v4260 = vpack.c.bf16 %v4211, %v4208
      %v4261 = vpack.c.bf16 %v4255, %v4252
      %v4262 = vld [vmem:[%s7] sm:$0xff]
      %v4263 = vld [vmem:[%s7 + $0x8] sm:$0xff]
      %v4264 = vld [vmem:[%s7 + $0x10] sm:$0xff]
      %v4265 = vld [vmem:[%s7 + $0x18] sm:$0xff]
      %v4266 = vld [vmem:[%s7 + $0x20] sm:$0xff]
      %v4267 = vld [vmem:[%s7 + $0x28] sm:$0xff]
      %v4268 = vld [vmem:[%s7 + $0x30] sm:$0xff]
      %v4269 = vld [vmem:[%s7 + $0x38] sm:$0xff]
      %v4270 = vld [vmem:[%s7 + $0x40] sm:$0xff]
      %v4271 = vld [vmem:[%s7 + $0x48] sm:$0xff]
      %v4272 = vld [vmem:[%s7 + $0x50] sm:$0xff]
      %v4273 = vld [vmem:[%s7 + $0x58] sm:$0xff]
      %v4274 = vld [vmem:[%s7 + $0x60] sm:$0xff]
      %v4275 = vld [vmem:[%s7 + $0x68] sm:$0xff]
      %v4276 = vld [vmem:[%s7 + $0x70] sm:$0xff]
      %v4277 = vld [vmem:[%s7 + $0x78] sm:$0xff]
      %v4278 = vld [vmem:[%s7 + $0x80] sm:$0xff]
      %v4279 = vld [vmem:[%s7 + $0x88] sm:$0xff]
      %v4280 = vld [vmem:[%s7 + $0x90] sm:$0xff]
      %v4281 = vld [vmem:[%s7 + $0x98] sm:$0xff]
      %v4282 = vld [vmem:[%s7 + $0xa0] sm:$0xff]
      %v4283 = vld [vmem:[%s7 + $0xa8] sm:$0xff]
      %v4284 = vld [vmem:[%s7 + $0xb0] sm:$0xff]
      %v4285 = vld [vmem:[%s7 + $0xb8] sm:$0xff]
      %v4286 = vld [vmem:[%s7 + $0xc0] sm:$0xff]
      %v4287 = vld [vmem:[%s7 + $0xc8] sm:$0xff]
      %v4288 = vld [vmem:[%s7 + $0xd0] sm:$0xff]
      %v4289 = vld [vmem:[%s7 + $0xd8] sm:$0xff]
      %v4290 = vld [vmem:[%s7 + $0xe0] sm:$0xff]
      %v4291 = vld [vmem:[%s7 + $0xe8] sm:$0xff]
      %v4292 = vld [vmem:[%s7 + $0xf0] sm:$0xff]
      %v4293 = vld [vmem:[%s7 + $0xf8] sm:$0xff]
      %v4294 = vld [vmem:[%s7 + $0x100] sm:$0xff]
      %v4295 = vld [vmem:[%s7 + $0x108] sm:$0xff]
      %v4296 = vld [vmem:[%s7 + $0x110] sm:$0xff]
      %v4297 = vld [vmem:[%s7 + $0x118] sm:$0xff]
      %v4298 = vld [vmem:[%s7 + $0x120] sm:$0xff]
      %v4299 = vld [vmem:[%s7 + $0x128] sm:$0xff]
      %v4300 = vld [vmem:[%s7 + $0x130] sm:$0xff]
      %v4301 = vld [vmem:[%s7 + $0x138] sm:$0xff]
      %v4302 = vld [vmem:[%s7 + $0x140] sm:$0xff]
      %v4303 = vld [vmem:[%s7 + $0x148] sm:$0xff]
      %v4304 = vld [vmem:[%s7 + $0x150] sm:$0xff]
      %v4305 = vld [vmem:[%s7 + $0x158] sm:$0xff]
      %v4306 = vld [vmem:[%s7 + $0x160] sm:$0xff]
      %v4307 = vld [vmem:[%s7 + $0x168] sm:$0xff]
      %v4308 = vld [vmem:[%s7 + $0x170] sm:$0xff]
      %v4309 = vld [vmem:[%s7 + $0x178] sm:$0xff]
      %v4310 = vld [vmem:[%s7 + $0x180] sm:$0xff]
      %v4311 = vld [vmem:[%s7 + $0x188] sm:$0xff]
      %v4312 = vld [vmem:[%s7 + $0x190] sm:$0xff]
      %v4313 = vld [vmem:[%s7 + $0x198] sm:$0xff]
      %v4314 = vld [vmem:[%s7 + $0x1a0] sm:$0xff]
      %v4315 = vld [vmem:[%s7 + $0x1a8] sm:$0xff]
      %v4316 = vld [vmem:[%s7 + $0x1b0] sm:$0xff]
      %v4317 = vld [vmem:[%s7 + $0x1b8] sm:$0xff]
      %v4318 = vld [vmem:[%s7 + $0x1c0] sm:$0xff]
      %v4319 = vld [vmem:[%s7 + $0x1c8] sm:$0xff]
      %v4320 = vld [vmem:[%s7 + $0x1d0] sm:$0xff]
      %v4321 = vld [vmem:[%s7 + $0x1d8] sm:$0xff]
      %v4322 = vld [vmem:[%s7 + $0x1e0] sm:$0xff]
      %v4323 = vld [vmem:[%s7 + $0x1e8] sm:$0xff]
      %v4324 = vld [vmem:[%s7 + $0x1f0] sm:$0xff]
      %v4325 = vld [vmem:[%s7 + $0x1f8] sm:$0xff]
      %v4326 = vld [vmem:[%s7 + $0x200] sm:$0xff]
      %v4327 = vld [vmem:[%s7 + $0x208] sm:$0xff]
      %v4328 = vld [vmem:[%s7 + $0x210] sm:$0xff]
      %v4329 = vld [vmem:[%s7 + $0x218] sm:$0xff]
      %v4330 = vld [vmem:[%s7 + $0x220] sm:$0xff]
      %v4331 = vld [vmem:[%s7 + $0x228] sm:$0xff]
      %v4332 = vld [vmem:[%s7 + $0x230] sm:$0xff]
      %v4333 = vld [vmem:[%s7 + $0x238] sm:$0xff]
      %v4334 = vld [vmem:[%s7 + $0x240] sm:$0xff]
      %v4335 = vld [vmem:[%s7 + $0x248] sm:$0xff]
      %v4336 = vld [vmem:[%s7 + $0x250] sm:$0xff]
      %v4337 = vld [vmem:[%s7 + $0x258] sm:$0xff]
      %v4338 = vld [vmem:[%s7 + $0x260] sm:$0xff]
      %v4339 = vld [vmem:[%s7 + $0x268] sm:$0xff]
      %v4340 = vld [vmem:[%s7 + $0x270] sm:$0xff]
      %v4341 = vld [vmem:[%s7 + $0x278] sm:$0xff]
      %v4342 = vld [vmem:[%s7 + $0x280] sm:$0xff]
      %v4343 = vld [vmem:[%s7 + $0x288] sm:$0xff]
      %v4344 = vld [vmem:[%s7 + $0x290] sm:$0xff]
      %v4345 = vld [vmem:[%s7 + $0x298] sm:$0xff]
      %v4346 = vld [vmem:[%s7 + $0x2a0] sm:$0xff]
      %v4347 = vld [vmem:[%s7 + $0x2a8] sm:$0xff]
      %v4348 = vld [vmem:[%s7 + $0x2b0] sm:$0xff]
      %v4349 = vld [vmem:[%s7 + $0x2b8] sm:$0xff]
      %v4350 = vld [vmem:[%s7 + $0x2c0] sm:$0xff]
      %v4351 = vld [vmem:[%s7 + $0x2c8] sm:$0xff]
      %v4352 = vld [vmem:[%s7 + $0x2d0] sm:$0xff]
      %v4353 = vld [vmem:[%s7 + $0x2d8] sm:$0xff]
      %v4354 = vld [vmem:[%s7 + $0x2e0] sm:$0xff]
      %v4355 = vld [vmem:[%s7 + $0x2e8] sm:$0xff]
      %v4356 = vld [vmem:[%s7 + $0x2f0] sm:$0xff]
      %v4357 = vld [vmem:[%s7 + $0x2f8] sm:$0xff]
      %v4358 = vld [vmem:[%s7 + $0x300] sm:$0xff]
      %v4359 = vld [vmem:[%s7 + $0x308] sm:$0xff]
      %v4360 = vld [vmem:[%s7 + $0x310] sm:$0xff]
      %v4361 = vld [vmem:[%s7 + $0x318] sm:$0xff]
      %v4362 = vld [vmem:[%s7 + $0x320] sm:$0xff]
      %v4363 = vld [vmem:[%s7 + $0x328] sm:$0xff]
      %v4364 = vld [vmem:[%s7 + $0x330] sm:$0xff]
      %v4365 = vld [vmem:[%s7 + $0x338] sm:$0xff]
      %v4366 = vld [vmem:[%s7 + $0x340] sm:$0xff]
      %v4367 = vld [vmem:[%s7 + $0x348] sm:$0xff]
      %v4368 = vld [vmem:[%s7 + $0x350] sm:$0xff]
      %v4369 = vld [vmem:[%s7 + $0x358] sm:$0xff]
      %v4370 = vld [vmem:[%s7 + $0x360] sm:$0xff]
      %v4371 = vld [vmem:[%s7 + $0x368] sm:$0xff]
      %v4372 = vld [vmem:[%s7 + $0x370] sm:$0xff]
      %v4373 = vld [vmem:[%s7 + $0x378] sm:$0xff]
      %v4374 = vld [vmem:[%s7 + $0x380] sm:$0xff]
      %v4375 = vld [vmem:[%s7 + $0x388] sm:$0xff]
      %v4376 = vld [vmem:[%s7 + $0x390] sm:$0xff]
      %v4377 = vld [vmem:[%s7 + $0x398] sm:$0xff]
      %v4378 = vld [vmem:[%s7 + $0x3a0] sm:$0xff]
      %v4379 = vld [vmem:[%s7 + $0x3a8] sm:$0xff]
      %v4380 = vld [vmem:[%s7 + $0x3b0] sm:$0xff]
      %v4381 = vld [vmem:[%s7 + $0x3b8] sm:$0xff]
      %v4382 = vld [vmem:[%s7 + $0x3c0] sm:$0xff]
      %v4383 = vld [vmem:[%s7 + $0x3c8] sm:$0xff]
      %v4384 = vld [vmem:[%s7 + $0x3d0] sm:$0xff]
      %v4385 = vld [vmem:[%s7 + $0x3d8] sm:$0xff]
      %v4386 = vld [vmem:[%s7 + $0x3e0] sm:$0xff]
      %v4387 = vld [vmem:[%s7 + $0x3e8] sm:$0xff]
      %v4388 = vld [vmem:[%s7 + $0x3f0] sm:$0xff]
      %v4389 = vld [vmem:[%s7 + $0x3f8] sm:$0xff]
      %v4390 = vld [vmem:[%s8] sm:$0xf]
      %v4392 = vlaneseq
      %v4393 = vshrl.u32 %v4392, 7
      %v4394 = vsub.s32 0, %v4393
      %v4395 = vrot.slane %v4390, %v4394
      %v4396 = vlaneseq
      %v4397 = vshrl.u32 %v4396, 7
      %v4398 = vsub.s32 1, %v4397
      %v4399 = vrot.slane %v4390, %v4398
      %v4400 = vlaneseq
      %v4401 = vshrl.u32 %v4400, 7
      %v4402 = vsub.s32 2, %v4401
      %v4403 = vrot.slane %v4390, %v4402
      %v4404 = vlaneseq
      %v4405 = vshrl.u32 %v4404, 7
      %v4406 = vsub.s32 3, %v4405
      %v4407 = vrot.slane %v4390, %v4406
      %v4540 = vunpack.c.l.b16 %v4262
      %v4541 = vunpack.c.h.b16 %v4262
      %v4542 = vunpack.c.l.b16 %v4263
      %v4543 = vunpack.c.h.b16 %v4263
      %v4544 = vunpack.c.l.b16 %v4264
      %v4545 = vunpack.c.h.b16 %v4264
      %v4546 = vunpack.c.l.b16 %v4265
      %v4547 = vunpack.c.h.b16 %v4265
      %v4548 = vunpack.c.l.b16 %v4266
      %v4549 = vunpack.c.h.b16 %v4266
      %v4550 = vunpack.c.l.b16 %v4267
      %v4551 = vunpack.c.h.b16 %v4267
      %v4552 = vunpack.c.l.b16 %v4268
      %v4553 = vunpack.c.h.b16 %v4268
      %v4554 = vunpack.c.l.b16 %v4269
      %v4555 = vunpack.c.h.b16 %v4269
      %v4556 = vunpack.c.l.b16 %v4270
      %v4557 = vunpack.c.h.b16 %v4270
      %v4558 = vunpack.c.l.b16 %v4271
      %v4559 = vunpack.c.h.b16 %v4271
      %v4560 = vunpack.c.l.b16 %v4272
      %v4561 = vunpack.c.h.b16 %v4272
      %v4562 = vunpack.c.l.b16 %v4273
      %v4563 = vunpack.c.h.b16 %v4273
      %v4564 = vunpack.c.l.b16 %v4274
      %v4565 = vunpack.c.h.b16 %v4274
      %v4566 = vunpack.c.l.b16 %v4275
      %v4567 = vunpack.c.h.b16 %v4275
      %v4568 = vunpack.c.l.b16 %v4276
      %v4569 = vunpack.c.h.b16 %v4276
      %v4570 = vunpack.c.l.b16 %v4277
      %v4571 = vunpack.c.h.b16 %v4277
      %v4572 = vunpack.c.l.b16 %v4278
      %v4573 = vunpack.c.h.b16 %v4278
      %v4574 = vunpack.c.l.b16 %v4279
      %v4575 = vunpack.c.h.b16 %v4279
      %v4576 = vunpack.c.l.b16 %v4280
      %v4577 = vunpack.c.h.b16 %v4280
      %v4578 = vunpack.c.l.b16 %v4281
      %v4579 = vunpack.c.h.b16 %v4281
      %v4580 = vunpack.c.l.b16 %v4282
      %v4581 = vunpack.c.h.b16 %v4282
      %v4582 = vunpack.c.l.b16 %v4283
      %v4583 = vunpack.c.h.b16 %v4283
      %v4584 = vunpack.c.l.b16 %v4284
      %v4585 = vunpack.c.h.b16 %v4284
      %v4586 = vunpack.c.l.b16 %v4285
      %v4587 = vunpack.c.h.b16 %v4285
      %v4588 = vunpack.c.l.b16 %v4286
      %v4589 = vunpack.c.h.b16 %v4286
      %v4590 = vunpack.c.l.b16 %v4287
      %v4591 = vunpack.c.h.b16 %v4287
      %v4592 = vunpack.c.l.b16 %v4288
      %v4593 = vunpack.c.h.b16 %v4288
      %v4594 = vunpack.c.l.b16 %v4289
      %v4595 = vunpack.c.h.b16 %v4289
      %v4596 = vunpack.c.l.b16 %v4290
      %v4597 = vunpack.c.h.b16 %v4290
      %v4598 = vunpack.c.l.b16 %v4291
      %v4599 = vunpack.c.h.b16 %v4291
      %v4600 = vunpack.c.l.b16 %v4292
      %v4601 = vunpack.c.h.b16 %v4292
      %v4602 = vunpack.c.l.b16 %v4293
      %v4603 = vunpack.c.h.b16 %v4293
      %v4604 = vunpack.c.l.b16 %v4294
      %v4605 = vunpack.c.h.b16 %v4294
      %v4606 = vunpack.c.l.b16 %v4295
      %v4607 = vunpack.c.h.b16 %v4295
      %v4608 = vunpack.c.l.b16 %v4296
      %v4609 = vunpack.c.h.b16 %v4296
      %v4610 = vunpack.c.l.b16 %v4297
      %v4611 = vunpack.c.h.b16 %v4297
      %v4612 = vunpack.c.l.b16 %v4298
      %v4613 = vunpack.c.h.b16 %v4298
      %v4614 = vunpack.c.l.b16 %v4299
      %v4615 = vunpack.c.h.b16 %v4299
      %v4616 = vunpack.c.l.b16 %v4300
      %v4617 = vunpack.c.h.b16 %v4300
      %v4618 = vunpack.c.l.b16 %v4301
      %v4619 = vunpack.c.h.b16 %v4301
      %v4620 = vunpack.c.l.b16 %v4302
      %v4621 = vunpack.c.h.b16 %v4302
      %v4622 = vunpack.c.l.b16 %v4303
      %v4623 = vunpack.c.h.b16 %v4303
      %v4624 = vunpack.c.l.b16 %v4304
      %v4625 = vunpack.c.h.b16 %v4304
      %v4626 = vunpack.c.l.b16 %v4305
      %v4627 = vunpack.c.h.b16 %v4305
      %v4628 = vunpack.c.l.b16 %v4306
      %v4629 = vunpack.c.h.b16 %v4306
      %v4630 = vunpack.c.l.b16 %v4307
      %v4631 = vunpack.c.h.b16 %v4307
      %v4632 = vunpack.c.l.b16 %v4308
      %v4633 = vunpack.c.h.b16 %v4308
      %v4634 = vunpack.c.l.b16 %v4309
      %v4635 = vunpack.c.h.b16 %v4309
      %v4636 = vunpack.c.l.b16 %v4310
      %v4637 = vunpack.c.h.b16 %v4310
      %v4638 = vunpack.c.l.b16 %v4311
      %v4639 = vunpack.c.h.b16 %v4311
      %v4640 = vunpack.c.l.b16 %v4312
      %v4641 = vunpack.c.h.b16 %v4312
      %v4642 = vunpack.c.l.b16 %v4313
      %v4643 = vunpack.c.h.b16 %v4313
      %v4644 = vunpack.c.l.b16 %v4314
      %v4645 = vunpack.c.h.b16 %v4314
      %v4646 = vunpack.c.l.b16 %v4315
      %v4647 = vunpack.c.h.b16 %v4315
      %v4648 = vunpack.c.l.b16 %v4316
      %v4649 = vunpack.c.h.b16 %v4316
      %v4650 = vunpack.c.l.b16 %v4317
      %v4651 = vunpack.c.h.b16 %v4317
      %v4652 = vunpack.c.l.b16 %v4318
      %v4653 = vunpack.c.h.b16 %v4318
      %v4654 = vunpack.c.l.b16 %v4319
      %v4655 = vunpack.c.h.b16 %v4319
      %v4656 = vunpack.c.l.b16 %v4320
      %v4657 = vunpack.c.h.b16 %v4320
      %v4658 = vunpack.c.l.b16 %v4321
      %v4659 = vunpack.c.h.b16 %v4321
      %v4660 = vunpack.c.l.b16 %v4322
      %v4661 = vunpack.c.h.b16 %v4322
      %v4662 = vunpack.c.l.b16 %v4323
      %v4663 = vunpack.c.h.b16 %v4323
      %v4664 = vunpack.c.l.b16 %v4324
      %v4665 = vunpack.c.h.b16 %v4324
      %v4666 = vunpack.c.l.b16 %v4325
      %v4667 = vunpack.c.h.b16 %v4325
      %v4668 = vunpack.c.l.b16 %v4326
      %v4669 = vunpack.c.h.b16 %v4326
      %v4670 = vunpack.c.l.b16 %v4327
      %v4671 = vunpack.c.h.b16 %v4327
      %v4672 = vunpack.c.l.b16 %v4328
      %v4673 = vunpack.c.h.b16 %v4328
      %v4674 = vunpack.c.l.b16 %v4329
      %v4675 = vunpack.c.h.b16 %v4329
      %v4676 = vunpack.c.l.b16 %v4330
      %v4677 = vunpack.c.h.b16 %v4330
      %v4678 = vunpack.c.l.b16 %v4331
      %v4679 = vunpack.c.h.b16 %v4331
      %v4680 = vunpack.c.l.b16 %v4332
      %v4681 = vunpack.c.h.b16 %v4332
      %v4682 = vunpack.c.l.b16 %v4333
      %v4683 = vunpack.c.h.b16 %v4333
      %v4684 = vunpack.c.l.b16 %v4334
      %v4685 = vunpack.c.h.b16 %v4334
      %v4686 = vunpack.c.l.b16 %v4335
      %v4687 = vunpack.c.h.b16 %v4335
      %v4688 = vunpack.c.l.b16 %v4336
      %v4689 = vunpack.c.h.b16 %v4336
      %v4690 = vunpack.c.l.b16 %v4337
      %v4691 = vunpack.c.h.b16 %v4337
      %v4692 = vunpack.c.l.b16 %v4338
      %v4693 = vunpack.c.h.b16 %v4338
      %v4694 = vunpack.c.l.b16 %v4339
      %v4695 = vunpack.c.h.b16 %v4339
      %v4696 = vunpack.c.l.b16 %v4340
      %v4697 = vunpack.c.h.b16 %v4340
      %v4698 = vunpack.c.l.b16 %v4341
      %v4699 = vunpack.c.h.b16 %v4341
      %v4700 = vunpack.c.l.b16 %v4342
      %v4701 = vunpack.c.h.b16 %v4342
      %v4702 = vunpack.c.l.b16 %v4343
      %v4703 = vunpack.c.h.b16 %v4343
      %v4704 = vunpack.c.l.b16 %v4344
      %v4705 = vunpack.c.h.b16 %v4344
      %v4706 = vunpack.c.l.b16 %v4345
      %v4707 = vunpack.c.h.b16 %v4345
      %v4708 = vunpack.c.l.b16 %v4346
      %v4709 = vunpack.c.h.b16 %v4346
      %v4710 = vunpack.c.l.b16 %v4347
      %v4711 = vunpack.c.h.b16 %v4347
      %v4712 = vunpack.c.l.b16 %v4348
      %v4713 = vunpack.c.h.b16 %v4348
      %v4714 = vunpack.c.l.b16 %v4349
      %v4715 = vunpack.c.h.b16 %v4349
      %v4716 = vunpack.c.l.b16 %v4350
      %v4717 = vunpack.c.h.b16 %v4350
      %v4718 = vunpack.c.l.b16 %v4351
      %v4719 = vunpack.c.h.b16 %v4351
      %v4720 = vunpack.c.l.b16 %v4352
      %v4721 = vunpack.c.h.b16 %v4352
      %v4722 = vunpack.c.l.b16 %v4353
      %v4723 = vunpack.c.h.b16 %v4353
      %v4724 = vunpack.c.l.b16 %v4354
      %v4725 = vunpack.c.h.b16 %v4354
      %v4726 = vunpack.c.l.b16 %v4355
      %v4727 = vunpack.c.h.b16 %v4355
      %v4728 = vunpack.c.l.b16 %v4356
      %v4729 = vunpack.c.h.b16 %v4356
      %v4730 = vunpack.c.l.b16 %v4357
      %v4731 = vunpack.c.h.b16 %v4357
      %v4732 = vunpack.c.l.b16 %v4358
      %v4733 = vunpack.c.h.b16 %v4358
      %v4734 = vunpack.c.l.b16 %v4359
      %v4735 = vunpack.c.h.b16 %v4359
      %v4736 = vunpack.c.l.b16 %v4360
      %v4737 = vunpack.c.h.b16 %v4360
      %v4738 = vunpack.c.l.b16 %v4361
      %v4739 = vunpack.c.h.b16 %v4361
      %v4740 = vunpack.c.l.b16 %v4362
      %v4741 = vunpack.c.h.b16 %v4362
      %v4742 = vunpack.c.l.b16 %v4363
      %v4743 = vunpack.c.h.b16 %v4363
      %v4744 = vunpack.c.l.b16 %v4364
      %v4745 = vunpack.c.h.b16 %v4364
      %v4746 = vunpack.c.l.b16 %v4365
      %v4747 = vunpack.c.h.b16 %v4365
      %v4748 = vunpack.c.l.b16 %v4366
      %v4749 = vunpack.c.h.b16 %v4366
      %v4750 = vunpack.c.l.b16 %v4367
      %v4751 = vunpack.c.h.b16 %v4367
      %v4752 = vunpack.c.l.b16 %v4368
      %v4753 = vunpack.c.h.b16 %v4368
      %v4754 = vunpack.c.l.b16 %v4369
      %v4755 = vunpack.c.h.b16 %v4369
      %v4756 = vunpack.c.l.b16 %v4370
      %v4757 = vunpack.c.h.b16 %v4370
      %v4758 = vunpack.c.l.b16 %v4371
      %v4759 = vunpack.c.h.b16 %v4371
      %v4760 = vunpack.c.l.b16 %v4372
      %v4761 = vunpack.c.h.b16 %v4372
      %v4762 = vunpack.c.l.b16 %v4373
      %v4763 = vunpack.c.h.b16 %v4373
      %v4764 = vunpack.c.l.b16 %v4374
      %v4765 = vunpack.c.h.b16 %v4374
      %v4766 = vunpack.c.l.b16 %v4375
      %v4767 = vunpack.c.h.b16 %v4375
      %v4768 = vunpack.c.l.b16 %v4376
      %v4769 = vunpack.c.h.b16 %v4376
      %v4770 = vunpack.c.l.b16 %v4377
      %v4771 = vunpack.c.h.b16 %v4377
      %v4772 = vunpack.c.l.b16 %v4378
      %v4773 = vunpack.c.h.b16 %v4378
      %v4774 = vunpack.c.l.b16 %v4379
      %v4775 = vunpack.c.h.b16 %v4379
      %v4776 = vunpack.c.l.b16 %v4380
      %v4777 = vunpack.c.h.b16 %v4380
      %v4778 = vunpack.c.l.b16 %v4381
      %v4779 = vunpack.c.h.b16 %v4381
      %v4780 = vunpack.c.l.b16 %v4382
      %v4781 = vunpack.c.h.b16 %v4382
      %v4782 = vunpack.c.l.b16 %v4383
      %v4783 = vunpack.c.h.b16 %v4383
      %v4784 = vunpack.c.l.b16 %v4384
      %v4785 = vunpack.c.h.b16 %v4384
      %v4786 = vunpack.c.l.b16 %v4385
      %v4787 = vunpack.c.h.b16 %v4385
      %v4788 = vunpack.c.l.b16 %v4386
      %v4789 = vunpack.c.h.b16 %v4386
      %v4790 = vunpack.c.l.b16 %v4387
      %v4791 = vunpack.c.h.b16 %v4387
      %v4792 = vunpack.c.l.b16 %v4388
      %v4793 = vunpack.c.h.b16 %v4388
      %v4794 = vunpack.c.l.b16 %v4389
      %v4795 = vunpack.c.h.b16 %v4389
      %v4796 = vpack.c.b16 %v4544, %v4540
      %v4797 = vpack.c.b16 %v4545, %v4541
      %v4798 = vpack.c.b16 %v4546, %v4542
      %v4799 = vpack.c.b16 %v4547, %v4543
      %v4800 = vpack.c.b16 %v4552, %v4548
      %v4801 = vpack.c.b16 %v4553, %v4549
      %v4802 = vpack.c.b16 %v4554, %v4550
      %v4803 = vpack.c.b16 %v4555, %v4551
      %v4804 = vpack.c.b16 %v4560, %v4556
      %v4805 = vpack.c.b16 %v4561, %v4557
      %v4806 = vpack.c.b16 %v4562, %v4558
      %v4807 = vpack.c.b16 %v4563, %v4559
      %v4808 = vpack.c.b16 %v4568, %v4564
      %v4809 = vpack.c.b16 %v4569, %v4565
      %v4810 = vpack.c.b16 %v4570, %v4566
      %v4811 = vpack.c.b16 %v4571, %v4567
      %v4812 = vpack.c.b16 %v4576, %v4572
      %v4813 = vpack.c.b16 %v4577, %v4573
      %v4814 = vpack.c.b16 %v4578, %v4574
      %v4815 = vpack.c.b16 %v4579, %v4575
      %v4816 = vpack.c.b16 %v4584, %v4580
      %v4817 = vpack.c.b16 %v4585, %v4581
      %v4818 = vpack.c.b16 %v4586, %v4582
      %v4819 = vpack.c.b16 %v4587, %v4583
      %v4820 = vpack.c.b16 %v4592, %v4588
      %v4821 = vpack.c.b16 %v4593, %v4589
      %v4822 = vpack.c.b16 %v4594, %v4590
      %v4823 = vpack.c.b16 %v4595, %v4591
      %v4824 = vpack.c.b16 %v4600, %v4596
      %v4825 = vpack.c.b16 %v4601, %v4597
      %v4826 = vpack.c.b16 %v4602, %v4598
      %v4827 = vpack.c.b16 %v4603, %v4599
      %v4828 = vpack.c.b16 %v4608, %v4604
      %v4829 = vpack.c.b16 %v4609, %v4605
      %v4830 = vpack.c.b16 %v4610, %v4606
      %v4831 = vpack.c.b16 %v4611, %v4607
      %v4832 = vpack.c.b16 %v4616, %v4612
      %v4833 = vpack.c.b16 %v4617, %v4613
      %v4834 = vpack.c.b16 %v4618, %v4614
      %v4835 = vpack.c.b16 %v4619, %v4615
      %v4836 = vpack.c.b16 %v4624, %v4620
      %v4837 = vpack.c.b16 %v4625, %v4621
      %v4838 = vpack.c.b16 %v4626, %v4622
      %v4839 = vpack.c.b16 %v4627, %v4623
      %v4840 = vpack.c.b16 %v4632, %v4628
      %v4841 = vpack.c.b16 %v4633, %v4629
      %v4842 = vpack.c.b16 %v4634, %v4630
      %v4843 = vpack.c.b16 %v4635, %v4631
      %v4844 = vpack.c.b16 %v4640, %v4636
      %v4845 = vpack.c.b16 %v4641, %v4637
      %v4846 = vpack.c.b16 %v4642, %v4638
      %v4847 = vpack.c.b16 %v4643, %v4639
      %v4848 = vpack.c.b16 %v4648, %v4644
      %v4849 = vpack.c.b16 %v4649, %v4645
      %v4850 = vpack.c.b16 %v4650, %v4646
      %v4851 = vpack.c.b16 %v4651, %v4647
      %v4852 = vpack.c.b16 %v4656, %v4652
      %v4853 = vpack.c.b16 %v4657, %v4653
      %v4854 = vpack.c.b16 %v4658, %v4654
      %v4855 = vpack.c.b16 %v4659, %v4655
      %v4856 = vpack.c.b16 %v4664, %v4660
      %v4857 = vpack.c.b16 %v4665, %v4661
      %v4858 = vpack.c.b16 %v4666, %v4662
      %v4859 = vpack.c.b16 %v4667, %v4663
      %v4860 = vpack.c.b16 %v4672, %v4668
      %v4861 = vpack.c.b16 %v4673, %v4669
      %v4862 = vpack.c.b16 %v4674, %v4670
      %v4863 = vpack.c.b16 %v4675, %v4671
      %v4864 = vpack.c.b16 %v4680, %v4676
      %v4865 = vpack.c.b16 %v4681, %v4677
      %v4866 = vpack.c.b16 %v4682, %v4678
      %v4867 = vpack.c.b16 %v4683, %v4679
      %v4868 = vpack.c.b16 %v4688, %v4684
      %v4869 = vpack.c.b16 %v4689, %v4685
      %v4870 = vpack.c.b16 %v4690, %v4686
      %v4871 = vpack.c.b16 %v4691, %v4687
      %v4872 = vpack.c.b16 %v4696, %v4692
      %v4873 = vpack.c.b16 %v4697, %v4693
      %v4874 = vpack.c.b16 %v4698, %v4694
      %v4875 = vpack.c.b16 %v4699, %v4695
      %v4876 = vpack.c.b16 %v4704, %v4700
      %v4877 = vpack.c.b16 %v4705, %v4701
      %v4878 = vpack.c.b16 %v4706, %v4702
      %v4879 = vpack.c.b16 %v4707, %v4703
      %v4880 = vpack.c.b16 %v4712, %v4708
      %v4881 = vpack.c.b16 %v4713, %v4709
      %v4882 = vpack.c.b16 %v4714, %v4710
      %v4883 = vpack.c.b16 %v4715, %v4711
      %v4884 = vpack.c.b16 %v4720, %v4716
      %v4885 = vpack.c.b16 %v4721, %v4717
      %v4886 = vpack.c.b16 %v4722, %v4718
      %v4887 = vpack.c.b16 %v4723, %v4719
      %v4888 = vpack.c.b16 %v4728, %v4724
      %v4889 = vpack.c.b16 %v4729, %v4725
      %v4890 = vpack.c.b16 %v4730, %v4726
      %v4891 = vpack.c.b16 %v4731, %v4727
      %v4892 = vpack.c.b16 %v4736, %v4732
      %v4893 = vpack.c.b16 %v4737, %v4733
      %v4894 = vpack.c.b16 %v4738, %v4734
      %v4895 = vpack.c.b16 %v4739, %v4735
      %v4896 = vpack.c.b16 %v4744, %v4740
      %v4897 = vpack.c.b16 %v4745, %v4741
      %v4898 = vpack.c.b16 %v4746, %v4742
      %v4899 = vpack.c.b16 %v4747, %v4743
      %v4900 = vpack.c.b16 %v4752, %v4748
      %v4901 = vpack.c.b16 %v4753, %v4749
      %v4902 = vpack.c.b16 %v4754, %v4750
      %v4903 = vpack.c.b16 %v4755, %v4751
      %v4904 = vpack.c.b16 %v4760, %v4756
      %v4905 = vpack.c.b16 %v4761, %v4757
      %v4906 = vpack.c.b16 %v4762, %v4758
      %v4907 = vpack.c.b16 %v4763, %v4759
      %v4908 = vpack.c.b16 %v4768, %v4764
      %v4909 = vpack.c.b16 %v4769, %v4765
      %v4910 = vpack.c.b16 %v4770, %v4766
      %v4911 = vpack.c.b16 %v4771, %v4767
      %v4912 = vpack.c.b16 %v4776, %v4772
      %v4913 = vpack.c.b16 %v4777, %v4773
      %v4914 = vpack.c.b16 %v4778, %v4774
      %v4915 = vpack.c.b16 %v4779, %v4775
      %v4916 = vpack.c.b16 %v4784, %v4780
      %v4917 = vpack.c.b16 %v4785, %v4781
      %v4918 = vpack.c.b16 %v4786, %v4782
      %v4919 = vpack.c.b16 %v4787, %v4783
      %v4920 = vpack.c.b16 %v4792, %v4788
      %v4921 = vpack.c.b16 %v4793, %v4789
      %v4922 = vpack.c.b16 %v4794, %v4790
      %v4923 = vpack.c.b16 %v4795, %v4791
      %5052 = vmatprep.subr.bf16.mxu0 %v4797
      %5053 = vmatpush1.bf16.msra.mxu0 %v4796
      %5054 = vmatprep.subr.bf16.mxu0 %v4801
      %5055 = vmatpush1.bf16.msra.mxu0 %v4800
      %5056 = vmatprep.subr.bf16.mxu0 %v4805
      %5057 = vmatpush1.bf16.msra.mxu0 %v4804
      %5058 = vmatprep.subr.bf16.mxu0 %v4809
      %5059 = vmatpush1.bf16.msra.mxu0 %v4808
      %5060 = vmatprep.subr.bf16.mxu0 %v4813
      %5061 = vmatpush1.bf16.msra.mxu0 %v4812
      %5062 = vmatprep.subr.bf16.mxu0 %v4817
      %5063 = vmatpush1.bf16.msra.mxu0 %v4816
      %5064 = vmatprep.subr.bf16.mxu0 %v4821
      %5065 = vmatpush1.bf16.msra.mxu0 %v4820
      %5066 = vmatprep.subr.bf16.mxu0 %v4825
      %5067 = vmatpush1.bf16.msra.mxu0 %v4824
      %5068 = vmatprep.subr.bf16.mxu0 %v4829
      %5069 = vmatpush1.bf16.msra.mxu0 %v4828
      %5070 = vmatprep.subr.bf16.mxu0 %v4833
      %5071 = vmatpush1.bf16.msra.mxu0 %v4832
      %5072 = vmatprep.subr.bf16.mxu0 %v4837
      %5073 = vmatpush1.bf16.msra.mxu0 %v4836
      %5074 = vmatprep.subr.bf16.mxu0 %v4841
      %5075 = vmatpush1.bf16.msra.mxu0 %v4840
      %5076 = vmatprep.subr.bf16.mxu0 %v4845
      %5077 = vmatpush1.bf16.msra.mxu0 %v4844
      %5078 = vmatprep.subr.bf16.mxu0 %v4849
      %5079 = vmatpush1.bf16.msra.mxu0 %v4848
      %5080 = vmatprep.subr.bf16.mxu0 %v4853
      %5081 = vmatpush1.bf16.msra.mxu0 %v4852
      %5082 = vmatprep.subr.bf16.mxu0 %v4857
      %5083 = vmatpush1.bf16.msra.mxu0 %v4856
      %5084 = vmatprep.mubr.bf16.mxu0 %v4259
      %5085 = vmatmul.mubr.bf16.gmra.mrb[0].mxu0 %v4258
      %v5086 = vpop.f32.mrb[0].mxu0
      %v5087 = vadd.f32 %v4395, %v5086
      %v5088 = vpop.f32.mrb[0].mxu0
      %v5089 = vadd.f32 %v4399, %v5088
      %v5090 = vpop.f32.mrb[0].mxu0
      %v5091 = vadd.f32 %v4395, %v5090
      %v5092 = vpop.f32.mrb[0].mxu0
      %v5093 = vadd.f32 %v4399, %v5092
      %5094 = vdwg.mxu0
      %5095 = vmatprep.subr.bf16.mxu0 %v4861
      %5096 = vmatpush1.bf16.msra.mxu0 %v4860
      %5097 = vmatprep.subr.bf16.mxu0 %v4865
      %5098 = vmatpush1.bf16.msra.mxu0 %v4864
      %5099 = vmatprep.subr.bf16.mxu0 %v4869
      %5100 = vmatpush1.bf16.msra.mxu0 %v4868
      %5101 = vmatprep.subr.bf16.mxu0 %v4873
      %5102 = vmatpush1.bf16.msra.mxu0 %v4872
      %5103 = vmatprep.subr.bf16.mxu0 %v4877
      %5104 = vmatpush1.bf16.msra.mxu0 %v4876
      %5105 = vmatprep.subr.bf16.mxu0 %v4881
      %5106 = vmatpush1.bf16.msra.mxu0 %v4880
      %5107 = vmatprep.subr.bf16.mxu0 %v4885
      %5108 = vmatpush1.bf16.msra.mxu0 %v4884
      %5109 = vmatprep.subr.bf16.mxu0 %v4889
      %5110 = vmatpush1.bf16.msra.mxu0 %v4888
      %5111 = vmatprep.subr.bf16.mxu0 %v4893
      %5112 = vmatpush1.bf16.msra.mxu0 %v4892
      %5113 = vmatprep.subr.bf16.mxu0 %v4897
      %5114 = vmatpush1.bf16.msra.mxu0 %v4896
      %5115 = vmatprep.subr.bf16.mxu0 %v4901
      %5116 = vmatpush1.bf16.msra.mxu0 %v4900
      %5117 = vmatprep.subr.bf16.mxu0 %v4905
      %5118 = vmatpush1.bf16.msra.mxu0 %v4904
      %5119 = vmatprep.subr.bf16.mxu0 %v4909
      %5120 = vmatpush1.bf16.msra.mxu0 %v4908
      %5121 = vmatprep.subr.bf16.mxu0 %v4913
      %5122 = vmatpush1.bf16.msra.mxu0 %v4912
      %5123 = vmatprep.subr.bf16.mxu0 %v4917
      %5124 = vmatpush1.bf16.msra.mxu0 %v4916
      %5125 = vmatprep.subr.bf16.mxu0 %v4921
      %5126 = vmatpush1.bf16.msra.mxu0 %v4920
      %5127 = vmatprep.mubr.bf16.mxu0 %v4261
      %5128 = vmatmul.mubr.bf16.gmra.mrb[0].mxu0 %v4260
      %v5129 = vpop.f32.mrb[0].mxu0
      %v5130 = vadd.f32 %v5087, %v5129
      %v5131 = vpop.f32.mrb[0].mxu0
      %v5132 = vadd.f32 %v5089, %v5131
      %v5133 = vpop.f32.mrb[0].mxu0
      %v5134 = vadd.f32 %v5091, %v5133
      %v5135 = vpop.f32.mrb[0].mxu0
      %v5136 = vadd.f32 %v5093, %v5135
      %5137 = vdwg.mxu0
      %5138 = vmatprep.subr.bf16.mxu0 %v4799
      %5139 = vmatpush1.bf16.msra.mxu0 %v4798
      %5140 = vmatprep.subr.bf16.mxu0 %v4803
      %5141 = vmatpush1.bf16.msra.mxu0 %v4802
      %5142 = vmatprep.subr.bf16.mxu0 %v4807
      %5143 = vmatpush1.bf16.msra.mxu0 %v4806
      %5144 = vmatprep.subr.bf16.mxu0 %v4811
      %5145 = vmatpush1.bf16.msra.mxu0 %v4810
      %5146 = vmatprep.subr.bf16.mxu0 %v4815
      %5147 = vmatpush1.bf16.msra.mxu0 %v4814
      %5148 = vmatprep.subr.bf16.mxu0 %v4819
      %5149 = vmatpush1.bf16.msra.mxu0 %v4818
      %5150 = vmatprep.subr.bf16.mxu0 %v4823
      %5151 = vmatpush1.bf16.msra.mxu0 %v4822
      %5152 = vmatprep.subr.bf16.mxu0 %v4827
      %5153 = vmatpush1.bf16.msra.mxu0 %v4826
      %5154 = vmatprep.subr.bf16.mxu0 %v4831
      %5155 = vmatpush1.bf16.msra.mxu0 %v4830
      %5156 = vmatprep.subr.bf16.mxu0 %v4835
      %5157 = vmatpush1.bf16.msra.mxu0 %v4834
      %5158 = vmatprep.subr.bf16.mxu0 %v4839
      %5159 = vmatpush1.bf16.msra.mxu0 %v4838
      %5160 = vmatprep.subr.bf16.mxu0 %v4843
      %5161 = vmatpush1.bf16.msra.mxu0 %v4842
      %5162 = vmatprep.subr.bf16.mxu0 %v4847
      %5163 = vmatpush1.bf16.msra.mxu0 %v4846
      %5164 = vmatprep.subr.bf16.mxu0 %v4851
      %5165 = vmatpush1.bf16.msra.mxu0 %v4850
      %5166 = vmatprep.subr.bf16.mxu0 %v4855
      %5167 = vmatpush1.bf16.msra.mxu0 %v4854
      %5168 = vmatprep.subr.bf16.mxu0 %v4859
      %5169 = vmatpush1.bf16.msra.mxu0 %v4858
      %5170 = vmatprep.mubr.bf16.mxu0 %v4259
      %5171 = vmatmul.mubr.bf16.gmra.mrb[0].mxu0 %v4258
      %v5172 = vpop.f32.mrb[0].mxu0
      %v5173 = vadd.f32 %v4403, %v5172
      %v5174 = vpop.f32.mrb[0].mxu0
      %v5175 = vadd.f32 %v4407, %v5174
      %v5176 = vpop.f32.mrb[0].mxu0
      %v5177 = vadd.f32 %v4403, %v5176
      %v5178 = vpop.f32.mrb[0].mxu0
      %v5179 = vadd.f32 %v4407, %v5178
      %5180 = vdwg.mxu0
      %5181 = vmatprep.subr.bf16.mxu0 %v4863
      %5182 = vmatpush1.bf16.msra.mxu0 %v4862
      %5183 = vmatprep.subr.bf16.mxu0 %v4867
      %5184 = vmatpush1.bf16.msra.mxu0 %v4866
      %5185 = vmatprep.subr.bf16.mxu0 %v4871
      %5186 = vmatpush1.bf16.msra.mxu0 %v4870
      %5187 = vmatprep.subr.bf16.mxu0 %v4875
      %5188 = vmatpush1.bf16.msra.mxu0 %v4874
      %5189 = vmatprep.subr.bf16.mxu0 %v4879
      %5190 = vmatpush1.bf16.msra.mxu0 %v4878
      %5191 = vmatprep.subr.bf16.mxu0 %v4883
      %5192 = vmatpush1.bf16.msra.mxu0 %v4882
      %5193 = vmatprep.subr.bf16.mxu0 %v4887
      %5194 = vmatpush1.bf16.msra.mxu0 %v4886
      %5195 = vmatprep.subr.bf16.mxu0 %v4891
      %5196 = vmatpush1.bf16.msra.mxu0 %v4890
      %5197 = vmatprep.subr.bf16.mxu0 %v4895
      %5198 = vmatpush1.bf16.msra.mxu0 %v4894
      %5199 = vmatprep.subr.bf16.mxu0 %v4899
      %5200 = vmatpush1.bf16.msra.mxu0 %v4898
      %5201 = vmatprep.subr.bf16.mxu0 %v4903
      %5202 = vmatpush1.bf16.msra.mxu0 %v4902
      %5203 = vmatprep.subr.bf16.mxu0 %v4907
      %5204 = vmatpush1.bf16.msra.mxu0 %v4906
      %5205 = vmatprep.subr.bf16.mxu0 %v4911
      %5206 = vmatpush1.bf16.msra.mxu0 %v4910
      %5207 = vmatprep.subr.bf16.mxu0 %v4915
      %5208 = vmatpush1.bf16.msra.mxu0 %v4914
      %5209 = vmatprep.subr.bf16.mxu0 %v4919
      %5210 = vmatpush1.bf16.msra.mxu0 %v4918
      %5211 = vmatprep.subr.bf16.mxu0 %v4923
      %5212 = vmatpush1.bf16.msra.mxu0 %v4922
      %5213 = vmatprep.mubr.bf16.mxu0 %v4261
      %5214 = vmatmul.mubr.bf16.gmra.mrb[0].mxu0 %v4260
      %v5215 = vpop.f32.mrb[0].mxu0
      %v5216 = vadd.f32 %v5173, %v5215
      %v5217 = vpop.f32.mrb[0].mxu0
      %v5218 = vadd.f32 %v5175, %v5217
      %v5219 = vpop.f32.mrb[0].mxu0
      %v5220 = vadd.f32 %v5177, %v5219
      %v5221 = vpop.f32.mrb[0].mxu0
      %v5222 = vadd.f32 %v5179, %v5221
      %5223 = vdwg.mxu0
      %v5224 = vadd.f32 %v753, %v5130
      %v5225 = vadd.f32 %v755, %v5132
      %v5226 = vadd.f32 %v796, %v5216
      %v5227 = vadd.f32 %v798, %v5218
      %v5228 = vadd.f32 %v757, %v5134
      %v5229 = vadd.f32 %v759, %v5136
      %v5230 = vadd.f32 %v800, %v5220
      %v5231 = vadd.f32 %v802, %v5222
      %v5232 = vld [vmem:[%s9] sm:$0xf]
      %v5233 = vld [vmem:[%s10] sm:$0xf]
      %v5234 = vadd.f32 %v5224, %v5225
      %v5235 = vadd.f32 %v5234, %v5226
      %v5236 = vadd.f32 %v5235, %v5227
      %5237 = vadd.xlane.f32.xlu0 %v5236
      %v5238 = vpop.xlane.xlu0 %5237
      %v5239 = vadd.f32 %v5228, %v5229
      %v5240 = vadd.f32 %v5239, %v5230
      %v5241 = vadd.f32 %v5240, %v5231
      %5242 = vadd.xlane.f32.xlu0 %v5241
      %v5243 = vpop.xlane.xlu0 %5242
      %v5244 = vmul.f32 %v5238, %v816
      %v5245 = vmul.f32 %v5243, %v816
      %v5246 = vsub.f32 %v5224, %v5244
      %v5247 = vsub.f32 %v5225, %v5244
      %v5248 = vsub.f32 %v5226, %v5244
      %v5249 = vsub.f32 %v5227, %v5244
      %v5250 = vsub.f32 %v5228, %v5245
      %v5251 = vsub.f32 %v5229, %v5245
      %v5252 = vsub.f32 %v5230, %v5245
      %v5253 = vsub.f32 %v5231, %v5245
      %v5254 = vmul.f32 %v5246, %v5246
      %v5255 = vmul.f32 %v5247, %v5247
      %v5256 = vmul.f32 %v5248, %v5248
      %v5257 = vmul.f32 %v5249, %v5249
      %v5258 = vmul.f32 %v5250, %v5250
      %v5259 = vmul.f32 %v5251, %v5251
      %v5260 = vmul.f32 %v5252, %v5252
      %v5261 = vmul.f32 %v5253, %v5253
      %v5262 = vadd.f32 %v5254, %v5255
      %v5263 = vadd.f32 %v5262, %v5256
      %v5264 = vadd.f32 %v5263, %v5257
      %5265 = vadd.xlane.f32.xlu0 %v5264
      %v5266 = vpop.xlane.xlu0 %5265
      %v5267 = vadd.f32 %v5258, %v5259
      %v5268 = vadd.f32 %v5267, %v5260
      %v5269 = vadd.f32 %v5268, %v5261
      %5270 = vadd.xlane.f32.xlu0 %v5269
      %v5271 = vpop.xlane.xlu0 %5270
      %v5272 = vmul.f32 %v5266, %v816
      %v5273 = vmul.f32 %v5271, %v816
      %v5274 = vadd.f32 %v5272, 1e-05
      %v5275 = vadd.f32 %v5273, 1e-05
      %v5276 = vrsqrt.pop %v5274
      %v5277 = vrsqrt.pop %v5275
      %v5278 = vmul.f32 %v5246, %v5276
      %v5279 = vmul.f32 %v5247, %v5276
      %v5280 = vmul.f32 %v5248, %v5276
      %v5281 = vmul.f32 %v5249, %v5276
      %v5282 = vmul.f32 %v5250, %v5277
      %v5283 = vmul.f32 %v5251, %v5277
      %v5284 = vmul.f32 %v5252, %v5277
      %v5285 = vmul.f32 %v5253, %v5277
      %v5287 = vlaneseq
      %v5288 = vshrl.u32 %v5287, 7
      %v5289 = vsub.s32 0, %v5288
      %v5290 = vrot.slane %v5232, %v5289
      %v5291 = vlaneseq
      %v5292 = vshrl.u32 %v5291, 7
      %v5293 = vsub.s32 1, %v5292
      %v5294 = vrot.slane %v5232, %v5293
      %v5295 = vlaneseq
      %v5296 = vshrl.u32 %v5295, 7
      %v5297 = vsub.s32 2, %v5296
      %v5298 = vrot.slane %v5232, %v5297
      %v5299 = vlaneseq
      %v5300 = vshrl.u32 %v5299, 7
      %v5301 = vsub.s32 3, %v5300
      %v5302 = vrot.slane %v5232, %v5301
      %v5307 = vmul.f32 %v5278, %v5290
      %v5308 = vmul.f32 %v5279, %v5294
      %v5309 = vmul.f32 %v5280, %v5298
      %v5310 = vmul.f32 %v5281, %v5302
      %v5311 = vmul.f32 %v5282, %v5290
      %v5312 = vmul.f32 %v5283, %v5294
      %v5313 = vmul.f32 %v5284, %v5298
      %v5314 = vmul.f32 %v5285, %v5302
      %v5316 = vlaneseq
      %v5317 = vshrl.u32 %v5316, 7
      %v5318 = vsub.s32 0, %v5317
      %v5319 = vrot.slane %v5233, %v5318
      %v5320 = vlaneseq
      %v5321 = vshrl.u32 %v5320, 7
      %v5322 = vsub.s32 1, %v5321
      %v5323 = vrot.slane %v5233, %v5322
      %v5324 = vlaneseq
      %v5325 = vshrl.u32 %v5324, 7
      %v5326 = vsub.s32 2, %v5325
      %v5327 = vrot.slane %v5233, %v5326
      %v5328 = vlaneseq
      %v5329 = vshrl.u32 %v5328, 7
      %v5330 = vsub.s32 3, %v5329
      %v5331 = vrot.slane %v5233, %v5330
      %v5336 = vadd.f32 %v5307, %v5319
      %v5337 = vadd.f32 %v5308, %v5323
      %v5338 = vadd.f32 %v5309, %v5327
      %v5339 = vadd.f32 %v5310, %v5331
      %v5340 = vadd.f32 %v5311, %v5319
      %v5341 = vadd.f32 %v5312, %v5323
      %v5342 = vadd.f32 %v5313, %v5327
      %v5343 = vadd.f32 %v5314, %v5331
      %v5344 = vpack.c.bf16 %v5340, %v5336
      %v5345 = vpack.c.bf16 %v5341, %v5337
      %v5346 = vpack.c.bf16 %v5342, %v5338
      %v5347 = vpack.c.bf16 %v5343, %v5339
      %v5348 = vld [vmem:[%s11] sm:$0xff]
      %v5349 = vld [vmem:[%s11 + $0x8] sm:$0xff]
      %v5350 = vld [vmem:[%s11 + $0x10] sm:$0xff]
      %v5351 = vld [vmem:[%s11 + $0x18] sm:$0xff]
      %v5352 = vld [vmem:[%s11 + $0x20] sm:$0xff]
      %v5353 = vld [vmem:[%s11 + $0x28] sm:$0xff]
      %v5354 = vld [vmem:[%s11 + $0x30] sm:$0xff]
      %v5355 = vld [vmem:[%s11 + $0x38] sm:$0xff]
      %v5356 = vld [vmem:[%s11 + $0x40] sm:$0xff]
      %v5357 = vld [vmem:[%s11 + $0x48] sm:$0xff]
      %v5358 = vld [vmem:[%s11 + $0x50] sm:$0xff]
      %v5359 = vld [vmem:[%s11 + $0x58] sm:$0xff]
      %v5360 = vld [vmem:[%s11 + $0x60] sm:$0xff]
      %v5361 = vld [vmem:[%s11 + $0x68] sm:$0xff]
      %v5362 = vld [vmem:[%s11 + $0x70] sm:$0xff]
      %v5363 = vld [vmem:[%s11 + $0x78] sm:$0xff]
      %v5364 = vld [vmem:[%s11 + $0x80] sm:$0xff]
      %v5365 = vld [vmem:[%s11 + $0x88] sm:$0xff]
      %v5366 = vld [vmem:[%s11 + $0x90] sm:$0xff]
      %v5367 = vld [vmem:[%s11 + $0x98] sm:$0xff]
      %v5368 = vld [vmem:[%s11 + $0xa0] sm:$0xff]
      %v5369 = vld [vmem:[%s11 + $0xa8] sm:$0xff]
      %v5370 = vld [vmem:[%s11 + $0xb0] sm:$0xff]
      %v5371 = vld [vmem:[%s11 + $0xb8] sm:$0xff]
      %v5372 = vld [vmem:[%s11 + $0xc0] sm:$0xff]
      %v5373 = vld [vmem:[%s11 + $0xc8] sm:$0xff]
      %v5374 = vld [vmem:[%s11 + $0xd0] sm:$0xff]
      %v5375 = vld [vmem:[%s11 + $0xd8] sm:$0xff]
      %v5376 = vld [vmem:[%s11 + $0xe0] sm:$0xff]
      %v5377 = vld [vmem:[%s11 + $0xe8] sm:$0xff]
      %v5378 = vld [vmem:[%s11 + $0xf0] sm:$0xff]
      %v5379 = vld [vmem:[%s11 + $0xf8] sm:$0xff]
      %v5380 = vld [vmem:[%s11 + $0x100] sm:$0xff]
      %v5381 = vld [vmem:[%s11 + $0x108] sm:$0xff]
      %v5382 = vld [vmem:[%s11 + $0x110] sm:$0xff]
      %v5383 = vld [vmem:[%s11 + $0x118] sm:$0xff]
      %v5384 = vld [vmem:[%s11 + $0x120] sm:$0xff]
      %v5385 = vld [vmem:[%s11 + $0x128] sm:$0xff]
      %v5386 = vld [vmem:[%s11 + $0x130] sm:$0xff]
      %v5387 = vld [vmem:[%s11 + $0x138] sm:$0xff]
      %v5388 = vld [vmem:[%s11 + $0x140] sm:$0xff]
      %v5389 = vld [vmem:[%s11 + $0x148] sm:$0xff]
      %v5390 = vld [vmem:[%s11 + $0x150] sm:$0xff]
      %v5391 = vld [vmem:[%s11 + $0x158] sm:$0xff]
      %v5392 = vld [vmem:[%s11 + $0x160] sm:$0xff]
      %v5393 = vld [vmem:[%s11 + $0x168] sm:$0xff]
      %v5394 = vld [vmem:[%s11 + $0x170] sm:$0xff]
      %v5395 = vld [vmem:[%s11 + $0x178] sm:$0xff]
      %v5396 = vld [vmem:[%s11 + $0x180] sm:$0xff]
      %v5397 = vld [vmem:[%s11 + $0x188] sm:$0xff]
      %v5398 = vld [vmem:[%s11 + $0x190] sm:$0xff]
      %v5399 = vld [vmem:[%s11 + $0x198] sm:$0xff]
      %v5400 = vld [vmem:[%s11 + $0x1a0] sm:$0xff]
      %v5401 = vld [vmem:[%s11 + $0x1a8] sm:$0xff]
      %v5402 = vld [vmem:[%s11 + $0x1b0] sm:$0xff]
      %v5403 = vld [vmem:[%s11 + $0x1b8] sm:$0xff]
      %v5404 = vld [vmem:[%s11 + $0x1c0] sm:$0xff]
      %v5405 = vld [vmem:[%s11 + $0x1c8] sm:$0xff]
      %v5406 = vld [vmem:[%s11 + $0x1d0] sm:$0xff]
      %v5407 = vld [vmem:[%s11 + $0x1d8] sm:$0xff]
      %v5408 = vld [vmem:[%s11 + $0x1e0] sm:$0xff]
      %v5409 = vld [vmem:[%s11 + $0x1e8] sm:$0xff]
      %v5410 = vld [vmem:[%s11 + $0x1f0] sm:$0xff]
      %v5411 = vld [vmem:[%s11 + $0x1f8] sm:$0xff]
      %v5412 = vld [vmem:[%s11 + $0x200] sm:$0xff]
      %v5413 = vld [vmem:[%s11 + $0x208] sm:$0xff]
      %v5414 = vld [vmem:[%s11 + $0x210] sm:$0xff]
      %v5415 = vld [vmem:[%s11 + $0x218] sm:$0xff]
      %v5416 = vld [vmem:[%s11 + $0x220] sm:$0xff]
      %v5417 = vld [vmem:[%s11 + $0x228] sm:$0xff]
      %v5418 = vld [vmem:[%s11 + $0x230] sm:$0xff]
      %v5419 = vld [vmem:[%s11 + $0x238] sm:$0xff]
      %v5420 = vld [vmem:[%s11 + $0x240] sm:$0xff]
      %v5421 = vld [vmem:[%s11 + $0x248] sm:$0xff]
      %v5422 = vld [vmem:[%s11 + $0x250] sm:$0xff]
      %v5423 = vld [vmem:[%s11 + $0x258] sm:$0xff]
      %v5424 = vld [vmem:[%s11 + $0x260] sm:$0xff]
      %v5425 = vld [vmem:[%s11 + $0x268] sm:$0xff]
      %v5426 = vld [vmem:[%s11 + $0x270] sm:$0xff]
      %v5427 = vld [vmem:[%s11 + $0x278] sm:$0xff]
      %v5428 = vld [vmem:[%s11 + $0x280] sm:$0xff]
      %v5429 = vld [vmem:[%s11 + $0x288] sm:$0xff]
      %v5430 = vld [vmem:[%s11 + $0x290] sm:$0xff]
      %v5431 = vld [vmem:[%s11 + $0x298] sm:$0xff]
      %v5432 = vld [vmem:[%s11 + $0x2a0] sm:$0xff]
      %v5433 = vld [vmem:[%s11 + $0x2a8] sm:$0xff]
      %v5434 = vld [vmem:[%s11 + $0x2b0] sm:$0xff]
      %v5435 = vld [vmem:[%s11 + $0x2b8] sm:$0xff]
      %v5436 = vld [vmem:[%s11 + $0x2c0] sm:$0xff]
      %v5437 = vld [vmem:[%s11 + $0x2c8] sm:$0xff]
      %v5438 = vld [vmem:[%s11 + $0x2d0] sm:$0xff]
      %v5439 = vld [vmem:[%s11 + $0x2d8] sm:$0xff]
      %v5440 = vld [vmem:[%s11 + $0x2e0] sm:$0xff]
      %v5441 = vld [vmem:[%s11 + $0x2e8] sm:$0xff]
      %v5442 = vld [vmem:[%s11 + $0x2f0] sm:$0xff]
      %v5443 = vld [vmem:[%s11 + $0x2f8] sm:$0xff]
      %v5444 = vld [vmem:[%s11 + $0x300] sm:$0xff]
      %v5445 = vld [vmem:[%s11 + $0x308] sm:$0xff]
      %v5446 = vld [vmem:[%s11 + $0x310] sm:$0xff]
      %v5447 = vld [vmem:[%s11 + $0x318] sm:$0xff]
      %v5448 = vld [vmem:[%s11 + $0x320] sm:$0xff]
      %v5449 = vld [vmem:[%s11 + $0x328] sm:$0xff]
      %v5450 = vld [vmem:[%s11 + $0x330] sm:$0xff]
      %v5451 = vld [vmem:[%s11 + $0x338] sm:$0xff]
      %v5452 = vld [vmem:[%s11 + $0x340] sm:$0xff]
      %v5453 = vld [vmem:[%s11 + $0x348] sm:$0xff]
      %v5454 = vld [vmem:[%s11 + $0x350] sm:$0xff]
      %v5455 = vld [vmem:[%s11 + $0x358] sm:$0xff]
      %v5456 = vld [vmem:[%s11 + $0x360] sm:$0xff]
      %v5457 = vld [vmem:[%s11 + $0x368] sm:$0xff]
      %v5458 = vld [vmem:[%s11 + $0x370] sm:$0xff]
      %v5459 = vld [vmem:[%s11 + $0x378] sm:$0xff]
      %v5460 = vld [vmem:[%s11 + $0x380] sm:$0xff]
      %v5461 = vld [vmem:[%s11 + $0x388] sm:$0xff]
      %v5462 = vld [vmem:[%s11 + $0x390] sm:$0xff]
      %v5463 = vld [vmem:[%s11 + $0x398] sm:$0xff]
      %v5464 = vld [vmem:[%s11 + $0x3a0] sm:$0xff]
      %v5465 = vld [vmem:[%s11 + $0x3a8] sm:$0xff]
      %v5466 = vld [vmem:[%s11 + $0x3b0] sm:$0xff]
      %v5467 = vld [vmem:[%s11 + $0x3b8] sm:$0xff]
      %v5468 = vld [vmem:[%s11 + $0x3c0] sm:$0xff]
      %v5469 = vld [vmem:[%s11 + $0x3c8] sm:$0xff]
      %v5470 = vld [vmem:[%s11 + $0x3d0] sm:$0xff]
      %v5471 = vld [vmem:[%s11 + $0x3d8] sm:$0xff]
      %v5472 = vld [vmem:[%s11 + $0x3e0] sm:$0xff]
      %v5473 = vld [vmem:[%s11 + $0x3e8] sm:$0xff]
      %v5474 = vld [vmem:[%s11 + $0x3f0] sm:$0xff]
      %v5475 = vld [vmem:[%s11 + $0x3f8] sm:$0xff]
      %v5476 = vld [vmem:[%s11 + $0x400] sm:$0xff]
      %v5477 = vld [vmem:[%s11 + $0x408] sm:$0xff]
      %v5478 = vld [vmem:[%s11 + $0x410] sm:$0xff]
      %v5479 = vld [vmem:[%s11 + $0x418] sm:$0xff]
      %v5480 = vld [vmem:[%s11 + $0x420] sm:$0xff]
      %v5481 = vld [vmem:[%s11 + $0x428] sm:$0xff]
      %v5482 = vld [vmem:[%s11 + $0x430] sm:$0xff]
      %v5483 = vld [vmem:[%s11 + $0x438] sm:$0xff]
      %v5484 = vld [vmem:[%s11 + $0x440] sm:$0xff]
      %v5485 = vld [vmem:[%s11 + $0x448] sm:$0xff]
      %v5486 = vld [vmem:[%s11 + $0x450] sm:$0xff]
      %v5487 = vld [vmem:[%s11 + $0x458] sm:$0xff]
      %v5488 = vld [vmem:[%s11 + $0x460] sm:$0xff]
      %v5489 = vld [vmem:[%s11 + $0x468] sm:$0xff]
      %v5490 = vld [vmem:[%s11 + $0x470] sm:$0xff]
      %v5491 = vld [vmem:[%s11 + $0x478] sm:$0xff]
      %v5492 = vld [vmem:[%s11 + $0x480] sm:$0xff]
      %v5493 = vld [vmem:[%s11 + $0x488] sm:$0xff]
      %v5494 = vld [vmem:[%s11 + $0x490] sm:$0xff]
      %v5495 = vld [vmem:[%s11 + $0x498] sm:$0xff]
      %v5496 = vld [vmem:[%s11 + $0x4a0] sm:$0xff]
      %v5497 = vld [vmem:[%s11 + $0x4a8] sm:$0xff]
      %v5498 = vld [vmem:[%s11 + $0x4b0] sm:$0xff]
      %v5499 = vld [vmem:[%s11 + $0x4b8] sm:$0xff]
      %v5500 = vld [vmem:[%s11 + $0x4c0] sm:$0xff]
      %v5501 = vld [vmem:[%s11 + $0x4c8] sm:$0xff]
      %v5502 = vld [vmem:[%s11 + $0x4d0] sm:$0xff]
      %v5503 = vld [vmem:[%s11 + $0x4d8] sm:$0xff]
      %v5504 = vld [vmem:[%s11 + $0x4e0] sm:$0xff]
      %v5505 = vld [vmem:[%s11 + $0x4e8] sm:$0xff]
      %v5506 = vld [vmem:[%s11 + $0x4f0] sm:$0xff]
      %v5507 = vld [vmem:[%s11 + $0x4f8] sm:$0xff]
      %v5508 = vld [vmem:[%s11 + $0x500] sm:$0xff]
      %v5509 = vld [vmem:[%s11 + $0x508] sm:$0xff]
      %v5510 = vld [vmem:[%s11 + $0x510] sm:$0xff]
      %v5511 = vld [vmem:[%s11 + $0x518] sm:$0xff]
      %v5512 = vld [vmem:[%s11 + $0x520] sm:$0xff]
      %v5513 = vld [vmem:[%s11 + $0x528] sm:$0xff]
      %v5514 = vld [vmem:[%s11 + $0x530] sm:$0xff]
      %v5515 = vld [vmem:[%s11 + $0x538] sm:$0xff]
      %v5516 = vld [vmem:[%s11 + $0x540] sm:$0xff]
      %v5517 = vld [vmem:[%s11 + $0x548] sm:$0xff]
      %v5518 = vld [vmem:[%s11 + $0x550] sm:$0xff]
      %v5519 = vld [vmem:[%s11 + $0x558] sm:$0xff]
      %v5520 = vld [vmem:[%s11 + $0x560] sm:$0xff]
      %v5521 = vld [vmem:[%s11 + $0x568] sm:$0xff]
      %v5522 = vld [vmem:[%s11 + $0x570] sm:$0xff]
      %v5523 = vld [vmem:[%s11 + $0x578] sm:$0xff]
      %v5524 = vld [vmem:[%s11 + $0x580] sm:$0xff]
      %v5525 = vld [vmem:[%s11 + $0x588] sm:$0xff]
      %v5526 = vld [vmem:[%s11 + $0x590] sm:$0xff]
      %v5527 = vld [vmem:[%s11 + $0x598] sm:$0xff]
      %v5528 = vld [vmem:[%s11 + $0x5a0] sm:$0xff]
      %v5529 = vld [vmem:[%s11 + $0x5a8] sm:$0xff]
      %v5530 = vld [vmem:[%s11 + $0x5b0] sm:$0xff]
      %v5531 = vld [vmem:[%s11 + $0x5b8] sm:$0xff]
      %v5532 = vld [vmem:[%s11 + $0x5c0] sm:$0xff]
      %v5533 = vld [vmem:[%s11 + $0x5c8] sm:$0xff]
      %v5534 = vld [vmem:[%s11 + $0x5d0] sm:$0xff]
      %v5535 = vld [vmem:[%s11 + $0x5d8] sm:$0xff]
      %v5536 = vld [vmem:[%s11 + $0x5e0] sm:$0xff]
      %v5537 = vld [vmem:[%s11 + $0x5e8] sm:$0xff]
      %v5538 = vld [vmem:[%s11 + $0x5f0] sm:$0xff]
      %v5539 = vld [vmem:[%s11 + $0x5f8] sm:$0xff]
      %v5540 = vld [vmem:[%s11 + $0x600] sm:$0xff]
      %v5541 = vld [vmem:[%s11 + $0x608] sm:$0xff]
      %v5542 = vld [vmem:[%s11 + $0x610] sm:$0xff]
      %v5543 = vld [vmem:[%s11 + $0x618] sm:$0xff]
      %v5544 = vld [vmem:[%s11 + $0x620] sm:$0xff]
      %v5545 = vld [vmem:[%s11 + $0x628] sm:$0xff]
      %v5546 = vld [vmem:[%s11 + $0x630] sm:$0xff]
      %v5547 = vld [vmem:[%s11 + $0x638] sm:$0xff]
      %v5548 = vld [vmem:[%s11 + $0x640] sm:$0xff]
      %v5549 = vld [vmem:[%s11 + $0x648] sm:$0xff]
      %v5550 = vld [vmem:[%s11 + $0x650] sm:$0xff]
      %v5551 = vld [vmem:[%s11 + $0x658] sm:$0xff]
      %v5552 = vld [vmem:[%s11 + $0x660] sm:$0xff]
      %v5553 = vld [vmem:[%s11 + $0x668] sm:$0xff]
      %v5554 = vld [vmem:[%s11 + $0x670] sm:$0xff]
      %v5555 = vld [vmem:[%s11 + $0x678] sm:$0xff]
      %v5556 = vld [vmem:[%s11 + $0x680] sm:$0xff]
      %v5557 = vld [vmem:[%s11 + $0x688] sm:$0xff]
      %v5558 = vld [vmem:[%s11 + $0x690] sm:$0xff]
      %v5559 = vld [vmem:[%s11 + $0x698] sm:$0xff]
      %v5560 = vld [vmem:[%s11 + $0x6a0] sm:$0xff]
      %v5561 = vld [vmem:[%s11 + $0x6a8] sm:$0xff]
      %v5562 = vld [vmem:[%s11 + $0x6b0] sm:$0xff]
      %v5563 = vld [vmem:[%s11 + $0x6b8] sm:$0xff]
      %v5564 = vld [vmem:[%s11 + $0x6c0] sm:$0xff]
      %v5565 = vld [vmem:[%s11 + $0x6c8] sm:$0xff]
      %v5566 = vld [vmem:[%s11 + $0x6d0] sm:$0xff]
      %v5567 = vld [vmem:[%s11 + $0x6d8] sm:$0xff]
      %v5568 = vld [vmem:[%s11 + $0x6e0] sm:$0xff]
      %v5569 = vld [vmem:[%s11 + $0x6e8] sm:$0xff]
      %v5570 = vld [vmem:[%s11 + $0x6f0] sm:$0xff]
      %v5571 = vld [vmem:[%s11 + $0x6f8] sm:$0xff]
      %v5572 = vld [vmem:[%s11 + $0x700] sm:$0xff]
      %v5573 = vld [vmem:[%s11 + $0x708] sm:$0xff]
      %v5574 = vld [vmem:[%s11 + $0x710] sm:$0xff]
      %v5575 = vld [vmem:[%s11 + $0x718] sm:$0xff]
      %v5576 = vld [vmem:[%s11 + $0x720] sm:$0xff]
      %v5577 = vld [vmem:[%s11 + $0x728] sm:$0xff]
      %v5578 = vld [vmem:[%s11 + $0x730] sm:$0xff]
      %v5579 = vld [vmem:[%s11 + $0x738] sm:$0xff]
      %v5580 = vld [vmem:[%s11 + $0x740] sm:$0xff]
      %v5581 = vld [vmem:[%s11 + $0x748] sm:$0xff]
      %v5582 = vld [vmem:[%s11 + $0x750] sm:$0xff]
      %v5583 = vld [vmem:[%s11 + $0x758] sm:$0xff]
      %v5584 = vld [vmem:[%s11 + $0x760] sm:$0xff]
      %v5585 = vld [vmem:[%s11 + $0x768] sm:$0xff]
      %v5586 = vld [vmem:[%s11 + $0x770] sm:$0xff]
      %v5587 = vld [vmem:[%s11 + $0x778] sm:$0xff]
      %v5588 = vld [vmem:[%s11 + $0x780] sm:$0xff]
      %v5589 = vld [vmem:[%s11 + $0x788] sm:$0xff]
      %v5590 = vld [vmem:[%s11 + $0x790] sm:$0xff]
      %v5591 = vld [vmem:[%s11 + $0x798] sm:$0xff]
      %v5592 = vld [vmem:[%s11 + $0x7a0] sm:$0xff]
      %v5593 = vld [vmem:[%s11 + $0x7a8] sm:$0xff]
      %v5594 = vld [vmem:[%s11 + $0x7b0] sm:$0xff]
      %v5595 = vld [vmem:[%s11 + $0x7b8] sm:$0xff]
      %v5596 = vld [vmem:[%s11 + $0x7c0] sm:$0xff]
      %v5597 = vld [vmem:[%s11 + $0x7c8] sm:$0xff]
      %v5598 = vld [vmem:[%s11 + $0x7d0] sm:$0xff]
      %v5599 = vld [vmem:[%s11 + $0x7d8] sm:$0xff]
      %v5600 = vld [vmem:[%s11 + $0x7e0] sm:$0xff]
      %v5601 = vld [vmem:[%s11 + $0x7e8] sm:$0xff]
      %v5602 = vld [vmem:[%s11 + $0x7f0] sm:$0xff]
      %v5603 = vld [vmem:[%s11 + $0x7f8] sm:$0xff]
      %v5604 = vld [vmem:[%s12] sm:$0xff]
      %v5606 = vlaneseq
      %v5607 = vshrl.u32 %v5606, 7
      %v5608 = vsub.s32 0, %v5607
      %v5609 = vrot.slane %v5604, %v5608
      %v5610 = vlaneseq
      %v5611 = vshrl.u32 %v5610, 7
      %v5612 = vsub.s32 1, %v5611
      %v5613 = vrot.slane %v5604, %v5612
      %v5614 = vlaneseq
      %v5615 = vshrl.u32 %v5614, 7
      %v5616 = vsub.s32 2, %v5615
      %v5617 = vrot.slane %v5604, %v5616
      %v5618 = vlaneseq
      %v5619 = vshrl.u32 %v5618, 7
      %v5620 = vsub.s32 3, %v5619
      %v5621 = vrot.slane %v5604, %v5620
      %v5622 = vlaneseq
      %v5623 = vshrl.u32 %v5622, 7
      %v5624 = vsub.s32 4, %v5623
      %v5625 = vrot.slane %v5604, %v5624
      %v5626 = vlaneseq
      %v5627 = vshrl.u32 %v5626, 7
      %v5628 = vsub.s32 5, %v5627
      %v5629 = vrot.slane %v5604, %v5628
      %v5630 = vlaneseq
      %v5631 = vshrl.u32 %v5630, 7
      %v5632 = vsub.s32 6, %v5631
      %v5633 = vrot.slane %v5604, %v5632
      %v5634 = vlaneseq
      %v5635 = vshrl.u32 %v5634, 7
      %v5636 = vsub.s32 7, %v5635
      %v5637 = vrot.slane %v5604, %v5636
      %v5902 = vunpack.c.l.b16 %v5348
      %v5903 = vunpack.c.h.b16 %v5348
      %v5904 = vunpack.c.l.b16 %v5349
      %v5905 = vunpack.c.h.b16 %v5349
      %v5906 = vunpack.c.l.b16 %v5350
      %v5907 = vunpack.c.h.b16 %v5350
      %v5908 = vunpack.c.l.b16 %v5351
      %v5909 = vunpack.c.h.b16 %v5351
      %v5910 = vunpack.c.l.b16 %v5352
      %v5911 = vunpack.c.h.b16 %v5352
      %v5912 = vunpack.c.l.b16 %v5353
      %v5913 = vunpack.c.h.b16 %v5353
      %v5914 = vunpack.c.l.b16 %v5354
      %v5915 = vunpack.c.h.b16 %v5354
      %v5916 = vunpack.c.l.b16 %v5355
      %v5917 = vunpack.c.h.b16 %v5355
      %v5918 = vunpack.c.l.b16 %v5356
      %v5919 = vunpack.c.h.b16 %v5356
      %v5920 = vunpack.c.l.b16 %v5357
      %v5921 = vunpack.c.h.b16 %v5357
      %v5922 = vunpack.c.l.b16 %v5358
      %v5923 = vunpack.c.h.b16 %v5358
      %v5924 = vunpack.c.l.b16 %v5359
      %v5925 = vunpack.c.h.b16 %v5359
      %v5926 = vunpack.c.l.b16 %v5360
      %v5927 = vunpack.c.h.b16 %v5360
      %v5928 = vunpack.c.l.b16 %v5361
      %v5929 = vunpack.c.h.b16 %v5361
      %v5930 = vunpack.c.l.b16 %v5362
      %v5931 = vunpack.c.h.b16 %v5362
      %v5932 = vunpack.c.l.b16 %v5363
      %v5933 = vunpack.c.h.b16 %v5363
      %v5934 = vunpack.c.l.b16 %v5364
      %v5935 = vunpack.c.h.b16 %v5364
      %v5936 = vunpack.c.l.b16 %v5365
      %v5937 = vunpack.c.h.b16 %v5365
      %v5938 = vunpack.c.l.b16 %v5366
      %v5939 = vunpack.c.h.b16 %v5366
      %v5940 = vunpack.c.l.b16 %v5367
      %v5941 = vunpack.c.h.b16 %v5367
      %v5942 = vunpack.c.l.b16 %v5368
      %v5943 = vunpack.c.h.b16 %v5368
      %v5944 = vunpack.c.l.b16 %v5369
      %v5945 = vunpack.c.h.b16 %v5369
      %v5946 = vunpack.c.l.b16 %v5370
      %v5947 = vunpack.c.h.b16 %v5370
      %v5948 = vunpack.c.l.b16 %v5371
      %v5949 = vunpack.c.h.b16 %v5371
      %v5950 = vunpack.c.l.b16 %v5372
      %v5951 = vunpack.c.h.b16 %v5372
      %v5952 = vunpack.c.l.b16 %v5373
      %v5953 = vunpack.c.h.b16 %v5373
      %v5954 = vunpack.c.l.b16 %v5374
      %v5955 = vunpack.c.h.b16 %v5374
      %v5956 = vunpack.c.l.b16 %v5375
      %v5957 = vunpack.c.h.b16 %v5375
      %v5958 = vunpack.c.l.b16 %v5376
      %v5959 = vunpack.c.h.b16 %v5376
      %v5960 = vunpack.c.l.b16 %v5377
      %v5961 = vunpack.c.h.b16 %v5377
      %v5962 = vunpack.c.l.b16 %v5378
      %v5963 = vunpack.c.h.b16 %v5378
      %v5964 = vunpack.c.l.b16 %v5379
      %v5965 = vunpack.c.h.b16 %v5379
      %v5966 = vunpack.c.l.b16 %v5380
      %v5967 = vunpack.c.h.b16 %v5380
      %v5968 = vunpack.c.l.b16 %v5381
      %v5969 = vunpack.c.h.b16 %v5381
      %v5970 = vunpack.c.l.b16 %v5382
      %v5971 = vunpack.c.h.b16 %v5382
      %v5972 = vunpack.c.l.b16 %v5383
      %v5973 = vunpack.c.h.b16 %v5383
      %v5974 = vunpack.c.l.b16 %v5384
      %v5975 = vunpack.c.h.b16 %v5384
      %v5976 = vunpack.c.l.b16 %v5385
      %v5977 = vunpack.c.h.b16 %v5385
      %v5978 = vunpack.c.l.b16 %v5386
      %v5979 = vunpack.c.h.b16 %v5386
      %v5980 = vunpack.c.l.b16 %v5387
      %v5981 = vunpack.c.h.b16 %v5387
      %v5982 = vunpack.c.l.b16 %v5388
      %v5983 = vunpack.c.h.b16 %v5388
      %v5984 = vunpack.c.l.b16 %v5389
      %v5985 = vunpack.c.h.b16 %v5389
      %v5986 = vunpack.c.l.b16 %v5390
      %v5987 = vunpack.c.h.b16 %v5390
      %v5988 = vunpack.c.l.b16 %v5391
      %v5989 = vunpack.c.h.b16 %v5391
      %v5990 = vunpack.c.l.b16 %v5392
      %v5991 = vunpack.c.h.b16 %v5392
      %v5992 = vunpack.c.l.b16 %v5393
      %v5993 = vunpack.c.h.b16 %v5393
      %v5994 = vunpack.c.l.b16 %v5394
      %v5995 = vunpack.c.h.b16 %v5394
      %v5996 = vunpack.c.l.b16 %v5395
      %v5997 = vunpack.c.h.b16 %v5395
      %v5998 = vunpack.c.l.b16 %v5396
      %v5999 = vunpack.c.h.b16 %v5396
      %v6000 = vunpack.c.l.b16 %v5397
      %v6001 = vunpack.c.h.b16 %v5397
      %v6002 = vunpack.c.l.b16 %v5398
      %v6003 = vunpack.c.h.b16 %v5398
      %v6004 = vunpack.c.l.b16 %v5399
      %v6005 = vunpack.c.h.b16 %v5399
      %v6006 = vunpack.c.l.b16 %v5400
      %v6007 = vunpack.c.h.b16 %v5400
      %v6008 = vunpack.c.l.b16 %v5401
      %v6009 = vunpack.c.h.b16 %v5401
      %v6010 = vunpack.c.l.b16 %v5402
      %v6011 = vunpack.c.h.b16 %v5402
      %v6012 = vunpack.c.l.b16 %v5403
      %v6013 = vunpack.c.h.b16 %v5403
      %v6014 = vunpack.c.l.b16 %v5404
      %v6015 = vunpack.c.h.b16 %v5404
      %v6016 = vunpack.c.l.b16 %v5405
      %v6017 = vunpack.c.h.b16 %v5405
      %v6018 = vunpack.c.l.b16 %v5406
      %v6019 = vunpack.c.h.b16 %v5406
      %v6020 = vunpack.c.l.b16 %v5407
      %v6021 = vunpack.c.h.b16 %v5407
      %v6022 = vunpack.c.l.b16 %v5408
      %v6023 = vunpack.c.h.b16 %v5408
      %v6024 = vunpack.c.l.b16 %v5409
      %v6025 = vunpack.c.h.b16 %v5409
      %v6026 = vunpack.c.l.b16 %v5410
      %v6027 = vunpack.c.h.b16 %v5410
      %v6028 = vunpack.c.l.b16 %v5411
      %v6029 = vunpack.c.h.b16 %v5411
      %v6030 = vunpack.c.l.b16 %v5412
      %v6031 = vunpack.c.h.b16 %v5412
      %v6032 = vunpack.c.l.b16 %v5413
      %v6033 = vunpack.c.h.b16 %v5413
      %v6034 = vunpack.c.l.b16 %v5414
      %v6035 = vunpack.c.h.b16 %v5414
      %v6036 = vunpack.c.l.b16 %v5415
      %v6037 = vunpack.c.h.b16 %v5415
      %v6038 = vunpack.c.l.b16 %v5416
      %v6039 = vunpack.c.h.b16 %v5416
      %v6040 = vunpack.c.l.b16 %v5417
      %v6041 = vunpack.c.h.b16 %v5417
      %v6042 = vunpack.c.l.b16 %v5418
      %v6043 = vunpack.c.h.b16 %v5418
      %v6044 = vunpack.c.l.b16 %v5419
      %v6045 = vunpack.c.h.b16 %v5419
      %v6046 = vunpack.c.l.b16 %v5420
      %v6047 = vunpack.c.h.b16 %v5420
      %v6048 = vunpack.c.l.b16 %v5421
      %v6049 = vunpack.c.h.b16 %v5421
      %v6050 = vunpack.c.l.b16 %v5422
      %v6051 = vunpack.c.h.b16 %v5422
      %v6052 = vunpack.c.l.b16 %v5423
      %v6053 = vunpack.c.h.b16 %v5423
      %v6054 = vunpack.c.l.b16 %v5424
      %v6055 = vunpack.c.h.b16 %v5424
      %v6056 = vunpack.c.l.b16 %v5425
      %v6057 = vunpack.c.h.b16 %v5425
      %v6058 = vunpack.c.l.b16 %v5426
      %v6059 = vunpack.c.h.b16 %v5426
      %v6060 = vunpack.c.l.b16 %v5427
      %v6061 = vunpack.c.h.b16 %v5427
      %v6062 = vunpack.c.l.b16 %v5428
      %v6063 = vunpack.c.h.b16 %v5428
      %v6064 = vunpack.c.l.b16 %v5429
      %v6065 = vunpack.c.h.b16 %v5429
      %v6066 = vunpack.c.l.b16 %v5430
      %v6067 = vunpack.c.h.b16 %v5430
      %v6068 = vunpack.c.l.b16 %v5431
      %v6069 = vunpack.c.h.b16 %v5431
      %v6070 = vunpack.c.l.b16 %v5432
      %v6071 = vunpack.c.h.b16 %v5432
      %v6072 = vunpack.c.l.b16 %v5433
      %v6073 = vunpack.c.h.b16 %v5433
      %v6074 = vunpack.c.l.b16 %v5434
      %v6075 = vunpack.c.h.b16 %v5434
      %v6076 = vunpack.c.l.b16 %v5435
      %v6077 = vunpack.c.h.b16 %v5435
      %v6078 = vunpack.c.l.b16 %v5436
      %v6079 = vunpack.c.h.b16 %v5436
      %v6080 = vunpack.c.l.b16 %v5437
      %v6081 = vunpack.c.h.b16 %v5437
      %v6082 = vunpack.c.l.b16 %v5438
      %v6083 = vunpack.c.h.b16 %v5438
      %v6084 = vunpack.c.l.b16 %v5439
      %v6085 = vunpack.c.h.b16 %v5439
      %v6086 = vunpack.c.l.b16 %v5440
      %v6087 = vunpack.c.h.b16 %v5440
      %v6088 = vunpack.c.l.b16 %v5441
      %v6089 = vunpack.c.h.b16 %v5441
      %v6090 = vunpack.c.l.b16 %v5442
      %v6091 = vunpack.c.h.b16 %v5442
      %v6092 = vunpack.c.l.b16 %v5443
      %v6093 = vunpack.c.h.b16 %v5443
      %v6094 = vunpack.c.l.b16 %v5444
      %v6095 = vunpack.c.h.b16 %v5444
      %v6096 = vunpack.c.l.b16 %v5445
      %v6097 = vunpack.c.h.b16 %v5445
      %v6098 = vunpack.c.l.b16 %v5446
      %v6099 = vunpack.c.h.b16 %v5446
      %v6100 = vunpack.c.l.b16 %v5447
      %v6101 = vunpack.c.h.b16 %v5447
      %v6102 = vunpack.c.l.b16 %v5448
      %v6103 = vunpack.c.h.b16 %v5448
      %v6104 = vunpack.c.l.b16 %v5449
      %v6105 = vunpack.c.h.b16 %v5449
      %v6106 = vunpack.c.l.b16 %v5450
      %v6107 = vunpack.c.h.b16 %v5450
      %v6108 = vunpack.c.l.b16 %v5451
      %v6109 = vunpack.c.h.b16 %v5451
      %v6110 = vunpack.c.l.b16 %v5452
      %v6111 = vunpack.c.h.b16 %v5452
      %v6112 = vunpack.c.l.b16 %v5453
      %v6113 = vunpack.c.h.b16 %v5453
      %v6114 = vunpack.c.l.b16 %v5454
      %v6115 = vunpack.c.h.b16 %v5454
      %v6116 = vunpack.c.l.b16 %v5455
      %v6117 = vunpack.c.h.b16 %v5455
      %v6118 = vunpack.c.l.b16 %v5456
      %v6119 = vunpack.c.h.b16 %v5456
      %v6120 = vunpack.c.l.b16 %v5457
      %v6121 = vunpack.c.h.b16 %v5457
      %v6122 = vunpack.c.l.b16 %v5458
      %v6123 = vunpack.c.h.b16 %v5458
      %v6124 = vunpack.c.l.b16 %v5459
      %v6125 = vunpack.c.h.b16 %v5459
      %v6126 = vunpack.c.l.b16 %v5460
      %v6127 = vunpack.c.h.b16 %v5460
      %v6128 = vunpack.c.l.b16 %v5461
      %v6129 = vunpack.c.h.b16 %v5461
      %v6130 = vunpack.c.l.b16 %v5462
      %v6131 = vunpack.c.h.b16 %v5462
      %v6132 = vunpack.c.l.b16 %v5463
      %v6133 = vunpack.c.h.b16 %v5463
      %v6134 = vunpack.c.l.b16 %v5464
      %v6135 = vunpack.c.h.b16 %v5464
      %v6136 = vunpack.c.l.b16 %v5465
      %v6137 = vunpack.c.h.b16 %v5465
      %v6138 = vunpack.c.l.b16 %v5466
      %v6139 = vunpack.c.h.b16 %v5466
      %v6140 = vunpack.c.l.b16 %v5467
      %v6141 = vunpack.c.h.b16 %v5467
      %v6142 = vunpack.c.l.b16 %v5468
      %v6143 = vunpack.c.h.b16 %v5468
      %v6144 = vunpack.c.l.b16 %v5469
      %v6145 = vunpack.c.h.b16 %v5469
      %v6146 = vunpack.c.l.b16 %v5470
      %v6147 = vunpack.c.h.b16 %v5470
      %v6148 = vunpack.c.l.b16 %v5471
      %v6149 = vunpack.c.h.b16 %v5471
      %v6150 = vunpack.c.l.b16 %v5472
      %v6151 = vunpack.c.h.b16 %v5472
      %v6152 = vunpack.c.l.b16 %v5473
      %v6153 = vunpack.c.h.b16 %v5473
      %v6154 = vunpack.c.l.b16 %v5474
      %v6155 = vunpack.c.h.b16 %v5474
      %v6156 = vunpack.c.l.b16 %v5475
      %v6157 = vunpack.c.h.b16 %v5475
      %v6158 = vunpack.c.l.b16 %v5476
      %v6159 = vunpack.c.h.b16 %v5476
      %v6160 = vunpack.c.l.b16 %v5477
      %v6161 = vunpack.c.h.b16 %v5477
      %v6162 = vunpack.c.l.b16 %v5478
      %v6163 = vunpack.c.h.b16 %v5478
      %v6164 = vunpack.c.l.b16 %v5479
      %v6165 = vunpack.c.h.b16 %v5479
      %v6166 = vunpack.c.l.b16 %v5480
      %v6167 = vunpack.c.h.b16 %v5480
      %v6168 = vunpack.c.l.b16 %v5481
      %v6169 = vunpack.c.h.b16 %v5481
      %v6170 = vunpack.c.l.b16 %v5482
      %v6171 = vunpack.c.h.b16 %v5482
      %v6172 = vunpack.c.l.b16 %v5483
      %v6173 = vunpack.c.h.b16 %v5483
      %v6174 = vunpack.c.l.b16 %v5484
      %v6175 = vunpack.c.h.b16 %v5484
      %v6176 = vunpack.c.l.b16 %v5485
      %v6177 = vunpack.c.h.b16 %v5485
      %v6178 = vunpack.c.l.b16 %v5486
      %v6179 = vunpack.c.h.b16 %v5486
      %v6180 = vunpack.c.l.b16 %v5487
      %v6181 = vunpack.c.h.b16 %v5487
      %v6182 = vunpack.c.l.b16 %v5488
      %v6183 = vunpack.c.h.b16 %v5488
      %v6184 = vunpack.c.l.b16 %v5489
      %v6185 = vunpack.c.h.b16 %v5489
      %v6186 = vunpack.c.l.b16 %v5490
      %v6187 = vunpack.c.h.b16 %v5490
      %v6188 = vunpack.c.l.b16 %v5491
      %v6189 = vunpack.c.h.b16 %v5491
      %v6190 = vunpack.c.l.b16 %v5492
      %v6191 = vunpack.c.h.b16 %v5492
      %v6192 = vunpack.c.l.b16 %v5493
      %v6193 = vunpack.c.h.b16 %v5493
      %v6194 = vunpack.c.l.b16 %v5494
      %v6195 = vunpack.c.h.b16 %v5494
      %v6196 = vunpack.c.l.b16 %v5495
      %v6197 = vunpack.c.h.b16 %v5495
      %v6198 = vunpack.c.l.b16 %v5496
      %v6199 = vunpack.c.h.b16 %v5496
      %v6200 = vunpack.c.l.b16 %v5497
      %v6201 = vunpack.c.h.b16 %v5497
      %v6202 = vunpack.c.l.b16 %v5498
      %v6203 = vunpack.c.h.b16 %v5498
      %v6204 = vunpack.c.l.b16 %v5499
      %v6205 = vunpack.c.h.b16 %v5499
      %v6206 = vunpack.c.l.b16 %v5500
      %v6207 = vunpack.c.h.b16 %v5500
      %v6208 = vunpack.c.l.b16 %v5501
      %v6209 = vunpack.c.h.b16 %v5501
      %v6210 = vunpack.c.l.b16 %v5502
      %v6211 = vunpack.c.h.b16 %v5502
      %v6212 = vunpack.c.l.b16 %v5503
      %v6213 = vunpack.c.h.b16 %v5503
      %v6214 = vunpack.c.l.b16 %v5504
      %v6215 = vunpack.c.h.b16 %v5504
      %v6216 = vunpack.c.l.b16 %v5505
      %v6217 = vunpack.c.h.b16 %v5505
      %v6218 = vunpack.c.l.b16 %v5506
      %v6219 = vunpack.c.h.b16 %v5506
      %v6220 = vunpack.c.l.b16 %v5507
      %v6221 = vunpack.c.h.b16 %v5507
      %v6222 = vunpack.c.l.b16 %v5508
      %v6223 = vunpack.c.h.b16 %v5508
      %v6224 = vunpack.c.l.b16 %v5509
      %v6225 = vunpack.c.h.b16 %v5509
      %v6226 = vunpack.c.l.b16 %v5510
      %v6227 = vunpack.c.h.b16 %v5510
      %v6228 = vunpack.c.l.b16 %v5511
      %v6229 = vunpack.c.h.b16 %v5511
      %v6230 = vunpack.c.l.b16 %v5512
      %v6231 = vunpack.c.h.b16 %v5512
      %v6232 = vunpack.c.l.b16 %v5513
      %v6233 = vunpack.c.h.b16 %v5513
      %v6234 = vunpack.c.l.b16 %v5514
      %v6235 = vunpack.c.h.b16 %v5514
      %v6236 = vunpack.c.l.b16 %v5515
      %v6237 = vunpack.c.h.b16 %v5515
      %v6238 = vunpack.c.l.b16 %v5516
      %v6239 = vunpack.c.h.b16 %v5516
      %v6240 = vunpack.c.l.b16 %v5517
      %v6241 = vunpack.c.h.b16 %v5517
      %v6242 = vunpack.c.l.b16 %v5518
      %v6243 = vunpack.c.h.b16 %v5518
      %v6244 = vunpack.c.l.b16 %v5519
      %v6245 = vunpack.c.h.b16 %v5519
      %v6246 = vunpack.c.l.b16 %v5520
      %v6247 = vunpack.c.h.b16 %v5520
      %v6248 = vunpack.c.l.b16 %v5521
      %v6249 = vunpack.c.h.b16 %v5521
      %v6250 = vunpack.c.l.b16 %v5522
      %v6251 = vunpack.c.h.b16 %v5522
      %v6252 = vunpack.c.l.b16 %v5523
      %v6253 = vunpack.c.h.b16 %v5523
      %v6254 = vunpack.c.l.b16 %v5524
      %v6255 = vunpack.c.h.b16 %v5524
      %v6256 = vunpack.c.l.b16 %v5525
      %v6257 = vunpack.c.h.b16 %v5525
      %v6258 = vunpack.c.l.b16 %v5526
      %v6259 = vunpack.c.h.b16 %v5526
      %v6260 = vunpack.c.l.b16 %v5527
      %v6261 = vunpack.c.h.b16 %v5527
      %v6262 = vunpack.c.l.b16 %v5528
      %v6263 = vunpack.c.h.b16 %v5528
      %v6264 = vunpack.c.l.b16 %v5529
      %v6265 = vunpack.c.h.b16 %v5529
      %v6266 = vunpack.c.l.b16 %v5530
      %v6267 = vunpack.c.h.b16 %v5530
      %v6268 = vunpack.c.l.b16 %v5531
      %v6269 = vunpack.c.h.b16 %v5531
      %v6270 = vunpack.c.l.b16 %v5532
      %v6271 = vunpack.c.h.b16 %v5532
      %v6272 = vunpack.c.l.b16 %v5533
      %v6273 = vunpack.c.h.b16 %v5533
      %v6274 = vunpack.c.l.b16 %v5534
      %v6275 = vunpack.c.h.b16 %v5534
      %v6276 = vunpack.c.l.b16 %v5535
      %v6277 = vunpack.c.h.b16 %v5535
      %v6278 = vunpack.c.l.b16 %v5536
      %v6279 = vunpack.c.h.b16 %v5536
      %v6280 = vunpack.c.l.b16 %v5537
      %v6281 = vunpack.c.h.b16 %v5537
      %v6282 = vunpack.c.l.b16 %v5538
      %v6283 = vunpack.c.h.b16 %v5538
      %v6284 = vunpack.c.l.b16 %v5539
      %v6285 = vunpack.c.h.b16 %v5539
      %v6286 = vunpack.c.l.b16 %v5540
      %v6287 = vunpack.c.h.b16 %v5540
      %v6288 = vunpack.c.l.b16 %v5541
      %v6289 = vunpack.c.h.b16 %v5541
      %v6290 = vunpack.c.l.b16 %v5542
      %v6291 = vunpack.c.h.b16 %v5542
      %v6292 = vunpack.c.l.b16 %v5543
      %v6293 = vunpack.c.h.b16 %v5543
      %v6294 = vunpack.c.l.b16 %v5544
      %v6295 = vunpack.c.h.b16 %v5544
      %v6296 = vunpack.c.l.b16 %v5545
      %v6297 = vunpack.c.h.b16 %v5545
      %v6298 = vunpack.c.l.b16 %v5546
      %v6299 = vunpack.c.h.b16 %v5546
      %v6300 = vunpack.c.l.b16 %v5547
      %v6301 = vunpack.c.h.b16 %v5547
      %v6302 = vunpack.c.l.b16 %v5548
      %v6303 = vunpack.c.h.b16 %v5548
      %v6304 = vunpack.c.l.b16 %v5549
      %v6305 = vunpack.c.h.b16 %v5549
      %v6306 = vunpack.c.l.b16 %v5550
      %v6307 = vunpack.c.h.b16 %v5550
      %v6308 = vunpack.c.l.b16 %v5551
      %v6309 = vunpack.c.h.b16 %v5551
      %v6310 = vunpack.c.l.b16 %v5552
      %v6311 = vunpack.c.h.b16 %v5552
      %v6312 = vunpack.c.l.b16 %v5553
      %v6313 = vunpack.c.h.b16 %v5553
      %v6314 = vunpack.c.l.b16 %v5554
      %v6315 = vunpack.c.h.b16 %v5554
      %v6316 = vunpack.c.l.b16 %v5555
      %v6317 = vunpack.c.h.b16 %v5555
      %v6318 = vunpack.c.l.b16 %v5556
      %v6319 = vunpack.c.h.b16 %v5556
      %v6320 = vunpack.c.l.b16 %v5557
      %v6321 = vunpack.c.h.b16 %v5557
      %v6322 = vunpack.c.l.b16 %v5558
      %v6323 = vunpack.c.h.b16 %v5558
      %v6324 = vunpack.c.l.b16 %v5559
      %v6325 = vunpack.c.h.b16 %v5559
      %v6326 = vunpack.c.l.b16 %v5560
      %v6327 = vunpack.c.h.b16 %v5560
      %v6328 = vunpack.c.l.b16 %v5561
      %v6329 = vunpack.c.h.b16 %v5561
      %v6330 = vunpack.c.l.b16 %v5562
      %v6331 = vunpack.c.h.b16 %v5562
      %v6332 = vunpack.c.l.b16 %v5563
      %v6333 = vunpack.c.h.b16 %v5563
      %v6334 = vunpack.c.l.b16 %v5564
      %v6335 = vunpack.c.h.b16 %v5564
      %v6336 = vunpack.c.l.b16 %v5565
      %v6337 = vunpack.c.h.b16 %v5565
      %v6338 = vunpack.c.l.b16 %v5566
      %v6339 = vunpack.c.h.b16 %v5566
      %v6340 = vunpack.c.l.b16 %v5567
      %v6341 = vunpack.c.h.b16 %v5567
      %v6342 = vunpack.c.l.b16 %v5568
      %v6343 = vunpack.c.h.b16 %v5568
      %v6344 = vunpack.c.l.b16 %v5569
      %v6345 = vunpack.c.h.b16 %v5569
      %v6346 = vunpack.c.l.b16 %v5570
      %v6347 = vunpack.c.h.b16 %v5570
      %v6348 = vunpack.c.l.b16 %v5571
      %v6349 = vunpack.c.h.b16 %v5571
      %v6350 = vunpack.c.l.b16 %v5572
      %v6351 = vunpack.c.h.b16 %v5572
      %v6352 = vunpack.c.l.b16 %v5573
      %v6353 = vunpack.c.h.b16 %v5573
      %v6354 = vunpack.c.l.b16 %v5574
      %v6355 = vunpack.c.h.b16 %v5574
      %v6356 = vunpack.c.l.b16 %v5575
      %v6357 = vunpack.c.h.b16 %v5575
      %v6358 = vunpack.c.l.b16 %v5576
      %v6359 = vunpack.c.h.b16 %v5576
      %v6360 = vunpack.c.l.b16 %v5577
      %v6361 = vunpack.c.h.b16 %v5577
      %v6362 = vunpack.c.l.b16 %v5578
      %v6363 = vunpack.c.h.b16 %v5578
      %v6364 = vunpack.c.l.b16 %v5579
      %v6365 = vunpack.c.h.b16 %v5579
      %v6366 = vunpack.c.l.b16 %v5580
      %v6367 = vunpack.c.h.b16 %v5580
      %v6368 = vunpack.c.l.b16 %v5581
      %v6369 = vunpack.c.h.b16 %v5581
      %v6370 = vunpack.c.l.b16 %v5582
      %v6371 = vunpack.c.h.b16 %v5582
      %v6372 = vunpack.c.l.b16 %v5583
      %v6373 = vunpack.c.h.b16 %v5583
      %v6374 = vunpack.c.l.b16 %v5584
      %v6375 = vunpack.c.h.b16 %v5584
      %v6376 = vunpack.c.l.b16 %v5585
      %v6377 = vunpack.c.h.b16 %v5585
      %v6378 = vunpack.c.l.b16 %v5586
      %v6379 = vunpack.c.h.b16 %v5586
      %v6380 = vunpack.c.l.b16 %v5587
      %v6381 = vunpack.c.h.b16 %v5587
      %v6382 = vunpack.c.l.b16 %v5588
      %v6383 = vunpack.c.h.b16 %v5588
      %v6384 = vunpack.c.l.b16 %v5589
      %v6385 = vunpack.c.h.b16 %v5589
      %v6386 = vunpack.c.l.b16 %v5590
      %v6387 = vunpack.c.h.b16 %v5590
      %v6388 = vunpack.c.l.b16 %v5591
      %v6389 = vunpack.c.h.b16 %v5591
      %v6390 = vunpack.c.l.b16 %v5592
      %v6391 = vunpack.c.h.b16 %v5592
      %v6392 = vunpack.c.l.b16 %v5593
      %v6393 = vunpack.c.h.b16 %v5593
      %v6394 = vunpack.c.l.b16 %v5594
      %v6395 = vunpack.c.h.b16 %v5594
      %v6396 = vunpack.c.l.b16 %v5595
      %v6397 = vunpack.c.h.b16 %v5595
      %v6398 = vunpack.c.l.b16 %v5596
      %v6399 = vunpack.c.h.b16 %v5596
      %v6400 = vunpack.c.l.b16 %v5597
      %v6401 = vunpack.c.h.b16 %v5597
      %v6402 = vunpack.c.l.b16 %v5598
      %v6403 = vunpack.c.h.b16 %v5598
      %v6404 = vunpack.c.l.b16 %v5599
      %v6405 = vunpack.c.h.b16 %v5599
      %v6406 = vunpack.c.l.b16 %v5600
      %v6407 = vunpack.c.h.b16 %v5600
      %v6408 = vunpack.c.l.b16 %v5601
      %v6409 = vunpack.c.h.b16 %v5601
      %v6410 = vunpack.c.l.b16 %v5602
      %v6411 = vunpack.c.h.b16 %v5602
      %v6412 = vunpack.c.l.b16 %v5603
      %v6413 = vunpack.c.h.b16 %v5603
      %v6414 = vpack.c.b16 %v5910, %v5902
      %v6415 = vpack.c.b16 %v5911, %v5903
      %v6416 = vpack.c.b16 %v5912, %v5904
      %v6417 = vpack.c.b16 %v5913, %v5905
      %v6418 = vpack.c.b16 %v5914, %v5906
      %v6419 = vpack.c.b16 %v5915, %v5907
      %v6420 = vpack.c.b16 %v5916, %v5908
      %v6421 = vpack.c.b16 %v5917, %v5909
      %v6422 = vpack.c.b16 %v5926, %v5918
      %v6423 = vpack.c.b16 %v5927, %v5919
      %v6424 = vpack.c.b16 %v5928, %v5920
      %v6425 = vpack.c.b16 %v5929, %v5921
      %v6426 = vpack.c.b16 %v5930, %v5922
      %v6427 = vpack.c.b16 %v5931, %v5923
      %v6428 = vpack.c.b16 %v5932, %v5924
      %v6429 = vpack.c.b16 %v5933, %v5925
      %v6430 = vpack.c.b16 %v5942, %v5934
      %v6431 = vpack.c.b16 %v5943, %v5935
      %v6432 = vpack.c.b16 %v5944, %v5936
      %v6433 = vpack.c.b16 %v5945, %v5937
      %v6434 = vpack.c.b16 %v5946, %v5938
      %v6435 = vpack.c.b16 %v5947, %v5939
      %v6436 = vpack.c.b16 %v5948, %v5940
      %v6437 = vpack.c.b16 %v5949, %v5941
      %v6438 = vpack.c.b16 %v5958, %v5950
      %v6439 = vpack.c.b16 %v5959, %v5951
      %v6440 = vpack.c.b16 %v5960, %v5952
      %v6441 = vpack.c.b16 %v5961, %v5953
      %v6442 = vpack.c.b16 %v5962, %v5954
      %v6443 = vpack.c.b16 %v5963, %v5955
      %v6444 = vpack.c.b16 %v5964, %v5956
      %v6445 = vpack.c.b16 %v5965, %v5957
      %v6446 = vpack.c.b16 %v5974, %v5966
      %v6447 = vpack.c.b16 %v5975, %v5967
      %v6448 = vpack.c.b16 %v5976, %v5968
      %v6449 = vpack.c.b16 %v5977, %v5969
      %v6450 = vpack.c.b16 %v5978, %v5970
      %v6451 = vpack.c.b16 %v5979, %v5971
      %v6452 = vpack.c.b16 %v5980, %v5972
      %v6453 = vpack.c.b16 %v5981, %v5973
      %v6454 = vpack.c.b16 %v5990, %v5982
      %v6455 = vpack.c.b16 %v5991, %v5983
      %v6456 = vpack.c.b16 %v5992, %v5984
      %v6457 = vpack.c.b16 %v5993, %v5985
      %v6458 = vpack.c.b16 %v5994, %v5986
      %v6459 = vpack.c.b16 %v5995, %v5987
      %v6460 = vpack.c.b16 %v5996, %v5988
      %v6461 = vpack.c.b16 %v5997, %v5989
      %v6462 = vpack.c.b16 %v6006, %v5998
      %v6463 = vpack.c.b16 %v6007, %v5999
      %v6464 = vpack.c.b16 %v6008, %v6000
      %v6465 = vpack.c.b16 %v6009, %v6001
      %v6466 = vpack.c.b16 %v6010, %v6002
      %v6467 = vpack.c.b16 %v6011, %v6003
      %v6468 = vpack.c.b16 %v6012, %v6004
      %v6469 = vpack.c.b16 %v6013, %v6005
      %v6470 = vpack.c.b16 %v6022, %v6014
      %v6471 = vpack.c.b16 %v6023, %v6015
      %v6472 = vpack.c.b16 %v6024, %v6016
      %v6473 = vpack.c.b16 %v6025, %v6017
      %v6474 = vpack.c.b16 %v6026, %v6018
      %v6475 = vpack.c.b16 %v6027, %v6019
      %v6476 = vpack.c.b16 %v6028, %v6020
      %v6477 = vpack.c.b16 %v6029, %v6021
      %v6478 = vpack.c.b16 %v6038, %v6030
      %v6479 = vpack.c.b16 %v6039, %v6031
      %v6480 = vpack.c.b16 %v6040, %v6032
      %v6481 = vpack.c.b16 %v6041, %v6033
      %v6482 = vpack.c.b16 %v6042, %v6034
      %v6483 = vpack.c.b16 %v6043, %v6035
      %v6484 = vpack.c.b16 %v6044, %v6036
      %v6485 = vpack.c.b16 %v6045, %v6037
      %v6486 = vpack.c.b16 %v6054, %v6046
      %v6487 = vpack.c.b16 %v6055, %v6047
      %v6488 = vpack.c.b16 %v6056, %v6048
      %v6489 = vpack.c.b16 %v6057, %v6049
      %v6490 = vpack.c.b16 %v6058, %v6050
      %v6491 = vpack.c.b16 %v6059, %v6051
      %v6492 = vpack.c.b16 %v6060, %v6052
      %v6493 = vpack.c.b16 %v6061, %v6053
      %v6494 = vpack.c.b16 %v6070, %v6062
      %v6495 = vpack.c.b16 %v6071, %v6063
      %v6496 = vpack.c.b16 %v6072, %v6064
      %v6497 = vpack.c.b16 %v6073, %v6065
      %v6498 = vpack.c.b16 %v6074, %v6066
      %v6499 = vpack.c.b16 %v6075, %v6067
      %v6500 = vpack.c.b16 %v6076, %v6068
      %v6501 = vpack.c.b16 %v6077, %v6069
      %v6502 = vpack.c.b16 %v6086, %v6078
      %v6503 = vpack.c.b16 %v6087, %v6079
      %v6504 = vpack.c.b16 %v6088, %v6080
      %v6505 = vpack.c.b16 %v6089, %v6081
      %v6506 = vpack.c.b16 %v6090, %v6082
      %v6507 = vpack.c.b16 %v6091, %v6083
      %v6508 = vpack.c.b16 %v6092, %v6084
      %v6509 = vpack.c.b16 %v6093, %v6085
      %v6510 = vpack.c.b16 %v6102, %v6094
      %v6511 = vpack.c.b16 %v6103, %v6095
      %v6512 = vpack.c.b16 %v6104, %v6096
      %v6513 = vpack.c.b16 %v6105, %v6097
      %v6514 = vpack.c.b16 %v6106, %v6098
      %v6515 = vpack.c.b16 %v6107, %v6099
      %v6516 = vpack.c.b16 %v6108, %v6100
      %v6517 = vpack.c.b16 %v6109, %v6101
      %v6518 = vpack.c.b16 %v6118, %v6110
      %v6519 = vpack.c.b16 %v6119, %v6111
      %v6520 = vpack.c.b16 %v6120, %v6112
      %v6521 = vpack.c.b16 %v6121, %v6113
      %v6522 = vpack.c.b16 %v6122, %v6114
      %v6523 = vpack.c.b16 %v6123, %v6115
      %v6524 = vpack.c.b16 %v6124, %v6116
      %v6525 = vpack.c.b16 %v6125, %v6117
      %v6526 = vpack.c.b16 %v6134, %v6126
      %v6527 = vpack.c.b16 %v6135, %v6127
      %v6528 = vpack.c.b16 %v6136, %v6128
      %v6529 = vpack.c.b16 %v6137, %v6129
      %v6530 = vpack.c.b16 %v6138, %v6130
      %v6531 = vpack.c.b16 %v6139, %v6131
      %v6532 = vpack.c.b16 %v6140, %v6132
      %v6533 = vpack.c.b16 %v6141, %v6133
      %v6534 = vpack.c.b16 %v6150, %v6142
      %v6535 = vpack.c.b16 %v6151, %v6143
      %v6536 = vpack.c.b16 %v6152, %v6144
      %v6537 = vpack.c.b16 %v6153, %v6145
      %v6538 = vpack.c.b16 %v6154, %v6146
      %v6539 = vpack.c.b16 %v6155, %v6147
      %v6540 = vpack.c.b16 %v6156, %v6148
      %v6541 = vpack.c.b16 %v6157, %v6149
      %v6542 = vpack.c.b16 %v6166, %v6158
      %v6543 = vpack.c.b16 %v6167, %v6159
      %v6544 = vpack.c.b16 %v6168, %v6160
      %v6545 = vpack.c.b16 %v6169, %v6161
      %v6546 = vpack.c.b16 %v6170, %v6162
      %v6547 = vpack.c.b16 %v6171, %v6163
      %v6548 = vpack.c.b16 %v6172, %v6164
      %v6549 = vpack.c.b16 %v6173, %v6165
      %v6550 = vpack.c.b16 %v6182, %v6174
      %v6551 = vpack.c.b16 %v6183, %v6175
      %v6552 = vpack.c.b16 %v6184, %v6176
      %v6553 = vpack.c.b16 %v6185, %v6177
      %v6554 = vpack.c.b16 %v6186, %v6178
      %v6555 = vpack.c.b16 %v6187, %v6179
      %v6556 = vpack.c.b16 %v6188, %v6180
      %v6557 = vpack.c.b16 %v6189, %v6181
      %v6558 = vpack.c.b16 %v6198, %v6190
      %v6559 = vpack.c.b16 %v6199, %v6191
      %v6560 = vpack.c.b16 %v6200, %v6192
      %v6561 = vpack.c.b16 %v6201, %v6193
      %v6562 = vpack.c.b16 %v6202, %v6194
      %v6563 = vpack.c.b16 %v6203, %v6195
      %v6564 = vpack.c.b16 %v6204, %v6196
      %v6565 = vpack.c.b16 %v6205, %v6197
      %v6566 = vpack.c.b16 %v6214, %v6206
      %v6567 = vpack.c.b16 %v6215, %v6207
      %v6568 = vpack.c.b16 %v6216, %v6208
      %v6569 = vpack.c.b16 %v6217, %v6209
      %v6570 = vpack.c.b16 %v6218, %v6210
      %v6571 = vpack.c.b16 %v6219, %v6211
      %v6572 = vpack.c.b16 %v6220, %v6212
      %v6573 = vpack.c.b16 %v6221, %v6213
      %v6574 = vpack.c.b16 %v6230, %v6222
      %v6575 = vpack.c.b16 %v6231, %v6223
      %v6576 = vpack.c.b16 %v6232, %v6224
      %v6577 = vpack.c.b16 %v6233, %v6225
      %v6578 = vpack.c.b16 %v6234, %v6226
      %v6579 = vpack.c.b16 %v6235, %v6227
      %v6580 = vpack.c.b16 %v6236, %v6228
      %v6581 = vpack.c.b16 %v6237, %v6229
      %v6582 = vpack.c.b16 %v6246, %v6238
      %v6583 = vpack.c.b16 %v6247, %v6239
      %v6584 = vpack.c.b16 %v6248, %v6240
      %v6585 = vpack.c.b16 %v6249, %v6241
      %v6586 = vpack.c.b16 %v6250, %v6242
      %v6587 = vpack.c.b16 %v6251, %v6243
      %v6588 = vpack.c.b16 %v6252, %v6244
      %v6589 = vpack.c.b16 %v6253, %v6245
      %v6590 = vpack.c.b16 %v6262, %v6254
      %v6591 = vpack.c.b16 %v6263, %v6255
      %v6592 = vpack.c.b16 %v6264, %v6256
      %v6593 = vpack.c.b16 %v6265, %v6257
      %v6594 = vpack.c.b16 %v6266, %v6258
      %v6595 = vpack.c.b16 %v6267, %v6259
      %v6596 = vpack.c.b16 %v6268, %v6260
      %v6597 = vpack.c.b16 %v6269, %v6261
      %v6598 = vpack.c.b16 %v6278, %v6270
      %v6599 = vpack.c.b16 %v6279, %v6271
      %v6600 = vpack.c.b16 %v6280, %v6272
      %v6601 = vpack.c.b16 %v6281, %v6273
      %v6602 = vpack.c.b16 %v6282, %v6274
      %v6603 = vpack.c.b16 %v6283, %v6275
      %v6604 = vpack.c.b16 %v6284, %v6276
      %v6605 = vpack.c.b16 %v6285, %v6277
      %v6606 = vpack.c.b16 %v6294, %v6286
      %v6607 = vpack.c.b16 %v6295, %v6287
      %v6608 = vpack.c.b16 %v6296, %v6288
      %v6609 = vpack.c.b16 %v6297, %v6289
      %v6610 = vpack.c.b16 %v6298, %v6290
      %v6611 = vpack.c.b16 %v6299, %v6291
      %v6612 = vpack.c.b16 %v6300, %v6292
      %v6613 = vpack.c.b16 %v6301, %v6293
      %v6614 = vpack.c.b16 %v6310, %v6302
      %v6615 = vpack.c.b16 %v6311, %v6303
      %v6616 = vpack.c.b16 %v6312, %v6304
      %v6617 = vpack.c.b16 %v6313, %v6305
      %v6618 = vpack.c.b16 %v6314, %v6306
      %v6619 = vpack.c.b16 %v6315, %v6307
      %v6620 = vpack.c.b16 %v6316, %v6308
      %v6621 = vpack.c.b16 %v6317, %v6309
      %v6622 = vpack.c.b16 %v6326, %v6318
      %v6623 = vpack.c.b16 %v6327, %v6319
      %v6624 = vpack.c.b16 %v6328, %v6320
      %v6625 = vpack.c.b16 %v6329, %v6321
      %v6626 = vpack.c.b16 %v6330, %v6322
      %v6627 = vpack.c.b16 %v6331, %v6323
      %v6628 = vpack.c.b16 %v6332, %v6324
      %v6629 = vpack.c.b16 %v6333, %v6325
      %v6630 = vpack.c.b16 %v6342, %v6334
      %v6631 = vpack.c.b16 %v6343, %v6335
      %v6632 = vpack.c.b16 %v6344, %v6336
      %v6633 = vpack.c.b16 %v6345, %v6337
      %v6634 = vpack.c.b16 %v6346, %v6338
      %v6635 = vpack.c.b16 %v6347, %v6339
      %v6636 = vpack.c.b16 %v6348, %v6340
      %v6637 = vpack.c.b16 %v6349, %v6341
      %v6638 = vpack.c.b16 %v6358, %v6350
      %v6639 = vpack.c.b16 %v6359, %v6351
      %v6640 = vpack.c.b16 %v6360, %v6352
      %v6641 = vpack.c.b16 %v6361, %v6353
      %v6642 = vpack.c.b16 %v6362, %v6354
      %v6643 = vpack.c.b16 %v6363, %v6355
      %v6644 = vpack.c.b16 %v6364, %v6356
      %v6645 = vpack.c.b16 %v6365, %v6357
      %v6646 = vpack.c.b16 %v6374, %v6366
      %v6647 = vpack.c.b16 %v6375, %v6367
      %v6648 = vpack.c.b16 %v6376, %v6368
      %v6649 = vpack.c.b16 %v6377, %v6369
      %v6650 = vpack.c.b16 %v6378, %v6370
      %v6651 = vpack.c.b16 %v6379, %v6371
      %v6652 = vpack.c.b16 %v6380, %v6372
      %v6653 = vpack.c.b16 %v6381, %v6373
      %v6654 = vpack.c.b16 %v6390, %v6382
      %v6655 = vpack.c.b16 %v6391, %v6383
      %v6656 = vpack.c.b16 %v6392, %v6384
      %v6657 = vpack.c.b16 %v6393, %v6385
      %v6658 = vpack.c.b16 %v6394, %v6386
      %v6659 = vpack.c.b16 %v6395, %v6387
      %v6660 = vpack.c.b16 %v6396, %v6388
      %v6661 = vpack.c.b16 %v6397, %v6389
      %v6662 = vpack.c.b16 %v6406, %v6398
      %v6663 = vpack.c.b16 %v6407, %v6399
      %v6664 = vpack.c.b16 %v6408, %v6400
      %v6665 = vpack.c.b16 %v6409, %v6401
      %v6666 = vpack.c.b16 %v6410, %v6402
      %v6667 = vpack.c.b16 %v6411, %v6403
      %v6668 = vpack.c.b16 %v6412, %v6404
      %v6669 = vpack.c.b16 %v6413, %v6405
      %6926 = vmatprep.subr.bf16.mxu0 %v6415
      %6927 = vmatpush1.bf16.msra.mxu0 %v6414
      %6928 = vmatprep.subr.bf16.mxu0 %v6423
      %6929 = vmatpush1.bf16.msra.mxu0 %v6422
      %6930 = vmatprep.subr.bf16.mxu0 %v6431
      %6931 = vmatpush1.bf16.msra.mxu0 %v6430
      %6932 = vmatprep.subr.bf16.mxu0 %v6439
      %6933 = vmatpush1.bf16.msra.mxu0 %v6438
      %6934 = vmatprep.subr.bf16.mxu0 %v6447
      %6935 = vmatpush1.bf16.msra.mxu0 %v6446
      %6936 = vmatprep.subr.bf16.mxu0 %v6455
      %6937 = vmatpush1.bf16.msra.mxu0 %v6454
      %6938 = vmatprep.subr.bf16.mxu0 %v6463
      %6939 = vmatpush1.bf16.msra.mxu0 %v6462
      %6940 = vmatprep.subr.bf16.mxu0 %v6471
      %6941 = vmatpush1.bf16.msra.mxu0 %v6470
      %6942 = vmatprep.subr.bf16.mxu0 %v6479
      %6943 = vmatpush1.bf16.msra.mxu0 %v6478
      %6944 = vmatprep.subr.bf16.mxu0 %v6487
      %6945 = vmatpush1.bf16.msra.mxu0 %v6486
      %6946 = vmatprep.subr.bf16.mxu0 %v6495
      %6947 = vmatpush1.bf16.msra.mxu0 %v6494
      %6948 = vmatprep.subr.bf16.mxu0 %v6503
      %6949 = vmatpush1.bf16.msra.mxu0 %v6502
      %6950 = vmatprep.subr.bf16.mxu0 %v6511
      %6951 = vmatpush1.bf16.msra.mxu0 %v6510
      %6952 = vmatprep.subr.bf16.mxu0 %v6519
      %6953 = vmatpush1.bf16.msra.mxu0 %v6518
      %6954 = vmatprep.subr.bf16.mxu0 %v6527
      %6955 = vmatpush1.bf16.msra.mxu0 %v6526
      %6956 = vmatprep.subr.bf16.mxu0 %v6535
      %6957 = vmatpush1.bf16.msra.mxu0 %v6534
      %6958 = vmatprep.mubr.bf16.mxu0 %v5345
      %6959 = vmatmul.mubr.bf16.gmra.mrb[0].mxu0 %v5344
      %v6960 = vpop.f32.mrb[0].mxu0
      %v6961 = vadd.f32 %v5609, %v6960
      %v6962 = vpop.f32.mrb[0].mxu0
      %v6963 = vadd.f32 %v5613, %v6962
      %v6964 = vpop.f32.mrb[0].mxu0
      %v6965 = vadd.f32 %v5609, %v6964
      %v6966 = vpop.f32.mrb[0].mxu0
      %v6967 = vadd.f32 %v5613, %v6966
      %6968 = vdwg.mxu0
      %6969 = vmatprep.subr.bf16.mxu0 %v6543
      %6970 = vmatpush1.bf16.msra.mxu0 %v6542
      %6971 = vmatprep.subr.bf16.mxu0 %v6551
      %6972 = vmatpush1.bf16.msra.mxu0 %v6550
      %6973 = vmatprep.subr.bf16.mxu0 %v6559
      %6974 = vmatpush1.bf16.msra.mxu0 %v6558
      %6975 = vmatprep.subr.bf16.mxu0 %v6567
      %6976 = vmatpush1.bf16.msra.mxu0 %v6566
      %6977 = vmatprep.subr.bf16.mxu0 %v6575
      %6978 = vmatpush1.bf16.msra.mxu0 %v6574
      %6979 = vmatprep.subr.bf16.mxu0 %v6583
      %6980 = vmatpush1.bf16.msra.mxu0 %v6582
      %6981 = vmatprep.subr.bf16.mxu0 %v6591
      %6982 = vmatpush1.bf16.msra.mxu0 %v6590
      %6983 = vmatprep.subr.bf16.mxu0 %v6599
      %6984 = vmatpush1.bf16.msra.mxu0 %v6598
      %6985 = vmatprep.subr.bf16.mxu0 %v6607
      %6986 = vmatpush1.bf16.msra.mxu0 %v6606
      %6987 = vmatprep.subr.bf16.mxu0 %v6615
      %6988 = vmatpush1.bf16.msra.mxu0 %v6614
      %6989 = vmatprep.subr.bf16.mxu0 %v6623
      %6990 = vmatpush1.bf16.msra.mxu0 %v6622
      %6991 = vmatprep.subr.bf16.mxu0 %v6631
      %6992 = vmatpush1.bf16.msra.mxu0 %v6630
      %6993 = vmatprep.subr.bf16.mxu0 %v6639
      %6994 = vmatpush1.bf16.msra.mxu0 %v6638
      %6995 = vmatprep.subr.bf16.mxu0 %v6647
      %6996 = vmatpush1.bf16.msra.mxu0 %v6646
      %6997 = vmatprep.subr.bf16.mxu0 %v6655
      %6998 = vmatpush1.bf16.msra.mxu0 %v6654
      %6999 = vmatprep.subr.bf16.mxu0 %v6663
      %7000 = vmatpush1.bf16.msra.mxu0 %v6662
      %7001 = vmatprep.mubr.bf16.mxu0 %v5347
      %7002 = vmatmul.mubr.bf16.gmra.mrb[0].mxu0 %v5346
      %v7003 = vpop.f32.mrb[0].mxu0
      %v7004 = vadd.f32 %v6961, %v7003
      %v7005 = vpop.f32.mrb[0].mxu0
      %v7006 = vadd.f32 %v6963, %v7005
      %v7007 = vpop.f32.mrb[0].mxu0
      %v7008 = vadd.f32 %v6965, %v7007
      %v7009 = vpop.f32.mrb[0].mxu0
      %v7010 = vadd.f32 %v6967, %v7009
      %7011 = vdwg.mxu0
      %7012 = vmatprep.subr.bf16.mxu0 %v6417
      %7013 = vmatpush1.bf16.msra.mxu0 %v6416
      %7014 = vmatprep.subr.bf16.mxu0 %v6425
      %7015 = vmatpush1.bf16.msra.mxu0 %v6424
      %7016 = vmatprep.subr.bf16.mxu0 %v6433
      %7017 = vmatpush1.bf16.msra.mxu0 %v6432
      %7018 = vmatprep.subr.bf16.mxu0 %v6441
      %7019 = vmatpush1.bf16.msra.mxu0 %v6440
      %7020 = vmatprep.subr.bf16.mxu0 %v6449
      %7021 = vmatpush1.bf16.msra.mxu0 %v6448
      %7022 = vmatprep.subr.bf16.mxu0 %v6457
      %7023 = vmatpush1.bf16.msra.mxu0 %v6456
      %7024 = vmatprep.subr.bf16.mxu0 %v6465
      %7025 = vmatpush1.bf16.msra.mxu0 %v6464
      %7026 = vmatprep.subr.bf16.mxu0 %v6473
      %7027 = vmatpush1.bf16.msra.mxu0 %v6472
      %7028 = vmatprep.subr.bf16.mxu0 %v6481
      %7029 = vmatpush1.bf16.msra.mxu0 %v6480
      %7030 = vmatprep.subr.bf16.mxu0 %v6489
      %7031 = vmatpush1.bf16.msra.mxu0 %v6488
      %7032 = vmatprep.subr.bf16.mxu0 %v6497
      %7033 = vmatpush1.bf16.msra.mxu0 %v6496
      %7034 = vmatprep.subr.bf16.mxu0 %v6505
      %7035 = vmatpush1.bf16.msra.mxu0 %v6504
      %7036 = vmatprep.subr.bf16.mxu0 %v6513
      %7037 = vmatpush1.bf16.msra.mxu0 %v6512
      %7038 = vmatprep.subr.bf16.mxu0 %v6521
      %7039 = vmatpush1.bf16.msra.mxu0 %v6520
      %7040 = vmatprep.subr.bf16.mxu0 %v6529
      %7041 = vmatpush1.bf16.msra.mxu0 %v6528
      %7042 = vmatprep.subr.bf16.mxu0 %v6537
      %7043 = vmatpush1.bf16.msra.mxu0 %v6536
      %7044 = vmatprep.mubr.bf16.mxu0 %v5345
      %7045 = vmatmul.mubr.bf16.gmra.mrb[0].mxu0 %v5344
      %v7046 = vpop.f32.mrb[0].mxu0
      %v7047 = vadd.f32 %v5617, %v7046
      %v7048 = vpop.f32.mrb[0].mxu0
      %v7049 = vadd.f32 %v5621, %v7048
      %v7050 = vpop.f32.mrb[0].mxu0
      %v7051 = vadd.f32 %v5617, %v7050
      %v7052 = vpop.f32.mrb[0].mxu0
      %v7053 = vadd.f32 %v5621, %v7052
      %7054 = vdwg.mxu0
      %7055 = vmatprep.subr.bf16.mxu0 %v6545
      %7056 = vmatpush1.bf16.msra.mxu0 %v6544
      %7057 = vmatprep.subr.bf16.mxu0 %v6553
      %7058 = vmatpush1.bf16.msra.mxu0 %v6552
      %7059 = vmatprep.subr.bf16.mxu0 %v6561
      %7060 = vmatpush1.bf16.msra.mxu0 %v6560
      %7061 = vmatprep.subr.bf16.mxu0 %v6569
      %7062 = vmatpush1.bf16.msra.mxu0 %v6568
      %7063 = vmatprep.subr.bf16.mxu0 %v6577
      %7064 = vmatpush1.bf16.msra.mxu0 %v6576
      %7065 = vmatprep.subr.bf16.mxu0 %v6585
      %7066 = vmatpush1.bf16.msra.mxu0 %v6584
      %7067 = vmatprep.subr.bf16.mxu0 %v6593
      %7068 = vmatpush1.bf16.msra.mxu0 %v6592
      %7069 = vmatprep.subr.bf16.mxu0 %v6601
      %7070 = vmatpush1.bf16.msra.mxu0 %v6600
      %7071 = vmatprep.subr.bf16.mxu0 %v6609
      %7072 = vmatpush1.bf16.msra.mxu0 %v6608
      %7073 = vmatprep.subr.bf16.mxu0 %v6617
      %7074 = vmatpush1.bf16.msra.mxu0 %v6616
      %7075 = vmatprep.subr.bf16.mxu0 %v6625
      %7076 = vmatpush1.bf16.msra.mxu0 %v6624
      %7077 = vmatprep.subr.bf16.mxu0 %v6633
      %7078 = vmatpush1.bf16.msra.mxu0 %v6632
      %7079 = vmatprep.subr.bf16.mxu0 %v6641
      %7080 = vmatpush1.bf16.msra.mxu0 %v6640
      %7081 = vmatprep.subr.bf16.mxu0 %v6649
      %7082 = vmatpush1.bf16.msra.mxu0 %v6648
      %7083 = vmatprep.subr.bf16.mxu0 %v6657
      %7084 = vmatpush1.bf16.msra.mxu0 %v6656
      %7085 = vmatprep.subr.bf16.mxu0 %v6665
      %7086 = vmatpush1.bf16.msra.mxu0 %v6664
      %7087 = vmatprep.mubr.bf16.mxu0 %v5347
      %7088 = vmatmul.mubr.bf16.gmra.mrb[0].mxu0 %v5346
      %v7089 = vpop.f32.mrb[0].mxu0
      %v7090 = vadd.f32 %v7047, %v7089
      %v7091 = vpop.f32.mrb[0].mxu0
      %v7092 = vadd.f32 %v7049, %v7091
      %v7093 = vpop.f32.mrb[0].mxu0
      %v7094 = vadd.f32 %v7051, %v7093
      %v7095 = vpop.f32.mrb[0].mxu0
      %v7096 = vadd.f32 %v7053, %v7095
      %7097 = vdwg.mxu0
      %7098 = vmatprep.subr.bf16.mxu0 %v6419
      %7099 = vmatpush1.bf16.msra.mxu0 %v6418
      %7100 = vmatprep.subr.bf16.mxu0 %v6427
      %7101 = vmatpush1.bf16.msra.mxu0 %v6426
      %7102 = vmatprep.subr.bf16.mxu0 %v6435
      %7103 = vmatpush1.bf16.msra.mxu0 %v6434
      %7104 = vmatprep.subr.bf16.mxu0 %v6443
      %7105 = vmatpush1.bf16.msra.mxu0 %v6442
      %7106 = vmatprep.subr.bf16.mxu0 %v6451
      %7107 = vmatpush1.bf16.msra.mxu0 %v6450
      %7108 = vmatprep.subr.bf16.mxu0 %v6459
      %7109 = vmatpush1.bf16.msra.mxu0 %v6458
      %7110 = vmatprep.subr.bf16.mxu0 %v6467
      %7111 = vmatpush1.bf16.msra.mxu0 %v6466
      %7112 = vmatprep.subr.bf16.mxu0 %v6475
      %7113 = vmatpush1.bf16.msra.mxu0 %v6474
      %7114 = vmatprep.subr.bf16.mxu0 %v6483
      %7115 = vmatpush1.bf16.msra.mxu0 %v6482
      %7116 = vmatprep.subr.bf16.mxu0 %v6491
      %7117 = vmatpush1.bf16.msra.mxu0 %v6490
      %7118 = vmatprep.subr.bf16.mxu0 %v6499
      %7119 = vmatpush1.bf16.msra.mxu0 %v6498
      %7120 = vmatprep.subr.bf16.mxu0 %v6507
      %7121 = vmatpush1.bf16.msra.mxu0 %v6506
      %7122 = vmatprep.subr.bf16.mxu0 %v6515
      %7123 = vmatpush1.bf16.msra.mxu0 %v6514
      %7124 = vmatprep.subr.bf16.mxu0 %v6523
      %7125 = vmatpush1.bf16.msra.mxu0 %v6522
      %7126 = vmatprep.subr.bf16.mxu0 %v6531
      %7127 = vmatpush1.bf16.msra.mxu0 %v6530
      %7128 = vmatprep.subr.bf16.mxu0 %v6539
      %7129 = vmatpush1.bf16.msra.mxu0 %v6538
      %7130 = vmatprep.mubr.bf16.mxu0 %v5345
      %7131 = vmatmul.mubr.bf16.gmra.mrb[0].mxu0 %v5344
      %v7132 = vpop.f32.mrb[0].mxu0
      %v7133 = vadd.f32 %v5625, %v7132
      %v7134 = vpop.f32.mrb[0].mxu0
      %v7135 = vadd.f32 %v5629, %v7134
      %v7136 = vpop.f32.mrb[0].mxu0
      %v7137 = vadd.f32 %v5625, %v7136
      %v7138 = vpop.f32.mrb[0].mxu0
      %v7139 = vadd.f32 %v5629, %v7138
      %7140 = vdwg.mxu0
      %7141 = vmatprep.subr.bf16.mxu0 %v6547
      %7142 = vmatpush1.bf16.msra.mxu0 %v6546
      %7143 = vmatprep.subr.bf16.mxu0 %v6555
      %7144 = vmatpush1.bf16.msra.mxu0 %v6554
      %7145 = vmatprep.subr.bf16.mxu0 %v6563
      %7146 = vmatpush1.bf16.msra.mxu0 %v6562
      %7147 = vmatprep.subr.bf16.mxu0 %v6571
      %7148 = vmatpush1.bf16.msra.mxu0 %v6570
      %7149 = vmatprep.subr.bf16.mxu0 %v6579
      %7150 = vmatpush1.bf16.msra.mxu0 %v6578
      %7151 = vmatprep.subr.bf16.mxu0 %v6587
      %7152 = vmatpush1.bf16.msra.mxu0 %v6586
      %7153 = vmatprep.subr.bf16.mxu0 %v6595
      %7154 = vmatpush1.bf16.msra.mxu0 %v6594
      %7155 = vmatprep.subr.bf16.mxu0 %v6603
      %7156 = vmatpush1.bf16.msra.mxu0 %v6602
      %7157 = vmatprep.subr.bf16.mxu0 %v6611
      %7158 = vmatpush1.bf16.msra.mxu0 %v6610
      %7159 = vmatprep.subr.bf16.mxu0 %v6619
      %7160 = vmatpush1.bf16.msra.mxu0 %v6618
      %7161 = vmatprep.subr.bf16.mxu0 %v6627
      %7162 = vmatpush1.bf16.msra.mxu0 %v6626
      %7163 = vmatprep.subr.bf16.mxu0 %v6635
      %7164 = vmatpush1.bf16.msra.mxu0 %v6634
      %7165 = vmatprep.subr.bf16.mxu0 %v6643
      %7166 = vmatpush1.bf16.msra.mxu0 %v6642
      %7167 = vmatprep.subr.bf16.mxu0 %v6651
      %7168 = vmatpush1.bf16.msra.mxu0 %v6650
      %7169 = vmatprep.subr.bf16.mxu0 %v6659
      %7170 = vmatpush1.bf16.msra.mxu0 %v6658
      %7171 = vmatprep.subr.bf16.mxu0 %v6667
      %7172 = vmatpush1.bf16.msra.mxu0 %v6666
      %7173 = vmatprep.mubr.bf16.mxu0 %v5347
      %7174 = vmatmul.mubr.bf16.gmra.mrb[0].mxu0 %v5346
      %v7175 = vpop.f32.mrb[0].mxu0
      %v7176 = vadd.f32 %v7133, %v7175
      %v7177 = vpop.f32.mrb[0].mxu0
      %v7178 = vadd.f32 %v7135, %v7177
      %v7179 = vpop.f32.mrb[0].mxu0
      %v7180 = vadd.f32 %v7137, %v7179
      %v7181 = vpop.f32.mrb[0].mxu0
      %v7182 = vadd.f32 %v7139, %v7181
      %7183 = vdwg.mxu0
      %7184 = vmatprep.subr.bf16.mxu0 %v6421
      %7185 = vmatpush1.bf16.msra.mxu0 %v6420
      %7186 = vmatprep.subr.bf16.mxu0 %v6429
      %7187 = vmatpush1.bf16.msra.mxu0 %v6428
      %7188 = vmatprep.subr.bf16.mxu0 %v6437
      %7189 = vmatpush1.bf16.msra.mxu0 %v6436
      %7190 = vmatprep.subr.bf16.mxu0 %v6445
      %7191 = vmatpush1.bf16.msra.mxu0 %v6444
      %7192 = vmatprep.subr.bf16.mxu0 %v6453
      %7193 = vmatpush1.bf16.msra.mxu0 %v6452
      %7194 = vmatprep.subr.bf16.mxu0 %v6461
      %7195 = vmatpush1.bf16.msra.mxu0 %v6460
      %7196 = vmatprep.subr.bf16.mxu0 %v6469
      %7197 = vmatpush1.bf16.msra.mxu0 %v6468
      %7198 = vmatprep.subr.bf16.mxu0 %v6477
      %7199 = vmatpush1.bf16.msra.mxu0 %v6476
      %7200 = vmatprep.subr.bf16.mxu0 %v6485
      %7201 = vmatpush1.bf16.msra.mxu0 %v6484
      %7202 = vmatprep.subr.bf16.mxu0 %v6493
      %7203 = vmatpush1.bf16.msra.mxu0 %v6492
      %7204 = vmatprep.subr.bf16.mxu0 %v6501
      %7205 = vmatpush1.bf16.msra.mxu0 %v6500
      %7206 = vmatprep.subr.bf16.mxu0 %v6509
      %7207 = vmatpush1.bf16.msra.mxu0 %v6508
      %7208 = vmatprep.subr.bf16.mxu0 %v6517
      %7209 = vmatpush1.bf16.msra.mxu0 %v6516
      %7210 = vmatprep.subr.bf16.mxu0 %v6525
      %7211 = vmatpush1.bf16.msra.mxu0 %v6524
      %7212 = vmatprep.subr.bf16.mxu0 %v6533
      %7213 = vmatpush1.bf16.msra.mxu0 %v6532
      %7214 = vmatprep.subr.bf16.mxu0 %v6541
      %7215 = vmatpush1.bf16.msra.mxu0 %v6540
      %7216 = vmatprep.mubr.bf16.mxu0 %v5345
      %7217 = vmatmul.mubr.bf16.gmra.mrb[0].mxu0 %v5344
      %v7218 = vpop.f32.mrb[0].mxu0
      %v7219 = vadd.f32 %v5633, %v7218
      %v7220 = vpop.f32.mrb[0].mxu0
      %v7221 = vadd.f32 %v5637, %v7220
      %v7222 = vpop.f32.mrb[0].mxu0
      %v7223 = vadd.f32 %v5633, %v7222
      %v7224 = vpop.f32.mrb[0].mxu0
      %v7225 = vadd.f32 %v5637, %v7224
      %7226 = vdwg.mxu0
      %7227 = vmatprep.subr.bf16.mxu0 %v6549
      %7228 = vmatpush1.bf16.msra.mxu0 %v6548
      %7229 = vmatprep.subr.bf16.mxu0 %v6557
      %7230 = vmatpush1.bf16.msra.mxu0 %v6556
      %7231 = vmatprep.subr.bf16.mxu0 %v6565
      %7232 = vmatpush1.bf16.msra.mxu0 %v6564
      %7233 = vmatprep.subr.bf16.mxu0 %v6573
      %7234 = vmatpush1.bf16.msra.mxu0 %v6572
      %7235 = vmatprep.subr.bf16.mxu0 %v6581
      %7236 = vmatpush1.bf16.msra.mxu0 %v6580
      %7237 = vmatprep.subr.bf16.mxu0 %v6589
      %7238 = vmatpush1.bf16.msra.mxu0 %v6588
      %7239 = vmatprep.subr.bf16.mxu0 %v6597
      %7240 = vmatpush1.bf16.msra.mxu0 %v6596
      %7241 = vmatprep.subr.bf16.mxu0 %v6605
      %7242 = vmatpush1.bf16.msra.mxu0 %v6604
      %7243 = vmatprep.subr.bf16.mxu0 %v6613
      %7244 = vmatpush1.bf16.msra.mxu0 %v6612
      %7245 = vmatprep.subr.bf16.mxu0 %v6621
      %7246 = vmatpush1.bf16.msra.mxu0 %v6620
      %7247 = vmatprep.subr.bf16.mxu0 %v6629
      %7248 = vmatpush1.bf16.msra.mxu0 %v6628
      %7249 = vmatprep.subr.bf16.mxu0 %v6637
      %7250 = vmatpush1.bf16.msra.mxu0 %v6636
      %7251 = vmatprep.subr.bf16.mxu0 %v6645
      %7252 = vmatpush1.bf16.msra.mxu0 %v6644
      %7253 = vmatprep.subr.bf16.mxu0 %v6653
      %7254 = vmatpush1.bf16.msra.mxu0 %v6652
      %7255 = vmatprep.subr.bf16.mxu0 %v6661
      %7256 = vmatpush1.bf16.msra.mxu0 %v6660
      %7257 = vmatprep.subr.bf16.mxu0 %v6669
      %7258 = vmatpush1.bf16.msra.mxu0 %v6668
      %7259 = vmatprep.mubr.bf16.mxu0 %v5347
      %7260 = vmatmul.mubr.bf16.gmra.mrb[0].mxu0 %v5346
      %v7261 = vpop.f32.mrb[0].mxu0
      %v7262 = vadd.f32 %v7219, %v7261
      %v7263 = vpop.f32.mrb[0].mxu0
      %v7264 = vadd.f32 %v7221, %v7263
      %v7265 = vpop.f32.mrb[0].mxu0
      %v7266 = vadd.f32 %v7223, %v7265
      %v7267 = vpop.f32.mrb[0].mxu0
      %v7268 = vadd.f32 %v7225, %v7267
      %7269 = vdwg.mxu0
      %v7270 = vmul.f32 %v7004, 0.5
      %v7271 = vmul.f32 %v7006, 0.5
      %v7272 = vmul.f32 %v7090, 0.5
      %v7273 = vmul.f32 %v7092, 0.5
      %v7274 = vmul.f32 %v7176, 0.5
      %v7275 = vmul.f32 %v7178, 0.5
      %v7276 = vmul.f32 %v7262, 0.5
      %v7277 = vmul.f32 %v7264, 0.5
      %v7278 = vmul.f32 %v7008, 0.5
      %v7279 = vmul.f32 %v7010, 0.5
      %v7280 = vmul.f32 %v7094, 0.5
      %v7281 = vmul.f32 %v7096, 0.5
      %v7282 = vmul.f32 %v7180, 0.5
      %v7283 = vmul.f32 %v7182, 0.5
      %v7284 = vmul.f32 %v7266, 0.5
      %v7285 = vmul.f32 %v7268, 0.5
      %v7286 = vmul.f32 %v7004, 0.044715
      %v7287 = vmul.f32 %v7006, 0.044715
      %v7288 = vmul.f32 %v7090, 0.044715
      %v7289 = vmul.f32 %v7092, 0.044715
      %v7290 = vmul.f32 %v7176, 0.044715
      %v7291 = vmul.f32 %v7178, 0.044715
      %v7292 = vmul.f32 %v7262, 0.044715
      %v7293 = vmul.f32 %v7264, 0.044715
      %v7294 = vmul.f32 %v7008, 0.044715
      %v7295 = vmul.f32 %v7010, 0.044715
      %v7296 = vmul.f32 %v7094, 0.044715
      %v7297 = vmul.f32 %v7096, 0.044715
      %v7298 = vmul.f32 %v7180, 0.044715
      %v7299 = vmul.f32 %v7182, 0.044715
      %v7300 = vmul.f32 %v7266, 0.044715
      %v7301 = vmul.f32 %v7268, 0.044715
      %v7302 = vmul.f32 %v7286, %v7004
      %v7303 = vmul.f32 %v7287, %v7006
      %v7304 = vmul.f32 %v7288, %v7090
      %v7305 = vmul.f32 %v7289, %v7092
      %v7306 = vmul.f32 %v7290, %v7176
      %v7307 = vmul.f32 %v7291, %v7178
      %v7308 = vmul.f32 %v7292, %v7262
      %v7309 = vmul.f32 %v7293, %v7264
      %v7310 = vmul.f32 %v7294, %v7008
      %v7311 = vmul.f32 %v7295, %v7010
      %v7312 = vmul.f32 %v7296, %v7094
      %v7313 = vmul.f32 %v7297, %v7096
      %v7314 = vmul.f32 %v7298, %v7180
      %v7315 = vmul.f32 %v7299, %v7182
      %v7316 = vmul.f32 %v7300, %v7266
      %v7317 = vmul.f32 %v7301, %v7268
      %v7318 = vmul.f32 %v7302, %v7004
      %v7319 = vmul.f32 %v7303, %v7006
      %v7320 = vmul.f32 %v7304, %v7090
      %v7321 = vmul.f32 %v7305, %v7092
      %v7322 = vmul.f32 %v7306, %v7176
      %v7323 = vmul.f32 %v7307, %v7178
      %v7324 = vmul.f32 %v7308, %v7262
      %v7325 = vmul.f32 %v7309, %v7264
      %v7326 = vmul.f32 %v7310, %v7008
      %v7327 = vmul.f32 %v7311, %v7010
      %v7328 = vmul.f32 %v7312, %v7094
      %v7329 = vmul.f32 %v7313, %v7096
      %v7330 = vmul.f32 %v7314, %v7180
      %v7331 = vmul.f32 %v7315, %v7182
      %v7332 = vmul.f32 %v7316, %v7266
      %v7333 = vmul.f32 %v7317, %v7268
      %v7334 = vadd.f32 %v7004, %v7318
      %v7335 = vadd.f32 %v7006, %v7319
      %v7336 = vadd.f32 %v7090, %v7320
      %v7337 = vadd.f32 %v7092, %v7321
      %v7338 = vadd.f32 %v7176, %v7322
      %v7339 = vadd.f32 %v7178, %v7323
      %v7340 = vadd.f32 %v7262, %v7324
      %v7341 = vadd.f32 %v7264, %v7325
      %v7342 = vadd.f32 %v7008, %v7326
      %v7343 = vadd.f32 %v7010, %v7327
      %v7344 = vadd.f32 %v7094, %v7328
      %v7345 = vadd.f32 %v7096, %v7329
      %v7346 = vadd.f32 %v7180, %v7330
      %v7347 = vadd.f32 %v7182, %v7331
      %v7348 = vadd.f32 %v7266, %v7332
      %v7349 = vadd.f32 %v7268, %v7333
      %v7350 = vmul.f32 %v7334, 0.7978846
      %v7351 = vmul.f32 %v7335, 0.7978846
      %v7352 = vmul.f32 %v7336, 0.7978846
      %v7353 = vmul.f32 %v7337, 0.7978846
      %v7354 = vmul.f32 %v7338, 0.7978846
      %v7355 = vmul.f32 %v7339, 0.7978846
      %v7356 = vmul.f32 %v7340, 0.7978846
      %v7357 = vmul.f32 %v7341, 0.7978846
      %v7358 = vmul.f32 %v7342, 0.7978846
      %v7359 = vmul.f32 %v7343, 0.7978846
      %v7360 = vmul.f32 %v7344, 0.7978846
      %v7361 = vmul.f32 %v7345, 0.7978846
      %v7362 = vmul.f32 %v7346, 0.7978846
      %v7363 = vmul.f32 %v7347, 0.7978846
      %v7364 = vmul.f32 %v7348, 0.7978846
      %v7365 = vmul.f32 %v7349, 0.7978846
      %v7366 = vtanh.pop %v7350
      %v7367 = vtanh.pop %v7351
      %v7368 = vtanh.pop %v7352
      %v7369 = vtanh.pop %v7353
      %v7370 = vtanh.pop %v7354
      %v7371 = vtanh.pop %v7355
      %v7372 = vtanh.pop %v7356
      %v7373 = vtanh.pop %v7357
      %v7374 = vtanh.pop %v7358
      %v7375 = vtanh.pop %v7359
      %v7376 = vtanh.pop %v7360
      %v7377 = vtanh.pop %v7361
      %v7378 = vtanh.pop %v7362
      %v7379 = vtanh.pop %v7363
      %v7380 = vtanh.pop %v7364
      %v7381 = vtanh.pop %v7365
      %v7382 = vadd.f32 %v7366, 1.0
      %v7383 = vadd.f32 %v7367, 1.0
      %v7384 = vadd.f32 %v7368, 1.0
      %v7385 = vadd.f32 %v7369, 1.0
      %v7386 = vadd.f32 %v7370, 1.0
      %v7387 = vadd.f32 %v7371, 1.0
      %v7388 = vadd.f32 %v7372, 1.0
      %v7389 = vadd.f32 %v7373, 1.0
      %v7390 = vadd.f32 %v7374, 1.0
      %v7391 = vadd.f32 %v7375, 1.0
      %v7392 = vadd.f32 %v7376, 1.0
      %v7393 = vadd.f32 %v7377, 1.0
      %v7394 = vadd.f32 %v7378, 1.0
      %v7395 = vadd.f32 %v7379, 1.0
      %v7396 = vadd.f32 %v7380, 1.0
      %v7397 = vadd.f32 %v7381, 1.0
      %v7398 = vmul.f32 %v7270, %v7382
      %v7399 = vmul.f32 %v7271, %v7383
      %v7400 = vmul.f32 %v7272, %v7384
      %v7401 = vmul.f32 %v7273, %v7385
      %v7402 = vmul.f32 %v7274, %v7386
      %v7403 = vmul.f32 %v7275, %v7387
      %v7404 = vmul.f32 %v7276, %v7388
      %v7405 = vmul.f32 %v7277, %v7389
      %v7406 = vmul.f32 %v7278, %v7390
      %v7407 = vmul.f32 %v7279, %v7391
      %v7408 = vmul.f32 %v7280, %v7392
      %v7409 = vmul.f32 %v7281, %v7393
      %v7410 = vmul.f32 %v7282, %v7394
      %v7411 = vmul.f32 %v7283, %v7395
      %v7412 = vmul.f32 %v7284, %v7396
      %v7413 = vmul.f32 %v7285, %v7397
      %v7414 = vpack.c.bf16 %v7406, %v7398
      %v7415 = vpack.c.bf16 %v7407, %v7399
      %v7416 = vpack.c.bf16 %v7408, %v7400
      %v7417 = vpack.c.bf16 %v7409, %v7401
      %v7418 = vpack.c.bf16 %v7410, %v7402
      %v7419 = vpack.c.bf16 %v7411, %v7403
      %v7420 = vpack.c.bf16 %v7412, %v7404
      %v7421 = vpack.c.bf16 %v7413, %v7405
      %v7422 = vld [vmem:[%s13] sm:$0xff]
      %v7423 = vld [vmem:[%s13 + $0x8] sm:$0xff]
      %v7424 = vld [vmem:[%s13 + $0x10] sm:$0xff]
      %v7425 = vld [vmem:[%s13 + $0x18] sm:$0xff]
      %v7426 = vld [vmem:[%s13 + $0x20] sm:$0xff]
      %v7427 = vld [vmem:[%s13 + $0x28] sm:$0xff]
      %v7428 = vld [vmem:[%s13 + $0x30] sm:$0xff]
      %v7429 = vld [vmem:[%s13 + $0x38] sm:$0xff]
      %v7430 = vld [vmem:[%s13 + $0x40] sm:$0xff]
      %v7431 = vld [vmem:[%s13 + $0x48] sm:$0xff]
      %v7432 = vld [vmem:[%s13 + $0x50] sm:$0xff]
      %v7433 = vld [vmem:[%s13 + $0x58] sm:$0xff]
      %v7434 = vld [vmem:[%s13 + $0x60] sm:$0xff]
      %v7435 = vld [vmem:[%s13 + $0x68] sm:$0xff]
      %v7436 = vld [vmem:[%s13 + $0x70] sm:$0xff]
      %v7437 = vld [vmem:[%s13 + $0x78] sm:$0xff]
      %v7438 = vld [vmem:[%s13 + $0x80] sm:$0xff]
      %v7439 = vld [vmem:[%s13 + $0x88] sm:$0xff]
      %v7440 = vld [vmem:[%s13 + $0x90] sm:$0xff]
      %v7441 = vld [vmem:[%s13 + $0x98] sm:$0xff]
      %v7442 = vld [vmem:[%s13 + $0xa0] sm:$0xff]
      %v7443 = vld [vmem:[%s13 + $0xa8] sm:$0xff]
      %v7444 = vld [vmem:[%s13 + $0xb0] sm:$0xff]
      %v7445 = vld [vmem:[%s13 + $0xb8] sm:$0xff]
      %v7446 = vld [vmem:[%s13 + $0xc0] sm:$0xff]
      %v7447 = vld [vmem:[%s13 + $0xc8] sm:$0xff]
      %v7448 = vld [vmem:[%s13 + $0xd0] sm:$0xff]
      %v7449 = vld [vmem:[%s13 + $0xd8] sm:$0xff]
      %v7450 = vld [vmem:[%s13 + $0xe0] sm:$0xff]
      %v7451 = vld [vmem:[%s13 + $0xe8] sm:$0xff]
      %v7452 = vld [vmem:[%s13 + $0xf0] sm:$0xff]
      %v7453 = vld [vmem:[%s13 + $0xf8] sm:$0xff]
      %v7454 = vld [vmem:[%s13 + $0x100] sm:$0xff]
      %v7455 = vld [vmem:[%s13 + $0x108] sm:$0xff]
      %v7456 = vld [vmem:[%s13 + $0x110] sm:$0xff]
      %v7457 = vld [vmem:[%s13 + $0x118] sm:$0xff]
      %v7458 = vld [vmem:[%s13 + $0x120] sm:$0xff]
      %v7459 = vld [vmem:[%s13 + $0x128] sm:$0xff]
      %v7460 = vld [vmem:[%s13 + $0x130] sm:$0xff]
      %v7461 = vld [vmem:[%s13 + $0x138] sm:$0xff]
      %v7462 = vld [vmem:[%s13 + $0x140] sm:$0xff]
      %v7463 = vld [vmem:[%s13 + $0x148] sm:$0xff]
      %v7464 = vld [vmem:[%s13 + $0x150] sm:$0xff]
      %v7465 = vld [vmem:[%s13 + $0x158] sm:$0xff]
      %v7466 = vld [vmem:[%s13 + $0x160] sm:$0xff]
      %v7467 = vld [vmem:[%s13 + $0x168] sm:$0xff]
      %v7468 = vld [vmem:[%s13 + $0x170] sm:$0xff]
      %v7469 = vld [vmem:[%s13 + $0x178] sm:$0xff]
      %v7470 = vld [vmem:[%s13 + $0x180] sm:$0xff]
      %v7471 = vld [vmem:[%s13 + $0x188] sm:$0xff]
      %v7472 = vld [vmem:[%s13 + $0x190] sm:$0xff]
      %v7473 = vld [vmem:[%s13 + $0x198] sm:$0xff]
      %v7474 = vld [vmem:[%s13 + $0x1a0] sm:$0xff]
      %v7475 = vld [vmem:[%s13 + $0x1a8] sm:$0xff]
      %v7476 = vld [vmem:[%s13 + $0x1b0] sm:$0xff]
      %v7477 = vld [vmem:[%s13 + $0x1b8] sm:$0xff]
      %v7478 = vld [vmem:[%s13 + $0x1c0] sm:$0xff]
      %v7479 = vld [vmem:[%s13 + $0x1c8] sm:$0xff]
      %v7480 = vld [vmem:[%s13 + $0x1d0] sm:$0xff]
      %v7481 = vld [vmem:[%s13 + $0x1d8] sm:$0xff]
      %v7482 = vld [vmem:[%s13 + $0x1e0] sm:$0xff]
      %v7483 = vld [vmem:[%s13 + $0x1e8] sm:$0xff]
      %v7484 = vld [vmem:[%s13 + $0x1f0] sm:$0xff]
      %v7485 = vld [vmem:[%s13 + $0x1f8] sm:$0xff]
      %v7486 = vld [vmem:[%s13 + $0x200] sm:$0xff]
      %v7487 = vld [vmem:[%s13 + $0x208] sm:$0xff]
      %v7488 = vld [vmem:[%s13 + $0x210] sm:$0xff]
      %v7489 = vld [vmem:[%s13 + $0x218] sm:$0xff]
      %v7490 = vld [vmem:[%s13 + $0x220] sm:$0xff]
      %v7491 = vld [vmem:[%s13 + $0x228] sm:$0xff]
      %v7492 = vld [vmem:[%s13 + $0x230] sm:$0xff]
      %v7493 = vld [vmem:[%s13 + $0x238] sm:$0xff]
      %v7494 = vld [vmem:[%s13 + $0x240] sm:$0xff]
      %v7495 = vld [vmem:[%s13 + $0x248] sm:$0xff]
      %v7496 = vld [vmem:[%s13 + $0x250] sm:$0xff]
      %v7497 = vld [vmem:[%s13 + $0x258] sm:$0xff]
      %v7498 = vld [vmem:[%s13 + $0x260] sm:$0xff]
      %v7499 = vld [vmem:[%s13 + $0x268] sm:$0xff]
      %v7500 = vld [vmem:[%s13 + $0x270] sm:$0xff]
      %v7501 = vld [vmem:[%s13 + $0x278] sm:$0xff]
      %v7502 = vld [vmem:[%s13 + $0x280] sm:$0xff]
      %v7503 = vld [vmem:[%s13 + $0x288] sm:$0xff]
      %v7504 = vld [vmem:[%s13 + $0x290] sm:$0xff]
      %v7505 = vld [vmem:[%s13 + $0x298] sm:$0xff]
      %v7506 = vld [vmem:[%s13 + $0x2a0] sm:$0xff]
      %v7507 = vld [vmem:[%s13 + $0x2a8] sm:$0xff]
      %v7508 = vld [vmem:[%s13 + $0x2b0] sm:$0xff]
      %v7509 = vld [vmem:[%s13 + $0x2b8] sm:$0xff]
      %v7510 = vld [vmem:[%s13 + $0x2c0] sm:$0xff]
      %v7511 = vld [vmem:[%s13 + $0x2c8] sm:$0xff]
      %v7512 = vld [vmem:[%s13 + $0x2d0] sm:$0xff]
      %v7513 = vld [vmem:[%s13 + $0x2d8] sm:$0xff]
      %v7514 = vld [vmem:[%s13 + $0x2e0] sm:$0xff]
      %v7515 = vld [vmem:[%s13 + $0x2e8] sm:$0xff]
      %v7516 = vld [vmem:[%s13 + $0x2f0] sm:$0xff]
      %v7517 = vld [vmem:[%s13 + $0x2f8] sm:$0xff]
      %v7518 = vld [vmem:[%s13 + $0x300] sm:$0xff]
      %v7519 = vld [vmem:[%s13 + $0x308] sm:$0xff]
      %v7520 = vld [vmem:[%s13 + $0x310] sm:$0xff]
      %v7521 = vld [vmem:[%s13 + $0x318] sm:$0xff]
      %v7522 = vld [vmem:[%s13 + $0x320] sm:$0xff]
      %v7523 = vld [vmem:[%s13 + $0x328] sm:$0xff]
      %v7524 = vld [vmem:[%s13 + $0x330] sm:$0xff]
      %v7525 = vld [vmem:[%s13 + $0x338] sm:$0xff]
      %v7526 = vld [vmem:[%s13 + $0x340] sm:$0xff]
      %v7527 = vld [vmem:[%s13 + $0x348] sm:$0xff]
      %v7528 = vld [vmem:[%s13 + $0x350] sm:$0xff]
      %v7529 = vld [vmem:[%s13 + $0x358] sm:$0xff]
      %v7530 = vld [vmem:[%s13 + $0x360] sm:$0xff]
      %v7531 = vld [vmem:[%s13 + $0x368] sm:$0xff]
      %v7532 = vld [vmem:[%s13 + $0x370] sm:$0xff]
      %v7533 = vld [vmem:[%s13 + $0x378] sm:$0xff]
      %v7534 = vld [vmem:[%s13 + $0x380] sm:$0xff]
      %v7535 = vld [vmem:[%s13 + $0x388] sm:$0xff]
      %v7536 = vld [vmem:[%s13 + $0x390] sm:$0xff]
      %v7537 = vld [vmem:[%s13 + $0x398] sm:$0xff]
      %v7538 = vld [vmem:[%s13 + $0x3a0] sm:$0xff]
      %v7539 = vld [vmem:[%s13 + $0x3a8] sm:$0xff]
      %v7540 = vld [vmem:[%s13 + $0x3b0] sm:$0xff]
      %v7541 = vld [vmem:[%s13 + $0x3b8] sm:$0xff]
      %v7542 = vld [vmem:[%s13 + $0x3c0] sm:$0xff]
      %v7543 = vld [vmem:[%s13 + $0x3c8] sm:$0xff]
      %v7544 = vld [vmem:[%s13 + $0x3d0] sm:$0xff]
      %v7545 = vld [vmem:[%s13 + $0x3d8] sm:$0xff]
      %v7546 = vld [vmem:[%s13 + $0x3e0] sm:$0xff]
      %v7547 = vld [vmem:[%s13 + $0x3e8] sm:$0xff]
      %v7548 = vld [vmem:[%s13 + $0x3f0] sm:$0xff]
      %v7549 = vld [vmem:[%s13 + $0x3f8] sm:$0xff]
      %v7550 = vld [vmem:[%s13 + $0x400] sm:$0xff]
      %v7551 = vld [vmem:[%s13 + $0x408] sm:$0xff]
      %v7552 = vld [vmem:[%s13 + $0x410] sm:$0xff]
      %v7553 = vld [vmem:[%s13 + $0x418] sm:$0xff]
      %v7554 = vld [vmem:[%s13 + $0x420] sm:$0xff]
      %v7555 = vld [vmem:[%s13 + $0x428] sm:$0xff]
      %v7556 = vld [vmem:[%s13 + $0x430] sm:$0xff]
      %v7557 = vld [vmem:[%s13 + $0x438] sm:$0xff]
      %v7558 = vld [vmem:[%s13 + $0x440] sm:$0xff]
      %v7559 = vld [vmem:[%s13 + $0x448] sm:$0xff]
      %v7560 = vld [vmem:[%s13 + $0x450] sm:$0xff]
      %v7561 = vld [vmem:[%s13 + $0x458] sm:$0xff]
      %v7562 = vld [vmem:[%s13 + $0x460] sm:$0xff]
      %v7563 = vld [vmem:[%s13 + $0x468] sm:$0xff]
      %v7564 = vld [vmem:[%s13 + $0x470] sm:$0xff]
      %v7565 = vld [vmem:[%s13 + $0x478] sm:$0xff]
      %v7566 = vld [vmem:[%s13 + $0x480] sm:$0xff]
      %v7567 = vld [vmem:[%s13 + $0x488] sm:$0xff]
      %v7568 = vld [vmem:[%s13 + $0x490] sm:$0xff]
      %v7569 = vld [vmem:[%s13 + $0x498] sm:$0xff]
      %v7570 = vld [vmem:[%s13 + $0x4a0] sm:$0xff]
      %v7571 = vld [vmem:[%s13 + $0x4a8] sm:$0xff]
      %v7572 = vld [vmem:[%s13 + $0x4b0] sm:$0xff]
      %v7573 = vld [vmem:[%s13 + $0x4b8] sm:$0xff]
      %v7574 = vld [vmem:[%s13 + $0x4c0] sm:$0xff]
      %v7575 = vld [vmem:[%s13 + $0x4c8] sm:$0xff]
      %v7576 = vld [vmem:[%s13 + $0x4d0] sm:$0xff]
      %v7577 = vld [vmem:[%s13 + $0x4d8] sm:$0xff]
      %v7578 = vld [vmem:[%s13 + $0x4e0] sm:$0xff]
      %v7579 = vld [vmem:[%s13 + $0x4e8] sm:$0xff]
      %v7580 = vld [vmem:[%s13 + $0x4f0] sm:$0xff]
      %v7581 = vld [vmem:[%s13 + $0x4f8] sm:$0xff]
      %v7582 = vld [vmem:[%s13 + $0x500] sm:$0xff]
      %v7583 = vld [vmem:[%s13 + $0x508] sm:$0xff]
      %v7584 = vld [vmem:[%s13 + $0x510] sm:$0xff]
      %v7585 = vld [vmem:[%s13 + $0x518] sm:$0xff]
      %v7586 = vld [vmem:[%s13 + $0x520] sm:$0xff]
      %v7587 = vld [vmem:[%s13 + $0x528] sm:$0xff]
      %v7588 = vld [vmem:[%s13 + $0x530] sm:$0xff]
      %v7589 = vld [vmem:[%s13 + $0x538] sm:$0xff]
      %v7590 = vld [vmem:[%s13 + $0x540] sm:$0xff]
      %v7591 = vld [vmem:[%s13 + $0x548] sm:$0xff]
      %v7592 = vld [vmem:[%s13 + $0x550] sm:$0xff]
      %v7593 = vld [vmem:[%s13 + $0x558] sm:$0xff]
      %v7594 = vld [vmem:[%s13 + $0x560] sm:$0xff]
      %v7595 = vld [vmem:[%s13 + $0x568] sm:$0xff]
      %v7596 = vld [vmem:[%s13 + $0x570] sm:$0xff]
      %v7597 = vld [vmem:[%s13 + $0x578] sm:$0xff]
      %v7598 = vld [vmem:[%s13 + $0x580] sm:$0xff]
      %v7599 = vld [vmem:[%s13 + $0x588] sm:$0xff]
      %v7600 = vld [vmem:[%s13 + $0x590] sm:$0xff]
      %v7601 = vld [vmem:[%s13 + $0x598] sm:$0xff]
      %v7602 = vld [vmem:[%s13 + $0x5a0] sm:$0xff]
      %v7603 = vld [vmem:[%s13 + $0x5a8] sm:$0xff]
      %v7604 = vld [vmem:[%s13 + $0x5b0] sm:$0xff]
      %v7605 = vld [vmem:[%s13 + $0x5b8] sm:$0xff]
      %v7606 = vld [vmem:[%s13 + $0x5c0] sm:$0xff]
      %v7607 = vld [vmem:[%s13 + $0x5c8] sm:$0xff]
      %v7608 = vld [vmem:[%s13 + $0x5d0] sm:$0xff]
      %v7609 = vld [vmem:[%s13 + $0x5d8] sm:$0xff]
      %v7610 = vld [vmem:[%s13 + $0x5e0] sm:$0xff]
      %v7611 = vld [vmem:[%s13 + $0x5e8] sm:$0xff]
      %v7612 = vld [vmem:[%s13 + $0x5f0] sm:$0xff]
      %v7613 = vld [vmem:[%s13 + $0x5f8] sm:$0xff]
      %v7614 = vld [vmem:[%s13 + $0x600] sm:$0xff]
      %v7615 = vld [vmem:[%s13 + $0x608] sm:$0xff]
      %v7616 = vld [vmem:[%s13 + $0x610] sm:$0xff]
      %v7617 = vld [vmem:[%s13 + $0x618] sm:$0xff]
      %v7618 = vld [vmem:[%s13 + $0x620] sm:$0xff]
      %v7619 = vld [vmem:[%s13 + $0x628] sm:$0xff]
      %v7620 = vld [vmem:[%s13 + $0x630] sm:$0xff]
      %v7621 = vld [vmem:[%s13 + $0x638] sm:$0xff]
      %v7622 = vld [vmem:[%s13 + $0x640] sm:$0xff]
      %v7623 = vld [vmem:[%s13 + $0x648] sm:$0xff]
      %v7624 = vld [vmem:[%s13 + $0x650] sm:$0xff]
      %v7625 = vld [vmem:[%s13 + $0x658] sm:$0xff]
      %v7626 = vld [vmem:[%s13 + $0x660] sm:$0xff]
      %v7627 = vld [vmem:[%s13 + $0x668] sm:$0xff]
      %v7628 = vld [vmem:[%s13 + $0x670] sm:$0xff]
      %v7629 = vld [vmem:[%s13 + $0x678] sm:$0xff]
      %v7630 = vld [vmem:[%s13 + $0x680] sm:$0xff]
      %v7631 = vld [vmem:[%s13 + $0x688] sm:$0xff]
      %v7632 = vld [vmem:[%s13 + $0x690] sm:$0xff]
      %v7633 = vld [vmem:[%s13 + $0x698] sm:$0xff]
      %v7634 = vld [vmem:[%s13 + $0x6a0] sm:$0xff]
      %v7635 = vld [vmem:[%s13 + $0x6a8] sm:$0xff]
      %v7636 = vld [vmem:[%s13 + $0x6b0] sm:$0xff]
      %v7637 = vld [vmem:[%s13 + $0x6b8] sm:$0xff]
      %v7638 = vld [vmem:[%s13 + $0x6c0] sm:$0xff]
      %v7639 = vld [vmem:[%s13 + $0x6c8] sm:$0xff]
      %v7640 = vld [vmem:[%s13 + $0x6d0] sm:$0xff]
      %v7641 = vld [vmem:[%s13 + $0x6d8] sm:$0xff]
      %v7642 = vld [vmem:[%s13 + $0x6e0] sm:$0xff]
      %v7643 = vld [vmem:[%s13 + $0x6e8] sm:$0xff]
      %v7644 = vld [vmem:[%s13 + $0x6f0] sm:$0xff]
      %v7645 = vld [vmem:[%s13 + $0x6f8] sm:$0xff]
      %v7646 = vld [vmem:[%s13 + $0x700] sm:$0xff]
      %v7647 = vld [vmem:[%s13 + $0x708] sm:$0xff]
      %v7648 = vld [vmem:[%s13 + $0x710] sm:$0xff]
      %v7649 = vld [vmem:[%s13 + $0x718] sm:$0xff]
      %v7650 = vld [vmem:[%s13 + $0x720] sm:$0xff]
      %v7651 = vld [vmem:[%s13 + $0x728] sm:$0xff]
      %v7652 = vld [vmem:[%s13 + $0x730] sm:$0xff]
      %v7653 = vld [vmem:[%s13 + $0x738] sm:$0xff]
      %v7654 = vld [vmem:[%s13 + $0x740] sm:$0xff]
      %v7655 = vld [vmem:[%s13 + $0x748] sm:$0xff]
      %v7656 = vld [vmem:[%s13 + $0x750] sm:$0xff]
      %v7657 = vld [vmem:[%s13 + $0x758] sm:$0xff]
      %v7658 = vld [vmem:[%s13 + $0x760] sm:$0xff]
      %v7659 = vld [vmem:[%s13 + $0x768] sm:$0xff]
      %v7660 = vld [vmem:[%s13 + $0x770] sm:$0xff]
      %v7661 = vld [vmem:[%s13 + $0x778] sm:$0xff]
      %v7662 = vld [vmem:[%s13 + $0x780] sm:$0xff]
      %v7663 = vld [vmem:[%s13 + $0x788] sm:$0xff]
      %v7664 = vld [vmem:[%s13 + $0x790] sm:$0xff]
      %v7665 = vld [vmem:[%s13 + $0x798] sm:$0xff]
      %v7666 = vld [vmem:[%s13 + $0x7a0] sm:$0xff]
      %v7667 = vld [vmem:[%s13 + $0x7a8] sm:$0xff]
      %v7668 = vld [vmem:[%s13 + $0x7b0] sm:$0xff]
      %v7669 = vld [vmem:[%s13 + $0x7b8] sm:$0xff]
      %v7670 = vld [vmem:[%s13 + $0x7c0] sm:$0xff]
      %v7671 = vld [vmem:[%s13 + $0x7c8] sm:$0xff]
      %v7672 = vld [vmem:[%s13 + $0x7d0] sm:$0xff]
      %v7673 = vld [vmem:[%s13 + $0x7d8] sm:$0xff]
      %v7674 = vld [vmem:[%s13 + $0x7e0] sm:$0xff]
      %v7675 = vld [vmem:[%s13 + $0x7e8] sm:$0xff]
      %v7676 = vld [vmem:[%s13 + $0x7f0] sm:$0xff]
      %v7677 = vld [vmem:[%s13 + $0x7f8] sm:$0xff]
      %v7678 = vld [vmem:[%s14] sm:$0xf]
      %v7680 = vlaneseq
      %v7681 = vshrl.u32 %v7680, 7
      %v7682 = vsub.s32 0, %v7681
      %v7683 = vrot.slane %v7678, %v7682
      %v7684 = vlaneseq
      %v7685 = vshrl.u32 %v7684, 7
      %v7686 = vsub.s32 1, %v7685
      %v7687 = vrot.slane %v7678, %v7686
      %v7688 = vlaneseq
      %v7689 = vshrl.u32 %v7688, 7
      %v7690 = vsub.s32 2, %v7689
      %v7691 = vrot.slane %v7678, %v7690
      %v7692 = vlaneseq
      %v7693 = vshrl.u32 %v7692, 7
      %v7694 = vsub.s32 3, %v7693
      %v7695 = vrot.slane %v7678, %v7694
      %v7956 = vunpack.c.l.b16 %v7422
      %v7957 = vunpack.c.h.b16 %v7422
      %v7958 = vunpack.c.l.b16 %v7423
      %v7959 = vunpack.c.h.b16 %v7423
      %v7960 = vunpack.c.l.b16 %v7424
      %v7961 = vunpack.c.h.b16 %v7424
      %v7962 = vunpack.c.l.b16 %v7425
      %v7963 = vunpack.c.h.b16 %v7425
      %v7964 = vunpack.c.l.b16 %v7426
      %v7965 = vunpack.c.h.b16 %v7426
      %v7966 = vunpack.c.l.b16 %v7427
      %v7967 = vunpack.c.h.b16 %v7427
      %v7968 = vunpack.c.l.b16 %v7428
      %v7969 = vunpack.c.h.b16 %v7428
      %v7970 = vunpack.c.l.b16 %v7429
      %v7971 = vunpack.c.h.b16 %v7429
      %v7972 = vunpack.c.l.b16 %v7430
      %v7973 = vunpack.c.h.b16 %v7430
      %v7974 = vunpack.c.l.b16 %v7431
      %v7975 = vunpack.c.h.b16 %v7431
      %v7976 = vunpack.c.l.b16 %v7432
      %v7977 = vunpack.c.h.b16 %v7432
      %v7978 = vunpack.c.l.b16 %v7433
      %v7979 = vunpack.c.h.b16 %v7433
      %v7980 = vunpack.c.l.b16 %v7434
      %v7981 = vunpack.c.h.b16 %v7434
      %v7982 = vunpack.c.l.b16 %v7435
      %v7983 = vunpack.c.h.b16 %v7435
      %v7984 = vunpack.c.l.b16 %v7436
      %v7985 = vunpack.c.h.b16 %v7436
      %v7986 = vunpack.c.l.b16 %v7437
      %v7987 = vunpack.c.h.b16 %v7437
      %v7988 = vunpack.c.l.b16 %v7438
      %v7989 = vunpack.c.h.b16 %v7438
      %v7990 = vunpack.c.l.b16 %v7439
      %v7991 = vunpack.c.h.b16 %v7439
      %v7992 = vunpack.c.l.b16 %v7440
      %v7993 = vunpack.c.h.b16 %v7440
      %v7994 = vunpack.c.l.b16 %v7441
      %v7995 = vunpack.c.h.b16 %v7441
      %v7996 = vunpack.c.l.b16 %v7442
      %v7997 = vunpack.c.h.b16 %v7442
      %v7998 = vunpack.c.l.b16 %v7443
      %v7999 = vunpack.c.h.b16 %v7443
      %v8000 = vunpack.c.l.b16 %v7444
      %v8001 = vunpack.c.h.b16 %v7444
      %v8002 = vunpack.c.l.b16 %v7445
      %v8003 = vunpack.c.h.b16 %v7445
      %v8004 = vunpack.c.l.b16 %v7446
      %v8005 = vunpack.c.h.b16 %v7446
      %v8006 = vunpack.c.l.b16 %v7447
      %v8007 = vunpack.c.h.b16 %v7447
      %v8008 = vunpack.c.l.b16 %v7448
      %v8009 = vunpack.c.h.b16 %v7448
      %v8010 = vunpack.c.l.b16 %v7449
      %v8011 = vunpack.c.h.b16 %v7449
      %v8012 = vunpack.c.l.b16 %v7450
      %v8013 = vunpack.c.h.b16 %v7450
      %v8014 = vunpack.c.l.b16 %v7451
      %v8015 = vunpack.c.h.b16 %v7451
      %v8016 = vunpack.c.l.b16 %v7452
      %v8017 = vunpack.c.h.b16 %v7452
      %v8018 = vunpack.c.l.b16 %v7453
      %v8019 = vunpack.c.h.b16 %v7453
      %v8020 = vunpack.c.l.b16 %v7454
      %v8021 = vunpack.c.h.b16 %v7454
      %v8022 = vunpack.c.l.b16 %v7455
      %v8023 = vunpack.c.h.b16 %v7455
      %v8024 = vunpack.c.l.b16 %v7456
      %v8025 = vunpack.c.h.b16 %v7456
      %v8026 = vunpack.c.l.b16 %v7457
      %v8027 = vunpack.c.h.b16 %v7457
      %v8028 = vunpack.c.l.b16 %v7458
      %v8029 = vunpack.c.h.b16 %v7458
      %v8030 = vunpack.c.l.b16 %v7459
      %v8031 = vunpack.c.h.b16 %v7459
      %v8032 = vunpack.c.l.b16 %v7460
      %v8033 = vunpack.c.h.b16 %v7460
      %v8034 = vunpack.c.l.b16 %v7461
      %v8035 = vunpack.c.h.b16 %v7461
      %v8036 = vunpack.c.l.b16 %v7462
      %v8037 = vunpack.c.h.b16 %v7462
      %v8038 = vunpack.c.l.b16 %v7463
      %v8039 = vunpack.c.h.b16 %v7463
      %v8040 = vunpack.c.l.b16 %v7464
      %v8041 = vunpack.c.h.b16 %v7464
      %v8042 = vunpack.c.l.b16 %v7465
      %v8043 = vunpack.c.h.b16 %v7465
      %v8044 = vunpack.c.l.b16 %v7466
      %v8045 = vunpack.c.h.b16 %v7466
      %v8046 = vunpack.c.l.b16 %v7467
      %v8047 = vunpack.c.h.b16 %v7467
      %v8048 = vunpack.c.l.b16 %v7468
      %v8049 = vunpack.c.h.b16 %v7468
      %v8050 = vunpack.c.l.b16 %v7469
      %v8051 = vunpack.c.h.b16 %v7469
      %v8052 = vunpack.c.l.b16 %v7470
      %v8053 = vunpack.c.h.b16 %v7470
      %v8054 = vunpack.c.l.b16 %v7471
      %v8055 = vunpack.c.h.b16 %v7471
      %v8056 = vunpack.c.l.b16 %v7472
      %v8057 = vunpack.c.h.b16 %v7472
      %v8058 = vunpack.c.l.b16 %v7473
      %v8059 = vunpack.c.h.b16 %v7473
      %v8060 = vunpack.c.l.b16 %v7474
      %v8061 = vunpack.c.h.b16 %v7474
      %v8062 = vunpack.c.l.b16 %v7475
      %v8063 = vunpack.c.h.b16 %v7475
      %v8064 = vunpack.c.l.b16 %v7476
      %v8065 = vunpack.c.h.b16 %v7476
      %v8066 = vunpack.c.l.b16 %v7477
      %v8067 = vunpack.c.h.b16 %v7477
      %v8068 = vunpack.c.l.b16 %v7478
      %v8069 = vunpack.c.h.b16 %v7478
      %v8070 = vunpack.c.l.b16 %v7479
      %v8071 = vunpack.c.h.b16 %v7479
      %v8072 = vunpack.c.l.b16 %v7480
      %v8073 = vunpack.c.h.b16 %v7480
      %v8074 = vunpack.c.l.b16 %v7481
      %v8075 = vunpack.c.h.b16 %v7481
      %v8076 = vunpack.c.l.b16 %v7482
      %v8077 = vunpack.c.h.b16 %v7482
      %v8078 = vunpack.c.l.b16 %v7483
      %v8079 = vunpack.c.h.b16 %v7483
      %v8080 = vunpack.c.l.b16 %v7484
      %v8081 = vunpack.c.h.b16 %v7484
      %v8082 = vunpack.c.l.b16 %v7485
      %v8083 = vunpack.c.h.b16 %v7485
      %v8084 = vunpack.c.l.b16 %v7486
      %v8085 = vunpack.c.h.b16 %v7486
      %v8086 = vunpack.c.l.b16 %v7487
      %v8087 = vunpack.c.h.b16 %v7487
      %v8088 = vunpack.c.l.b16 %v7488
      %v8089 = vunpack.c.h.b16 %v7488
      %v8090 = vunpack.c.l.b16 %v7489
      %v8091 = vunpack.c.h.b16 %v7489
      %v8092 = vunpack.c.l.b16 %v7490
      %v8093 = vunpack.c.h.b16 %v7490
      %v8094 = vunpack.c.l.b16 %v7491
      %v8095 = vunpack.c.h.b16 %v7491
      %v8096 = vunpack.c.l.b16 %v7492
      %v8097 = vunpack.c.h.b16 %v7492
      %v8098 = vunpack.c.l.b16 %v7493
      %v8099 = vunpack.c.h.b16 %v7493
      %v8100 = vunpack.c.l.b16 %v7494
      %v8101 = vunpack.c.h.b16 %v7494
      %v8102 = vunpack.c.l.b16 %v7495
      %v8103 = vunpack.c.h.b16 %v7495
      %v8104 = vunpack.c.l.b16 %v7496
      %v8105 = vunpack.c.h.b16 %v7496
      %v8106 = vunpack.c.l.b16 %v7497
      %v8107 = vunpack.c.h.b16 %v7497
      %v8108 = vunpack.c.l.b16 %v7498
      %v8109 = vunpack.c.h.b16 %v7498
      %v8110 = vunpack.c.l.b16 %v7499
      %v8111 = vunpack.c.h.b16 %v7499
      %v8112 = vunpack.c.l.b16 %v7500
      %v8113 = vunpack.c.h.b16 %v7500
      %v8114 = vunpack.c.l.b16 %v7501
      %v8115 = vunpack.c.h.b16 %v7501
      %v8116 = vunpack.c.l.b16 %v7502
      %v8117 = vunpack.c.h.b16 %v7502
      %v8118 = vunpack.c.l.b16 %v7503
      %v8119 = vunpack.c.h.b16 %v7503
      %v8120 = vunpack.c.l.b16 %v7504
      %v8121 = vunpack.c.h.b16 %v7504
      %v8122 = vunpack.c.l.b16 %v7505
      %v8123 = vunpack.c.h.b16 %v7505
      %v8124 = vunpack.c.l.b16 %v7506
      %v8125 = vunpack.c.h.b16 %v7506
      %v8126 = vunpack.c.l.b16 %v7507
      %v8127 = vunpack.c.h.b16 %v7507
      %v8128 = vunpack.c.l.b16 %v7508
      %v8129 = vunpack.c.h.b16 %v7508
      %v8130 = vunpack.c.l.b16 %v7509
      %v8131 = vunpack.c.h.b16 %v7509
      %v8132 = vunpack.c.l.b16 %v7510
      %v8133 = vunpack.c.h.b16 %v7510
      %v8134 = vunpack.c.l.b16 %v7511
      %v8135 = vunpack.c.h.b16 %v7511
      %v8136 = vunpack.c.l.b16 %v7512
      %v8137 = vunpack.c.h.b16 %v7512
      %v8138 = vunpack.c.l.b16 %v7513
      %v8139 = vunpack.c.h.b16 %v7513
      %v8140 = vunpack.c.l.b16 %v7514
      %v8141 = vunpack.c.h.b16 %v7514
      %v8142 = vunpack.c.l.b16 %v7515
      %v8143 = vunpack.c.h.b16 %v7515
      %v8144 = vunpack.c.l.b16 %v7516
      %v8145 = vunpack.c.h.b16 %v7516
      %v8146 = vunpack.c.l.b16 %v7517
      %v8147 = vunpack.c.h.b16 %v7517
      %v8148 = vunpack.c.l.b16 %v7518
      %v8149 = vunpack.c.h.b16 %v7518
      %v8150 = vunpack.c.l.b16 %v7519
      %v8151 = vunpack.c.h.b16 %v7519
      %v8152 = vunpack.c.l.b16 %v7520
      %v8153 = vunpack.c.h.b16 %v7520
      %v8154 = vunpack.c.l.b16 %v7521
      %v8155 = vunpack.c.h.b16 %v7521
      %v8156 = vunpack.c.l.b16 %v7522
      %v8157 = vunpack.c.h.b16 %v7522
      %v8158 = vunpack.c.l.b16 %v7523
      %v8159 = vunpack.c.h.b16 %v7523
      %v8160 = vunpack.c.l.b16 %v7524
      %v8161 = vunpack.c.h.b16 %v7524
      %v8162 = vunpack.c.l.b16 %v7525
      %v8163 = vunpack.c.h.b16 %v7525
      %v8164 = vunpack.c.l.b16 %v7526
      %v8165 = vunpack.c.h.b16 %v7526
      %v8166 = vunpack.c.l.b16 %v7527
      %v8167 = vunpack.c.h.b16 %v7527
      %v8168 = vunpack.c.l.b16 %v7528
      %v8169 = vunpack.c.h.b16 %v7528
      %v8170 = vunpack.c.l.b16 %v7529
      %v8171 = vunpack.c.h.b16 %v7529
      %v8172 = vunpack.c.l.b16 %v7530
      %v8173 = vunpack.c.h.b16 %v7530
      %v8174 = vunpack.c.l.b16 %v7531
      %v8175 = vunpack.c.h.b16 %v7531
      %v8176 = vunpack.c.l.b16 %v7532
      %v8177 = vunpack.c.h.b16 %v7532
      %v8178 = vunpack.c.l.b16 %v7533
      %v8179 = vunpack.c.h.b16 %v7533
      %v8180 = vunpack.c.l.b16 %v7534
      %v8181 = vunpack.c.h.b16 %v7534
      %v8182 = vunpack.c.l.b16 %v7535
      %v8183 = vunpack.c.h.b16 %v7535
      %v8184 = vunpack.c.l.b16 %v7536
      %v8185 = vunpack.c.h.b16 %v7536
      %v8186 = vunpack.c.l.b16 %v7537
      %v8187 = vunpack.c.h.b16 %v7537
      %v8188 = vunpack.c.l.b16 %v7538
      %v8189 = vunpack.c.h.b16 %v7538
      %v8190 = vunpack.c.l.b16 %v7539
      %v8191 = vunpack.c.h.b16 %v7539
      %v8192 = vunpack.c.l.b16 %v7540
      %v8193 = vunpack.c.h.b16 %v7540
      %v8194 = vunpack.c.l.b16 %v7541
      %v8195 = vunpack.c.h.b16 %v7541
      %v8196 = vunpack.c.l.b16 %v7542
      %v8197 = vunpack.c.h.b16 %v7542
      %v8198 = vunpack.c.l.b16 %v7543
      %v8199 = vunpack.c.h.b16 %v7543
      %v8200 = vunpack.c.l.b16 %v7544
      %v8201 = vunpack.c.h.b16 %v7544
      %v8202 = vunpack.c.l.b16 %v7545
      %v8203 = vunpack.c.h.b16 %v7545
      %v8204 = vunpack.c.l.b16 %v7546
      %v8205 = vunpack.c.h.b16 %v7546
      %v8206 = vunpack.c.l.b16 %v7547
      %v8207 = vunpack.c.h.b16 %v7547
      %v8208 = vunpack.c.l.b16 %v7548
      %v8209 = vunpack.c.h.b16 %v7548
      %v8210 = vunpack.c.l.b16 %v7549
      %v8211 = vunpack.c.h.b16 %v7549
      %v8212 = vunpack.c.l.b16 %v7550
      %v8213 = vunpack.c.h.b16 %v7550
      %v8214 = vunpack.c.l.b16 %v7551
      %v8215 = vunpack.c.h.b16 %v7551
      %v8216 = vunpack.c.l.b16 %v7552
      %v8217 = vunpack.c.h.b16 %v7552
      %v8218 = vunpack.c.l.b16 %v7553
      %v8219 = vunpack.c.h.b16 %v7553
      %v8220 = vunpack.c.l.b16 %v7554
      %v8221 = vunpack.c.h.b16 %v7554
      %v8222 = vunpack.c.l.b16 %v7555
      %v8223 = vunpack.c.h.b16 %v7555
      %v8224 = vunpack.c.l.b16 %v7556
      %v8225 = vunpack.c.h.b16 %v7556
      %v8226 = vunpack.c.l.b16 %v7557
      %v8227 = vunpack.c.h.b16 %v7557
      %v8228 = vunpack.c.l.b16 %v7558
      %v8229 = vunpack.c.h.b16 %v7558
      %v8230 = vunpack.c.l.b16 %v7559
      %v8231 = vunpack.c.h.b16 %v7559
      %v8232 = vunpack.c.l.b16 %v7560
      %v8233 = vunpack.c.h.b16 %v7560
      %v8234 = vunpack.c.l.b16 %v7561
      %v8235 = vunpack.c.h.b16 %v7561
      %v8236 = vunpack.c.l.b16 %v7562
      %v8237 = vunpack.c.h.b16 %v7562
      %v8238 = vunpack.c.l.b16 %v7563
      %v8239 = vunpack.c.h.b16 %v7563
      %v8240 = vunpack.c.l.b16 %v7564
      %v8241 = vunpack.c.h.b16 %v7564
      %v8242 = vunpack.c.l.b16 %v7565
      %v8243 = vunpack.c.h.b16 %v7565
      %v8244 = vunpack.c.l.b16 %v7566
      %v8245 = vunpack.c.h.b16 %v7566
      %v8246 = vunpack.c.l.b16 %v7567
      %v8247 = vunpack.c.h.b16 %v7567
      %v8248 = vunpack.c.l.b16 %v7568
      %v8249 = vunpack.c.h.b16 %v7568
      %v8250 = vunpack.c.l.b16 %v7569
      %v8251 = vunpack.c.h.b16 %v7569
      %v8252 = vunpack.c.l.b16 %v7570
      %v8253 = vunpack.c.h.b16 %v7570
      %v8254 = vunpack.c.l.b16 %v7571
      %v8255 = vunpack.c.h.b16 %v7571
      %v8256 = vunpack.c.l.b16 %v7572
      %v8257 = vunpack.c.h.b16 %v7572
      %v8258 = vunpack.c.l.b16 %v7573
      %v8259 = vunpack.c.h.b16 %v7573
      %v8260 = vunpack.c.l.b16 %v7574
      %v8261 = vunpack.c.h.b16 %v7574
      %v8262 = vunpack.c.l.b16 %v7575
      %v8263 = vunpack.c.h.b16 %v7575
      %v8264 = vunpack.c.l.b16 %v7576
      %v8265 = vunpack.c.h.b16 %v7576
      %v8266 = vunpack.c.l.b16 %v7577
      %v8267 = vunpack.c.h.b16 %v7577
      %v8268 = vunpack.c.l.b16 %v7578
      %v8269 = vunpack.c.h.b16 %v7578
      %v8270 = vunpack.c.l.b16 %v7579
      %v8271 = vunpack.c.h.b16 %v7579
      %v8272 = vunpack.c.l.b16 %v7580
      %v8273 = vunpack.c.h.b16 %v7580
      %v8274 = vunpack.c.l.b16 %v7581
      %v8275 = vunpack.c.h.b16 %v7581
      %v8276 = vunpack.c.l.b16 %v7582
      %v8277 = vunpack.c.h.b16 %v7582
      %v8278 = vunpack.c.l.b16 %v7583
      %v8279 = vunpack.c.h.b16 %v7583
      %v8280 = vunpack.c.l.b16 %v7584
      %v8281 = vunpack.c.h.b16 %v7584
      %v8282 = vunpack.c.l.b16 %v7585
      %v8283 = vunpack.c.h.b16 %v7585
      %v8284 = vunpack.c.l.b16 %v7586
      %v8285 = vunpack.c.h.b16 %v7586
      %v8286 = vunpack.c.l.b16 %v7587
      %v8287 = vunpack.c.h.b16 %v7587
      %v8288 = vunpack.c.l.b16 %v7588
      %v8289 = vunpack.c.h.b16 %v7588
      %v8290 = vunpack.c.l.b16 %v7589
      %v8291 = vunpack.c.h.b16 %v7589
      %v8292 = vunpack.c.l.b16 %v7590
      %v8293 = vunpack.c.h.b16 %v7590
      %v8294 = vunpack.c.l.b16 %v7591
      %v8295 = vunpack.c.h.b16 %v7591
      %v8296 = vunpack.c.l.b16 %v7592
      %v8297 = vunpack.c.h.b16 %v7592
      %v8298 = vunpack.c.l.b16 %v7593
      %v8299 = vunpack.c.h.b16 %v7593
      %v8300 = vunpack.c.l.b16 %v7594
      %v8301 = vunpack.c.h.b16 %v7594
      %v8302 = vunpack.c.l.b16 %v7595
      %v8303 = vunpack.c.h.b16 %v7595
      %v8304 = vunpack.c.l.b16 %v7596
      %v8305 = vunpack.c.h.b16 %v7596
      %v8306 = vunpack.c.l.b16 %v7597
      %v8307 = vunpack.c.h.b16 %v7597
      %v8308 = vunpack.c.l.b16 %v7598
      %v8309 = vunpack.c.h.b16 %v7598
      %v8310 = vunpack.c.l.b16 %v7599
      %v8311 = vunpack.c.h.b16 %v7599
      %v8312 = vunpack.c.l.b16 %v7600
      %v8313 = vunpack.c.h.b16 %v7600
      %v8314 = vunpack.c.l.b16 %v7601
      %v8315 = vunpack.c.h.b16 %v7601
      %v8316 = vunpack.c.l.b16 %v7602
      %v8317 = vunpack.c.h.b16 %v7602
      %v8318 = vunpack.c.l.b16 %v7603
      %v8319 = vunpack.c.h.b16 %v7603
      %v8320 = vunpack.c.l.b16 %v7604
      %v8321 = vunpack.c.h.b16 %v7604
      %v8322 = vunpack.c.l.b16 %v7605
      %v8323 = vunpack.c.h.b16 %v7605
      %v8324 = vunpack.c.l.b16 %v7606
      %v8325 = vunpack.c.h.b16 %v7606
      %v8326 = vunpack.c.l.b16 %v7607
      %v8327 = vunpack.c.h.b16 %v7607
      %v8328 = vunpack.c.l.b16 %v7608
      %v8329 = vunpack.c.h.b16 %v7608
      %v8330 = vunpack.c.l.b16 %v7609
      %v8331 = vunpack.c.h.b16 %v7609
      %v8332 = vunpack.c.l.b16 %v7610
      %v8333 = vunpack.c.h.b16 %v7610
      %v8334 = vunpack.c.l.b16 %v7611
      %v8335 = vunpack.c.h.b16 %v7611
      %v8336 = vunpack.c.l.b16 %v7612
      %v8337 = vunpack.c.h.b16 %v7612
      %v8338 = vunpack.c.l.b16 %v7613
      %v8339 = vunpack.c.h.b16 %v7613
      %v8340 = vunpack.c.l.b16 %v7614
      %v8341 = vunpack.c.h.b16 %v7614
      %v8342 = vunpack.c.l.b16 %v7615
      %v8343 = vunpack.c.h.b16 %v7615
      %v8344 = vunpack.c.l.b16 %v7616
      %v8345 = vunpack.c.h.b16 %v7616
      %v8346 = vunpack.c.l.b16 %v7617
      %v8347 = vunpack.c.h.b16 %v7617
      %v8348 = vunpack.c.l.b16 %v7618
      %v8349 = vunpack.c.h.b16 %v7618
      %v8350 = vunpack.c.l.b16 %v7619
      %v8351 = vunpack.c.h.b16 %v7619
      %v8352 = vunpack.c.l.b16 %v7620
      %v8353 = vunpack.c.h.b16 %v7620
      %v8354 = vunpack.c.l.b16 %v7621
      %v8355 = vunpack.c.h.b16 %v7621
      %v8356 = vunpack.c.l.b16 %v7622
      %v8357 = vunpack.c.h.b16 %v7622
      %v8358 = vunpack.c.l.b16 %v7623
      %v8359 = vunpack.c.h.b16 %v7623
      %v8360 = vunpack.c.l.b16 %v7624
      %v8361 = vunpack.c.h.b16 %v7624
      %v8362 = vunpack.c.l.b16 %v7625
      %v8363 = vunpack.c.h.b16 %v7625
      %v8364 = vunpack.c.l.b16 %v7626
      %v8365 = vunpack.c.h.b16 %v7626
      %v8366 = vunpack.c.l.b16 %v7627
      %v8367 = vunpack.c.h.b16 %v7627
      %v8368 = vunpack.c.l.b16 %v7628
      %v8369 = vunpack.c.h.b16 %v7628
      %v8370 = vunpack.c.l.b16 %v7629
      %v8371 = vunpack.c.h.b16 %v7629
      %v8372 = vunpack.c.l.b16 %v7630
      %v8373 = vunpack.c.h.b16 %v7630
      %v8374 = vunpack.c.l.b16 %v7631
      %v8375 = vunpack.c.h.b16 %v7631
      %v8376 = vunpack.c.l.b16 %v7632
      %v8377 = vunpack.c.h.b16 %v7632
      %v8378 = vunpack.c.l.b16 %v7633
      %v8379 = vunpack.c.h.b16 %v7633
      %v8380 = vunpack.c.l.b16 %v7634
      %v8381 = vunpack.c.h.b16 %v7634
      %v8382 = vunpack.c.l.b16 %v7635
      %v8383 = vunpack.c.h.b16 %v7635
      %v8384 = vunpack.c.l.b16 %v7636
      %v8385 = vunpack.c.h.b16 %v7636
      %v8386 = vunpack.c.l.b16 %v7637
      %v8387 = vunpack.c.h.b16 %v7637
      %v8388 = vunpack.c.l.b16 %v7638
      %v8389 = vunpack.c.h.b16 %v7638
      %v8390 = vunpack.c.l.b16 %v7639
      %v8391 = vunpack.c.h.b16 %v7639
      %v8392 = vunpack.c.l.b16 %v7640
      %v8393 = vunpack.c.h.b16 %v7640
      %v8394 = vunpack.c.l.b16 %v7641
      %v8395 = vunpack.c.h.b16 %v7641
      %v8396 = vunpack.c.l.b16 %v7642
      %v8397 = vunpack.c.h.b16 %v7642
      %v8398 = vunpack.c.l.b16 %v7643
      %v8399 = vunpack.c.h.b16 %v7643
      %v8400 = vunpack.c.l.b16 %v7644
      %v8401 = vunpack.c.h.b16 %v7644
      %v8402 = vunpack.c.l.b16 %v7645
      %v8403 = vunpack.c.h.b16 %v7645
      %v8404 = vunpack.c.l.b16 %v7646
      %v8405 = vunpack.c.h.b16 %v7646
      %v8406 = vunpack.c.l.b16 %v7647
      %v8407 = vunpack.c.h.b16 %v7647
      %v8408 = vunpack.c.l.b16 %v7648
      %v8409 = vunpack.c.h.b16 %v7648
      %v8410 = vunpack.c.l.b16 %v7649
      %v8411 = vunpack.c.h.b16 %v7649
      %v8412 = vunpack.c.l.b16 %v7650
      %v8413 = vunpack.c.h.b16 %v7650
      %v8414 = vunpack.c.l.b16 %v7651
      %v8415 = vunpack.c.h.b16 %v7651
      %v8416 = vunpack.c.l.b16 %v7652
      %v8417 = vunpack.c.h.b16 %v7652
      %v8418 = vunpack.c.l.b16 %v7653
      %v8419 = vunpack.c.h.b16 %v7653
      %v8420 = vunpack.c.l.b16 %v7654
      %v8421 = vunpack.c.h.b16 %v7654
      %v8422 = vunpack.c.l.b16 %v7655
      %v8423 = vunpack.c.h.b16 %v7655
      %v8424 = vunpack.c.l.b16 %v7656
      %v8425 = vunpack.c.h.b16 %v7656
      %v8426 = vunpack.c.l.b16 %v7657
      %v8427 = vunpack.c.h.b16 %v7657
      %v8428 = vunpack.c.l.b16 %v7658
      %v8429 = vunpack.c.h.b16 %v7658
      %v8430 = vunpack.c.l.b16 %v7659
      %v8431 = vunpack.c.h.b16 %v7659
      %v8432 = vunpack.c.l.b16 %v7660
      %v8433 = vunpack.c.h.b16 %v7660
      %v8434 = vunpack.c.l.b16 %v7661
      %v8435 = vunpack.c.h.b16 %v7661
      %v8436 = vunpack.c.l.b16 %v7662
      %v8437 = vunpack.c.h.b16 %v7662
      %v8438 = vunpack.c.l.b16 %v7663
      %v8439 = vunpack.c.h.b16 %v7663
      %v8440 = vunpack.c.l.b16 %v7664
      %v8441 = vunpack.c.h.b16 %v7664
      %v8442 = vunpack.c.l.b16 %v7665
      %v8443 = vunpack.c.h.b16 %v7665
      %v8444 = vunpack.c.l.b16 %v7666
      %v8445 = vunpack.c.h.b16 %v7666
      %v8446 = vunpack.c.l.b16 %v7667
      %v8447 = vunpack.c.h.b16 %v7667
      %v8448 = vunpack.c.l.b16 %v7668
      %v8449 = vunpack.c.h.b16 %v7668
      %v8450 = vunpack.c.l.b16 %v7669
      %v8451 = vunpack.c.h.b16 %v7669
      %v8452 = vunpack.c.l.b16 %v7670
      %v8453 = vunpack.c.h.b16 %v7670
      %v8454 = vunpack.c.l.b16 %v7671
      %v8455 = vunpack.c.h.b16 %v7671
      %v8456 = vunpack.c.l.b16 %v7672
      %v8457 = vunpack.c.h.b16 %v7672
      %v8458 = vunpack.c.l.b16 %v7673
      %v8459 = vunpack.c.h.b16 %v7673
      %v8460 = vunpack.c.l.b16 %v7674
      %v8461 = vunpack.c.h.b16 %v7674
      %v8462 = vunpack.c.l.b16 %v7675
      %v8463 = vunpack.c.h.b16 %v7675
      %v8464 = vunpack.c.l.b16 %v7676
      %v8465 = vunpack.c.h.b16 %v7676
      %v8466 = vunpack.c.l.b16 %v7677
      %v8467 = vunpack.c.h.b16 %v7677
      %v8468 = vpack.c.b16 %v7960, %v7956
      %v8469 = vpack.c.b16 %v7961, %v7957
      %v8470 = vpack.c.b16 %v7962, %v7958
      %v8471 = vpack.c.b16 %v7963, %v7959
      %v8472 = vpack.c.b16 %v7968, %v7964
      %v8473 = vpack.c.b16 %v7969, %v7965
      %v8474 = vpack.c.b16 %v7970, %v7966
      %v8475 = vpack.c.b16 %v7971, %v7967
      %v8476 = vpack.c.b16 %v7976, %v7972
      %v8477 = vpack.c.b16 %v7977, %v7973
      %v8478 = vpack.c.b16 %v7978, %v7974
      %v8479 = vpack.c.b16 %v7979, %v7975
      %v8480 = vpack.c.b16 %v7984, %v7980
      %v8481 = vpack.c.b16 %v7985, %v7981
      %v8482 = vpack.c.b16 %v7986, %v7982
      %v8483 = vpack.c.b16 %v7987, %v7983
      %v8484 = vpack.c.b16 %v7992, %v7988
      %v8485 = vpack.c.b16 %v7993, %v7989
      %v8486 = vpack.c.b16 %v7994, %v7990
      %v8487 = vpack.c.b16 %v7995, %v7991
      %v8488 = vpack.c.b16 %v8000, %v7996
      %v8489 = vpack.c.b16 %v8001, %v7997
      %v8490 = vpack.c.b16 %v8002, %v7998
      %v8491 = vpack.c.b16 %v8003, %v7999
      %v8492 = vpack.c.b16 %v8008, %v8004
      %v8493 = vpack.c.b16 %v8009, %v8005
      %v8494 = vpack.c.b16 %v8010, %v8006
      %v8495 = vpack.c.b16 %v8011, %v8007
      %v8496 = vpack.c.b16 %v8016, %v8012
      %v8497 = vpack.c.b16 %v8017, %v8013
      %v8498 = vpack.c.b16 %v8018, %v8014
      %v8499 = vpack.c.b16 %v8019, %v8015
      %v8500 = vpack.c.b16 %v8024, %v8020
      %v8501 = vpack.c.b16 %v8025, %v8021
      %v8502 = vpack.c.b16 %v8026, %v8022
      %v8503 = vpack.c.b16 %v8027, %v8023
      %v8504 = vpack.c.b16 %v8032, %v8028
      %v8505 = vpack.c.b16 %v8033, %v8029
      %v8506 = vpack.c.b16 %v8034, %v8030
      %v8507 = vpack.c.b16 %v8035, %v8031
      %v8508 = vpack.c.b16 %v8040, %v8036
      %v8509 = vpack.c.b16 %v8041, %v8037
      %v8510 = vpack.c.b16 %v8042, %v8038
      %v8511 = vpack.c.b16 %v8043, %v8039
      %v8512 = vpack.c.b16 %v8048, %v8044
      %v8513 = vpack.c.b16 %v8049, %v8045
      %v8514 = vpack.c.b16 %v8050, %v8046
      %v8515 = vpack.c.b16 %v8051, %v8047
      %v8516 = vpack.c.b16 %v8056, %v8052
      %v8517 = vpack.c.b16 %v8057, %v8053
      %v8518 = vpack.c.b16 %v8058, %v8054
      %v8519 = vpack.c.b16 %v8059, %v8055
      %v8520 = vpack.c.b16 %v8064, %v8060
      %v8521 = vpack.c.b16 %v8065, %v8061
      %v8522 = vpack.c.b16 %v8066, %v8062
      %v8523 = vpack.c.b16 %v8067, %v8063
      %v8524 = vpack.c.b16 %v8072, %v8068
      %v8525 = vpack.c.b16 %v8073, %v8069
      %v8526 = vpack.c.b16 %v8074, %v8070
      %v8527 = vpack.c.b16 %v8075, %v8071
      %v8528 = vpack.c.b16 %v8080, %v8076
      %v8529 = vpack.c.b16 %v8081, %v8077
      %v8530 = vpack.c.b16 %v8082, %v8078
      %v8531 = vpack.c.b16 %v8083, %v8079
      %v8532 = vpack.c.b16 %v8088, %v8084
      %v8533 = vpack.c.b16 %v8089, %v8085
      %v8534 = vpack.c.b16 %v8090, %v8086
      %v8535 = vpack.c.b16 %v8091, %v8087
      %v8536 = vpack.c.b16 %v8096, %v8092
      %v8537 = vpack.c.b16 %v8097, %v8093
      %v8538 = vpack.c.b16 %v8098, %v8094
      %v8539 = vpack.c.b16 %v8099, %v8095
      %v8540 = vpack.c.b16 %v8104, %v8100
      %v8541 = vpack.c.b16 %v8105, %v8101
      %v8542 = vpack.c.b16 %v8106, %v8102
      %v8543 = vpack.c.b16 %v8107, %v8103
      %v8544 = vpack.c.b16 %v8112, %v8108
      %v8545 = vpack.c.b16 %v8113, %v8109
      %v8546 = vpack.c.b16 %v8114, %v8110
      %v8547 = vpack.c.b16 %v8115, %v8111
      %v8548 = vpack.c.b16 %v8120, %v8116
      %v8549 = vpack.c.b16 %v8121, %v8117
      %v8550 = vpack.c.b16 %v8122, %v8118
      %v8551 = vpack.c.b16 %v8123, %v8119
      %v8552 = vpack.c.b16 %v8128, %v8124
      %v8553 = vpack.c.b16 %v8129, %v8125
      %v8554 = vpack.c.b16 %v8130, %v8126
      %v8555 = vpack.c.b16 %v8131, %v8127
      %v8556 = vpack.c.b16 %v8136, %v8132
      %v8557 = vpack.c.b16 %v8137, %v8133
      %v8558 = vpack.c.b16 %v8138, %v8134
      %v8559 = vpack.c.b16 %v8139, %v8135
      %v8560 = vpack.c.b16 %v8144, %v8140
      %v8561 = vpack.c.b16 %v8145, %v8141
      %v8562 = vpack.c.b16 %v8146, %v8142
      %v8563 = vpack.c.b16 %v8147, %v8143
      %v8564 = vpack.c.b16 %v8152, %v8148
      %v8565 = vpack.c.b16 %v8153, %v8149
      %v8566 = vpack.c.b16 %v8154, %v8150
      %v8567 = vpack.c.b16 %v8155, %v8151
      %v8568 = vpack.c.b16 %v8160, %v8156
      %v8569 = vpack.c.b16 %v8161, %v8157
      %v8570 = vpack.c.b16 %v8162, %v8158
      %v8571 = vpack.c.b16 %v8163, %v8159
      %v8572 = vpack.c.b16 %v8168, %v8164
      %v8573 = vpack.c.b16 %v8169, %v8165
      %v8574 = vpack.c.b16 %v8170, %v8166
      %v8575 = vpack.c.b16 %v8171, %v8167
      %v8576 = vpack.c.b16 %v8176, %v8172
      %v8577 = vpack.c.b16 %v8177, %v8173
      %v8578 = vpack.c.b16 %v8178, %v8174
      %v8579 = vpack.c.b16 %v8179, %v8175
      %v8580 = vpack.c.b16 %v8184, %v8180
      %v8581 = vpack.c.b16 %v8185, %v8181
      %v8582 = vpack.c.b16 %v8186, %v8182
      %v8583 = vpack.c.b16 %v8187, %v8183
      %v8584 = vpack.c.b16 %v8192, %v8188
      %v8585 = vpack.c.b16 %v8193, %v8189
      %v8586 = vpack.c.b16 %v8194, %v8190
      %v8587 = vpack.c.b16 %v8195, %v8191
      %v8588 = vpack.c.b16 %v8200, %v8196
      %v8589 = vpack.c.b16 %v8201, %v8197
      %v8590 = vpack.c.b16 %v8202, %v8198
      %v8591 = vpack.c.b16 %v8203, %v8199
      %v8592 = vpack.c.b16 %v8208, %v8204
      %v8593 = vpack.c.b16 %v8209, %v8205
      %v8594 = vpack.c.b16 %v8210, %v8206
      %v8595 = vpack.c.b16 %v8211, %v8207
      %v8596 = vpack.c.b16 %v8216, %v8212
      %v8597 = vpack.c.b16 %v8217, %v8213
      %v8598 = vpack.c.b16 %v8218, %v8214
      %v8599 = vpack.c.b16 %v8219, %v8215
      %v8600 = vpack.c.b16 %v8224, %v8220
      %v8601 = vpack.c.b16 %v8225, %v8221
      %v8602 = vpack.c.b16 %v8226, %v8222
      %v8603 = vpack.c.b16 %v8227, %v8223
      %v8604 = vpack.c.b16 %v8232, %v8228
      %v8605 = vpack.c.b16 %v8233, %v8229
      %v8606 = vpack.c.b16 %v8234, %v8230
      %v8607 = vpack.c.b16 %v8235, %v8231
      %v8608 = vpack.c.b16 %v8240, %v8236
      %v8609 = vpack.c.b16 %v8241, %v8237
      %v8610 = vpack.c.b16 %v8242, %v8238
      %v8611 = vpack.c.b16 %v8243, %v8239
      %v8612 = vpack.c.b16 %v8248, %v8244
      %v8613 = vpack.c.b16 %v8249, %v8245
      %v8614 = vpack.c.b16 %v8250, %v8246
      %v8615 = vpack.c.b16 %v8251, %v8247
      %v8616 = vpack.c.b16 %v8256, %v8252
      %v8617 = vpack.c.b16 %v8257, %v8253
      %v8618 = vpack.c.b16 %v8258, %v8254
      %v8619 = vpack.c.b16 %v8259, %v8255
      %v8620 = vpack.c.b16 %v8264, %v8260
      %v8621 = vpack.c.b16 %v8265, %v8261
      %v8622 = vpack.c.b16 %v8266, %v8262
      %v8623 = vpack.c.b16 %v8267, %v8263
      %v8624 = vpack.c.b16 %v8272, %v8268
      %v8625 = vpack.c.b16 %v8273, %v8269
      %v8626 = vpack.c.b16 %v8274, %v8270
      %v8627 = vpack.c.b16 %v8275, %v8271
      %v8628 = vpack.c.b16 %v8280, %v8276
      %v8629 = vpack.c.b16 %v8281, %v8277
      %v8630 = vpack.c.b16 %v8282, %v8278
      %v8631 = vpack.c.b16 %v8283, %v8279
      %v8632 = vpack.c.b16 %v8288, %v8284
      %v8633 = vpack.c.b16 %v8289, %v8285
      %v8634 = vpack.c.b16 %v8290, %v8286
      %v8635 = vpack.c.b16 %v8291, %v8287
      %v8636 = vpack.c.b16 %v8296, %v8292
      %v8637 = vpack.c.b16 %v8297, %v8293
      %v8638 = vpack.c.b16 %v8298, %v8294
      %v8639 = vpack.c.b16 %v8299, %v8295
      %v8640 = vpack.c.b16 %v8304, %v8300
      %v8641 = vpack.c.b16 %v8305, %v8301
      %v8642 = vpack.c.b16 %v8306, %v8302
      %v8643 = vpack.c.b16 %v8307, %v8303
      %v8644 = vpack.c.b16 %v8312, %v8308
      %v8645 = vpack.c.b16 %v8313, %v8309
      %v8646 = vpack.c.b16 %v8314, %v8310
      %v8647 = vpack.c.b16 %v8315, %v8311
      %v8648 = vpack.c.b16 %v8320, %v8316
      %v8649 = vpack.c.b16 %v8321, %v8317
      %v8650 = vpack.c.b16 %v8322, %v8318
      %v8651 = vpack.c.b16 %v8323, %v8319
      %v8652 = vpack.c.b16 %v8328, %v8324
      %v8653 = vpack.c.b16 %v8329, %v8325
      %v8654 = vpack.c.b16 %v8330, %v8326
      %v8655 = vpack.c.b16 %v8331, %v8327
      %v8656 = vpack.c.b16 %v8336, %v8332
      %v8657 = vpack.c.b16 %v8337, %v8333
      %v8658 = vpack.c.b16 %v8338, %v8334
      %v8659 = vpack.c.b16 %v8339, %v8335
      %v8660 = vpack.c.b16 %v8344, %v8340
      %v8661 = vpack.c.b16 %v8345, %v8341
      %v8662 = vpack.c.b16 %v8346, %v8342
      %v8663 = vpack.c.b16 %v8347, %v8343
      %v8664 = vpack.c.b16 %v8352, %v8348
      %v8665 = vpack.c.b16 %v8353, %v8349
      %v8666 = vpack.c.b16 %v8354, %v8350
      %v8667 = vpack.c.b16 %v8355, %v8351
      %v8668 = vpack.c.b16 %v8360, %v8356
      %v8669 = vpack.c.b16 %v8361, %v8357
      %v8670 = vpack.c.b16 %v8362, %v8358
      %v8671 = vpack.c.b16 %v8363, %v8359
      %v8672 = vpack.c.b16 %v8368, %v8364
      %v8673 = vpack.c.b16 %v8369, %v8365
      %v8674 = vpack.c.b16 %v8370, %v8366
      %v8675 = vpack.c.b16 %v8371, %v8367
      %v8676 = vpack.c.b16 %v8376, %v8372
      %v8677 = vpack.c.b16 %v8377, %v8373
      %v8678 = vpack.c.b16 %v8378, %v8374
      %v8679 = vpack.c.b16 %v8379, %v8375
      %v8680 = vpack.c.b16 %v8384, %v8380
      %v8681 = vpack.c.b16 %v8385, %v8381
      %v8682 = vpack.c.b16 %v8386, %v8382
      %v8683 = vpack.c.b16 %v8387, %v8383
      %v8684 = vpack.c.b16 %v8392, %v8388
      %v8685 = vpack.c.b16 %v8393, %v8389
      %v8686 = vpack.c.b16 %v8394, %v8390
      %v8687 = vpack.c.b16 %v8395, %v8391
      %v8688 = vpack.c.b16 %v8400, %v8396
      %v8689 = vpack.c.b16 %v8401, %v8397
      %v8690 = vpack.c.b16 %v8402, %v8398
      %v8691 = vpack.c.b16 %v8403, %v8399
      %v8692 = vpack.c.b16 %v8408, %v8404
      %v8693 = vpack.c.b16 %v8409, %v8405
      %v8694 = vpack.c.b16 %v8410, %v8406
      %v8695 = vpack.c.b16 %v8411, %v8407
      %v8696 = vpack.c.b16 %v8416, %v8412
      %v8697 = vpack.c.b16 %v8417, %v8413
      %v8698 = vpack.c.b16 %v8418, %v8414
      %v8699 = vpack.c.b16 %v8419, %v8415
      %v8700 = vpack.c.b16 %v8424, %v8420
      %v8701 = vpack.c.b16 %v8425, %v8421
      %v8702 = vpack.c.b16 %v8426, %v8422
      %v8703 = vpack.c.b16 %v8427, %v8423
      %v8704 = vpack.c.b16 %v8432, %v8428
      %v8705 = vpack.c.b16 %v8433, %v8429
      %v8706 = vpack.c.b16 %v8434, %v8430
      %v8707 = vpack.c.b16 %v8435, %v8431
      %v8708 = vpack.c.b16 %v8440, %v8436
      %v8709 = vpack.c.b16 %v8441, %v8437
      %v8710 = vpack.c.b16 %v8442, %v8438
      %v8711 = vpack.c.b16 %v8443, %v8439
      %v8712 = vpack.c.b16 %v8448, %v8444
      %v8713 = vpack.c.b16 %v8449, %v8445
      %v8714 = vpack.c.b16 %v8450, %v8446
      %v8715 = vpack.c.b16 %v8451, %v8447
      %v8716 = vpack.c.b16 %v8456, %v8452
      %v8717 = vpack.c.b16 %v8457, %v8453
      %v8718 = vpack.c.b16 %v8458, %v8454
      %v8719 = vpack.c.b16 %v8459, %v8455
      %v8720 = vpack.c.b16 %v8464, %v8460
      %v8721 = vpack.c.b16 %v8465, %v8461
      %v8722 = vpack.c.b16 %v8466, %v8462
      %v8723 = vpack.c.b16 %v8467, %v8463
      %8980 = vmatprep.subr.bf16.mxu0 %v8469
      %8981 = vmatpush1.bf16.msra.mxu0 %v8468
      %8982 = vmatprep.subr.bf16.mxu0 %v8473
      %8983 = vmatpush1.bf16.msra.mxu0 %v8472
      %8984 = vmatprep.subr.bf16.mxu0 %v8477
      %8985 = vmatpush1.bf16.msra.mxu0 %v8476
      %8986 = vmatprep.subr.bf16.mxu0 %v8481
      %8987 = vmatpush1.bf16.msra.mxu0 %v8480
      %8988 = vmatprep.subr.bf16.mxu0 %v8485
      %8989 = vmatpush1.bf16.msra.mxu0 %v8484
      %8990 = vmatprep.subr.bf16.mxu0 %v8489
      %8991 = vmatpush1.bf16.msra.mxu0 %v8488
      %8992 = vmatprep.subr.bf16.mxu0 %v8493
      %8993 = vmatpush1.bf16.msra.mxu0 %v8492
      %8994 = vmatprep.subr.bf16.mxu0 %v8497
      %8995 = vmatpush1.bf16.msra.mxu0 %v8496
      %8996 = vmatprep.subr.bf16.mxu0 %v8501
      %8997 = vmatpush1.bf16.msra.mxu0 %v8500
      %8998 = vmatprep.subr.bf16.mxu0 %v8505
      %8999 = vmatpush1.bf16.msra.mxu0 %v8504
      %9000 = vmatprep.subr.bf16.mxu0 %v8509
      %9001 = vmatpush1.bf16.msra.mxu0 %v8508
      %9002 = vmatprep.subr.bf16.mxu0 %v8513
      %9003 = vmatpush1.bf16.msra.mxu0 %v8512
      %9004 = vmatprep.subr.bf16.mxu0 %v8517
      %9005 = vmatpush1.bf16.msra.mxu0 %v8516
      %9006 = vmatprep.subr.bf16.mxu0 %v8521
      %9007 = vmatpush1.bf16.msra.mxu0 %v8520
      %9008 = vmatprep.subr.bf16.mxu0 %v8525
      %9009 = vmatpush1.bf16.msra.mxu0 %v8524
      %9010 = vmatprep.subr.bf16.mxu0 %v8529
      %9011 = vmatpush1.bf16.msra.mxu0 %v8528
      %9012 = vmatprep.mubr.bf16.mxu0 %v7415
      %9013 = vmatmul.mubr.bf16.gmra.mrb[0].mxu0 %v7414
      %v9014 = vpop.f32.mrb[0].mxu0
      %v9015 = vadd.f32 %v7683, %v9014
      %v9016 = vpop.f32.mrb[0].mxu0
      %v9017 = vadd.f32 %v7687, %v9016
      %v9018 = vpop.f32.mrb[0].mxu0
      %v9019 = vadd.f32 %v7683, %v9018
      %v9020 = vpop.f32.mrb[0].mxu0
      %v9021 = vadd.f32 %v7687, %v9020
      %9022 = vdwg.mxu0
      %9023 = vmatprep.subr.bf16.mxu0 %v8533
      %9024 = vmatpush1.bf16.msra.mxu0 %v8532
      %9025 = vmatprep.subr.bf16.mxu0 %v8537
      %9026 = vmatpush1.bf16.msra.mxu0 %v8536
      %9027 = vmatprep.subr.bf16.mxu0 %v8541
      %9028 = vmatpush1.bf16.msra.mxu0 %v8540
      %9029 = vmatprep.subr.bf16.mxu0 %v8545
      %9030 = vmatpush1.bf16.msra.mxu0 %v8544
      %9031 = vmatprep.subr.bf16.mxu0 %v8549
      %9032 = vmatpush1.bf16.msra.mxu0 %v8548
      %9033 = vmatprep.subr.bf16.mxu0 %v8553
      %9034 = vmatpush1.bf16.msra.mxu0 %v8552
      %9035 = vmatprep.subr.bf16.mxu0 %v8557
      %9036 = vmatpush1.bf16.msra.mxu0 %v8556
      %9037 = vmatprep.subr.bf16.mxu0 %v8561
      %9038 = vmatpush1.bf16.msra.mxu0 %v8560
      %9039 = vmatprep.subr.bf16.mxu0 %v8565
      %9040 = vmatpush1.bf16.msra.mxu0 %v8564
      %9041 = vmatprep.subr.bf16.mxu0 %v8569
      %9042 = vmatpush1.bf16.msra.mxu0 %v8568
      %9043 = vmatprep.subr.bf16.mxu0 %v8573
      %9044 = vmatpush1.bf16.msra.mxu0 %v8572
      %9045 = vmatprep.subr.bf16.mxu0 %v8577
      %9046 = vmatpush1.bf16.msra.mxu0 %v8576
      %9047 = vmatprep.subr.bf16.mxu0 %v8581
      %9048 = vmatpush1.bf16.msra.mxu0 %v8580
      %9049 = vmatprep.subr.bf16.mxu0 %v8585
      %9050 = vmatpush1.bf16.msra.mxu0 %v8584
      %9051 = vmatprep.subr.bf16.mxu0 %v8589
      %9052 = vmatpush1.bf16.msra.mxu0 %v8588
      %9053 = vmatprep.subr.bf16.mxu0 %v8593
      %9054 = vmatpush1.bf16.msra.mxu0 %v8592
      %9055 = vmatprep.mubr.bf16.mxu0 %v7417
      %9056 = vmatmul.mubr.bf16.gmra.mrb[0].mxu0 %v7416
      %v9057 = vpop.f32.mrb[0].mxu0
      %v9058 = vadd.f32 %v9015, %v9057
      %v9059 = vpop.f32.mrb[0].mxu0
      %v9060 = vadd.f32 %v9017, %v9059
      %v9061 = vpop.f32.mrb[0].mxu0
      %v9062 = vadd.f32 %v9019, %v9061
      %v9063 = vpop.f32.mrb[0].mxu0
      %v9064 = vadd.f32 %v9021, %v9063
      %9065 = vdwg.mxu0
      %9066 = vmatprep.subr.bf16.mxu0 %v8597
      %9067 = vmatpush1.bf16.msra.mxu0 %v8596
      %9068 = vmatprep.subr.bf16.mxu0 %v8601
      %9069 = vmatpush1.bf16.msra.mxu0 %v8600
      %9070 = vmatprep.subr.bf16.mxu0 %v8605
      %9071 = vmatpush1.bf16.msra.mxu0 %v8604
      %9072 = vmatprep.subr.bf16.mxu0 %v8609
      %9073 = vmatpush1.bf16.msra.mxu0 %v8608
      %9074 = vmatprep.subr.bf16.mxu0 %v8613
      %9075 = vmatpush1.bf16.msra.mxu0 %v8612
      %9076 = vmatprep.subr.bf16.mxu0 %v8617
      %9077 = vmatpush1.bf16.msra.mxu0 %v8616
      %9078 = vmatprep.subr.bf16.mxu0 %v8621
      %9079 = vmatpush1.bf16.msra.mxu0 %v8620
      %9080 = vmatprep.subr.bf16.mxu0 %v8625
      %9081 = vmatpush1.bf16.msra.mxu0 %v8624
      %9082 = vmatprep.subr.bf16.mxu0 %v8629
      %9083 = vmatpush1.bf16.msra.mxu0 %v8628
      %9084 = vmatprep.subr.bf16.mxu0 %v8633
      %9085 = vmatpush1.bf16.msra.mxu0 %v8632
      %9086 = vmatprep.subr.bf16.mxu0 %v8637
      %9087 = vmatpush1.bf16.msra.mxu0 %v8636
      %9088 = vmatprep.subr.bf16.mxu0 %v8641
      %9089 = vmatpush1.bf16.msra.mxu0 %v8640
      %9090 = vmatprep.subr.bf16.mxu0 %v8645
      %9091 = vmatpush1.bf16.msra.mxu0 %v8644
      %9092 = vmatprep.subr.bf16.mxu0 %v8649
      %9093 = vmatpush1.bf16.msra.mxu0 %v8648
      %9094 = vmatprep.subr.bf16.mxu0 %v8653
      %9095 = vmatpush1.bf16.msra.mxu0 %v8652
      %9096 = vmatprep.subr.bf16.mxu0 %v8657
      %9097 = vmatpush1.bf16.msra.mxu0 %v8656
      %9098 = vmatprep.mubr.bf16.mxu0 %v7419
      %9099 = vmatmul.mubr.bf16.gmra.mrb[0].mxu0 %v7418
      %v9100 = vpop.f32.mrb[0].mxu0
      %v9101 = vadd.f32 %v9058, %v9100
      %v9102 = vpop.f32.mrb[0].mxu0
      %v9103 = vadd.f32 %v9060, %v9102
      %v9104 = vpop.f32.mrb[0].mxu0
      %v9105 = vadd.f32 %v9062, %v9104
      %v9106 = vpop.f32.mrb[0].mxu0
      %v9107 = vadd.f32 %v9064, %v9106
      %9108 = vdwg.mxu0
      %9109 = vmatprep.subr.bf16.mxu0 %v8661
      %9110 = vmatpush1.bf16.msra.mxu0 %v8660
      %9111 = vmatprep.subr.bf16.mxu0 %v8665
      %9112 = vmatpush1.bf16.msra.mxu0 %v8664
      %9113 = vmatprep.subr.bf16.mxu0 %v8669
      %9114 = vmatpush1.bf16.msra.mxu0 %v8668
      %9115 = vmatprep.subr.bf16.mxu0 %v8673
      %9116 = vmatpush1.bf16.msra.mxu0 %v8672
      %9117 = vmatprep.subr.bf16.mxu0 %v8677
      %9118 = vmatpush1.bf16.msra.mxu0 %v8676
      %9119 = vmatprep.subr.bf16.mxu0 %v8681
      %9120 = vmatpush1.bf16.msra.mxu0 %v8680
      %9121 = vmatprep.subr.bf16.mxu0 %v8685
      %9122 = vmatpush1.bf16.msra.mxu0 %v8684
      %9123 = vmatprep.subr.bf16.mxu0 %v8689
      %9124 = vmatpush1.bf16.msra.mxu0 %v8688
      %9125 = vmatprep.subr.bf16.mxu0 %v8693
      %9126 = vmatpush1.bf16.msra.mxu0 %v8692
      %9127 = vmatprep.subr.bf16.mxu0 %v8697
      %9128 = vmatpush1.bf16.msra.mxu0 %v8696
      %9129 = vmatprep.subr.bf16.mxu0 %v8701
      %9130 = vmatpush1.bf16.msra.mxu0 %v8700
      %9131 = vmatprep.subr.bf16.mxu0 %v8705
      %9132 = vmatpush1.bf16.msra.mxu0 %v8704
      %9133 = vmatprep.subr.bf16.mxu0 %v8709
      %9134 = vmatpush1.bf16.msra.mxu0 %v8708
      %9135 = vmatprep.subr.bf16.mxu0 %v8713
      %9136 = vmatpush1.bf16.msra.mxu0 %v8712
      %9137 = vmatprep.subr.bf16.mxu0 %v8717
      %9138 = vmatpush1.bf16.msra.mxu0 %v8716
      %9139 = vmatprep.subr.bf16.mxu0 %v8721
      %9140 = vmatpush1.bf16.msra.mxu0 %v8720
      %9141 = vmatprep.mubr.bf16.mxu0 %v7421
      %9142 = vmatmul.mubr.bf16.gmra.mrb[0].mxu0 %v7420
      %v9143 = vpop.f32.mrb[0].mxu0
      %v9144 = vadd.f32 %v9101, %v9143
      %v9145 = vpop.f32.mrb[0].mxu0
      %v9146 = vadd.f32 %v9103, %v9145
      %v9147 = vpop.f32.mrb[0].mxu0
      %v9148 = vadd.f32 %v9105, %v9147
      %v9149 = vpop.f32.mrb[0].mxu0
      %v9150 = vadd.f32 %v9107, %v9149
      %9151 = vdwg.mxu0
      %9152 = vmatprep.subr.bf16.mxu0 %v8471
      %9153 = vmatpush1.bf16.msra.mxu0 %v8470
      %9154 = vmatprep.subr.bf16.mxu0 %v8475
      %9155 = vmatpush1.bf16.msra.mxu0 %v8474
      %9156 = vmatprep.subr.bf16.mxu0 %v8479
      %9157 = vmatpush1.bf16.msra.mxu0 %v8478
      %9158 = vmatprep.subr.bf16.mxu0 %v8483
      %9159 = vmatpush1.bf16.msra.mxu0 %v8482
      %9160 = vmatprep.subr.bf16.mxu0 %v8487
      %9161 = vmatpush1.bf16.msra.mxu0 %v8486
      %9162 = vmatprep.subr.bf16.mxu0 %v8491
      %9163 = vmatpush1.bf16.msra.mxu0 %v8490
      %9164 = vmatprep.subr.bf16.mxu0 %v8495
      %9165 = vmatpush1.bf16.msra.mxu0 %v8494
      %9166 = vmatprep.subr.bf16.mxu0 %v8499
      %9167 = vmatpush1.bf16.msra.mxu0 %v8498
      %9168 = vmatprep.subr.bf16.mxu0 %v8503
      %9169 = vmatpush1.bf16.msra.mxu0 %v8502
      %9170 = vmatprep.subr.bf16.mxu0 %v8507
      %9171 = vmatpush1.bf16.msra.mxu0 %v8506
      %9172 = vmatprep.subr.bf16.mxu0 %v8511
      %9173 = vmatpush1.bf16.msra.mxu0 %v8510
      %9174 = vmatprep.subr.bf16.mxu0 %v8515
      %9175 = vmatpush1.bf16.msra.mxu0 %v8514
      %9176 = vmatprep.subr.bf16.mxu0 %v8519
      %9177 = vmatpush1.bf16.msra.mxu0 %v8518
      %9178 = vmatprep.subr.bf16.mxu0 %v8523
      %9179 = vmatpush1.bf16.msra.mxu0 %v8522
      %9180 = vmatprep.subr.bf16.mxu0 %v8527
      %9181 = vmatpush1.bf16.msra.mxu0 %v8526
      %9182 = vmatprep.subr.bf16.mxu0 %v8531
      %9183 = vmatpush1.bf16.msra.mxu0 %v8530
      %9184 = vmatprep.mubr.bf16.mxu0 %v7415
      %9185 = vmatmul.mubr.bf16.gmra.mrb[0].mxu0 %v7414
      %v9186 = vpop.f32.mrb[0].mxu0
      %v9187 = vadd.f32 %v7691, %v9186
      %v9188 = vpop.f32.mrb[0].mxu0
      %v9189 = vadd.f32 %v7695, %v9188
      %v9190 = vpop.f32.mrb[0].mxu0
      %v9191 = vadd.f32 %v7691, %v9190
      %v9192 = vpop.f32.mrb[0].mxu0
      %v9193 = vadd.f32 %v7695, %v9192
      %9194 = vdwg.mxu0
      %9195 = vmatprep.subr.bf16.mxu0 %v8535
      %9196 = vmatpush1.bf16.msra.mxu0 %v8534
      %9197 = vmatprep.subr.bf16.mxu0 %v8539
      %9198 = vmatpush1.bf16.msra.mxu0 %v8538
      %9199 = vmatprep.subr.bf16.mxu0 %v8543
      %9200 = vmatpush1.bf16.msra.mxu0 %v8542
      %9201 = vmatprep.subr.bf16.mxu0 %v8547
      %9202 = vmatpush1.bf16.msra.mxu0 %v8546
      %9203 = vmatprep.subr.bf16.mxu0 %v8551
      %9204 = vmatpush1.bf16.msra.mxu0 %v8550
      %9205 = vmatprep.subr.bf16.mxu0 %v8555
      %9206 = vmatpush1.bf16.msra.mxu0 %v8554
      %9207 = vmatprep.subr.bf16.mxu0 %v8559
      %9208 = vmatpush1.bf16.msra.mxu0 %v8558
      %9209 = vmatprep.subr.bf16.mxu0 %v8563
      %9210 = vmatpush1.bf16.msra.mxu0 %v8562
      %9211 = vmatprep.subr.bf16.mxu0 %v8567
      %9212 = vmatpush1.bf16.msra.mxu0 %v8566
      %9213 = vmatprep.subr.bf16.mxu0 %v8571
      %9214 = vmatpush1.bf16.msra.mxu0 %v8570
      %9215 = vmatprep.subr.bf16.mxu0 %v8575
      %9216 = vmatpush1.bf16.msra.mxu0 %v8574
      %9217 = vmatprep.subr.bf16.mxu0 %v8579
      %9218 = vmatpush1.bf16.msra.mxu0 %v8578
      %9219 = vmatprep.subr.bf16.mxu0 %v8583
      %9220 = vmatpush1.bf16.msra.mxu0 %v8582
      %9221 = vmatprep.subr.bf16.mxu0 %v8587
      %9222 = vmatpush1.bf16.msra.mxu0 %v8586
      %9223 = vmatprep.subr.bf16.mxu0 %v8591
      %9224 = vmatpush1.bf16.msra.mxu0 %v8590
      %9225 = vmatprep.subr.bf16.mxu0 %v8595
      %9226 = vmatpush1.bf16.msra.mxu0 %v8594
      %9227 = vmatprep.mubr.bf16.mxu0 %v7417
      %9228 = vmatmul.mubr.bf16.gmra.mrb[0].mxu0 %v7416
      %v9229 = vpop.f32.mrb[0].mxu0
      %v9230 = vadd.f32 %v9187, %v9229
      %v9231 = vpop.f32.mrb[0].mxu0
      %v9232 = vadd.f32 %v9189, %v9231
      %v9233 = vpop.f32.mrb[0].mxu0
      %v9234 = vadd.f32 %v9191, %v9233
      %v9235 = vpop.f32.mrb[0].mxu0
      %v9236 = vadd.f32 %v9193, %v9235
      %9237 = vdwg.mxu0
      %9238 = vmatprep.subr.bf16.mxu0 %v8599
      %9239 = vmatpush1.bf16.msra.mxu0 %v8598
      %9240 = vmatprep.subr.bf16.mxu0 %v8603
      %9241 = vmatpush1.bf16.msra.mxu0 %v8602
      %9242 = vmatprep.subr.bf16.mxu0 %v8607
      %9243 = vmatpush1.bf16.msra.mxu0 %v8606
      %9244 = vmatprep.subr.bf16.mxu0 %v8611
      %9245 = vmatpush1.bf16.msra.mxu0 %v8610
      %9246 = vmatprep.subr.bf16.mxu0 %v8615
      %9247 = vmatpush1.bf16.msra.mxu0 %v8614
      %9248 = vmatprep.subr.bf16.mxu0 %v8619
      %9249 = vmatpush1.bf16.msra.mxu0 %v8618
      %9250 = vmatprep.subr.bf16.mxu0 %v8623
      %9251 = vmatpush1.bf16.msra.mxu0 %v8622
      %9252 = vmatprep.subr.bf16.mxu0 %v8627
      %9253 = vmatpush1.bf16.msra.mxu0 %v8626
      %9254 = vmatprep.subr.bf16.mxu0 %v8631
      %9255 = vmatpush1.bf16.msra.mxu0 %v8630
      %9256 = vmatprep.subr.bf16.mxu0 %v8635
      %9257 = vmatpush1.bf16.msra.mxu0 %v8634
      %9258 = vmatprep.subr.bf16.mxu0 %v8639
      %9259 = vmatpush1.bf16.msra.mxu0 %v8638
      %9260 = vmatprep.subr.bf16.mxu0 %v8643
      %9261 = vmatpush1.bf16.msra.mxu0 %v8642
      %9262 = vmatprep.subr.bf16.mxu0 %v8647
      %9263 = vmatpush1.bf16.msra.mxu0 %v8646
      %9264 = vmatprep.subr.bf16.mxu0 %v8651
      %9265 = vmatpush1.bf16.msra.mxu0 %v8650
      %9266 = vmatprep.subr.bf16.mxu0 %v8655
      %9267 = vmatpush1.bf16.msra.mxu0 %v8654
      %9268 = vmatprep.subr.bf16.mxu0 %v8659
      %9269 = vmatpush1.bf16.msra.mxu0 %v8658
      %9270 = vmatprep.mubr.bf16.mxu0 %v7419
      %9271 = vmatmul.mubr.bf16.gmra.mrb[0].mxu0 %v7418
      %v9272 = vpop.f32.mrb[0].mxu0
      %v9273 = vadd.f32 %v9230, %v9272
      %v9274 = vpop.f32.mrb[0].mxu0
      %v9275 = vadd.f32 %v9232, %v9274
      %v9276 = vpop.f32.mrb[0].mxu0
      %v9277 = vadd.f32 %v9234, %v9276
      %v9278 = vpop.f32.mrb[0].mxu0
      %v9279 = vadd.f32 %v9236, %v9278
      %9280 = vdwg.mxu0
      %9281 = vmatprep.subr.bf16.mxu0 %v8663
      %9282 = vmatpush1.bf16.msra.mxu0 %v8662
      %9283 = vmatprep.subr.bf16.mxu0 %v8667
      %9284 = vmatpush1.bf16.msra.mxu0 %v8666
      %9285 = vmatprep.subr.bf16.mxu0 %v8671
      %9286 = vmatpush1.bf16.msra.mxu0 %v8670
      %9287 = vmatprep.subr.bf16.mxu0 %v8675
      %9288 = vmatpush1.bf16.msra.mxu0 %v8674
      %9289 = vmatprep.subr.bf16.mxu0 %v8679
      %9290 = vmatpush1.bf16.msra.mxu0 %v8678
      %9291 = vmatprep.subr.bf16.mxu0 %v8683
      %9292 = vmatpush1.bf16.msra.mxu0 %v8682
      %9293 = vmatprep.subr.bf16.mxu0 %v8687
      %9294 = vmatpush1.bf16.msra.mxu0 %v8686
      %9295 = vmatprep.subr.bf16.mxu0 %v8691
      %9296 = vmatpush1.bf16.msra.mxu0 %v8690
      %9297 = vmatprep.subr.bf16.mxu0 %v8695
      %9298 = vmatpush1.bf16.msra.mxu0 %v8694
      %9299 = vmatprep.subr.bf16.mxu0 %v8699
      %9300 = vmatpush1.bf16.msra.mxu0 %v8698
      %9301 = vmatprep.subr.bf16.mxu0 %v8703
      %9302 = vmatpush1.bf16.msra.mxu0 %v8702
      %9303 = vmatprep.subr.bf16.mxu0 %v8707
      %9304 = vmatpush1.bf16.msra.mxu0 %v8706
      %9305 = vmatprep.subr.bf16.mxu0 %v8711
      %9306 = vmatpush1.bf16.msra.mxu0 %v8710
      %9307 = vmatprep.subr.bf16.mxu0 %v8715
      %9308 = vmatpush1.bf16.msra.mxu0 %v8714
      %9309 = vmatprep.subr.bf16.mxu0 %v8719
      %9310 = vmatpush1.bf16.msra.mxu0 %v8718
      %9311 = vmatprep.subr.bf16.mxu0 %v8723
      %9312 = vmatpush1.bf16.msra.mxu0 %v8722
      %9313 = vmatprep.mubr.bf16.mxu0 %v7421
      %9314 = vmatmul.mubr.bf16.gmra.mrb[0].mxu0 %v7420
      %v9315 = vpop.f32.mrb[0].mxu0
      %v9316 = vadd.f32 %v9273, %v9315
      %v9317 = vpop.f32.mrb[0].mxu0
      %v9318 = vadd.f32 %v9275, %v9317
      %v9319 = vpop.f32.mrb[0].mxu0
      %v9320 = vadd.f32 %v9277, %v9319
      %v9321 = vpop.f32.mrb[0].mxu0
      %v9322 = vadd.f32 %v9279, %v9321
      %9323 = vdwg.mxu0
      %v9324 = vadd.f32 %v5224, %v9144
      %v9325 = vadd.f32 %v5225, %v9146
      %v9326 = vadd.f32 %v5226, %v9316
      %v9327 = vadd.f32 %v5227, %v9318
      %v9328 = vadd.f32 %v5228, %v9148
      %v9329 = vadd.f32 %v5229, %v9150
      %v9330 = vadd.f32 %v5230, %v9320
      %v9331 = vadd.f32 %v5231, %v9322
      %v9332 = vadd.f32 %v9324, %v9328
      %v9333 = vrot.slane %v9332, 4
      %v9334 = vadd.f32 %v9332, %v9333
      %v9335 = vrot.slane %v9334, 2
      %v9336 = vadd.f32 %v9334, %v9335
      %v9337 = vrot.slane %v9336, 1
      %v9338 = vadd.f32 %v9336, %v9337
      %v9339 = vadd.f32 %v9325, %v9329
      %v9340 = vrot.slane %v9339, 4
      %v9341 = vadd.f32 %v9339, %v9340
      %v9342 = vrot.slane %v9341, 2
      %v9343 = vadd.f32 %v9341, %v9342
      %v9344 = vrot.slane %v9343, 1
      %v9345 = vadd.f32 %v9343, %v9344
      %v9346 = vadd.f32 %v9326, %v9330
      %v9347 = vrot.slane %v9346, 4
      %v9348 = vadd.f32 %v9346, %v9347
      %v9349 = vrot.slane %v9348, 2
      %v9350 = vadd.f32 %v9348, %v9349
      %v9351 = vrot.slane %v9350, 1
      %v9352 = vadd.f32 %v9350, %v9351
      %v9353 = vadd.f32 %v9327, %v9331
      %v9354 = vrot.slane %v9353, 4
      %v9355 = vadd.f32 %v9353, %v9354
      %v9356 = vrot.slane %v9355, 2
      %v9357 = vadd.f32 %v9355, %v9356
      %v9358 = vrot.slane %v9357, 1
      %v9359 = vadd.f32 %v9357, %v9358
      %v9360 = vrcp.pop 16.0
      %v9361 = vmul.f32 %v9338, %v9360
      %v9362 = vmul.f32 %v9345, %v9360
      %v9363 = vmul.f32 %v9352, %v9360
      %v9364 = vmul.f32 %v9359, %v9360
      %v9369 = vcombine.low %v9361, %v9362
      %v9370 = vcombine.low %v9363, %v9364
      %v9372 = vunpack.c.l.s4 1966171168
      %v9373 = vunpack.c.0.s8 %v9372
      %v9374 = vlaneseq
      %v9375 = vshrl.u32 %v9374, 7
      %v9376 = vsub.s32 %v9373, %v9375
      %v9377 = vrot.slane %v9369, %v9376
      %v9379 = vunpack.c.l.s4 1966171168
      %v9380 = vunpack.c.0.s8 %v9379
      %v9381 = vlaneseq
      %v9382 = vshrl.u32 %v9381, 7
      %v9383 = vsub.s32 %v9380, %v9382
      %v9384 = vrot.slane %v9370, %v9383
      %v9385 = vcombine.low %v9377, %v9384
      %v9387 = vunpack.c.l.s4 1966171168
      %v9388 = vunpack.c.0.s8 %v9387
      %v9389 = vlaneseq
      %v9390 = vshrl.u32 %v9389, 7
      %v9391 = vsub.s32 %v9388, %v9390
      %v9392 = vrot.slane %v9385, %v9391
      %v9394 = vlaneseq
      %vm9395 = vcmp.ge.s32.totalorder %v9394, 0
      %vm9396 = vcmp.lt.s32.totalorder %v9394, 512
      %vm9397 = vmand %vm9395, %vm9396
      %9398 = vst.msk [vmem:[%s494] sm:$0xf] %vm9397, %v9392
      %p9399 = scmp.lt.s32.totalorder %s26, 1
      %s9400 = scalar_select %p9399, %s26, 1
      %s9401 = smul.addr %s9400, 4
      %s9402 = scalar_lea.vmem %s15, %s9401
      // Predicated region
      $region81: #{forward.4} parent=79 // pred_check
        %p9403 = pneg %p364
      $region82: #{forward.4} parent=79 // pred_check_branch
        %9405 = sbr.rel (%p9403) target = $region84
      $region83: #{forward.4} parent=79 // pred_region
        _
      $region84: #{forward.4} parent=79 // pred_fallthru
        _
    $region80: #{forward.4} parent=5 // pred_fallthru
      _
    %p9406 = scmp.le.s32.totalorder 2, %s21
    // Predicated region
    $region85: #{forward.4} parent=5 // pred_check
      %p9407 = pneg %p9406
    $region86: #{forward.4} parent=5 // pred_check_branch
      %9409 = sbr.rel (%p9407) target = $region88
    $region87: #{forward.4} parent=5 // pred_region
      %s9410 = ssub.s32 %s21, 2
      // Predicated region
      $region89: #{forward.4} parent=87 // pred_check
        %p9411 = pneg %p370
      $region90: #{forward.4} parent=87 // pred_check_branch
        %9413 = sbr.rel (%p9411) target = $region92
      $region91: #{forward.4} parent=87 // pred_region
        %p9414 = scmp.lt.s32.totalorder %s27, 1
        %s9415 = scalar_select %p9414, %s27, 1
        %s9416 = smul.addr %s9415, 4
        %s9417 = scalar_lea.vmem %s15, %s9416
      $region92: #{forward.4} parent=87 // pred_fallthru
        _
    $region88: #{forward.4} parent=5 // pred_fallthru
      _
  $region6: #{forward.4} parent=0 // loop_footer
    %s25 = sadd.s32 1, %s21
  $region7: #{forward.4} parent=0 // loop_footer_branch
    %20 = sbr.rel target = $region3
  $region8: #{forward.4} parent=0 // loop_exit
    _

</llo_original>
